<compile_context>
chip_gen: v7x
topology: tpu7x:2x2x1
jax: 0.10.0
libtpu: 0.0.40
codegen_flags: <defaults>
</compile_context>

<pallas_src>
import jax
import jax.numpy as jnp
from jax.experimental import pallas as pl
from jax.experimental.pallas import tpu as pltpu


# ------------------------------- fused kernel --------------------------------
def _make_kernel(num_layers, T, B):
    def kernel(*refs):
        # refs = [x_flat, (wih, whh, b) * num_layers, fc1_w, fc1_b, fc2_w, fc2_b,
        #         out, seq_scratch]
        x_ref = refs[0]
        layer_refs = refs[1:1 + 3 * num_layers]
        fc1_w_ref, fc1_b_ref, fc2_w_ref, fc2_b_ref = refs[1 + 3 * num_layers:5 + 3 * num_layers]
        out_ref = refs[5 + 3 * num_layers]
        seq_sc = refs[6 + 3 * num_layers]

        f32 = jnp.float32
        H = layer_refs[1].shape[-1]                       # whh of layer 0: (4, H, H)

        x_flat = x_ref[...]                               # (T*B, D), time-major rows

        # Layer-0 input projection + bias for ALL timesteps, per gate.  One well-shaped
        # (T*B, D)@(D, H) matmul per gate, off the sequential critical path.
        wih0 = layer_refs[0]
        b0 = layer_refs[2]
        gx0 = [
            jnp.dot(x_flat, wih0[g], preferred_element_type=f32) + b0[g]
            for g in range(4)
        ]                                                  # 4 x (T*B, H)

        # Hoisted broadcast of upper-layer biases (avoid re-broadcasting inside the loop).
        b_up = {
            l: [jnp.broadcast_to(layer_refs[3 * l + 2][g], (B, H)) for g in range(4)]
            for l in range(1, num_layers)
        }

        h = [jnp.zeros((B, H), f32) for _ in range(num_layers)]
        c = [jnp.zeros((B, H), f32) for _ in range(num_layers)]
        xin = [None] * num_layers                          # xin[l]: layer-l input (B, H)

        # Wavefront over (layer, time): at step s, layer l processes time t = s - l.
        # Layers are visited in DECREASING l so layer l reads layer l-1's time-t output
        # written at step s-1; work of different layers within a step is independent and
        # interleaves freely in the VLIW schedule (static unroll = one big basic block).
        for s in range(T + num_layers - 1):
            for l in range(num_layers - 1, -1, -1):
                t = s - l
                if t < 0 or t >= T:
                    continue
                whh = layer_refs[3 * l + 1]                # (4, H, H)
                if l == 0:
                    pre = [
                        gx0[g][t * B:(t + 1) * B]
                        + jnp.dot(h[0], whh[g], preferred_element_type=f32)
                        for g in range(4)
                    ]
                else:
                    wih = layer_refs[3 * l + 0]            # (4, H, H)
                    pre = [
                        jnp.dot(xin[l], wih[g], preferred_element_type=f32)
                        + jnp.dot(h[l], whh[g], preferred_element_type=f32)
                        + b_up[l][g]
                        for g in range(4)
                    ]
                # gate order: i, f, g, o (PyTorch convention)
                i_g = jax.nn.sigmoid(pre[0])
                f_g = jax.nn.sigmoid(pre[1])
                g_g = jnp.tanh(pre[2])
                o_g = jax.nn.sigmoid(pre[3])
                c[l] = f_g * c[l] + i_g * g_g
                h[l] = o_g * jnp.tanh(c[l])
                if l == num_layers - 1:
                    seq_sc[t * B:(t + 1) * B, :] = h[l]    # collect top-layer hidden seq
                else:
                    xin[l + 1] = h[l]                      # feed next layer (next step)

        # fc1 -> ReLU -> fc2 on the whole (T*B, H) hidden sequence at once.
        seq = seq_sc[...]
        a = jnp.maximum(
            jnp.dot(seq, fc1_w_ref[...], preferred_element_type=f32) + fc1_b_ref[...],
            0.0,
        )
        out_ref[...] = (
            jnp.dot(a, fc2_w_ref[...], preferred_element_type=f32) + fc2_b_ref[...]
        )                                                  # lane-dense (T*B, 128) store

    return kernel


# ------------------------------ full forward ----------------------------------
@jax.jit
def lstm_model_forward(x, params):
    """x: (B, T, 8) batch-first float32 -> (B, T, 1)."""
    B, T, D = x.shape
    num_layers = len(params["layers"])
    H = params["layers"][0]["whh"].shape[-1]
    F1 = params["fc2_w_pad"].shape[-1]                     # 128 (lane-dense output width)

    # Time-major flatten so per-timestep rows are contiguous inside the kernel.
    x_flat = jnp.transpose(x, (1, 0, 2)).reshape(T * B, D)

    weight_args = []
    in_specs = [pl.BlockSpec((T * B, D), lambda i: (0, 0))]
    for lp in params["layers"]:
        for name in ("wih", "whh", "b"):
            w = lp[name]
            weight_args.append(w)
            in_specs.append(pl.BlockSpec(w.shape, lambda i: (0, 0, 0)))
    for name in ("fc1_w_t", "fc1_b", "fc2_w_pad", "fc2_b_pad"):
        w = params[name]
        weight_args.append(w)
        in_specs.append(pl.BlockSpec(w.shape, lambda i: (0, 0)))

    out_pad = pl.pallas_call(
        _make_kernel(num_layers, T, B),
        out_shape=jax.ShapeDtypeStruct((T * B, F1), jnp.float32),
        grid_spec=pltpu.PrefetchScalarGridSpec(
            num_scalar_prefetch=0,
            grid=(1,),                                     # whole problem in one invocation
            in_specs=in_specs,
            out_specs=pl.BlockSpec((T * B, F1), lambda i: (0, 0)),
            scratch_shapes=[pltpu.VMEM((T * B, H), jnp.float32)],
        ),
        compiler_params=pltpu.CompilerParams(
            dimension_semantics=("arbitrary",),
        ),
    )(x_flat, *weight_args)

    # (T*B, 128) -> (B, T, 1): slice the real fc2 column and restore batch-first order.
    return jnp.transpose(out_pad.reshape(T, B, F1), (1, 0, 2))[:, :, :1]


# --------------------------------- params -------------------------------------
def init_params(key, input_size, hidden_size, num_layers):
    H = hidden_size
    params = {"layers": []}
    k_lstm = 1.0 / float(H) ** 0.5
    for layer in range(num_layers):
        d_in = input_size if layer == 0 else H
        key, k1, k2, k3, k4 = jax.random.split(key, 5)
        # PyTorch layout: (4H, d_in)/(4H, H)/(4H,) with gate chunks [i, f, g, o].
        w_ih = jax.random.uniform(k1, (4 * H, d_in), jnp.float32, -k_lstm, k_lstm)
        w_hh = jax.random.uniform(k2, (4 * H, H), jnp.float32, -k_lstm, k_lstm)
        b_ih = jax.random.uniform(k3, (4 * H,), jnp.float32, -k_lstm, k_lstm)
        b_hh = jax.random.uniform(k4, (4 * H,), jnp.float32, -k_lstm, k_lstm)
        params["layers"].append(
            {
                "wih": jnp.transpose(w_ih.reshape(4, H, d_in), (0, 2, 1)),  # (4, d_in, H)
                "whh": jnp.transpose(w_hh.reshape(4, H, H), (0, 2, 1)),     # (4, H, H)
                "b": (b_ih + b_hh).reshape(4, 1, H),                        # (4, 1, H)
            }
        )
    key, k1, k2, k3, k4 = jax.random.split(key, 5)
    kb1 = 1.0 / float(H) ** 0.5
    fc1_w = jax.random.uniform(k1, (128, H), jnp.float32, -kb1, kb1)
    fc1_b = jax.random.uniform(k2, (128,), jnp.float32, -kb1, kb1)
    kb2 = 1.0 / float(128) ** 0.5
    fc2_w = jax.random.uniform(k3, (1, 128), jnp.float32, -kb2, kb2)
    fc2_b = jax.random.uniform(k4, (1,), jnp.float32, -kb2, kb2)
    params["fc1_w_t"] = fc1_w.T                            # (H, 128)
    params["fc1_b"] = fc1_b.reshape(1, 128)
    # Zero-pad fc2 to 128 output lanes so the kernel's final store is lane-dense.
    params["fc2_w_pad"] = jnp.zeros((128, 128), jnp.float32).at[:, 0].set(fc2_w[0])
    params["fc2_b_pad"] = jnp.zeros((1, 128), jnp.float32).at[0, 0].set(fc2_b[0])
    return params


# ------------------------------ pure-JAX reference -----------------------------
def _reference_forward(x, params):
    hp = jax.lax.Precision.HIGHEST
    B, T, _ = x.shape
    seq = x
    for lp in params["layers"]:
        H = lp["whh"].shape[-1]
        h = jnp.zeros((B, H), jnp.float32)
        c = jnp.zeros((B, H), jnp.float32)
        outs = []
        for t in range(T):
            xt = seq[:, t, :]
            pre = [
                jnp.dot(xt, lp["wih"][g], precision=hp)
                + jnp.dot(h, lp["whh"][g], precision=hp)
                + lp["b"][g]
                for g in range(4)
            ]
            i = jax.nn.sigmoid(pre[0])
            f = jax.nn.sigmoid(pre[1])
            g_ = jnp.tanh(pre[2])
            o = jax.nn.sigmoid(pre[3])
            c = f * c + i * g_
            h = o * jnp.tanh(c)
            outs.append(h)
        seq = jnp.stack(outs, axis=1)                      # (B, T, H)
    a = jnp.maximum(jnp.dot(seq, params["fc1_w_t"], precision=hp) + params["fc1_b"], 0.0)
    out = jnp.dot(a, params["fc2_w_pad"], precision=hp) + params["fc2_b_pad"]
    return out[:, :, :1]


if __name__ == "__main__":
    hidden_size = 32
    num_layers = 2
    batch, seq_len, input_size = 2, 8, 8

    key = jax.random.PRNGKey(0)
    key, kx, kp = jax.random.split(key, 3)
    x = jax.random.normal(kx, (batch, seq_len, input_size), jnp.float32)
    params = init_params(kp, input_size, hidden_size, num_layers)

    out = lstm_model_forward(x, params)
    jax.block_until_ready(out)
    assert out.shape == (batch, seq_len, 1), out.shape

    ref = _reference_forward(x, params)
    max_err = float(jnp.max(jnp.abs(out - ref)))
    assert max_err < 1e-3, f"mismatch vs reference: max abs err {max_err}"

    print("KERNEL_OK")
</pallas_src>

<mosaic_0001>
module attributes {stable_mosaic.version = 11 : i64} {
  func.func @kernel(%arg0: i32, %arg1: memref<16x8xf32, #tpu.memory_space<vmem>>, %arg2: memref<4x8x32xf32, #tpu.memory_space<vmem>>, %arg3: memref<4x32x32xf32, #tpu.memory_space<vmem>>, %arg4: memref<4x1x32xf32, #tpu.memory_space<vmem>>, %arg5: memref<4x32x32xf32, #tpu.memory_space<vmem>>, %arg6: memref<4x32x32xf32, #tpu.memory_space<vmem>>, %arg7: memref<4x1x32xf32, #tpu.memory_space<vmem>>, %arg8: memref<32x128xf32, #tpu.memory_space<vmem>>, %arg9: memref<1x128xf32, #tpu.memory_space<vmem>>, %arg10: memref<128x128xf32, #tpu.memory_space<vmem>>, %arg11: memref<1x128xf32, #tpu.memory_space<vmem>>, %arg12: memref<16x128xf32, #tpu.memory_space<vmem>>, %arg13: memref<16x32xf32, #tpu.memory_space<vmem>>) attributes {dimension_semantics = [#tpu.dimension_semantics<arbitrary>], iteration_bounds = array<i64: 1>, scalar_prefetch = 0 : i64, scratch_operands = 1 : i64, tpu.core_type = #tpu.core_type<tc>, window_params = [{pipeline_mode = #tpu.pipeline_mode<synchronous>, transform_indices = @transform_0, window_bounds = array<i64: 16, 8>}, {pipeline_mode = #tpu.pipeline_mode<synchronous>, transform_indices = @transform_1, window_bounds = array<i64: 4, 8, 32>}, {pipeline_mode = #tpu.pipeline_mode<synchronous>, transform_indices = @transform_2, window_bounds = array<i64: 4, 32, 32>}, {pipeline_mode = #tpu.pipeline_mode<synchronous>, transform_indices = @transform_3, window_bounds = array<i64: 4, 1, 32>}, {pipeline_mode = #tpu.pipeline_mode<synchronous>, transform_indices = @transform_4, window_bounds = array<i64: 4, 32, 32>}, {pipeline_mode = #tpu.pipeline_mode<synchronous>, transform_indices = @transform_5, window_bounds = array<i64: 4, 32, 32>}, {pipeline_mode = #tpu.pipeline_mode<synchronous>, transform_indices = @transform_6, window_bounds = array<i64: 4, 1, 32>}, {pipeline_mode = #tpu.pipeline_mode<synchronous>, transform_indices = @transform_7, window_bounds = array<i64: 32, 128>}, {pipeline_mode = #tpu.pipeline_mode<synchronous>, transform_indices = @transform_8, window_bounds = array<i64: 1, 128>}, {pipeline_mode = #tpu.pipeline_mode<synchronous>, transform_indices = @transform_9, window_bounds = array<i64: 128, 128>}, {pipeline_mode = #tpu.pipeline_mode<synchronous>, transform_indices = @transform_10, window_bounds = array<i64: 1, 128>}, {pipeline_mode = #tpu.pipeline_mode<synchronous>, transform_indices = @transform_11, window_bounds = array<i64: 16, 128>}]} {
    %c0 = arith.constant 0 : index
    %c0_0 = arith.constant 0 : index
    %0 = vector.load %arg1[%c0, %c0_0] : memref<16x8xf32, #tpu.memory_space<vmem>>, vector<16x8xf32>
    %c0_1 = arith.constant 0 : index
    %c0_2 = arith.constant 0 : index
    %c0_3 = arith.constant 0 : index
    %1 = vector.load %arg2[%c0_1, %c0_2, %c0_3] : memref<4x8x32xf32, #tpu.memory_space<vmem>>, vector<1x8x32xf32>
    %2 = vector.shape_cast %1 : vector<1x8x32xf32> to vector<8x32xf32>
    %cst = arith.constant dense<0.000000e+00> : vector<16x32xf32>
    %3 = tpu.matmul %0, %2, %cst {dimension_numbers = #tpu.dot_dimension_numbers<[1], [0], [0], [1], [0, 0, 1, 1], [], []>} : vector<16x8xf32>, vector<8x32xf32>, vector<16x32xf32> -> vector<16x32xf32>
    %c0_4 = arith.constant 0 : index
    %c0_5 = arith.constant 0 : index
    %c0_6 = arith.constant 0 : index
    %4 = vector.load %arg4[%c0_4, %c0_5, %c0_6] : memref<4x1x32xf32, #tpu.memory_space<vmem>>, vector<1x1x32xf32>
    %5 = vector.shape_cast %4 : vector<1x1x32xf32> to vector<1x32xf32>
    %6 = vector.broadcast %5 : vector<1x32xf32> to vector<16x32xf32>
    %7 = arith.addf %3, %6 : vector<16x32xf32>
    %c1 = arith.constant 1 : index
    %c0_7 = arith.constant 0 : index
    %c0_8 = arith.constant 0 : index
    %8 = vector.load %arg2[%c1, %c0_7, %c0_8] : memref<4x8x32xf32, #tpu.memory_space<vmem>>, vector<1x8x32xf32>
    %9 = vector.shape_cast %8 : vector<1x8x32xf32> to vector<8x32xf32>
    %cst_9 = arith.constant dense<0.000000e+00> : vector<16x32xf32>
    %10 = tpu.matmul %0, %9, %cst_9 {dimension_numbers = #tpu.dot_dimension_numbers<[1], [0], [0], [1], [0, 0, 1, 1], [], []>} : vector<16x8xf32>, vector<8x32xf32>, vector<16x32xf32> -> vector<16x32xf32>
    %c1_10 = arith.constant 1 : index
    %c0_11 = arith.constant 0 : index
    %c0_12 = arith.constant 0 : index
    %11 = vector.load %arg4[%c1_10, %c0_11, %c0_12] : memref<4x1x32xf32, #tpu.memory_space<vmem>>, vector<1x1x32xf32>
    %12 = vector.shape_cast %11 : vector<1x1x32xf32> to vector<1x32xf32>
    %13 = vector.broadcast %12 : vector<1x32xf32> to vector<16x32xf32>
    %14 = arith.addf %10, %13 : vector<16x32xf32>
    %c2 = arith.constant 2 : index
    %c0_13 = arith.constant 0 : index
    %c0_14 = arith.constant 0 : index
    %15 = vector.load %arg2[%c2, %c0_13, %c0_14] : memref<4x8x32xf32, #tpu.memory_space<vmem>>, vector<1x8x32xf32>
    %16 = vector.shape_cast %15 : vector<1x8x32xf32> to vector<8x32xf32>
    %cst_15 = arith.constant dense<0.000000e+00> : vector<16x32xf32>
    %17 = tpu.matmul %0, %16, %cst_15 {dimension_numbers = #tpu.dot_dimension_numbers<[1], [0], [0], [1], [0, 0, 1, 1], [], []>} : vector<16x8xf32>, vector<8x32xf32>, vector<16x32xf32> -> vector<16x32xf32>
    %c2_16 = arith.constant 2 : index
    %c0_17 = arith.constant 0 : index
    %c0_18 = arith.constant 0 : index
    %18 = vector.load %arg4[%c2_16, %c0_17, %c0_18] : memref<4x1x32xf32, #tpu.memory_space<vmem>>, vector<1x1x32xf32>
    %19 = vector.shape_cast %18 : vector<1x1x32xf32> to vector<1x32xf32>
    %20 = vector.broadcast %19 : vector<1x32xf32> to vector<16x32xf32>
    %21 = arith.addf %17, %20 : vector<16x32xf32>
    %c3 = arith.constant 3 : index
    %c0_19 = arith.constant 0 : index
    %c0_20 = arith.constant 0 : index
    %22 = vector.load %arg2[%c3, %c0_19, %c0_20] : memref<4x8x32xf32, #tpu.memory_space<vmem>>, vector<1x8x32xf32>
    %23 = vector.shape_cast %22 : vector<1x8x32xf32> to vector<8x32xf32>
    %cst_21 = arith.constant dense<0.000000e+00> : vector<16x32xf32>
    %24 = tpu.matmul %0, %23, %cst_21 {dimension_numbers = #tpu.dot_dimension_numbers<[1], [0], [0], [1], [0, 0, 1, 1], [], []>} : vector<16x8xf32>, vector<8x32xf32>, vector<16x32xf32> -> vector<16x32xf32>
    %c3_22 = arith.constant 3 : index
    %c0_23 = arith.constant 0 : index
    %c0_24 = arith.constant 0 : index
    %25 = vector.load %arg4[%c3_22, %c0_23, %c0_24] : memref<4x1x32xf32, #tpu.memory_space<vmem>>, vector<1x1x32xf32>
    %26 = vector.shape_cast %25 : vector<1x1x32xf32> to vector<1x32xf32>
    %27 = vector.broadcast %26 : vector<1x32xf32> to vector<16x32xf32>
    %28 = arith.addf %24, %27 : vector<16x32xf32>
    %c0_25 = arith.constant 0 : index
    %c0_26 = arith.constant 0 : index
    %c0_27 = arith.constant 0 : index
    %29 = vector.load %arg7[%c0_25, %c0_26, %c0_27] : memref<4x1x32xf32, #tpu.memory_space<vmem>>, vector<1x1x32xf32>
    %30 = vector.shape_cast %29 : vector<1x1x32xf32> to vector<1x32xf32>
    %31 = vector.shape_cast %30 : vector<1x32xf32> to vector<1x32xf32>
    %32 = vector.broadcast %31 : vector<1x32xf32> to vector<2x32xf32>
    %c1_28 = arith.constant 1 : index
    %c0_29 = arith.constant 0 : index
    %c0_30 = arith.constant 0 : index
    %33 = vector.load %arg7[%c1_28, %c0_29, %c0_30] : memref<4x1x32xf32, #tpu.memory_space<vmem>>, vector<1x1x32xf32>
    %34 = vector.shape_cast %33 : vector<1x1x32xf32> to vector<1x32xf32>
    %35 = vector.shape_cast %34 : vector<1x32xf32> to vector<1x32xf32>
    %36 = vector.broadcast %35 : vector<1x32xf32> to vector<2x32xf32>
    %c2_31 = arith.constant 2 : index
    %c0_32 = arith.constant 0 : index
    %c0_33 = arith.constant 0 : index
    %37 = vector.load %arg7[%c2_31, %c0_32, %c0_33] : memref<4x1x32xf32, #tpu.memory_space<vmem>>, vector<1x1x32xf32>
    %38 = vector.shape_cast %37 : vector<1x1x32xf32> to vector<1x32xf32>
    %39 = vector.shape_cast %38 : vector<1x32xf32> to vector<1x32xf32>
    %40 = vector.broadcast %39 : vector<1x32xf32> to vector<2x32xf32>
    %c3_34 = arith.constant 3 : index
    %c0_35 = arith.constant 0 : index
    %c0_36 = arith.constant 0 : index
    %41 = vector.load %arg7[%c3_34, %c0_35, %c0_36] : memref<4x1x32xf32, #tpu.memory_space<vmem>>, vector<1x1x32xf32>
    %42 = vector.shape_cast %41 : vector<1x1x32xf32> to vector<1x32xf32>
    %43 = vector.shape_cast %42 : vector<1x32xf32> to vector<1x32xf32>
    %44 = vector.broadcast %43 : vector<1x32xf32> to vector<2x32xf32>
    %cst_37 = arith.constant 0.000000e+00 : f32
    %45 = vector.broadcast %cst_37 : f32 to vector<2x32xf32>
    %cst_38 = arith.constant 0.000000e+00 : f32
    %46 = vector.broadcast %cst_38 : f32 to vector<2x32xf32>
    %cst_39 = arith.constant 0.000000e+00 : f32
    %47 = vector.broadcast %cst_39 : f32 to vector<2x32xf32>
    %cst_40 = arith.constant 0.000000e+00 : f32
    %48 = vector.broadcast %cst_40 : f32 to vector<2x32xf32>
    %49 = vector.extract_strided_slice %7 {offsets = [0, 0], sizes = [2, 32], strides = [1, 1]} : vector<16x32xf32> to vector<2x32xf32>
    %c0_41 = arith.constant 0 : index
    %c0_42 = arith.constant 0 : index
    %c0_43 = arith.constant 0 : index
    %50 = vector.load %arg3[%c0_41, %c0_42, %c0_43] : memref<4x32x32xf32, #tpu.memory_space<vmem>>, vector<1x32x32xf32>
    %51 = vector.shape_cast %50 : vector<1x32x32xf32> to vector<32x32xf32>
    %cst_44 = arith.constant dense<0.000000e+00> : vector<2x32xf32>
    %52 = tpu.matmul %45, %51, %cst_44 {dimension_numbers = #tpu.dot_dimension_numbers<[1], [0], [0], [1], [0, 0, 1, 1], [], []>} : vector<2x32xf32>, vector<32x32xf32>, vector<2x32xf32> -> vector<2x32xf32>
    %53 = arith.addf %49, %52 : vector<2x32xf32>
    %54 = vector.extract_strided_slice %14 {offsets = [0, 0], sizes = [2, 32], strides = [1, 1]} : vector<16x32xf32> to vector<2x32xf32>
    %c1_45 = arith.constant 1 : index
    %c0_46 = arith.constant 0 : index
    %c0_47 = arith.constant 0 : index
    %55 = vector.load %arg3[%c1_45, %c0_46, %c0_47] : memref<4x32x32xf32, #tpu.memory_space<vmem>>, vector<1x32x32xf32>
    %56 = vector.shape_cast %55 : vector<1x32x32xf32> to vector<32x32xf32>
    %cst_48 = arith.constant dense<0.000000e+00> : vector<2x32xf32>
    %57 = tpu.matmul %45, %56, %cst_48 {dimension_numbers = #tpu.dot_dimension_numbers<[1], [0], [0], [1], [0, 0, 1, 1], [], []>} : vector<2x32xf32>, vector<32x32xf32>, vector<2x32xf32> -> vector<2x32xf32>
    %58 = arith.addf %54, %57 : vector<2x32xf32>
    %59 = vector.extract_strided_slice %21 {offsets = [0, 0], sizes = [2, 32], strides = [1, 1]} : vector<16x32xf32> to vector<2x32xf32>
    %c2_49 = arith.constant 2 : index
    %c0_50 = arith.constant 0 : index
    %c0_51 = arith.constant 0 : index
    %60 = vector.load %arg3[%c2_49, %c0_50, %c0_51] : memref<4x32x32xf32, #tpu.memory_space<vmem>>, vector<1x32x32xf32>
    %61 = vector.shape_cast %60 : vector<1x32x32xf32> to vector<32x32xf32>
    %cst_52 = arith.constant dense<0.000000e+00> : vector<2x32xf32>
    %62 = tpu.matmul %45, %61, %cst_52 {dimension_numbers = #tpu.dot_dimension_numbers<[1], [0], [0], [1], [0, 0, 1, 1], [], []>} : vector<2x32xf32>, vector<32x32xf32>, vector<2x32xf32> -> vector<2x32xf32>
    %63 = arith.addf %59, %62 : vector<2x32xf32>
    %64 = vector.extract_strided_slice %28 {offsets = [0, 0], sizes = [2, 32], strides = [1, 1]} : vector<16x32xf32> to vector<2x32xf32>
    %c3_53 = arith.constant 3 : index
    %c0_54 = arith.constant 0 : index
    %c0_55 = arith.constant 0 : index
    %65 = vector.load %arg3[%c3_53, %c0_54, %c0_55] : memref<4x32x32xf32, #tpu.memory_space<vmem>>, vector<1x32x32xf32>
    %66 = vector.shape_cast %65 : vector<1x32x32xf32> to vector<32x32xf32>
    %cst_56 = arith.constant dense<0.000000e+00> : vector<2x32xf32>
    %67 = tpu.matmul %45, %66, %cst_56 {dimension_numbers = #tpu.dot_dimension_numbers<[1], [0], [0], [1], [0, 0, 1, 1], [], []>} : vector<2x32xf32>, vector<32x32xf32>, vector<2x32xf32> -> vector<2x32xf32>
    %68 = arith.addf %64, %67 : vector<2x32xf32>
    %69 = arith.negf %53 : vector<2x32xf32>
    %70 = math.exp %69 : vector<2x32xf32>
    %cst_57 = arith.constant 1.000000e+00 : f32
    %71 = vector.broadcast %cst_57 : f32 to vector<2x32xf32>
    %72 = arith.addf %71, %70 : vector<2x32xf32>
    %73 = arith.divf %71, %72 : vector<2x32xf32>
    %74 = arith.negf %58 : vector<2x32xf32>
    %75 = math.exp %74 : vector<2x32xf32>
    %cst_58 = arith.constant 1.000000e+00 : f32
    %76 = vector.broadcast %cst_58 : f32 to vector<2x32xf32>
    %77 = arith.addf %76, %75 : vector<2x32xf32>
    %78 = arith.divf %76, %77 : vector<2x32xf32>
    %79 = math.tanh %63 : vector<2x32xf32>
    %80 = arith.negf %68 : vector<2x32xf32>
    %81 = math.exp %80 : vector<2x32xf32>
    %cst_59 = arith.constant 1.000000e+00 : f32
    %82 = vector.broadcast %cst_59 : f32 to vector<2x32xf32>
    %83 = arith.addf %82, %81 : vector<2x32xf32>
    %84 = arith.divf %82, %83 : vector<2x32xf32>
    %85 = arith.mulf %78, %47 : vector<2x32xf32>
    %86 = arith.mulf %73, %79 : vector<2x32xf32>
    %87 = arith.addf %85, %86 : vector<2x32xf32>
    %88 = math.tanh %87 : vector<2x32xf32>
    %89 = arith.mulf %84, %88 : vector<2x32xf32>
    %c0_60 = arith.constant 0 : index
    %c0_61 = arith.constant 0 : index
    %c0_62 = arith.constant 0 : index
    %90 = vector.load %arg5[%c0_60, %c0_61, %c0_62] : memref<4x32x32xf32, #tpu.memory_space<vmem>>, vector<1x32x32xf32>
    %91 = vector.shape_cast %90 : vector<1x32x32xf32> to vector<32x32xf32>
    %cst_63 = arith.constant dense<0.000000e+00> : vector<2x32xf32>
    %92 = tpu.matmul %89, %91, %cst_63 {dimension_numbers = #tpu.dot_dimension_numbers<[1], [0], [0], [1], [0, 0, 1, 1], [], []>} : vector<2x32xf32>, vector<32x32xf32>, vector<2x32xf32> -> vector<2x32xf32>
    %c0_64 = arith.constant 0 : index
    %c0_65 = arith.constant 0 : index
    %c0_66 = arith.constant 0 : index
    %93 = vector.load %arg6[%c0_64, %c0_65, %c0_66] : memref<4x32x32xf32, #tpu.memory_space<vmem>>, vector<1x32x32xf32>
    %94 = vector.shape_cast %93 : vector<1x32x32xf32> to vector<32x32xf32>
    %cst_67 = arith.constant dense<0.000000e+00> : vector<2x32xf32>
    %95 = tpu.matmul %46, %94, %cst_67 {dimension_numbers = #tpu.dot_dimension_numbers<[1], [0], [0], [1], [0, 0, 1, 1], [], []>} : vector<2x32xf32>, vector<32x32xf32>, vector<2x32xf32> -> vector<2x32xf32>
    %96 = arith.addf %92, %95 : vector<2x32xf32>
    %97 = arith.addf %96, %32 : vector<2x32xf32>
    %c1_68 = arith.constant 1 : index
    %c0_69 = arith.constant 0 : index
    %c0_70 = arith.constant 0 : index
    %98 = vector.load %arg5[%c1_68, %c0_69, %c0_70] : memref<4x32x32xf32, #tpu.memory_space<vmem>>, vector<1x32x32xf32>
    %99 = vector.shape_cast %98 : vector<1x32x32xf32> to vector<32x32xf32>
    %cst_71 = arith.constant dense<0.000000e+00> : vector<2x32xf32>
    %100 = tpu.matmul %89, %99, %cst_71 {dimension_numbers = #tpu.dot_dimension_numbers<[1], [0], [0], [1], [0, 0, 1, 1], [], []>} : vector<2x32xf32>, vector<32x32xf32>, vector<2x32xf32> -> vector<2x32xf32>
    %c1_72 = arith.constant 1 : index
    %c0_73 = arith.constant 0 : index
    %c0_74 = arith.constant 0 : index
    %101 = vector.load %arg6[%c1_72, %c0_73, %c0_74] : memref<4x32x32xf32, #tpu.memory_space<vmem>>, vector<1x32x32xf32>
    %102 = vector.shape_cast %101 : vector<1x32x32xf32> to vector<32x32xf32>
    %cst_75 = arith.constant dense<0.000000e+00> : vector<2x32xf32>
    %103 = tpu.matmul %46, %102, %cst_75 {dimension_numbers = #tpu.dot_dimension_numbers<[1], [0], [0], [1], [0, 0, 1, 1], [], []>} : vector<2x32xf32>, vector<32x32xf32>, vector<2x32xf32> -> vector<2x32xf32>
    %104 = arith.addf %100, %103 : vector<2x32xf32>
    %105 = arith.addf %104, %36 : vector<2x32xf32>
    %c2_76 = arith.constant 2 : index
    %c0_77 = arith.constant 0 : index
    %c0_78 = arith.constant 0 : index
    %106 = vector.load %arg5[%c2_76, %c0_77, %c0_78] : memref<4x32x32xf32, #tpu.memory_space<vmem>>, vector<1x32x32xf32>
    %107 = vector.shape_cast %106 : vector<1x32x32xf32> to vector<32x32xf32>
    %cst_79 = arith.constant dense<0.000000e+00> : vector<2x32xf32>
    %108 = tpu.matmul %89, %107, %cst_79 {dimension_numbers = #tpu.dot_dimension_numbers<[1], [0], [0], [1], [0, 0, 1, 1], [], []>} : vector<2x32xf32>, vector<32x32xf32>, vector<2x32xf32> -> vector<2x32xf32>
    %c2_80 = arith.constant 2 : index
    %c0_81 = arith.constant 0 : index
    %c0_82 = arith.constant 0 : index
    %109 = vector.load %arg6[%c2_80, %c0_81, %c0_82] : memref<4x32x32xf32, #tpu.memory_space<vmem>>, vector<1x32x32xf32>
    %110 = vector.shape_cast %109 : vector<1x32x32xf32> to vector<32x32xf32>
    %cst_83 = arith.constant dense<0.000000e+00> : vector<2x32xf32>
    %111 = tpu.matmul %46, %110, %cst_83 {dimension_numbers = #tpu.dot_dimension_numbers<[1], [0], [0], [1], [0, 0, 1, 1], [], []>} : vector<2x32xf32>, vector<32x32xf32>, vector<2x32xf32> -> vector<2x32xf32>
    %112 = arith.addf %108, %111 : vector<2x32xf32>
    %113 = arith.addf %112, %40 : vector<2x32xf32>
    %c3_84 = arith.constant 3 : index
    %c0_85 = arith.constant 0 : index
    %c0_86 = arith.constant 0 : index
    %114 = vector.load %arg5[%c3_84, %c0_85, %c0_86] : memref<4x32x32xf32, #tpu.memory_space<vmem>>, vector<1x32x32xf32>
    %115 = vector.shape_cast %114 : vector<1x32x32xf32> to vector<32x32xf32>
    %cst_87 = arith.constant dense<0.000000e+00> : vector<2x32xf32>
    %116 = tpu.matmul %89, %115, %cst_87 {dimension_numbers = #tpu.dot_dimension_numbers<[1], [0], [0], [1], [0, 0, 1, 1], [], []>} : vector<2x32xf32>, vector<32x32xf32>, vector<2x32xf32> -> vector<2x32xf32>
    %c3_88 = arith.constant 3 : index
    %c0_89 = arith.constant 0 : index
    %c0_90 = arith.constant 0 : index
    %117 = vector.load %arg6[%c3_88, %c0_89, %c0_90] : memref<4x32x32xf32, #tpu.memory_space<vmem>>, vector<1x32x32xf32>
    %118 = vector.shape_cast %117 : vector<1x32x32xf32> to vector<32x32xf32>
    %cst_91 = arith.constant dense<0.000000e+00> : vector<2x32xf32>
    %119 = tpu.matmul %46, %118, %cst_91 {dimension_numbers = #tpu.dot_dimension_numbers<[1], [0], [0], [1], [0, 0, 1, 1], [], []>} : vector<2x32xf32>, vector<32x32xf32>, vector<2x32xf32> -> vector<2x32xf32>
    %120 = arith.addf %116, %119 : vector<2x32xf32>
    %121 = arith.addf %120, %44 : vector<2x32xf32>
    %122 = arith.negf %97 : vector<2x32xf32>
    %123 = math.exp %122 : vector<2x32xf32>
    %cst_92 = arith.constant 1.000000e+00 : f32
    %124 = vector.broadcast %cst_92 : f32 to vector<2x32xf32>
    %125 = arith.addf %124, %123 : vector<2x32xf32>
    %126 = arith.divf %124, %125 : vector<2x32xf32>
    %127 = arith.negf %105 : vector<2x32xf32>
    %128 = math.exp %127 : vector<2x32xf32>
    %cst_93 = arith.constant 1.000000e+00 : f32
    %129 = vector.broadcast %cst_93 : f32 to vector<2x32xf32>
    %130 = arith.addf %129, %128 : vector<2x32xf32>
    %131 = arith.divf %129, %130 : vector<2x32xf32>
    %132 = math.tanh %113 : vector<2x32xf32>
    %133 = arith.negf %121 : vector<2x32xf32>
    %134 = math.exp %133 : vector<2x32xf32>
    %cst_94 = arith.constant 1.000000e+00 : f32
    %135 = vector.broadcast %cst_94 : f32 to vector<2x32xf32>
    %136 = arith.addf %135, %134 : vector<2x32xf32>
    %137 = arith.divf %135, %136 : vector<2x32xf32>
    %138 = arith.mulf %131, %48 : vector<2x32xf32>
    %139 = arith.mulf %126, %132 : vector<2x32xf32>
    %140 = arith.addf %138, %139 : vector<2x32xf32>
    %141 = math.tanh %140 : vector<2x32xf32>
    %142 = arith.mulf %137, %141 : vector<2x32xf32>
    %c0_95 = arith.constant 0 : index
    %c0_96 = arith.constant 0 : index
    %143 = vector.load %arg13[%c0_95, %c0_96] : memref<16x32xf32, #tpu.memory_space<vmem>>, vector<2x32xf32>
    tpu.vector_store %arg13[%c0_95, %c0_96], %142 {strides = array<i32>} : memref<16x32xf32, #tpu.memory_space<vmem>>, vector<2x32xf32>,
    %144 = vector.extract_strided_slice %7 {offsets = [2, 0], sizes = [2, 32], strides = [1, 1]} : vector<16x32xf32> to vector<2x32xf32>
    %c0_97 = arith.constant 0 : index
    %c0_98 = arith.constant 0 : index
    %c0_99 = arith.constant 0 : index
    %145 = vector.load %arg3[%c0_97, %c0_98, %c0_99] : memref<4x32x32xf32, #tpu.memory_space<vmem>>, vector<1x32x32xf32>
    %146 = vector.shape_cast %145 : vector<1x32x32xf32> to vector<32x32xf32>
    %cst_100 = arith.constant dense<0.000000e+00> : vector<2x32xf32>
    %147 = tpu.matmul %89, %146, %cst_100 {dimension_numbers = #tpu.dot_dimension_numbers<[1], [0], [0], [1], [0, 0, 1, 1], [], []>} : vector<2x32xf32>, vector<32x32xf32>, vector<2x32xf32> -> vector<2x32xf32>
    %148 = arith.addf %144, %147 : vector<2x32xf32>
    %149 = vector.extract_strided_slice %14 {offsets = [2, 0], sizes = [2, 32], strides = [1, 1]} : vector<16x32xf32> to vector<2x32xf32>
    %c1_101 = arith.constant 1 : index
    %c0_102 = arith.constant 0 : index
    %c0_103 = arith.constant 0 : index
    %150 = vector.load %arg3[%c1_101, %c0_102, %c0_103] : memref<4x32x32xf32, #tpu.memory_space<vmem>>, vector<1x32x32xf32>
    %151 = vector.shape_cast %150 : vector<1x32x32xf32> to vector<32x32xf32>
    %cst_104 = arith.constant dense<0.000000e+00> : vector<2x32xf32>
    %152 = tpu.matmul %89, %151, %cst_104 {dimension_numbers = #tpu.dot_dimension_numbers<[1], [0], [0], [1], [0, 0, 1, 1], [], []>} : vector<2x32xf32>, vector<32x32xf32>, vector<2x32xf32> -> vector<2x32xf32>
    %153 = arith.addf %149, %152 : vector<2x32xf32>
    %154 = vector.extract_strided_slice %21 {offsets = [2, 0], sizes = [2, 32], strides = [1, 1]} : vector<16x32xf32> to vector<2x32xf32>
    %c2_105 = arith.constant 2 : index
    %c0_106 = arith.constant 0 : index
    %c0_107 = arith.constant 0 : index
    %155 = vector.load %arg3[%c2_105, %c0_106, %c0_107] : memref<4x32x32xf32, #tpu.memory_space<vmem>>, vector<1x32x32xf32>
    %156 = vector.shape_cast %155 : vector<1x32x32xf32> to vector<32x32xf32>
    %cst_108 = arith.constant dense<0.000000e+00> : vector<2x32xf32>
    %157 = tpu.matmul %89, %156, %cst_108 {dimension_numbers = #tpu.dot_dimension_numbers<[1], [0], [0], [1], [0, 0, 1, 1], [], []>} : vector<2x32xf32>, vector<32x32xf32>, vector<2x32xf32> -> vector<2x32xf32>
    %158 = arith.addf %154, %157 : vector<2x32xf32>
    %159 = vector.extract_strided_slice %28 {offsets = [2, 0], sizes = [2, 32], strides = [1, 1]} : vector<16x32xf32> to vector<2x32xf32>
    %c3_109 = arith.constant 3 : index
    %c0_110 = arith.constant 0 : index
    %c0_111 = arith.constant 0 : index
    %160 = vector.load %arg3[%c3_109, %c0_110, %c0_111] : memref<4x32x32xf32, #tpu.memory_space<vmem>>, vector<1x32x32xf32>
    %161 = vector.shape_cast %160 : vector<1x32x32xf32> to vector<32x32xf32>
    %cst_112 = arith.constant dense<0.000000e+00> : vector<2x32xf32>
    %162 = tpu.matmul %89, %161, %cst_112 {dimension_numbers = #tpu.dot_dimension_numbers<[1], [0], [0], [1], [0, 0, 1, 1], [], []>} : vector<2x32xf32>, vector<32x32xf32>, vector<2x32xf32> -> vector<2x32xf32>
    %163 = arith.addf %159, %162 : vector<2x32xf32>
    %164 = arith.negf %148 : vector<2x32xf32>
    %165 = math.exp %164 : vector<2x32xf32>
    %cst_113 = arith.constant 1.000000e+00 : f32
    %166 = vector.broadcast %cst_113 : f32 to vector<2x32xf32>
    %167 = arith.addf %166, %165 : vector<2x32xf32>
    %168 = arith.divf %166, %167 : vector<2x32xf32>
    %169 = arith.negf %153 : vector<2x32xf32>
    %170 = math.exp %169 : vector<2x32xf32>
    %cst_114 = arith.constant 1.000000e+00 : f32
    %171 = vector.broadcast %cst_114 : f32 to vector<2x32xf32>
    %172 = arith.addf %171, %170 : vector<2x32xf32>
    %173 = arith.divf %171, %172 : vector<2x32xf32>
    %174 = math.tanh %158 : vector<2x32xf32>
    %175 = arith.negf %163 : vector<2x32xf32>
    %176 = math.exp %175 : vector<2x32xf32>
    %cst_115 = arith.constant 1.000000e+00 : f32
    %177 = vector.broadcast %cst_115 : f32 to vector<2x32xf32>
    %178 = arith.addf %177, %176 : vector<2x32xf32>
    %179 = arith.divf %177, %178 : vector<2x32xf32>
    %180 = arith.mulf %173, %87 : vector<2x32xf32>
    %181 = arith.mulf %168, %174 : vector<2x32xf32>
    %182 = arith.addf %180, %181 : vector<2x32xf32>
    %183 = math.tanh %182 : vector<2x32xf32>
    %184 = arith.mulf %179, %183 : vector<2x32xf32>
    %c0_116 = arith.constant 0 : index
    %c0_117 = arith.constant 0 : index
    %c0_118 = arith.constant 0 : index
    %185 = vector.load %arg5[%c0_116, %c0_117, %c0_118] : memref<4x32x32xf32, #tpu.memory_space<vmem>>, vector<1x32x32xf32>
    %186 = vector.shape_cast %185 : vector<1x32x32xf32> to vector<32x32xf32>
    %cst_119 = arith.constant dense<0.000000e+00> : vector<2x32xf32>
    %187 = tpu.matmul %184, %186, %cst_119 {dimension_numbers = #tpu.dot_dimension_numbers<[1], [0], [0], [1], [0, 0, 1, 1], [], []>} : vector<2x32xf32>, vector<32x32xf32>, vector<2x32xf32> -> vector<2x32xf32>
    %c0_120 = arith.constant 0 : index
    %c0_121 = arith.constant 0 : index
    %c0_122 = arith.constant 0 : index
    %188 = vector.load %arg6[%c0_120, %c0_121, %c0_122] : memref<4x32x32xf32, #tpu.memory_space<vmem>>, vector<1x32x32xf32>
    %189 = vector.shape_cast %188 : vector<1x32x32xf32> to vector<32x32xf32>
    %cst_123 = arith.constant dense<0.000000e+00> : vector<2x32xf32>
    %190 = tpu.matmul %142, %189, %cst_123 {dimension_numbers = #tpu.dot_dimension_numbers<[1], [0], [0], [1], [0, 0, 1, 1], [], []>} : vector<2x32xf32>, vector<32x32xf32>, vector<2x32xf32> -> vector<2x32xf32>
    %191 = arith.addf %187, %190 : vector<2x32xf32>
    %192 = arith.addf %191, %32 : vector<2x32xf32>
    %c1_124 = arith.constant 1 : index
    %c0_125 = arith.constant 0 : index
    %c0_126 = arith.constant 0 : index
    %193 = vector.load %arg5[%c1_124, %c0_125, %c0_126] : memref<4x32x32xf32, #tpu.memory_space<vmem>>, vector<1x32x32xf32>
    %194 = vector.shape_cast %193 : vector<1x32x32xf32> to vector<32x32xf32>
    %cst_127 = arith.constant dense<0.000000e+00> : vector<2x32xf32>
    %195 = tpu.matmul %184, %194, %cst_127 {dimension_numbers = #tpu.dot_dimension_numbers<[1], [0], [0], [1], [0, 0, 1, 1], [], []>} : vector<2x32xf32>, vector<32x32xf32>, vector<2x32xf32> -> vector<2x32xf32>
    %c1_128 = arith.constant 1 : index
    %c0_129 = arith.constant 0 : index
    %c0_130 = arith.constant 0 : index
    %196 = vector.load %arg6[%c1_128, %c0_129, %c0_130] : memref<4x32x32xf32, #tpu.memory_space<vmem>>, vector<1x32x32xf32>
    %197 = vector.shape_cast %196 : vector<1x32x32xf32> to vector<32x32xf32>
    %cst_131 = arith.constant dense<0.000000e+00> : vector<2x32xf32>
    %198 = tpu.matmul %142, %197, %cst_131 {dimension_numbers = #tpu.dot_dimension_numbers<[1], [0], [0], [1], [0, 0, 1, 1], [], []>} : vector<2x32xf32>, vector<32x32xf32>, vector<2x32xf32> -> vector<2x32xf32>
    %199 = arith.addf %195, %198 : vector<2x32xf32>
    %200 = arith.addf %199, %36 : vector<2x32xf32>
    %c2_132 = arith.constant 2 : index
    %c0_133 = arith.constant 0 : index
    %c0_134 = arith.constant 0 : index
    %201 = vector.load %arg5[%c2_132, %c0_133, %c0_134] : memref<4x32x32xf32, #tpu.memory_space<vmem>>, vector<1x32x32xf32>
    %202 = vector.shape_cast %201 : vector<1x32x32xf32> to vector<32x32xf32>
    %cst_135 = arith.constant dense<0.000000e+00> : vector<2x32xf32>
    %203 = tpu.matmul %184, %202, %cst_135 {dimension_numbers = #tpu.dot_dimension_numbers<[1], [0], [0], [1], [0, 0, 1, 1], [], []>} : vector<2x32xf32>, vector<32x32xf32>, vector<2x32xf32> -> vector<2x32xf32>
    %c2_136 = arith.constant 2 : index
    %c0_137 = arith.constant 0 : index
    %c0_138 = arith.constant 0 : index
    %204 = vector.load %arg6[%c2_136, %c0_137, %c0_138] : memref<4x32x32xf32, #tpu.memory_space<vmem>>, vector<1x32x32xf32>
    %205 = vector.shape_cast %204 : vector<1x32x32xf32> to vector<32x32xf32>
    %cst_139 = arith.constant dense<0.000000e+00> : vector<2x32xf32>
    %206 = tpu.matmul %142, %205, %cst_139 {dimension_numbers = #tpu.dot_dimension_numbers<[1], [0], [0], [1], [0, 0, 1, 1], [], []>} : vector<2x32xf32>, vector<32x32xf32>, vector<2x32xf32> -> vector<2x32xf32>
    %207 = arith.addf %203, %206 : vector<2x32xf32>
    %208 = arith.addf %207, %40 : vector<2x32xf32>
    %c3_140 = arith.constant 3 : index
    %c0_141 = arith.constant 0 : index
    %c0_142 = arith.constant 0 : index
    %209 = vector.load %arg5[%c3_140, %c0_141, %c0_142] : memref<4x32x32xf32, #tpu.memory_space<vmem>>, vector<1x32x32xf32>
    %210 = vector.shape_cast %209 : vector<1x32x32xf32> to vector<32x32xf32>
    %cst_143 = arith.constant dense<0.000000e+00> : vector<2x32xf32>
    %211 = tpu.matmul %184, %210, %cst_143 {dimension_numbers = #tpu.dot_dimension_numbers<[1], [0], [0], [1], [0, 0, 1, 1], [], []>} : vector<2x32xf32>, vector<32x32xf32>, vector<2x32xf32> -> vector<2x32xf32>
    %c3_144 = arith.constant 3 : index
    %c0_145 = arith.constant 0 : index
    %c0_146 = arith.constant 0 : index
    %212 = vector.load %arg6[%c3_144, %c0_145, %c0_146] : memref<4x32x32xf32, #tpu.memory_space<vmem>>, vector<1x32x32xf32>
    %213 = vector.shape_cast %212 : vector<1x32x32xf32> to vector<32x32xf32>
    %cst_147 = arith.constant dense<0.000000e+00> : vector<2x32xf32>
    %214 = tpu.matmul %142, %213, %cst_147 {dimension_numbers = #tpu.dot_dimension_numbers<[1], [0], [0], [1], [0, 0, 1, 1], [], []>} : vector<2x32xf32>, vector<32x32xf32>, vector<2x32xf32> -> vector<2x32xf32>
    %215 = arith.addf %211, %214 : vector<2x32xf32>
    %216 = arith.addf %215, %44 : vector<2x32xf32>
    %217 = arith.negf %192 : vector<2x32xf32>
    %218 = math.exp %217 : vector<2x32xf32>
    %cst_148 = arith.constant 1.000000e+00 : f32
    %219 = vector.broadcast %cst_148 : f32 to vector<2x32xf32>
    %220 = arith.addf %219, %218 : vector<2x32xf32>
    %221 = arith.divf %219, %220 : vector<2x32xf32>
    %222 = arith.negf %200 : vector<2x32xf32>
    %223 = math.exp %222 : vector<2x32xf32>
    %cst_149 = arith.constant 1.000000e+00 : f32
    %224 = vector.broadcast %cst_149 : f32 to vector<2x32xf32>
    %225 = arith.addf %224, %223 : vector<2x32xf32>
    %226 = arith.divf %224, %225 : vector<2x32xf32>
    %227 = math.tanh %208 : vector<2x32xf32>
    %228 = arith.negf %216 : vector<2x32xf32>
    %229 = math.exp %228 : vector<2x32xf32>
    %cst_150 = arith.constant 1.000000e+00 : f32
    %230 = vector.broadcast %cst_150 : f32 to vector<2x32xf32>
    %231 = arith.addf %230, %229 : vector<2x32xf32>
    %232 = arith.divf %230, %231 : vector<2x32xf32>
    %233 = arith.mulf %226, %140 : vector<2x32xf32>
    %234 = arith.mulf %221, %227 : vector<2x32xf32>
    %235 = arith.addf %233, %234 : vector<2x32xf32>
    %236 = math.tanh %235 : vector<2x32xf32>
    %237 = arith.mulf %232, %236 : vector<2x32xf32>
    %c2_151 = arith.constant 2 : index
    %c0_152 = arith.constant 0 : index
    %238 = vector.load %arg13[%c2_151, %c0_152] : memref<16x32xf32, #tpu.memory_space<vmem>>, vector<2x32xf32>
    tpu.vector_store %arg13[%c2_151, %c0_152], %237 {strides = array<i32>} : memref<16x32xf32, #tpu.memory_space<vmem>>, vector<2x32xf32>,
    %239 = vector.extract_strided_slice %7 {offsets = [4, 0], sizes = [2, 32], strides = [1, 1]} : vector<16x32xf32> to vector<2x32xf32>
    %c0_153 = arith.constant 0 : index
    %c0_154 = arith.constant 0 : index
    %c0_155 = arith.constant 0 : index
    %240 = vector.load %arg3[%c0_153, %c0_154, %c0_155] : memref<4x32x32xf32, #tpu.memory_space<vmem>>, vector<1x32x32xf32>
    %241 = vector.shape_cast %240 : vector<1x32x32xf32> to vector<32x32xf32>
    %cst_156 = arith.constant dense<0.000000e+00> : vector<2x32xf32>
    %242 = tpu.matmul %184, %241, %cst_156 {dimension_numbers = #tpu.dot_dimension_numbers<[1], [0], [0], [1], [0, 0, 1, 1], [], []>} : vector<2x32xf32>, vector<32x32xf32>, vector<2x32xf32> -> vector<2x32xf32>
    %243 = arith.addf %239, %242 : vector<2x32xf32>
    %244 = vector.extract_strided_slice %14 {offsets = [4, 0], sizes = [2, 32], strides = [1, 1]} : vector<16x32xf32> to vector<2x32xf32>
    %c1_157 = arith.constant 1 : index
    %c0_158 = arith.constant 0 : index
    %c0_159 = arith.constant 0 : index
    %245 = vector.load %arg3[%c1_157, %c0_158, %c0_159] : memref<4x32x32xf32, #tpu.memory_space<vmem>>, vector<1x32x32xf32>
    %246 = vector.shape_cast %245 : vector<1x32x32xf32> to vector<32x32xf32>
    %cst_160 = arith.constant dense<0.000000e+00> : vector<2x32xf32>
    %247 = tpu.matmul %184, %246, %cst_160 {dimension_numbers = #tpu.dot_dimension_numbers<[1], [0], [0], [1], [0, 0, 1, 1], [], []>} : vector<2x32xf32>, vector<32x32xf32>, vector<2x32xf32> -> vector<2x32xf32>
    %248 = arith.addf %244, %247 : vector<2x32xf32>
    %249 = vector.extract_strided_slice %21 {offsets = [4, 0], sizes = [2, 32], strides = [1, 1]} : vector<16x32xf32> to vector<2x32xf32>
    %c2_161 = arith.constant 2 : index
    %c0_162 = arith.constant 0 : index
    %c0_163 = arith.constant 0 : index
    %250 = vector.load %arg3[%c2_161, %c0_162, %c0_163] : memref<4x32x32xf32, #tpu.memory_space<vmem>>, vector<1x32x32xf32>
    %251 = vector.shape_cast %250 : vector<1x32x32xf32> to vector<32x32xf32>
    %cst_164 = arith.constant dense<0.000000e+00> : vector<2x32xf32>
    %252 = tpu.matmul %184, %251, %cst_164 {dimension_numbers = #tpu.dot_dimension_numbers<[1], [0], [0], [1], [0, 0, 1, 1], [], []>} : vector<2x32xf32>, vector<32x32xf32>, vector<2x32xf32> -> vector<2x32xf32>
    %253 = arith.addf %249, %252 : vector<2x32xf32>
    %254 = vector.extract_strided_slice %28 {offsets = [4, 0], sizes = [2, 32], strides = [1, 1]} : vector<16x32xf32> to vector<2x32xf32>
    %c3_165 = arith.constant 3 : index
    %c0_166 = arith.constant 0 : index
    %c0_167 = arith.constant 0 : index
    %255 = vector.load %arg3[%c3_165, %c0_166, %c0_167] : memref<4x32x32xf32, #tpu.memory_space<vmem>>, vector<1x32x32xf32>
    %256 = vector.shape_cast %255 : vector<1x32x32xf32> to vector<32x32xf32>
    %cst_168 = arith.constant dense<0.000000e+00> : vector<2x32xf32>
    %257 = tpu.matmul %184, %256, %cst_168 {dimension_numbers = #tpu.dot_dimension_numbers<[1], [0], [0], [1], [0, 0, 1, 1], [], []>} : vector<2x32xf32>, vector<32x32xf32>, vector<2x32xf32> -> vector<2x32xf32>
    %258 = arith.addf %254, %257 : vector<2x32xf32>
    %259 = arith.negf %243 : vector<2x32xf32>
    %260 = math.exp %259 : vector<2x32xf32>
    %cst_169 = arith.constant 1.000000e+00 : f32
    %261 = vector.broadcast %cst_169 : f32 to vector<2x32xf32>
    %262 = arith.addf %261, %260 : vector<2x32xf32>
    %263 = arith.divf %261, %262 : vector<2x32xf32>
    %264 = arith.negf %248 : vector<2x32xf32>
    %265 = math.exp %264 : vector<2x32xf32>
    %cst_170 = arith.constant 1.000000e+00 : f32
    %266 = vector.broadcast %cst_170 : f32 to vector<2x32xf32>
    %267 = arith.addf %266, %265 : vector<2x32xf32>
    %268 = arith.divf %266, %267 : vector<2x32xf32>
    %269 = math.tanh %253 : vector<2x32xf32>
    %270 = arith.negf %258 : vector<2x32xf32>
    %271 = math.exp %270 : vector<2x32xf32>
    %cst_171 = arith.constant 1.000000e+00 : f32
    %272 = vector.broadcast %cst_171 : f32 to vector<2x32xf32>
    %273 = arith.addf %272, %271 : vector<2x32xf32>
    %274 = arith.divf %272, %273 : vector<2x32xf32>
    %275 = arith.mulf %268, %182 : vector<2x32xf32>
    %276 = arith.mulf %263, %269 : vector<2x32xf32>
    %277 = arith.addf %275, %276 : vector<2x32xf32>
    %278 = math.tanh %277 : vector<2x32xf32>
    %279 = arith.mulf %274, %278 : vector<2x32xf32>
    %c0_172 = arith.constant 0 : index
    %c0_173 = arith.constant 0 : index
    %c0_174 = arith.constant 0 : index
    %280 = vector.load %arg5[%c0_172, %c0_173, %c0_174] : memref<4x32x32xf32, #tpu.memory_space<vmem>>, vector<1x32x32xf32>
    %281 = vector.shape_cast %280 : vector<1x32x32xf32> to vector<32x32xf32>
    %cst_175 = arith.constant dense<0.000000e+00> : vector<2x32xf32>
    %282 = tpu.matmul %279, %281, %cst_175 {dimension_numbers = #tpu.dot_dimension_numbers<[1], [0], [0], [1], [0, 0, 1, 1], [], []>} : vector<2x32xf32>, vector<32x32xf32>, vector<2x32xf32> -> vector<2x32xf32>
    %c0_176 = arith.constant 0 : index
    %c0_177 = arith.constant 0 : index
    %c0_178 = arith.constant 0 : index
    %283 = vector.load %arg6[%c0_176, %c0_177, %c0_178] : memref<4x32x32xf32, #tpu.memory_space<vmem>>, vector<1x32x32xf32>
    %284 = vector.shape_cast %283 : vector<1x32x32xf32> to vector<32x32xf32>
    %cst_179 = arith.constant dense<0.000000e+00> : vector<2x32xf32>
    %285 = tpu.matmul %237, %284, %cst_179 {dimension_numbers = #tpu.dot_dimension_numbers<[1], [0], [0], [1], [0, 0, 1, 1], [], []>} : vector<2x32xf32>, vector<32x32xf32>, vector<2x32xf32> -> vector<2x32xf32>
    %286 = arith.addf %282, %285 : vector<2x32xf32>
    %287 = arith.addf %286, %32 : vector<2x32xf32>
    %c1_180 = arith.constant 1 : index
    %c0_181 = arith.constant 0 : index
    %c0_182 = arith.constant 0 : index
    %288 = vector.load %arg5[%c1_180, %c0_181, %c0_182] : memref<4x32x32xf32, #tpu.memory_space<vmem>>, vector<1x32x32xf32>
    %289 = vector.shape_cast %288 : vector<1x32x32xf32> to vector<32x32xf32>
    %cst_183 = arith.constant dense<0.000000e+00> : vector<2x32xf32>
    %290 = tpu.matmul %279, %289, %cst_183 {dimension_numbers = #tpu.dot_dimension_numbers<[1], [0], [0], [1], [0, 0, 1, 1], [], []>} : vector<2x32xf32>, vector<32x32xf32>, vector<2x32xf32> -> vector<2x32xf32>
    %c1_184 = arith.constant 1 : index
    %c0_185 = arith.constant 0 : index
    %c0_186 = arith.constant 0 : index
    %291 = vector.load %arg6[%c1_184, %c0_185, %c0_186] : memref<4x32x32xf32, #tpu.memory_space<vmem>>, vector<1x32x32xf32>
    %292 = vector.shape_cast %291 : vector<1x32x32xf32> to vector<32x32xf32>
    %cst_187 = arith.constant dense<0.000000e+00> : vector<2x32xf32>
    %293 = tpu.matmul %237, %292, %cst_187 {dimension_numbers = #tpu.dot_dimension_numbers<[1], [0], [0], [1], [0, 0, 1, 1], [], []>} : vector<2x32xf32>, vector<32x32xf32>, vector<2x32xf32> -> vector<2x32xf32>
    %294 = arith.addf %290, %293 : vector<2x32xf32>
    %295 = arith.addf %294, %36 : vector<2x32xf32>
    %c2_188 = arith.constant 2 : index
    %c0_189 = arith.constant 0 : index
    %c0_190 = arith.constant 0 : index
    %296 = vector.load %arg5[%c2_188, %c0_189, %c0_190] : memref<4x32x32xf32, #tpu.memory_space<vmem>>, vector<1x32x32xf32>
    %297 = vector.shape_cast %296 : vector<1x32x32xf32> to vector<32x32xf32>
    %cst_191 = arith.constant dense<0.000000e+00> : vector<2x32xf32>
    %298 = tpu.matmul %279, %297, %cst_191 {dimension_numbers = #tpu.dot_dimension_numbers<[1], [0], [0], [1], [0, 0, 1, 1], [], []>} : vector<2x32xf32>, vector<32x32xf32>, vector<2x32xf32> -> vector<2x32xf32>
    %c2_192 = arith.constant 2 : index
    %c0_193 = arith.constant 0 : index
    %c0_194 = arith.constant 0 : index
    %299 = vector.load %arg6[%c2_192, %c0_193, %c0_194] : memref<4x32x32xf32, #tpu.memory_space<vmem>>, vector<1x32x32xf32>
    %300 = vector.shape_cast %299 : vector<1x32x32xf32> to vector<32x32xf32>
    %cst_195 = arith.constant dense<0.000000e+00> : vector<2x32xf32>
    %301 = tpu.matmul %237, %300, %cst_195 {dimension_numbers = #tpu.dot_dimension_numbers<[1], [0], [0], [1], [0, 0, 1, 1], [], []>} : vector<2x32xf32>, vector<32x32xf32>, vector<2x32xf32> -> vector<2x32xf32>
    %302 = arith.addf %298, %301 : vector<2x32xf32>
    %303 = arith.addf %302, %40 : vector<2x32xf32>
    %c3_196 = arith.constant 3 : index
    %c0_197 = arith.constant 0 : index
    %c0_198 = arith.constant 0 : index
    %304 = vector.load %arg5[%c3_196, %c0_197, %c0_198] : memref<4x32x32xf32, #tpu.memory_space<vmem>>, vector<1x32x32xf32>
    %305 = vector.shape_cast %304 : vector<1x32x32xf32> to vector<32x32xf32>
    %cst_199 = arith.constant dense<0.000000e+00> : vector<2x32xf32>
    %306 = tpu.matmul %279, %305, %cst_199 {dimension_numbers = #tpu.dot_dimension_numbers<[1], [0], [0], [1], [0, 0, 1, 1], [], []>} : vector<2x32xf32>, vector<32x32xf32>, vector<2x32xf32> -> vector<2x32xf32>
    %c3_200 = arith.constant 3 : index
    %c0_201 = arith.constant 0 : index
    %c0_202 = arith.constant 0 : index
    %307 = vector.load %arg6[%c3_200, %c0_201, %c0_202] : memref<4x32x32xf32, #tpu.memory_space<vmem>>, vector<1x32x32xf32>
    %308 = vector.shape_cast %307 : vector<1x32x32xf32> to vector<32x32xf32>
    %cst_203 = arith.constant dense<0.000000e+00> : vector<2x32xf32>
    %309 = tpu.matmul %237, %308, %cst_203 {dimension_numbers = #tpu.dot_dimension_numbers<[1], [0], [0], [1], [0, 0, 1, 1], [], []>} : vector<2x32xf32>, vector<32x32xf32>, vector<2x32xf32> -> vector<2x32xf32>
    %310 = arith.addf %306, %309 : vector<2x32xf32>
    %311 = arith.addf %310, %44 : vector<2x32xf32>
    %312 = arith.negf %287 : vector<2x32xf32>
    %313 = math.exp %312 : vector<2x32xf32>
    %cst_204 = arith.constant 1.000000e+00 : f32
    %314 = vector.broadcast %cst_204 : f32 to vector<2x32xf32>
    %315 = arith.addf %314, %313 : vector<2x32xf32>
    %316 = arith.divf %314, %315 : vector<2x32xf32>
    %317 = arith.negf %295 : vector<2x32xf32>
    %318 = math.exp %317 : vector<2x32xf32>
    %cst_205 = arith.constant 1.000000e+00 : f32
    %319 = vector.broadcast %cst_205 : f32 to vector<2x32xf32>
    %320 = arith.addf %319, %318 : vector<2x32xf32>
    %321 = arith.divf %319, %320 : vector<2x32xf32>
    %322 = math.tanh %303 : vector<2x32xf32>
    %323 = arith.negf %311 : vector<2x32xf32>
    %324 = math.exp %323 : vector<2x32xf32>
    %cst_206 = arith.constant 1.000000e+00 : f32
    %325 = vector.broadcast %cst_206 : f32 to vector<2x32xf32>
    %326 = arith.addf %325, %324 : vector<2x32xf32>
    %327 = arith.divf %325, %326 : vector<2x32xf32>
    %328 = arith.mulf %321, %235 : vector<2x32xf32>
    %329 = arith.mulf %316, %322 : vector<2x32xf32>
    %330 = arith.addf %328, %329 : vector<2x32xf32>
    %331 = math.tanh %330 : vector<2x32xf32>
    %332 = arith.mulf %327, %331 : vector<2x32xf32>
    %c4 = arith.constant 4 : index
    %c0_207 = arith.constant 0 : index
    %333 = vector.load %arg13[%c4, %c0_207] : memref<16x32xf32, #tpu.memory_space<vmem>>, vector<2x32xf32>
    tpu.vector_store %arg13[%c4, %c0_207], %332 {strides = array<i32>} : memref<16x32xf32, #tpu.memory_space<vmem>>, vector<2x32xf32>,
    %334 = vector.extract_strided_slice %7 {offsets = [6, 0], sizes = [2, 32], strides = [1, 1]} : vector<16x32xf32> to vector<2x32xf32>
    %c0_208 = arith.constant 0 : index
    %c0_209 = arith.constant 0 : index
    %c0_210 = arith.constant 0 : index
    %335 = vector.load %arg3[%c0_208, %c0_209, %c0_210] : memref<4x32x32xf32, #tpu.memory_space<vmem>>, vector<1x32x32xf32>
    %336 = vector.shape_cast %335 : vector<1x32x32xf32> to vector<32x32xf32>
    %cst_211 = arith.constant dense<0.000000e+00> : vector<2x32xf32>
    %337 = tpu.matmul %279, %336, %cst_211 {dimension_numbers = #tpu.dot_dimension_numbers<[1], [0], [0], [1], [0, 0, 1, 1], [], []>} : vector<2x32xf32>, vector<32x32xf32>, vector<2x32xf32> -> vector<2x32xf32>
    %338 = arith.addf %334, %337 : vector<2x32xf32>
    %339 = vector.extract_strided_slice %14 {offsets = [6, 0], sizes = [2, 32], strides = [1, 1]} : vector<16x32xf32> to vector<2x32xf32>
    %c1_212 = arith.constant 1 : index
    %c0_213 = arith.constant 0 : index
    %c0_214 = arith.constant 0 : index
    %340 = vector.load %arg3[%c1_212, %c0_213, %c0_214] : memref<4x32x32xf32, #tpu.memory_space<vmem>>, vector<1x32x32xf32>
    %341 = vector.shape_cast %340 : vector<1x32x32xf32> to vector<32x32xf32>
    %cst_215 = arith.constant dense<0.000000e+00> : vector<2x32xf32>
    %342 = tpu.matmul %279, %341, %cst_215 {dimension_numbers = #tpu.dot_dimension_numbers<[1], [0], [0], [1], [0, 0, 1, 1], [], []>} : vector<2x32xf32>, vector<32x32xf32>, vector<2x32xf32> -> vector<2x32xf32>
    %343 = arith.addf %339, %342 : vector<2x32xf32>
    %344 = vector.extract_strided_slice %21 {offsets = [6, 0], sizes = [2, 32], strides = [1, 1]} : vector<16x32xf32> to vector<2x32xf32>
    %c2_216 = arith.constant 2 : index
    %c0_217 = arith.constant 0 : index
    %c0_218 = arith.constant 0 : index
    %345 = vector.load %arg3[%c2_216, %c0_217, %c0_218] : memref<4x32x32xf32, #tpu.memory_space<vmem>>, vector<1x32x32xf32>
    %346 = vector.shape_cast %345 : vector<1x32x32xf32> to vector<32x32xf32>
    %cst_219 = arith.constant dense<0.000000e+00> : vector<2x32xf32>
    %347 = tpu.matmul %279, %346, %cst_219 {dimension_numbers = #tpu.dot_dimension_numbers<[1], [0], [0], [1], [0, 0, 1, 1], [], []>} : vector<2x32xf32>, vector<32x32xf32>, vector<2x32xf32> -> vector<2x32xf32>
    %348 = arith.addf %344, %347 : vector<2x32xf32>
    %349 = vector.extract_strided_slice %28 {offsets = [6, 0], sizes = [2, 32], strides = [1, 1]} : vector<16x32xf32> to vector<2x32xf32>
    %c3_220 = arith.constant 3 : index
    %c0_221 = arith.constant 0 : index
    %c0_222 = arith.constant 0 : index
    %350 = vector.load %arg3[%c3_220, %c0_221, %c0_222] : memref<4x32x32xf32, #tpu.memory_space<vmem>>, vector<1x32x32xf32>
    %351 = vector.shape_cast %350 : vector<1x32x32xf32> to vector<32x32xf32>
    %cst_223 = arith.constant dense<0.000000e+00> : vector<2x32xf32>
    %352 = tpu.matmul %279, %351, %cst_223 {dimension_numbers = #tpu.dot_dimension_numbers<[1], [0], [0], [1], [0, 0, 1, 1], [], []>} : vector<2x32xf32>, vector<32x32xf32>, vector<2x32xf32> -> vector<2x32xf32>
    %353 = arith.addf %349, %352 : vector<2x32xf32>
    %354 = arith.negf %338 : vector<2x32xf32>
    %355 = math.exp %354 : vector<2x32xf32>
    %cst_224 = arith.constant 1.000000e+00 : f32
    %356 = vector.broadcast %cst_224 : f32 to vector<2x32xf32>
    %357 = arith.addf %356, %355 : vector<2x32xf32>
    %358 = arith.divf %356, %357 : vector<2x32xf32>
    %359 = arith.negf %343 : vector<2x32xf32>
    %360 = math.exp %359 : vector<2x32xf32>
    %cst_225 = arith.constant 1.000000e+00 : f32
    %361 = vector.broadcast %cst_225 : f32 to vector<2x32xf32>
    %362 = arith.addf %361, %360 : vector<2x32xf32>
    %363 = arith.divf %361, %362 : vector<2x32xf32>
    %364 = math.tanh %348 : vector<2x32xf32>
    %365 = arith.negf %353 : vector<2x32xf32>
    %366 = math.exp %365 : vector<2x32xf32>
    %cst_226 = arith.constant 1.000000e+00 : f32
    %367 = vector.broadcast %cst_226 : f32 to vector<2x32xf32>
    %368 = arith.addf %367, %366 : vector<2x32xf32>
    %369 = arith.divf %367, %368 : vector<2x32xf32>
    %370 = arith.mulf %363, %277 : vector<2x32xf32>
    %371 = arith.mulf %358, %364 : vector<2x32xf32>
    %372 = arith.addf %370, %371 : vector<2x32xf32>
    %373 = math.tanh %372 : vector<2x32xf32>
    %374 = arith.mulf %369, %373 : vector<2x32xf32>
    %c0_227 = arith.constant 0 : index
    %c0_228 = arith.constant 0 : index
    %c0_229 = arith.constant 0 : index
    %375 = vector.load %arg5[%c0_227, %c0_228, %c0_229] : memref<4x32x32xf32, #tpu.memory_space<vmem>>, vector<1x32x32xf32>
    %376 = vector.shape_cast %375 : vector<1x32x32xf32> to vector<32x32xf32>
    %cst_230 = arith.constant dense<0.000000e+00> : vector<2x32xf32>
    %377 = tpu.matmul %374, %376, %cst_230 {dimension_numbers = #tpu.dot_dimension_numbers<[1], [0], [0], [1], [0, 0, 1, 1], [], []>} : vector<2x32xf32>, vector<32x32xf32>, vector<2x32xf32> -> vector<2x32xf32>
    %c0_231 = arith.constant 0 : index
    %c0_232 = arith.constant 0 : index
    %c0_233 = arith.constant 0 : index
    %378 = vector.load %arg6[%c0_231, %c0_232, %c0_233] : memref<4x32x32xf32, #tpu.memory_space<vmem>>, vector<1x32x32xf32>
    %379 = vector.shape_cast %378 : vector<1x32x32xf32> to vector<32x32xf32>
    %cst_234 = arith.constant dense<0.000000e+00> : vector<2x32xf32>
    %380 = tpu.matmul %332, %379, %cst_234 {dimension_numbers = #tpu.dot_dimension_numbers<[1], [0], [0], [1], [0, 0, 1, 1], [], []>} : vector<2x32xf32>, vector<32x32xf32>, vector<2x32xf32> -> vector<2x32xf32>
    %381 = arith.addf %377, %380 : vector<2x32xf32>
    %382 = arith.addf %381, %32 : vector<2x32xf32>
    %c1_235 = arith.constant 1 : index
    %c0_236 = arith.constant 0 : index
    %c0_237 = arith.constant 0 : index
    %383 = vector.load %arg5[%c1_235, %c0_236, %c0_237] : memref<4x32x32xf32, #tpu.memory_space<vmem>>, vector<1x32x32xf32>
    %384 = vector.shape_cast %383 : vector<1x32x32xf32> to vector<32x32xf32>
    %cst_238 = arith.constant dense<0.000000e+00> : vector<2x32xf32>
    %385 = tpu.matmul %374, %384, %cst_238 {dimension_numbers = #tpu.dot_dimension_numbers<[1], [0], [0], [1], [0, 0, 1, 1], [], []>} : vector<2x32xf32>, vector<32x32xf32>, vector<2x32xf32> -> vector<2x32xf32>
    %c1_239 = arith.constant 1 : index
    %c0_240 = arith.constant 0 : index
    %c0_241 = arith.constant 0 : index
    %386 = vector.load %arg6[%c1_239, %c0_240, %c0_241] : memref<4x32x32xf32, #tpu.memory_space<vmem>>, vector<1x32x32xf32>
    %387 = vector.shape_cast %386 : vector<1x32x32xf32> to vector<32x32xf32>
    %cst_242 = arith.constant dense<0.000000e+00> : vector<2x32xf32>
    %388 = tpu.matmul %332, %387, %cst_242 {dimension_numbers = #tpu.dot_dimension_numbers<[1], [0], [0], [1], [0, 0, 1, 1], [], []>} : vector<2x32xf32>, vector<32x32xf32>, vector<2x32xf32> -> vector<2x32xf32>
    %389 = arith.addf %385, %388 : vector<2x32xf32>
    %390 = arith.addf %389, %36 : vector<2x32xf32>
    %c2_243 = arith.constant 2 : index
    %c0_244 = arith.constant 0 : index
    %c0_245 = arith.constant 0 : index
    %391 = vector.load %arg5[%c2_243, %c0_244, %c0_245] : memref<4x32x32xf32, #tpu.memory_space<vmem>>, vector<1x32x32xf32>
    %392 = vector.shape_cast %391 : vector<1x32x32xf32> to vector<32x32xf32>
    %cst_246 = arith.constant dense<0.000000e+00> : vector<2x32xf32>
    %393 = tpu.matmul %374, %392, %cst_246 {dimension_numbers = #tpu.dot_dimension_numbers<[1], [0], [0], [1], [0, 0, 1, 1], [], []>} : vector<2x32xf32>, vector<32x32xf32>, vector<2x32xf32> -> vector<2x32xf32>
    %c2_247 = arith.constant 2 : index
    %c0_248 = arith.constant 0 : index
    %c0_249 = arith.constant 0 : index
    %394 = vector.load %arg6[%c2_247, %c0_248, %c0_249] : memref<4x32x32xf32, #tpu.memory_space<vmem>>, vector<1x32x32xf32>
    %395 = vector.shape_cast %394 : vector<1x32x32xf32> to vector<32x32xf32>
    %cst_250 = arith.constant dense<0.000000e+00> : vector<2x32xf32>
    %396 = tpu.matmul %332, %395, %cst_250 {dimension_numbers = #tpu.dot_dimension_numbers<[1], [0], [0], [1], [0, 0, 1, 1], [], []>} : vector<2x32xf32>, vector<32x32xf32>, vector<2x32xf32> -> vector<2x32xf32>
    %397 = arith.addf %393, %396 : vector<2x32xf32>
    %398 = arith.addf %397, %40 : vector<2x32xf32>
    %c3_251 = arith.constant 3 : index
    %c0_252 = arith.constant 0 : index
    %c0_253 = arith.constant 0 : index
    %399 = vector.load %arg5[%c3_251, %c0_252, %c0_253] : memref<4x32x32xf32, #tpu.memory_space<vmem>>, vector<1x32x32xf32>
    %400 = vector.shape_cast %399 : vector<1x32x32xf32> to vector<32x32xf32>
    %cst_254 = arith.constant dense<0.000000e+00> : vector<2x32xf32>
    %401 = tpu.matmul %374, %400, %cst_254 {dimension_numbers = #tpu.dot_dimension_numbers<[1], [0], [0], [1], [0, 0, 1, 1], [], []>} : vector<2x32xf32>, vector<32x32xf32>, vector<2x32xf32> -> vector<2x32xf32>
    %c3_255 = arith.constant 3 : index
    %c0_256 = arith.constant 0 : index
    %c0_257 = arith.constant 0 : index
    %402 = vector.load %arg6[%c3_255, %c0_256, %c0_257] : memref<4x32x32xf32, #tpu.memory_space<vmem>>, vector<1x32x32xf32>
    %403 = vector.shape_cast %402 : vector<1x32x32xf32> to vector<32x32xf32>
    %cst_258 = arith.constant dense<0.000000e+00> : vector<2x32xf32>
    %404 = tpu.matmul %332, %403, %cst_258 {dimension_numbers = #tpu.dot_dimension_numbers<[1], [0], [0], [1], [0, 0, 1, 1], [], []>} : vector<2x32xf32>, vector<32x32xf32>, vector<2x32xf32> -> vector<2x32xf32>
    %405 = arith.addf %401, %404 : vector<2x32xf32>
    %406 = arith.addf %405, %44 : vector<2x32xf32>
    %407 = arith.negf %382 : vector<2x32xf32>
    %408 = math.exp %407 : vector<2x32xf32>
    %cst_259 = arith.constant 1.000000e+00 : f32
    %409 = vector.broadcast %cst_259 : f32 to vector<2x32xf32>
    %410 = arith.addf %409, %408 : vector<2x32xf32>
    %411 = arith.divf %409, %410 : vector<2x32xf32>
    %412 = arith.negf %390 : vector<2x32xf32>
    %413 = math.exp %412 : vector<2x32xf32>
    %cst_260 = arith.constant 1.000000e+00 : f32
    %414 = vector.broadcast %cst_260 : f32 to vector<2x32xf32>
    %415 = arith.addf %414, %413 : vector<2x32xf32>
    %416 = arith.divf %414, %415 : vector<2x32xf32>
    %417 = math.tanh %398 : vector<2x32xf32>
    %418 = arith.negf %406 : vector<2x32xf32>
    %419 = math.exp %418 : vector<2x32xf32>
    %cst_261 = arith.constant 1.000000e+00 : f32
    %420 = vector.broadcast %cst_261 : f32 to vector<2x32xf32>
    %421 = arith.addf %420, %419 : vector<2x32xf32>
    %422 = arith.divf %420, %421 : vector<2x32xf32>
    %423 = arith.mulf %416, %330 : vector<2x32xf32>
    %424 = arith.mulf %411, %417 : vector<2x32xf32>
    %425 = arith.addf %423, %424 : vector<2x32xf32>
    %426 = math.tanh %425 : vector<2x32xf32>
    %427 = arith.mulf %422, %426 : vector<2x32xf32>
    %c6 = arith.constant 6 : index
    %c0_262 = arith.constant 0 : index
    %428 = vector.load %arg13[%c6, %c0_262] : memref<16x32xf32, #tpu.memory_space<vmem>>, vector<2x32xf32>
    tpu.vector_store %arg13[%c6, %c0_262], %427 {strides = array<i32>} : memref<16x32xf32, #tpu.memory_space<vmem>>, vector<2x32xf32>,
    %429 = vector.extract_strided_slice %7 {offsets = [8, 0], sizes = [2, 32], strides = [1, 1]} : vector<16x32xf32> to vector<2x32xf32>
    %c0_263 = arith.constant 0 : index
    %c0_264 = arith.constant 0 : index
    %c0_265 = arith.constant 0 : index
    %430 = vector.load %arg3[%c0_263, %c0_264, %c0_265] : memref<4x32x32xf32, #tpu.memory_space<vmem>>, vector<1x32x32xf32>
    %431 = vector.shape_cast %430 : vector<1x32x32xf32> to vector<32x32xf32>
    %cst_266 = arith.constant dense<0.000000e+00> : vector<2x32xf32>
    %432 = tpu.matmul %374, %431, %cst_266 {dimension_numbers = #tpu.dot_dimension_numbers<[1], [0], [0], [1], [0, 0, 1, 1], [], []>} : vector<2x32xf32>, vector<32x32xf32>, vector<2x32xf32> -> vector<2x32xf32>
    %433 = arith.addf %429, %432 : vector<2x32xf32>
    %434 = vector.extract_strided_slice %14 {offsets = [8, 0], sizes = [2, 32], strides = [1, 1]} : vector<16x32xf32> to vector<2x32xf32>
    %c1_267 = arith.constant 1 : index
    %c0_268 = arith.constant 0 : index
    %c0_269 = arith.constant 0 : index
    %435 = vector.load %arg3[%c1_267, %c0_268, %c0_269] : memref<4x32x32xf32, #tpu.memory_space<vmem>>, vector<1x32x32xf32>
    %436 = vector.shape_cast %435 : vector<1x32x32xf32> to vector<32x32xf32>
    %cst_270 = arith.constant dense<0.000000e+00> : vector<2x32xf32>
    %437 = tpu.matmul %374, %436, %cst_270 {dimension_numbers = #tpu.dot_dimension_numbers<[1], [0], [0], [1], [0, 0, 1, 1], [], []>} : vector<2x32xf32>, vector<32x32xf32>, vector<2x32xf32> -> vector<2x32xf32>
    %438 = arith.addf %434, %437 : vector<2x32xf32>
    %439 = vector.extract_strided_slice %21 {offsets = [8, 0], sizes = [2, 32], strides = [1, 1]} : vector<16x32xf32> to vector<2x32xf32>
    %c2_271 = arith.constant 2 : index
    %c0_272 = arith.constant 0 : index
    %c0_273 = arith.constant 0 : index
    %440 = vector.load %arg3[%c2_271, %c0_272, %c0_273] : memref<4x32x32xf32, #tpu.memory_space<vmem>>, vector<1x32x32xf32>
    %441 = vector.shape_cast %440 : vector<1x32x32xf32> to vector<32x32xf32>
    %cst_274 = arith.constant dense<0.000000e+00> : vector<2x32xf32>
    %442 = tpu.matmul %374, %441, %cst_274 {dimension_numbers = #tpu.dot_dimension_numbers<[1], [0], [0], [1], [0, 0, 1, 1], [], []>} : vector<2x32xf32>, vector<32x32xf32>, vector<2x32xf32> -> vector<2x32xf32>
    %443 = arith.addf %439, %442 : vector<2x32xf32>
    %444 = vector.extract_strided_slice %28 {offsets = [8, 0], sizes = [2, 32], strides = [1, 1]} : vector<16x32xf32> to vector<2x32xf32>
    %c3_275 = arith.constant 3 : index
    %c0_276 = arith.constant 0 : index
    %c0_277 = arith.constant 0 : index
    %445 = vector.load %arg3[%c3_275, %c0_276, %c0_277] : memref<4x32x32xf32, #tpu.memory_space<vmem>>, vector<1x32x32xf32>
    %446 = vector.shape_cast %445 : vector<1x32x32xf32> to vector<32x32xf32>
    %cst_278 = arith.constant dense<0.000000e+00> : vector<2x32xf32>
    %447 = tpu.matmul %374, %446, %cst_278 {dimension_numbers = #tpu.dot_dimension_numbers<[1], [0], [0], [1], [0, 0, 1, 1], [], []>} : vector<2x32xf32>, vector<32x32xf32>, vector<2x32xf32> -> vector<2x32xf32>
    %448 = arith.addf %444, %447 : vector<2x32xf32>
    %449 = arith.negf %433 : vector<2x32xf32>
    %450 = math.exp %449 : vector<2x32xf32>
    %cst_279 = arith.constant 1.000000e+00 : f32
    %451 = vector.broadcast %cst_279 : f32 to vector<2x32xf32>
    %452 = arith.addf %451, %450 : vector<2x32xf32>
    %453 = arith.divf %451, %452 : vector<2x32xf32>
    %454 = arith.negf %438 : vector<2x32xf32>
    %455 = math.exp %454 : vector<2x32xf32>
    %cst_280 = arith.constant 1.000000e+00 : f32
    %456 = vector.broadcast %cst_280 : f32 to vector<2x32xf32>
    %457 = arith.addf %456, %455 : vector<2x32xf32>
    %458 = arith.divf %456, %457 : vector<2x32xf32>
    %459 = math.tanh %443 : vector<2x32xf32>
    %460 = arith.negf %448 : vector<2x32xf32>
    %461 = math.exp %460 : vector<2x32xf32>
    %cst_281 = arith.constant 1.000000e+00 : f32
    %462 = vector.broadcast %cst_281 : f32 to vector<2x32xf32>
    %463 = arith.addf %462, %461 : vector<2x32xf32>
    %464 = arith.divf %462, %463 : vector<2x32xf32>
    %465 = arith.mulf %458, %372 : vector<2x32xf32>
    %466 = arith.mulf %453, %459 : vector<2x32xf32>
    %467 = arith.addf %465, %466 : vector<2x32xf32>
    %468 = math.tanh %467 : vector<2x32xf32>
    %469 = arith.mulf %464, %468 : vector<2x32xf32>
    %c0_282 = arith.constant 0 : index
    %c0_283 = arith.constant 0 : index
    %c0_284 = arith.constant 0 : index
    %470 = vector.load %arg5[%c0_282, %c0_283, %c0_284] : memref<4x32x32xf32, #tpu.memory_space<vmem>>, vector<1x32x32xf32>
    %471 = vector.shape_cast %470 : vector<1x32x32xf32> to vector<32x32xf32>
    %cst_285 = arith.constant dense<0.000000e+00> : vector<2x32xf32>
    %472 = tpu.matmul %469, %471, %cst_285 {dimension_numbers = #tpu.dot_dimension_numbers<[1], [0], [0], [1], [0, 0, 1, 1], [], []>} : vector<2x32xf32>, vector<32x32xf32>, vector<2x32xf32> -> vector<2x32xf32>
    %c0_286 = arith.constant 0 : index
    %c0_287 = arith.constant 0 : index
    %c0_288 = arith.constant 0 : index
    %473 = vector.load %arg6[%c0_286, %c0_287, %c0_288] : memref<4x32x32xf32, #tpu.memory_space<vmem>>, vector<1x32x32xf32>
    %474 = vector.shape_cast %473 : vector<1x32x32xf32> to vector<32x32xf32>
    %cst_289 = arith.constant dense<0.000000e+00> : vector<2x32xf32>
    %475 = tpu.matmul %427, %474, %cst_289 {dimension_numbers = #tpu.dot_dimension_numbers<[1], [0], [0], [1], [0, 0, 1, 1], [], []>} : vector<2x32xf32>, vector<32x32xf32>, vector<2x32xf32> -> vector<2x32xf32>
    %476 = arith.addf %472, %475 : vector<2x32xf32>
    %477 = arith.addf %476, %32 : vector<2x32xf32>
    %c1_290 = arith.constant 1 : index
    %c0_291 = arith.constant 0 : index
    %c0_292 = arith.constant 0 : index
    %478 = vector.load %arg5[%c1_290, %c0_291, %c0_292] : memref<4x32x32xf32, #tpu.memory_space<vmem>>, vector<1x32x32xf32>
    %479 = vector.shape_cast %478 : vector<1x32x32xf32> to vector<32x32xf32>
    %cst_293 = arith.constant dense<0.000000e+00> : vector<2x32xf32>
    %480 = tpu.matmul %469, %479, %cst_293 {dimension_numbers = #tpu.dot_dimension_numbers<[1], [0], [0], [1], [0, 0, 1, 1], [], []>} : vector<2x32xf32>, vector<32x32xf32>, vector<2x32xf32> -> vector<2x32xf32>
    %c1_294 = arith.constant 1 : index
    %c0_295 = arith.constant 0 : index
    %c0_296 = arith.constant 0 : index
    %481 = vector.load %arg6[%c1_294, %c0_295, %c0_296] : memref<4x32x32xf32, #tpu.memory_space<vmem>>, vector<1x32x32xf32>
    %482 = vector.shape_cast %481 : vector<1x32x32xf32> to vector<32x32xf32>
    %cst_297 = arith.constant dense<0.000000e+00> : vector<2x32xf32>
    %483 = tpu.matmul %427, %482, %cst_297 {dimension_numbers = #tpu.dot_dimension_numbers<[1], [0], [0], [1], [0, 0, 1, 1], [], []>} : vector<2x32xf32>, vector<32x32xf32>, vector<2x32xf32> -> vector<2x32xf32>
    %484 = arith.addf %480, %483 : vector<2x32xf32>
    %485 = arith.addf %484, %36 : vector<2x32xf32>
    %c2_298 = arith.constant 2 : index
    %c0_299 = arith.constant 0 : index
    %c0_300 = arith.constant 0 : index
    %486 = vector.load %arg5[%c2_298, %c0_299, %c0_300] : memref<4x32x32xf32, #tpu.memory_space<vmem>>, vector<1x32x32xf32>
    %487 = vector.shape_cast %486 : vector<1x32x32xf32> to vector<32x32xf32>
    %cst_301 = arith.constant dense<0.000000e+00> : vector<2x32xf32>
    %488 = tpu.matmul %469, %487, %cst_301 {dimension_numbers = #tpu.dot_dimension_numbers<[1], [0], [0], [1], [0, 0, 1, 1], [], []>} : vector<2x32xf32>, vector<32x32xf32>, vector<2x32xf32> -> vector<2x32xf32>
    %c2_302 = arith.constant 2 : index
    %c0_303 = arith.constant 0 : index
    %c0_304 = arith.constant 0 : index
    %489 = vector.load %arg6[%c2_302, %c0_303, %c0_304] : memref<4x32x32xf32, #tpu.memory_space<vmem>>, vector<1x32x32xf32>
    %490 = vector.shape_cast %489 : vector<1x32x32xf32> to vector<32x32xf32>
    %cst_305 = arith.constant dense<0.000000e+00> : vector<2x32xf32>
    %491 = tpu.matmul %427, %490, %cst_305 {dimension_numbers = #tpu.dot_dimension_numbers<[1], [0], [0], [1], [0, 0, 1, 1], [], []>} : vector<2x32xf32>, vector<32x32xf32>, vector<2x32xf32> -> vector<2x32xf32>
    %492 = arith.addf %488, %491 : vector<2x32xf32>
    %493 = arith.addf %492, %40 : vector<2x32xf32>
    %c3_306 = arith.constant 3 : index
    %c0_307 = arith.constant 0 : index
    %c0_308 = arith.constant 0 : index
    %494 = vector.load %arg5[%c3_306, %c0_307, %c0_308] : memref<4x32x32xf32, #tpu.memory_space<vmem>>, vector<1x32x32xf32>
    %495 = vector.shape_cast %494 : vector<1x32x32xf32> to vector<32x32xf32>
    %cst_309 = arith.constant dense<0.000000e+00> : vector<2x32xf32>
    %496 = tpu.matmul %469, %495, %cst_309 {dimension_numbers = #tpu.dot_dimension_numbers<[1], [0], [0], [1], [0, 0, 1, 1], [], []>} : vector<2x32xf32>, vector<32x32xf32>, vector<2x32xf32> -> vector<2x32xf32>
    %c3_310 = arith.constant 3 : index
    %c0_311 = arith.constant 0 : index
    %c0_312 = arith.constant 0 : index
    %497 = vector.load %arg6[%c3_310, %c0_311, %c0_312] : memref<4x32x32xf32, #tpu.memory_space<vmem>>, vector<1x32x32xf32>
    %498 = vector.shape_cast %497 : vector<1x32x32xf32> to vector<32x32xf32>
    %cst_313 = arith.constant dense<0.000000e+00> : vector<2x32xf32>
    %499 = tpu.matmul %427, %498, %cst_313 {dimension_numbers = #tpu.dot_dimension_numbers<[1], [0], [0], [1], [0, 0, 1, 1], [], []>} : vector<2x32xf32>, vector<32x32xf32>, vector<2x32xf32> -> vector<2x32xf32>
    %500 = arith.addf %496, %499 : vector<2x32xf32>
    %501 = arith.addf %500, %44 : vector<2x32xf32>
    %502 = arith.negf %477 : vector<2x32xf32>
    %503 = math.exp %502 : vector<2x32xf32>
    %cst_314 = arith.constant 1.000000e+00 : f32
    %504 = vector.broadcast %cst_314 : f32 to vector<2x32xf32>
    %505 = arith.addf %504, %503 : vector<2x32xf32>
    %506 = arith.divf %504, %505 : vector<2x32xf32>
    %507 = arith.negf %485 : vector<2x32xf32>
    %508 = math.exp %507 : vector<2x32xf32>
    %cst_315 = arith.constant 1.000000e+00 : f32
    %509 = vector.broadcast %cst_315 : f32 to vector<2x32xf32>
    %510 = arith.addf %509, %508 : vector<2x32xf32>
    %511 = arith.divf %509, %510 : vector<2x32xf32>
    %512 = math.tanh %493 : vector<2x32xf32>
    %513 = arith.negf %501 : vector<2x32xf32>
    %514 = math.exp %513 : vector<2x32xf32>
    %cst_316 = arith.constant 1.000000e+00 : f32
    %515 = vector.broadcast %cst_316 : f32 to vector<2x32xf32>
    %516 = arith.addf %515, %514 : vector<2x32xf32>
    %517 = arith.divf %515, %516 : vector<2x32xf32>
    %518 = arith.mulf %511, %425 : vector<2x32xf32>
    %519 = arith.mulf %506, %512 : vector<2x32xf32>
    %520 = arith.addf %518, %519 : vector<2x32xf32>
    %521 = math.tanh %520 : vector<2x32xf32>
    %522 = arith.mulf %517, %521 : vector<2x32xf32>
    %c8 = arith.constant 8 : index
    %c0_317 = arith.constant 0 : index
    %523 = vector.load %arg13[%c8, %c0_317] : memref<16x32xf32, #tpu.memory_space<vmem>>, vector<2x32xf32>
    tpu.vector_store %arg13[%c8, %c0_317], %522 {strides = array<i32>} : memref<16x32xf32, #tpu.memory_space<vmem>>, vector<2x32xf32>,
    %524 = vector.extract_strided_slice %7 {offsets = [10, 0], sizes = [2, 32], strides = [1, 1]} : vector<16x32xf32> to vector<2x32xf32>
    %c0_318 = arith.constant 0 : index
    %c0_319 = arith.constant 0 : index
    %c0_320 = arith.constant 0 : index
    %525 = vector.load %arg3[%c0_318, %c0_319, %c0_320] : memref<4x32x32xf32, #tpu.memory_space<vmem>>, vector<1x32x32xf32>
    %526 = vector.shape_cast %525 : vector<1x32x32xf32> to vector<32x32xf32>
    %cst_321 = arith.constant dense<0.000000e+00> : vector<2x32xf32>
    %527 = tpu.matmul %469, %526, %cst_321 {dimension_numbers = #tpu.dot_dimension_numbers<[1], [0], [0], [1], [0, 0, 1, 1], [], []>} : vector<2x32xf32>, vector<32x32xf32>, vector<2x32xf32> -> vector<2x32xf32>
    %528 = arith.addf %524, %527 : vector<2x32xf32>
    %529 = vector.extract_strided_slice %14 {offsets = [10, 0], sizes = [2, 32], strides = [1, 1]} : vector<16x32xf32> to vector<2x32xf32>
    %c1_322 = arith.constant 1 : index
    %c0_323 = arith.constant 0 : index
    %c0_324 = arith.constant 0 : index
    %530 = vector.load %arg3[%c1_322, %c0_323, %c0_324] : memref<4x32x32xf32, #tpu.memory_space<vmem>>, vector<1x32x32xf32>
    %531 = vector.shape_cast %530 : vector<1x32x32xf32> to vector<32x32xf32>
    %cst_325 = arith.constant dense<0.000000e+00> : vector<2x32xf32>
    %532 = tpu.matmul %469, %531, %cst_325 {dimension_numbers = #tpu.dot_dimension_numbers<[1], [0], [0], [1], [0, 0, 1, 1], [], []>} : vector<2x32xf32>, vector<32x32xf32>, vector<2x32xf32> -> vector<2x32xf32>
    %533 = arith.addf %529, %532 : vector<2x32xf32>
    %534 = vector.extract_strided_slice %21 {offsets = [10, 0], sizes = [2, 32], strides = [1, 1]} : vector<16x32xf32> to vector<2x32xf32>
    %c2_326 = arith.constant 2 : index
    %c0_327 = arith.constant 0 : index
    %c0_328 = arith.constant 0 : index
    %535 = vector.load %arg3[%c2_326, %c0_327, %c0_328] : memref<4x32x32xf32, #tpu.memory_space<vmem>>, vector<1x32x32xf32>
    %536 = vector.shape_cast %535 : vector<1x32x32xf32> to vector<32x32xf32>
    %cst_329 = arith.constant dense<0.000000e+00> : vector<2x32xf32>
    %537 = tpu.matmul %469, %536, %cst_329 {dimension_numbers = #tpu.dot_dimension_numbers<[1], [0], [0], [1], [0, 0, 1, 1], [], []>} : vector<2x32xf32>, vector<32x32xf32>, vector<2x32xf32> -> vector<2x32xf32>
    %538 = arith.addf %534, %537 : vector<2x32xf32>
    %539 = vector.extract_strided_slice %28 {offsets = [10, 0], sizes = [2, 32], strides = [1, 1]} : vector<16x32xf32> to vector<2x32xf32>
    %c3_330 = arith.constant 3 : index
    %c0_331 = arith.constant 0 : index
    %c0_332 = arith.constant 0 : index
    %540 = vector.load %arg3[%c3_330, %c0_331, %c0_332] : memref<4x32x32xf32, #tpu.memory_space<vmem>>, vector<1x32x32xf32>
    %541 = vector.shape_cast %540 : vector<1x32x32xf32> to vector<32x32xf32>
    %cst_333 = arith.constant dense<0.000000e+00> : vector<2x32xf32>
    %542 = tpu.matmul %469, %541, %cst_333 {dimension_numbers = #tpu.dot_dimension_numbers<[1], [0], [0], [1], [0, 0, 1, 1], [], []>} : vector<2x32xf32>, vector<32x32xf32>, vector<2x32xf32> -> vector<2x32xf32>
    %543 = arith.addf %539, %542 : vector<2x32xf32>
    %544 = arith.negf %528 : vector<2x32xf32>
    %545 = math.exp %544 : vector<2x32xf32>
    %cst_334 = arith.constant 1.000000e+00 : f32
    %546 = vector.broadcast %cst_334 : f32 to vector<2x32xf32>
    %547 = arith.addf %546, %545 : vector<2x32xf32>
    %548 = arith.divf %546, %547 : vector<2x32xf32>
    %549 = arith.negf %533 : vector<2x32xf32>
    %550 = math.exp %549 : vector<2x32xf32>
    %cst_335 = arith.constant 1.000000e+00 : f32
    %551 = vector.broadcast %cst_335 : f32 to vector<2x32xf32>
    %552 = arith.addf %551, %550 : vector<2x32xf32>
    %553 = arith.divf %551, %552 : vector<2x32xf32>
    %554 = math.tanh %538 : vector<2x32xf32>
    %555 = arith.negf %543 : vector<2x32xf32>
    %556 = math.exp %555 : vector<2x32xf32>
    %cst_336 = arith.constant 1.000000e+00 : f32
    %557 = vector.broadcast %cst_336 : f32 to vector<2x32xf32>
    %558 = arith.addf %557, %556 : vector<2x32xf32>
    %559 = arith.divf %557, %558 : vector<2x32xf32>
    %560 = arith.mulf %553, %467 : vector<2x32xf32>
    %561 = arith.mulf %548, %554 : vector<2x32xf32>
    %562 = arith.addf %560, %561 : vector<2x32xf32>
    %563 = math.tanh %562 : vector<2x32xf32>
    %564 = arith.mulf %559, %563 : vector<2x32xf32>
    %c0_337 = arith.constant 0 : index
    %c0_338 = arith.constant 0 : index
    %c0_339 = arith.constant 0 : index
    %565 = vector.load %arg5[%c0_337, %c0_338, %c0_339] : memref<4x32x32xf32, #tpu.memory_space<vmem>>, vector<1x32x32xf32>
    %566 = vector.shape_cast %565 : vector<1x32x32xf32> to vector<32x32xf32>
    %cst_340 = arith.constant dense<0.000000e+00> : vector<2x32xf32>
    %567 = tpu.matmul %564, %566, %cst_340 {dimension_numbers = #tpu.dot_dimension_numbers<[1], [0], [0], [1], [0, 0, 1, 1], [], []>} : vector<2x32xf32>, vector<32x32xf32>, vector<2x32xf32> -> vector<2x32xf32>
    %c0_341 = arith.constant 0 : index
    %c0_342 = arith.constant 0 : index
    %c0_343 = arith.constant 0 : index
    %568 = vector.load %arg6[%c0_341, %c0_342, %c0_343] : memref<4x32x32xf32, #tpu.memory_space<vmem>>, vector<1x32x32xf32>
    %569 = vector.shape_cast %568 : vector<1x32x32xf32> to vector<32x32xf32>
    %cst_344 = arith.constant dense<0.000000e+00> : vector<2x32xf32>
    %570 = tpu.matmul %522, %569, %cst_344 {dimension_numbers = #tpu.dot_dimension_numbers<[1], [0], [0], [1], [0, 0, 1, 1], [], []>} : vector<2x32xf32>, vector<32x32xf32>, vector<2x32xf32> -> vector<2x32xf32>
    %571 = arith.addf %567, %570 : vector<2x32xf32>
    %572 = arith.addf %571, %32 : vector<2x32xf32>
    %c1_345 = arith.constant 1 : index
    %c0_346 = arith.constant 0 : index
    %c0_347 = arith.constant 0 : index
    %573 = vector.load %arg5[%c1_345, %c0_346, %c0_347] : memref<4x32x32xf32, #tpu.memory_space<vmem>>, vector<1x32x32xf32>
    %574 = vector.shape_cast %573 : vector<1x32x32xf32> to vector<32x32xf32>
    %cst_348 = arith.constant dense<0.000000e+00> : vector<2x32xf32>
    %575 = tpu.matmul %564, %574, %cst_348 {dimension_numbers = #tpu.dot_dimension_numbers<[1], [0], [0], [1], [0, 0, 1, 1], [], []>} : vector<2x32xf32>, vector<32x32xf32>, vector<2x32xf32> -> vector<2x32xf32>
    %c1_349 = arith.constant 1 : index
    %c0_350 = arith.constant 0 : index
    %c0_351 = arith.constant 0 : index
    %576 = vector.load %arg6[%c1_349, %c0_350, %c0_351] : memref<4x32x32xf32, #tpu.memory_space<vmem>>, vector<1x32x32xf32>
    %577 = vector.shape_cast %576 : vector<1x32x32xf32> to vector<32x32xf32>
    %cst_352 = arith.constant dense<0.000000e+00> : vector<2x32xf32>
    %578 = tpu.matmul %522, %577, %cst_352 {dimension_numbers = #tpu.dot_dimension_numbers<[1], [0], [0], [1], [0, 0, 1, 1], [], []>} : vector<2x32xf32>, vector<32x32xf32>, vector<2x32xf32> -> vector<2x32xf32>
    %579 = arith.addf %575, %578 : vector<2x32xf32>
    %580 = arith.addf %579, %36 : vector<2x32xf32>
    %c2_353 = arith.constant 2 : index
    %c0_354 = arith.constant 0 : index
    %c0_355 = arith.constant 0 : index
    %581 = vector.load %arg5[%c2_353, %c0_354, %c0_355] : memref<4x32x32xf32, #tpu.memory_space<vmem>>, vector<1x32x32xf32>
    %582 = vector.shape_cast %581 : vector<1x32x32xf32> to vector<32x32xf32>
    %cst_356 = arith.constant dense<0.000000e+00> : vector<2x32xf32>
    %583 = tpu.matmul %564, %582, %cst_356 {dimension_numbers = #tpu.dot_dimension_numbers<[1], [0], [0], [1], [0, 0, 1, 1], [], []>} : vector<2x32xf32>, vector<32x32xf32>, vector<2x32xf32> -> vector<2x32xf32>
    %c2_357 = arith.constant 2 : index
    %c0_358 = arith.constant 0 : index
    %c0_359 = arith.constant 0 : index
    %584 = vector.load %arg6[%c2_357, %c0_358, %c0_359] : memref<4x32x32xf32, #tpu.memory_space<vmem>>, vector<1x32x32xf32>
    %585 = vector.shape_cast %584 : vector<1x32x32xf32> to vector<32x32xf32>
    %cst_360 = arith.constant dense<0.000000e+00> : vector<2x32xf32>
    %586 = tpu.matmul %522, %585, %cst_360 {dimension_numbers = #tpu.dot_dimension_numbers<[1], [0], [0], [1], [0, 0, 1, 1], [], []>} : vector<2x32xf32>, vector<32x32xf32>, vector<2x32xf32> -> vector<2x32xf32>
    %587 = arith.addf %583, %586 : vector<2x32xf32>
    %588 = arith.addf %587, %40 : vector<2x32xf32>
    %c3_361 = arith.constant 3 : index
    %c0_362 = arith.constant 0 : index
    %c0_363 = arith.constant 0 : index
    %589 = vector.load %arg5[%c3_361, %c0_362, %c0_363] : memref<4x32x32xf32, #tpu.memory_space<vmem>>, vector<1x32x32xf32>
    %590 = vector.shape_cast %589 : vector<1x32x32xf32> to vector<32x32xf32>
    %cst_364 = arith.constant dense<0.000000e+00> : vector<2x32xf32>
    %591 = tpu.matmul %564, %590, %cst_364 {dimension_numbers = #tpu.dot_dimension_numbers<[1], [0], [0], [1], [0, 0, 1, 1], [], []>} : vector<2x32xf32>, vector<32x32xf32>, vector<2x32xf32> -> vector<2x32xf32>
    %c3_365 = arith.constant 3 : index
    %c0_366 = arith.constant 0 : index
    %c0_367 = arith.constant 0 : index
    %592 = vector.load %arg6[%c3_365, %c0_366, %c0_367] : memref<4x32x32xf32, #tpu.memory_space<vmem>>, vector<1x32x32xf32>
    %593 = vector.shape_cast %592 : vector<1x32x32xf32> to vector<32x32xf32>
    %cst_368 = arith.constant dense<0.000000e+00> : vector<2x32xf32>
    %594 = tpu.matmul %522, %593, %cst_368 {dimension_numbers = #tpu.dot_dimension_numbers<[1], [0], [0], [1], [0, 0, 1, 1], [], []>} : vector<2x32xf32>, vector<32x32xf32>, vector<2x32xf32> -> vector<2x32xf32>
    %595 = arith.addf %591, %594 : vector<2x32xf32>
    %596 = arith.addf %595, %44 : vector<2x32xf32>
    %597 = arith.negf %572 : vector<2x32xf32>
    %598 = math.exp %597 : vector<2x32xf32>
    %cst_369 = arith.constant 1.000000e+00 : f32
    %599 = vector.broadcast %cst_369 : f32 to vector<2x32xf32>
    %600 = arith.addf %599, %598 : vector<2x32xf32>
    %601 = arith.divf %599, %600 : vector<2x32xf32>
    %602 = arith.negf %580 : vector<2x32xf32>
    %603 = math.exp %602 : vector<2x32xf32>
    %cst_370 = arith.constant 1.000000e+00 : f32
    %604 = vector.broadcast %cst_370 : f32 to vector<2x32xf32>
    %605 = arith.addf %604, %603 : vector<2x32xf32>
    %606 = arith.divf %604, %605 : vector<2x32xf32>
    %607 = math.tanh %588 : vector<2x32xf32>
    %608 = arith.negf %596 : vector<2x32xf32>
    %609 = math.exp %608 : vector<2x32xf32>
    %cst_371 = arith.constant 1.000000e+00 : f32
    %610 = vector.broadcast %cst_371 : f32 to vector<2x32xf32>
    %611 = arith.addf %610, %609 : vector<2x32xf32>
    %612 = arith.divf %610, %611 : vector<2x32xf32>
    %613 = arith.mulf %606, %520 : vector<2x32xf32>
    %614 = arith.mulf %601, %607 : vector<2x32xf32>
    %615 = arith.addf %613, %614 : vector<2x32xf32>
    %616 = math.tanh %615 : vector<2x32xf32>
    %617 = arith.mulf %612, %616 : vector<2x32xf32>
    %c10 = arith.constant 10 : index
    %c0_372 = arith.constant 0 : index
    %618 = vector.load %arg13[%c10, %c0_372] : memref<16x32xf32, #tpu.memory_space<vmem>>, vector<2x32xf32>
    tpu.vector_store %arg13[%c10, %c0_372], %617 {strides = array<i32>} : memref<16x32xf32, #tpu.memory_space<vmem>>, vector<2x32xf32>,
    %619 = vector.extract_strided_slice %7 {offsets = [12, 0], sizes = [2, 32], strides = [1, 1]} : vector<16x32xf32> to vector<2x32xf32>
    %c0_373 = arith.constant 0 : index
    %c0_374 = arith.constant 0 : index
    %c0_375 = arith.constant 0 : index
    %620 = vector.load %arg3[%c0_373, %c0_374, %c0_375] : memref<4x32x32xf32, #tpu.memory_space<vmem>>, vector<1x32x32xf32>
    %621 = vector.shape_cast %620 : vector<1x32x32xf32> to vector<32x32xf32>
    %cst_376 = arith.constant dense<0.000000e+00> : vector<2x32xf32>
    %622 = tpu.matmul %564, %621, %cst_376 {dimension_numbers = #tpu.dot_dimension_numbers<[1], [0], [0], [1], [0, 0, 1, 1], [], []>} : vector<2x32xf32>, vector<32x32xf32>, vector<2x32xf32> -> vector<2x32xf32>
    %623 = arith.addf %619, %622 : vector<2x32xf32>
    %624 = vector.extract_strided_slice %14 {offsets = [12, 0], sizes = [2, 32], strides = [1, 1]} : vector<16x32xf32> to vector<2x32xf32>
    %c1_377 = arith.constant 1 : index
    %c0_378 = arith.constant 0 : index
    %c0_379 = arith.constant 0 : index
    %625 = vector.load %arg3[%c1_377, %c0_378, %c0_379] : memref<4x32x32xf32, #tpu.memory_space<vmem>>, vector<1x32x32xf32>
    %626 = vector.shape_cast %625 : vector<1x32x32xf32> to vector<32x32xf32>
    %cst_380 = arith.constant dense<0.000000e+00> : vector<2x32xf32>
    %627 = tpu.matmul %564, %626, %cst_380 {dimension_numbers = #tpu.dot_dimension_numbers<[1], [0], [0], [1], [0, 0, 1, 1], [], []>} : vector<2x32xf32>, vector<32x32xf32>, vector<2x32xf32> -> vector<2x32xf32>
    %628 = arith.addf %624, %627 : vector<2x32xf32>
    %629 = vector.extract_strided_slice %21 {offsets = [12, 0], sizes = [2, 32], strides = [1, 1]} : vector<16x32xf32> to vector<2x32xf32>
    %c2_381 = arith.constant 2 : index
    %c0_382 = arith.constant 0 : index
    %c0_383 = arith.constant 0 : index
    %630 = vector.load %arg3[%c2_381, %c0_382, %c0_383] : memref<4x32x32xf32, #tpu.memory_space<vmem>>, vector<1x32x32xf32>
    %631 = vector.shape_cast %630 : vector<1x32x32xf32> to vector<32x32xf32>
    %cst_384 = arith.constant dense<0.000000e+00> : vector<2x32xf32>
    %632 = tpu.matmul %564, %631, %cst_384 {dimension_numbers = #tpu.dot_dimension_numbers<[1], [0], [0], [1], [0, 0, 1, 1], [], []>} : vector<2x32xf32>, vector<32x32xf32>, vector<2x32xf32> -> vector<2x32xf32>
    %633 = arith.addf %629, %632 : vector<2x32xf32>
    %634 = vector.extract_strided_slice %28 {offsets = [12, 0], sizes = [2, 32], strides = [1, 1]} : vector<16x32xf32> to vector<2x32xf32>
    %c3_385 = arith.constant 3 : index
    %c0_386 = arith.constant 0 : index
    %c0_387 = arith.constant 0 : index
    %635 = vector.load %arg3[%c3_385, %c0_386, %c0_387] : memref<4x32x32xf32, #tpu.memory_space<vmem>>, vector<1x32x32xf32>
    %636 = vector.shape_cast %635 : vector<1x32x32xf32> to vector<32x32xf32>
    %cst_388 = arith.constant dense<0.000000e+00> : vector<2x32xf32>
    %637 = tpu.matmul %564, %636, %cst_388 {dimension_numbers = #tpu.dot_dimension_numbers<[1], [0], [0], [1], [0, 0, 1, 1], [], []>} : vector<2x32xf32>, vector<32x32xf32>, vector<2x32xf32> -> vector<2x32xf32>
    %638 = arith.addf %634, %637 : vector<2x32xf32>
    %639 = arith.negf %623 : vector<2x32xf32>
    %640 = math.exp %639 : vector<2x32xf32>
    %cst_389 = arith.constant 1.000000e+00 : f32
    %641 = vector.broadcast %cst_389 : f32 to vector<2x32xf32>
    %642 = arith.addf %641, %640 : vector<2x32xf32>
    %643 = arith.divf %641, %642 : vector<2x32xf32>
    %644 = arith.negf %628 : vector<2x32xf32>
    %645 = math.exp %644 : vector<2x32xf32>
    %cst_390 = arith.constant 1.000000e+00 : f32
    %646 = vector.broadcast %cst_390 : f32 to vector<2x32xf32>
    %647 = arith.addf %646, %645 : vector<2x32xf32>
    %648 = arith.divf %646, %647 : vector<2x32xf32>
    %649 = math.tanh %633 : vector<2x32xf32>
    %650 = arith.negf %638 : vector<2x32xf32>
    %651 = math.exp %650 : vector<2x32xf32>
    %cst_391 = arith.constant 1.000000e+00 : f32
    %652 = vector.broadcast %cst_391 : f32 to vector<2x32xf32>
    %653 = arith.addf %652, %651 : vector<2x32xf32>
    %654 = arith.divf %652, %653 : vector<2x32xf32>
    %655 = arith.mulf %648, %562 : vector<2x32xf32>
    %656 = arith.mulf %643, %649 : vector<2x32xf32>
    %657 = arith.addf %655, %656 : vector<2x32xf32>
    %658 = math.tanh %657 : vector<2x32xf32>
    %659 = arith.mulf %654, %658 : vector<2x32xf32>
    %c0_392 = arith.constant 0 : index
    %c0_393 = arith.constant 0 : index
    %c0_394 = arith.constant 0 : index
    %660 = vector.load %arg5[%c0_392, %c0_393, %c0_394] : memref<4x32x32xf32, #tpu.memory_space<vmem>>, vector<1x32x32xf32>
    %661 = vector.shape_cast %660 : vector<1x32x32xf32> to vector<32x32xf32>
    %cst_395 = arith.constant dense<0.000000e+00> : vector<2x32xf32>
    %662 = tpu.matmul %659, %661, %cst_395 {dimension_numbers = #tpu.dot_dimension_numbers<[1], [0], [0], [1], [0, 0, 1, 1], [], []>} : vector<2x32xf32>, vector<32x32xf32>, vector<2x32xf32> -> vector<2x32xf32>
    %c0_396 = arith.constant 0 : index
    %c0_397 = arith.constant 0 : index
    %c0_398 = arith.constant 0 : index
    %663 = vector.load %arg6[%c0_396, %c0_397, %c0_398] : memref<4x32x32xf32, #tpu.memory_space<vmem>>, vector<1x32x32xf32>
    %664 = vector.shape_cast %663 : vector<1x32x32xf32> to vector<32x32xf32>
    %cst_399 = arith.constant dense<0.000000e+00> : vector<2x32xf32>
    %665 = tpu.matmul %617, %664, %cst_399 {dimension_numbers = #tpu.dot_dimension_numbers<[1], [0], [0], [1], [0, 0, 1, 1], [], []>} : vector<2x32xf32>, vector<32x32xf32>, vector<2x32xf32> -> vector<2x32xf32>
    %666 = arith.addf %662, %665 : vector<2x32xf32>
    %667 = arith.addf %666, %32 : vector<2x32xf32>
    %c1_400 = arith.constant 1 : index
    %c0_401 = arith.constant 0 : index
    %c0_402 = arith.constant 0 : index
    %668 = vector.load %arg5[%c1_400, %c0_401, %c0_402] : memref<4x32x32xf32, #tpu.memory_space<vmem>>, vector<1x32x32xf32>
    %669 = vector.shape_cast %668 : vector<1x32x32xf32> to vector<32x32xf32>
    %cst_403 = arith.constant dense<0.000000e+00> : vector<2x32xf32>
    %670 = tpu.matmul %659, %669, %cst_403 {dimension_numbers = #tpu.dot_dimension_numbers<[1], [0], [0], [1], [0, 0, 1, 1], [], []>} : vector<2x32xf32>, vector<32x32xf32>, vector<2x32xf32> -> vector<2x32xf32>
    %c1_404 = arith.constant 1 : index
    %c0_405 = arith.constant 0 : index
    %c0_406 = arith.constant 0 : index
    %671 = vector.load %arg6[%c1_404, %c0_405, %c0_406] : memref<4x32x32xf32, #tpu.memory_space<vmem>>, vector<1x32x32xf32>
    %672 = vector.shape_cast %671 : vector<1x32x32xf32> to vector<32x32xf32>
    %cst_407 = arith.constant dense<0.000000e+00> : vector<2x32xf32>
    %673 = tpu.matmul %617, %672, %cst_407 {dimension_numbers = #tpu.dot_dimension_numbers<[1], [0], [0], [1], [0, 0, 1, 1], [], []>} : vector<2x32xf32>, vector<32x32xf32>, vector<2x32xf32> -> vector<2x32xf32>
    %674 = arith.addf %670, %673 : vector<2x32xf32>
    %675 = arith.addf %674, %36 : vector<2x32xf32>
    %c2_408 = arith.constant 2 : index
    %c0_409 = arith.constant 0 : index
    %c0_410 = arith.constant 0 : index
    %676 = vector.load %arg5[%c2_408, %c0_409, %c0_410] : memref<4x32x32xf32, #tpu.memory_space<vmem>>, vector<1x32x32xf32>
    %677 = vector.shape_cast %676 : vector<1x32x32xf32> to vector<32x32xf32>
    %cst_411 = arith.constant dense<0.000000e+00> : vector<2x32xf32>
    %678 = tpu.matmul %659, %677, %cst_411 {dimension_numbers = #tpu.dot_dimension_numbers<[1], [0], [0], [1], [0, 0, 1, 1], [], []>} : vector<2x32xf32>, vector<32x32xf32>, vector<2x32xf32> -> vector<2x32xf32>
    %c2_412 = arith.constant 2 : index
    %c0_413 = arith.constant 0 : index
    %c0_414 = arith.constant 0 : index
    %679 = vector.load %arg6[%c2_412, %c0_413, %c0_414] : memref<4x32x32xf32, #tpu.memory_space<vmem>>, vector<1x32x32xf32>
    %680 = vector.shape_cast %679 : vector<1x32x32xf32> to vector<32x32xf32>
    %cst_415 = arith.constant dense<0.000000e+00> : vector<2x32xf32>
    %681 = tpu.matmul %617, %680, %cst_415 {dimension_numbers = #tpu.dot_dimension_numbers<[1], [0], [0], [1], [0, 0, 1, 1], [], []>} : vector<2x32xf32>, vector<32x32xf32>, vector<2x32xf32> -> vector<2x32xf32>
    %682 = arith.addf %678, %681 : vector<2x32xf32>
    %683 = arith.addf %682, %40 : vector<2x32xf32>
    %c3_416 = arith.constant 3 : index
    %c0_417 = arith.constant 0 : index
    %c0_418 = arith.constant 0 : index
    %684 = vector.load %arg5[%c3_416, %c0_417, %c0_418] : memref<4x32x32xf32, #tpu.memory_space<vmem>>, vector<1x32x32xf32>
    %685 = vector.shape_cast %684 : vector<1x32x32xf32> to vector<32x32xf32>
    %cst_419 = arith.constant dense<0.000000e+00> : vector<2x32xf32>
    %686 = tpu.matmul %659, %685, %cst_419 {dimension_numbers = #tpu.dot_dimension_numbers<[1], [0], [0], [1], [0, 0, 1, 1], [], []>} : vector<2x32xf32>, vector<32x32xf32>, vector<2x32xf32> -> vector<2x32xf32>
    %c3_420 = arith.constant 3 : index
    %c0_421 = arith.constant 0 : index
    %c0_422 = arith.constant 0 : index
    %687 = vector.load %arg6[%c3_420, %c0_421, %c0_422] : memref<4x32x32xf32, #tpu.memory_space<vmem>>, vector<1x32x32xf32>
    %688 = vector.shape_cast %687 : vector<1x32x32xf32> to vector<32x32xf32>
    %cst_423 = arith.constant dense<0.000000e+00> : vector<2x32xf32>
    %689 = tpu.matmul %617, %688, %cst_423 {dimension_numbers = #tpu.dot_dimension_numbers<[1], [0], [0], [1], [0, 0, 1, 1], [], []>} : vector<2x32xf32>, vector<32x32xf32>, vector<2x32xf32> -> vector<2x32xf32>
    %690 = arith.addf %686, %689 : vector<2x32xf32>
    %691 = arith.addf %690, %44 : vector<2x32xf32>
    %692 = arith.negf %667 : vector<2x32xf32>
    %693 = math.exp %692 : vector<2x32xf32>
    %cst_424 = arith.constant 1.000000e+00 : f32
    %694 = vector.broadcast %cst_424 : f32 to vector<2x32xf32>
    %695 = arith.addf %694, %693 : vector<2x32xf32>
    %696 = arith.divf %694, %695 : vector<2x32xf32>
    %697 = arith.negf %675 : vector<2x32xf32>
    %698 = math.exp %697 : vector<2x32xf32>
    %cst_425 = arith.constant 1.000000e+00 : f32
    %699 = vector.broadcast %cst_425 : f32 to vector<2x32xf32>
    %700 = arith.addf %699, %698 : vector<2x32xf32>
    %701 = arith.divf %699, %700 : vector<2x32xf32>
    %702 = math.tanh %683 : vector<2x32xf32>
    %703 = arith.negf %691 : vector<2x32xf32>
    %704 = math.exp %703 : vector<2x32xf32>
    %cst_426 = arith.constant 1.000000e+00 : f32
    %705 = vector.broadcast %cst_426 : f32 to vector<2x32xf32>
    %706 = arith.addf %705, %704 : vector<2x32xf32>
    %707 = arith.divf %705, %706 : vector<2x32xf32>
    %708 = arith.mulf %701, %615 : vector<2x32xf32>
    %709 = arith.mulf %696, %702 : vector<2x32xf32>
    %710 = arith.addf %708, %709 : vector<2x32xf32>
    %711 = math.tanh %710 : vector<2x32xf32>
    %712 = arith.mulf %707, %711 : vector<2x32xf32>
    %c12 = arith.constant 12 : index
    %c0_427 = arith.constant 0 : index
    %713 = vector.load %arg13[%c12, %c0_427] : memref<16x32xf32, #tpu.memory_space<vmem>>, vector<2x32xf32>
    tpu.vector_store %arg13[%c12, %c0_427], %712 {strides = array<i32>} : memref<16x32xf32, #tpu.memory_space<vmem>>, vector<2x32xf32>,
    %714 = vector.extract_strided_slice %7 {offsets = [14, 0], sizes = [2, 32], strides = [1, 1]} : vector<16x32xf32> to vector<2x32xf32>
    %c0_428 = arith.constant 0 : index
    %c0_429 = arith.constant 0 : index
    %c0_430 = arith.constant 0 : index
    %715 = vector.load %arg3[%c0_428, %c0_429, %c0_430] : memref<4x32x32xf32, #tpu.memory_space<vmem>>, vector<1x32x32xf32>
    %716 = vector.shape_cast %715 : vector<1x32x32xf32> to vector<32x32xf32>
    %cst_431 = arith.constant dense<0.000000e+00> : vector<2x32xf32>
    %717 = tpu.matmul %659, %716, %cst_431 {dimension_numbers = #tpu.dot_dimension_numbers<[1], [0], [0], [1], [0, 0, 1, 1], [], []>} : vector<2x32xf32>, vector<32x32xf32>, vector<2x32xf32> -> vector<2x32xf32>
    %718 = arith.addf %714, %717 : vector<2x32xf32>
    %719 = vector.extract_strided_slice %14 {offsets = [14, 0], sizes = [2, 32], strides = [1, 1]} : vector<16x32xf32> to vector<2x32xf32>
    %c1_432 = arith.constant 1 : index
    %c0_433 = arith.constant 0 : index
    %c0_434 = arith.constant 0 : index
    %720 = vector.load %arg3[%c1_432, %c0_433, %c0_434] : memref<4x32x32xf32, #tpu.memory_space<vmem>>, vector<1x32x32xf32>
    %721 = vector.shape_cast %720 : vector<1x32x32xf32> to vector<32x32xf32>
    %cst_435 = arith.constant dense<0.000000e+00> : vector<2x32xf32>
    %722 = tpu.matmul %659, %721, %cst_435 {dimension_numbers = #tpu.dot_dimension_numbers<[1], [0], [0], [1], [0, 0, 1, 1], [], []>} : vector<2x32xf32>, vector<32x32xf32>, vector<2x32xf32> -> vector<2x32xf32>
    %723 = arith.addf %719, %722 : vector<2x32xf32>
    %724 = vector.extract_strided_slice %21 {offsets = [14, 0], sizes = [2, 32], strides = [1, 1]} : vector<16x32xf32> to vector<2x32xf32>
    %c2_436 = arith.constant 2 : index
    %c0_437 = arith.constant 0 : index
    %c0_438 = arith.constant 0 : index
    %725 = vector.load %arg3[%c2_436, %c0_437, %c0_438] : memref<4x32x32xf32, #tpu.memory_space<vmem>>, vector<1x32x32xf32>
    %726 = vector.shape_cast %725 : vector<1x32x32xf32> to vector<32x32xf32>
    %cst_439 = arith.constant dense<0.000000e+00> : vector<2x32xf32>
    %727 = tpu.matmul %659, %726, %cst_439 {dimension_numbers = #tpu.dot_dimension_numbers<[1], [0], [0], [1], [0, 0, 1, 1], [], []>} : vector<2x32xf32>, vector<32x32xf32>, vector<2x32xf32> -> vector<2x32xf32>
    %728 = arith.addf %724, %727 : vector<2x32xf32>
    %729 = vector.extract_strided_slice %28 {offsets = [14, 0], sizes = [2, 32], strides = [1, 1]} : vector<16x32xf32> to vector<2x32xf32>
    %c3_440 = arith.constant 3 : index
    %c0_441 = arith.constant 0 : index
    %c0_442 = arith.constant 0 : index
    %730 = vector.load %arg3[%c3_440, %c0_441, %c0_442] : memref<4x32x32xf32, #tpu.memory_space<vmem>>, vector<1x32x32xf32>
    %731 = vector.shape_cast %730 : vector<1x32x32xf32> to vector<32x32xf32>
    %cst_443 = arith.constant dense<0.000000e+00> : vector<2x32xf32>
    %732 = tpu.matmul %659, %731, %cst_443 {dimension_numbers = #tpu.dot_dimension_numbers<[1], [0], [0], [1], [0, 0, 1, 1], [], []>} : vector<2x32xf32>, vector<32x32xf32>, vector<2x32xf32> -> vector<2x32xf32>
    %733 = arith.addf %729, %732 : vector<2x32xf32>
    %734 = arith.negf %718 : vector<2x32xf32>
    %735 = math.exp %734 : vector<2x32xf32>
    %cst_444 = arith.constant 1.000000e+00 : f32
    %736 = vector.broadcast %cst_444 : f32 to vector<2x32xf32>
    %737 = arith.addf %736, %735 : vector<2x32xf32>
    %738 = arith.divf %736, %737 : vector<2x32xf32>
    %739 = arith.negf %723 : vector<2x32xf32>
    %740 = math.exp %739 : vector<2x32xf32>
    %cst_445 = arith.constant 1.000000e+00 : f32
    %741 = vector.broadcast %cst_445 : f32 to vector<2x32xf32>
    %742 = arith.addf %741, %740 : vector<2x32xf32>
    %743 = arith.divf %741, %742 : vector<2x32xf32>
    %744 = math.tanh %728 : vector<2x32xf32>
    %745 = arith.negf %733 : vector<2x32xf32>
    %746 = math.exp %745 : vector<2x32xf32>
    %cst_446 = arith.constant 1.000000e+00 : f32
    %747 = vector.broadcast %cst_446 : f32 to vector<2x32xf32>
    %748 = arith.addf %747, %746 : vector<2x32xf32>
    %749 = arith.divf %747, %748 : vector<2x32xf32>
    %750 = arith.mulf %743, %657 : vector<2x32xf32>
    %751 = arith.mulf %738, %744 : vector<2x32xf32>
    %752 = arith.addf %750, %751 : vector<2x32xf32>
    %753 = math.tanh %752 : vector<2x32xf32>
    %754 = arith.mulf %749, %753 : vector<2x32xf32>
    %c0_447 = arith.constant 0 : index
    %c0_448 = arith.constant 0 : index
    %c0_449 = arith.constant 0 : index
    %755 = vector.load %arg5[%c0_447, %c0_448, %c0_449] : memref<4x32x32xf32, #tpu.memory_space<vmem>>, vector<1x32x32xf32>
    %756 = vector.shape_cast %755 : vector<1x32x32xf32> to vector<32x32xf32>
    %cst_450 = arith.constant dense<0.000000e+00> : vector<2x32xf32>
    %757 = tpu.matmul %754, %756, %cst_450 {dimension_numbers = #tpu.dot_dimension_numbers<[1], [0], [0], [1], [0, 0, 1, 1], [], []>} : vector<2x32xf32>, vector<32x32xf32>, vector<2x32xf32> -> vector<2x32xf32>
    %c0_451 = arith.constant 0 : index
    %c0_452 = arith.constant 0 : index
    %c0_453 = arith.constant 0 : index
    %758 = vector.load %arg6[%c0_451, %c0_452, %c0_453] : memref<4x32x32xf32, #tpu.memory_space<vmem>>, vector<1x32x32xf32>
    %759 = vector.shape_cast %758 : vector<1x32x32xf32> to vector<32x32xf32>
    %cst_454 = arith.constant dense<0.000000e+00> : vector<2x32xf32>
    %760 = tpu.matmul %712, %759, %cst_454 {dimension_numbers = #tpu.dot_dimension_numbers<[1], [0], [0], [1], [0, 0, 1, 1], [], []>} : vector<2x32xf32>, vector<32x32xf32>, vector<2x32xf32> -> vector<2x32xf32>
    %761 = arith.addf %757, %760 : vector<2x32xf32>
    %762 = arith.addf %761, %32 : vector<2x32xf32>
    %c1_455 = arith.constant 1 : index
    %c0_456 = arith.constant 0 : index
    %c0_457 = arith.constant 0 : index
    %763 = vector.load %arg5[%c1_455, %c0_456, %c0_457] : memref<4x32x32xf32, #tpu.memory_space<vmem>>, vector<1x32x32xf32>
    %764 = vector.shape_cast %763 : vector<1x32x32xf32> to vector<32x32xf32>
    %cst_458 = arith.constant dense<0.000000e+00> : vector<2x32xf32>
    %765 = tpu.matmul %754, %764, %cst_458 {dimension_numbers = #tpu.dot_dimension_numbers<[1], [0], [0], [1], [0, 0, 1, 1], [], []>} : vector<2x32xf32>, vector<32x32xf32>, vector<2x32xf32> -> vector<2x32xf32>
    %c1_459 = arith.constant 1 : index
    %c0_460 = arith.constant 0 : index
    %c0_461 = arith.constant 0 : index
    %766 = vector.load %arg6[%c1_459, %c0_460, %c0_461] : memref<4x32x32xf32, #tpu.memory_space<vmem>>, vector<1x32x32xf32>
    %767 = vector.shape_cast %766 : vector<1x32x32xf32> to vector<32x32xf32>
    %cst_462 = arith.constant dense<0.000000e+00> : vector<2x32xf32>
    %768 = tpu.matmul %712, %767, %cst_462 {dimension_numbers = #tpu.dot_dimension_numbers<[1], [0], [0], [1], [0, 0, 1, 1], [], []>} : vector<2x32xf32>, vector<32x32xf32>, vector<2x32xf32> -> vector<2x32xf32>
    %769 = arith.addf %765, %768 : vector<2x32xf32>
    %770 = arith.addf %769, %36 : vector<2x32xf32>
    %c2_463 = arith.constant 2 : index
    %c0_464 = arith.constant 0 : index
    %c0_465 = arith.constant 0 : index
    %771 = vector.load %arg5[%c2_463, %c0_464, %c0_465] : memref<4x32x32xf32, #tpu.memory_space<vmem>>, vector<1x32x32xf32>
    %772 = vector.shape_cast %771 : vector<1x32x32xf32> to vector<32x32xf32>
    %cst_466 = arith.constant dense<0.000000e+00> : vector<2x32xf32>
    %773 = tpu.matmul %754, %772, %cst_466 {dimension_numbers = #tpu.dot_dimension_numbers<[1], [0], [0], [1], [0, 0, 1, 1], [], []>} : vector<2x32xf32>, vector<32x32xf32>, vector<2x32xf32> -> vector<2x32xf32>
    %c2_467 = arith.constant 2 : index
    %c0_468 = arith.constant 0 : index
    %c0_469 = arith.constant 0 : index
    %774 = vector.load %arg6[%c2_467, %c0_468, %c0_469] : memref<4x32x32xf32, #tpu.memory_space<vmem>>, vector<1x32x32xf32>
    %775 = vector.shape_cast %774 : vector<1x32x32xf32> to vector<32x32xf32>
    %cst_470 = arith.constant dense<0.000000e+00> : vector<2x32xf32>
    %776 = tpu.matmul %712, %775, %cst_470 {dimension_numbers = #tpu.dot_dimension_numbers<[1], [0], [0], [1], [0, 0, 1, 1], [], []>} : vector<2x32xf32>, vector<32x32xf32>, vector<2x32xf32> -> vector<2x32xf32>
    %777 = arith.addf %773, %776 : vector<2x32xf32>
    %778 = arith.addf %777, %40 : vector<2x32xf32>
    %c3_471 = arith.constant 3 : index
    %c0_472 = arith.constant 0 : index
    %c0_473 = arith.constant 0 : index
    %779 = vector.load %arg5[%c3_471, %c0_472, %c0_473] : memref<4x32x32xf32, #tpu.memory_space<vmem>>, vector<1x32x32xf32>
    %780 = vector.shape_cast %779 : vector<1x32x32xf32> to vector<32x32xf32>
    %cst_474 = arith.constant dense<0.000000e+00> : vector<2x32xf32>
    %781 = tpu.matmul %754, %780, %cst_474 {dimension_numbers = #tpu.dot_dimension_numbers<[1], [0], [0], [1], [0, 0, 1, 1], [], []>} : vector<2x32xf32>, vector<32x32xf32>, vector<2x32xf32> -> vector<2x32xf32>
    %c3_475 = arith.constant 3 : index
    %c0_476 = arith.constant 0 : index
    %c0_477 = arith.constant 0 : index
    %782 = vector.load %arg6[%c3_475, %c0_476, %c0_477] : memref<4x32x32xf32, #tpu.memory_space<vmem>>, vector<1x32x32xf32>
    %783 = vector.shape_cast %782 : vector<1x32x32xf32> to vector<32x32xf32>
    %cst_478 = arith.constant dense<0.000000e+00> : vector<2x32xf32>
    %784 = tpu.matmul %712, %783, %cst_478 {dimension_numbers = #tpu.dot_dimension_numbers<[1], [0], [0], [1], [0, 0, 1, 1], [], []>} : vector<2x32xf32>, vector<32x32xf32>, vector<2x32xf32> -> vector<2x32xf32>
    %785 = arith.addf %781, %784 : vector<2x32xf32>
    %786 = arith.addf %785, %44 : vector<2x32xf32>
    %787 = arith.negf %762 : vector<2x32xf32>
    %788 = math.exp %787 : vector<2x32xf32>
    %cst_479 = arith.constant 1.000000e+00 : f32
    %789 = vector.broadcast %cst_479 : f32 to vector<2x32xf32>
    %790 = arith.addf %789, %788 : vector<2x32xf32>
    %791 = arith.divf %789, %790 : vector<2x32xf32>
    %792 = arith.negf %770 : vector<2x32xf32>
    %793 = math.exp %792 : vector<2x32xf32>
    %cst_480 = arith.constant 1.000000e+00 : f32
    %794 = vector.broadcast %cst_480 : f32 to vector<2x32xf32>
    %795 = arith.addf %794, %793 : vector<2x32xf32>
    %796 = arith.divf %794, %795 : vector<2x32xf32>
    %797 = math.tanh %778 : vector<2x32xf32>
    %798 = arith.negf %786 : vector<2x32xf32>
    %799 = math.exp %798 : vector<2x32xf32>
    %cst_481 = arith.constant 1.000000e+00 : f32
    %800 = vector.broadcast %cst_481 : f32 to vector<2x32xf32>
    %801 = arith.addf %800, %799 : vector<2x32xf32>
    %802 = arith.divf %800, %801 : vector<2x32xf32>
    %803 = arith.mulf %796, %710 : vector<2x32xf32>
    %804 = arith.mulf %791, %797 : vector<2x32xf32>
    %805 = arith.addf %803, %804 : vector<2x32xf32>
    %806 = math.tanh %805 : vector<2x32xf32>
    %807 = arith.mulf %802, %806 : vector<2x32xf32>
    %c14 = arith.constant 14 : index
    %c0_482 = arith.constant 0 : index
    %808 = vector.load %arg13[%c14, %c0_482] : memref<16x32xf32, #tpu.memory_space<vmem>>, vector<2x32xf32>
    tpu.vector_store %arg13[%c14, %c0_482], %807 {strides = array<i32>} : memref<16x32xf32, #tpu.memory_space<vmem>>, vector<2x32xf32>,
    %c0_483 = arith.constant 0 : index
    %c0_484 = arith.constant 0 : index
    %809 = vector.load %arg13[%c0_483, %c0_484] : memref<16x32xf32, #tpu.memory_space<vmem>>, vector<16x32xf32>
    %c0_485 = arith.constant 0 : index
    %c0_486 = arith.constant 0 : index
    %810 = vector.load %arg8[%c0_485, %c0_486] : memref<32x128xf32, #tpu.memory_space<vmem>>, vector<32x128xf32>
    %cst_487 = arith.constant dense<0.000000e+00> : vector<16x128xf32>
    %811 = tpu.matmul %809, %810, %cst_487 {dimension_numbers = #tpu.dot_dimension_numbers<[1], [0], [0], [1], [0, 0, 1, 1], [], []>} : vector<16x32xf32>, vector<32x128xf32>, vector<16x128xf32> -> vector<16x128xf32>
    %c0_488 = arith.constant 0 : index
    %c0_489 = arith.constant 0 : index
    %812 = vector.load %arg9[%c0_488, %c0_489] : memref<1x128xf32, #tpu.memory_space<vmem>>, vector<1x128xf32>
    %813 = vector.broadcast %812 : vector<1x128xf32> to vector<16x128xf32>
    %814 = arith.addf %811, %813 : vector<16x128xf32>
    %cst_490 = arith.constant 0.000000e+00 : f32
    %815 = vector.broadcast %cst_490 : f32 to vector<16x128xf32>
    %816 = arith.maximumf %814, %815 : vector<16x128xf32>
    %c0_491 = arith.constant 0 : index
    %c0_492 = arith.constant 0 : index
    %817 = vector.load %arg10[%c0_491, %c0_492] : memref<128x128xf32, #tpu.memory_space<vmem>>, vector<128x128xf32>
    %cst_493 = arith.constant dense<0.000000e+00> : vector<16x128xf32>
    %818 = tpu.matmul %816, %817, %cst_493 {dimension_numbers = #tpu.dot_dimension_numbers<[1], [0], [0], [1], [0, 0, 1, 1], [], []>} : vector<16x128xf32>, vector<128x128xf32>, vector<16x128xf32> -> vector<16x128xf32>
    %c0_494 = arith.constant 0 : index
    %c0_495 = arith.constant 0 : index
    %819 = vector.load %arg11[%c0_494, %c0_495] : memref<1x128xf32, #tpu.memory_space<vmem>>, vector<1x128xf32>
    %820 = vector.broadcast %819 : vector<1x128xf32> to vector<16x128xf32>
    %821 = arith.addf %818, %820 : vector<16x128xf32>
    %c0_496 = arith.constant 0 : index
    %c0_497 = arith.constant 0 : index
    %822 = vector.load %arg12[%c0_496, %c0_497] : memref<16x128xf32, #tpu.memory_space<vmem>>, vector<16x128xf32>
    tpu.vector_store %arg12[%c0_496, %c0_497], %821 {strides = array<i32>} : memref<16x128xf32, #tpu.memory_space<vmem>>, vector<16x128xf32>,
    return
  }
  func.func @transform_0(%arg0: i32) -> (i32, i32) {
    %c0_i32 = arith.constant 0 : i32
    %c0_i32_0 = arith.constant 0 : i32
    %c0_i32_1 = arith.constant 0 : i32
    return %c0_i32, %c0_i32_0 : i32, i32
  }
  func.func @transform_1(%arg0: i32) -> (i32, i32, i32) {
    %c0_i32 = arith.constant 0 : i32
    %c0_i32_0 = arith.constant 0 : i32
    %c0_i32_1 = arith.constant 0 : i32
    %c0_i32_2 = arith.constant 0 : i32
    return %c0_i32, %c0_i32_0, %c0_i32_1 : i32, i32, i32
  }
  func.func @transform_2(%arg0: i32) -> (i32, i32, i32) {
    %c0_i32 = arith.constant 0 : i32
    %c0_i32_0 = arith.constant 0 : i32
    %c0_i32_1 = arith.constant 0 : i32
    %c0_i32_2 = arith.constant 0 : i32
    return %c0_i32, %c0_i32_0, %c0_i32_1 : i32, i32, i32
  }
  func.func @transform_3(%arg0: i32) -> (i32, i32, i32) {
    %c0_i32 = arith.constant 0 : i32
    %c0_i32_0 = arith.constant 0 : i32
    %c0_i32_1 = arith.constant 0 : i32
    %c0_i32_2 = arith.constant 0 : i32
    return %c0_i32, %c0_i32_0, %c0_i32_1 : i32, i32, i32
  }
  func.func @transform_4(%arg0: i32) -> (i32, i32, i32) {
    %c0_i32 = arith.constant 0 : i32
    %c0_i32_0 = arith.constant 0 : i32
    %c0_i32_1 = arith.constant 0 : i32
    %c0_i32_2 = arith.constant 0 : i32
    return %c0_i32, %c0_i32_0, %c0_i32_1 : i32, i32, i32
  }
  func.func @transform_5(%arg0: i32) -> (i32, i32, i32) {
    %c0_i32 = arith.constant 0 : i32
    %c0_i32_0 = arith.constant 0 : i32
    %c0_i32_1 = arith.constant 0 : i32
    %c0_i32_2 = arith.constant 0 : i32
    return %c0_i32, %c0_i32_0, %c0_i32_1 : i32, i32, i32
  }
  func.func @transform_6(%arg0: i32) -> (i32, i32, i32) {
    %c0_i32 = arith.constant 0 : i32
    %c0_i32_0 = arith.constant 0 : i32
    %c0_i32_1 = arith.constant 0 : i32
    %c0_i32_2 = arith.constant 0 : i32
    return %c0_i32, %c0_i32_0, %c0_i32_1 : i32, i32, i32
  }
  func.func @transform_7(%arg0: i32) -> (i32, i32) {
    %c0_i32 = arith.constant 0 : i32
    %c0_i32_0 = arith.constant 0 : i32
    %c0_i32_1 = arith.constant 0 : i32
    return %c0_i32, %c0_i32_0 : i32, i32
  }
  func.func @transform_8(%arg0: i32) -> (i32, i32) {
    %c0_i32 = arith.constant 0 : i32
    %c0_i32_0 = arith.constant 0 : i32
    %c0_i32_1 = arith.constant 0 : i32
    return %c0_i32, %c0_i32_0 : i32, i32
  }
  func.func @transform_9(%arg0: i32) -> (i32, i32) {
    %c0_i32 = arith.constant 0 : i32
    %c0_i32_0 = arith.constant 0 : i32
    %c0_i32_1 = arith.constant 0 : i32
    return %c0_i32, %c0_i32_0 : i32, i32
  }
  func.func @transform_10(%arg0: i32) -> (i32, i32) {
    %c0_i32 = arith.constant 0 : i32
    %c0_i32_0 = arith.constant 0 : i32
    %c0_i32_1 = arith.constant 0 : i32
    return %c0_i32, %c0_i32_0 : i32, i32
  }
  func.func @transform_11(%arg0: i32) -> (i32, i32) {
    %c0_i32 = arith.constant 0 : i32
    %c0_i32_0 = arith.constant 0 : i32
    %c0_i32_1 = arith.constant 0 : i32
    return %c0_i32, %c0_i32_0 : i32, i32
  }
}

</mosaic_0001>

<llo_original>
// kernel: lstm_model_forward.1
$region0: #{lstm_model_forward.1}
  #allocation0 [shape = 'u32[]', space=smem, size = 0x4, offset = 0x4, fixed_abs, tag = 'smem constant byte address 0x4 - core index']
  #allocation1 [shape = 'u32[144,128]{1,0:T(1,128)}', space=vmem, size = 0x12000, scoped, tag = 'internal scratch']
  #allocation2 [shape = 'f32[16,32]{1,0:T(8,128)}', space=vmem, size = 0x2000, scoped, tag = 'scratch operand']
  %s0 = inlined_call_operand.vmem [shape: f32[16,8], index: 0, kind: input, shape index: {}]
  %s1 = inlined_call_operand.vmem [shape: f32[4,8,32], index: 1, kind: input, shape index: {}]
  %s2 = inlined_call_operand.hbm [shape: f32[4,32,32], index: 2, kind: input, shape index: {}]
  %s3 = inlined_call_operand.vmem [shape: f32[4,1,32], index: 3, kind: input, shape index: {}]
  %s4 = inlined_call_operand.hbm [shape: f32[4,32,32], index: 4, kind: input, shape index: {}]
  %s5 = inlined_call_operand.hbm [shape: f32[4,32,32], index: 5, kind: input, shape index: {}]
  %s6 = inlined_call_operand.vmem [shape: f32[4,1,32], index: 6, kind: input, shape index: {}]
  %s7 = inlined_call_operand.hbm [shape: f32[32,128], index: 7, kind: input, shape index: {}]
  %s8 = inlined_call_operand.vmem [shape: f32[1,128], index: 8, kind: input, shape index: {}]
  %s9 = inlined_call_operand.hbm [shape: f32[128,128], index: 9, kind: input, shape index: {}]
  %s10 = inlined_call_operand.vmem [shape: f32[1,128], index: 10, kind: input, shape index: {}]
  %s11 = inlined_call_operand.vmem [shape: f32[16,128], index: 11, kind: output, shape index: {}]
  %s12 = sld [smem:[#allocation0]]
  $region74: #{lstm_model_forward.1} parent=0
    _
  %s14 = ssub.s32 1, %s12
  %s15 = scalar_select 0, %s14, %s12
  $region1: #{lstm_model_forward.1} parent=0
    #allocation3 [shape = 'u8[65536]{0}', space=vmem, size = 0x10000, scoped, tag = 'input window, operand 2, single buffered']
    #allocation4 [shape = 's32[1]{0}', space=sflag, size = 0x4, scoped, tag = 'scoped memory for lstm_model_forward.1']
    #allocation5 [shape = 'u8[65536]{0}', space=vmem, size = 0x10000, scoped, tag = 'input window, operand 4, single buffered']
    #allocation6 [shape = 's32[1]{0}', space=sflag, size = 0x4, scoped, tag = 'scoped memory for lstm_model_forward.1']
    #allocation7 [shape = 'u8[65536]{0}', space=vmem, size = 0x10000, scoped, tag = 'input window, operand 5, single buffered']
    #allocation8 [shape = 'u8[16384]{0}', space=vmem, size = 0x4000, scoped, tag = 'input window, operand 7, single buffered']
    #allocation9 [shape = 's32[1]{0}', space=sflag, size = 0x4, scoped, tag = 'scoped memory for lstm_model_forward.1']
    #allocation10 [shape = 'u8[65536]{0}', space=vmem, size = 0x10000, scoped, tag = 'input window, operand 9, single buffered']
    %16 = vsyncpa [#allocation4], 0
    %17 = vsyncpa [#allocation6], 0
    %18 = vsyncpa [#allocation9], 0
    // Predicated region
    $region2: #{lstm_model_forward.1} parent=1 // pred_check
      _
    $region3: #{lstm_model_forward.1} parent=1 // pred_check_branch
      %20 = sbr.rel (0) target = $region5
    $region4: #{lstm_model_forward.1} parent=1 // pred_region
      _
    $region5: #{lstm_model_forward.1} parent=1 // pred_fallthru
      _
    // Predicated region
    $region6: #{lstm_model_forward.1} parent=1 // pred_check
      _
    $region7: #{lstm_model_forward.1} parent=1 // pred_check_branch
      %22 = sbr.rel (0) target = $region9
    $region8: #{lstm_model_forward.1} parent=1 // pred_region
      _
    $region9: #{lstm_model_forward.1} parent=1 // pred_fallthru
      _
    // Predicated region
    $region10: #{lstm_model_forward.1} parent=1 // pred_check
      _
    $region11: #{lstm_model_forward.1} parent=1 // pred_check_branch
      %24 = sbr.rel (0) target = $region13
    $region12: #{lstm_model_forward.1} parent=1 // pred_region
      %s26 = ssub.s32 2048, 2048
      %27 = vsyncadd [#allocation4], %s26
      %s28 = sshll.u32 [#allocation3], 4
      %s29 = int_to_ptr.vmem [resolvable:$true] %s28
      %34 = dma.hbm_to_vmem [thread:$0]  %s2, 2048, %s29, [#allocation4], 128, 128, 8
    $region13: #{lstm_model_forward.1} parent=1 // pred_fallthru
      _
    // Predicated region
    $region14: #{lstm_model_forward.1} parent=1 // pred_check
      _
    $region15: #{lstm_model_forward.1} parent=1 // pred_check_branch
      %36 = sbr.rel (0) target = $region17
    $region16: #{lstm_model_forward.1} parent=1 // pred_region
      _
    $region17: #{lstm_model_forward.1} parent=1 // pred_fallthru
      _
    // Predicated region
    $region18: #{lstm_model_forward.1} parent=1 // pred_check
      _
    $region19: #{lstm_model_forward.1} parent=1 // pred_check_branch
      %38 = sbr.rel (0) target = $region21
    $region20: #{lstm_model_forward.1} parent=1 // pred_region
      %s40 = ssub.s32 2048, 2048
      %41 = vsyncadd [#allocation6], %s40
      %s42 = sshll.u32 [#allocation5], 4
      %s43 = int_to_ptr.vmem [resolvable:$true] %s42
      %48 = dma.hbm_to_vmem [thread:$0]  %s4, 2048, %s43, [#allocation6], 128, 128, 8
    $region21: #{lstm_model_forward.1} parent=1 // pred_fallthru
      _
    // Predicated region
    $region22: #{lstm_model_forward.1} parent=1 // pred_check
      _
    $region23: #{lstm_model_forward.1} parent=1 // pred_check_branch
      %50 = sbr.rel (0) target = $region25
    $region24: #{lstm_model_forward.1} parent=1 // pred_region
      %s52 = ssub.s32 2048, 2048
      %53 = vsyncadd [#allocation6], %s52
      %s54 = sshll.u32 [#allocation7], 4
      %s55 = int_to_ptr.vmem [resolvable:$true] %s54
      %60 = dma.hbm_to_vmem [thread:$0]  %s5, 2048, %s55, [#allocation6], 128, 128, 8
    $region25: #{lstm_model_forward.1} parent=1 // pred_fallthru
      _
    // Predicated region
    $region26: #{lstm_model_forward.1} parent=1 // pred_check
      _
    $region27: #{lstm_model_forward.1} parent=1 // pred_check_branch
      %62 = sbr.rel (0) target = $region29
    $region28: #{lstm_model_forward.1} parent=1 // pred_region
      _
    $region29: #{lstm_model_forward.1} parent=1 // pred_fallthru
      _
    // Predicated region
    $region30: #{lstm_model_forward.1} parent=1 // pred_check
      _
    $region31: #{lstm_model_forward.1} parent=1 // pred_check_branch
      %64 = sbr.rel (0) target = $region33
    $region32: #{lstm_model_forward.1} parent=1 // pred_region
      %s66 = ssub.s32 512, 512
      %67 = vsyncadd [#allocation9], %s66
      %s68 = sshll.u32 [#allocation8], 4
      %s69 = int_to_ptr.vmem [resolvable:$true] %s68
      %74 = dma.hbm_to_vmem [thread:$0]  %s7, 512, %s69, [#allocation9], 128, 128, 8
    $region33: #{lstm_model_forward.1} parent=1 // pred_fallthru
      _
    // Predicated region
    $region34: #{lstm_model_forward.1} parent=1 // pred_check
      _
    $region35: #{lstm_model_forward.1} parent=1 // pred_check_branch
      %76 = sbr.rel (0) target = $region37
    $region36: #{lstm_model_forward.1} parent=1 // pred_region
      _
    $region37: #{lstm_model_forward.1} parent=1 // pred_fallthru
      _
    // Predicated region
    $region38: #{lstm_model_forward.1} parent=1 // pred_check
      _
    $region39: #{lstm_model_forward.1} parent=1 // pred_check_branch
      %78 = sbr.rel (0) target = $region41
    $region40: #{lstm_model_forward.1} parent=1 // pred_region
      %s80 = ssub.s32 2048, 2048
      %81 = vsyncadd [#allocation9], %s80
      %s82 = sshll.u32 [#allocation10], 4
      %s83 = int_to_ptr.vmem [resolvable:$true] %s82
      %88 = dma.hbm_to_vmem [thread:$0]  %s9, 2048, %s83, [#allocation9], 128, 128, 8
    $region41: #{lstm_model_forward.1} parent=1 // pred_fallthru
      _
    // Predicated region
    $region42: #{lstm_model_forward.1} parent=1 // pred_check
      _
    $region43: #{lstm_model_forward.1} parent=1 // pred_check_branch
      %90 = sbr.rel (0) target = $region45
    $region44: #{lstm_model_forward.1} parent=1 // pred_region
      _
    $region45: #{lstm_model_forward.1} parent=1 // pred_fallthru
      _
    // Predicated region
    $region46: #{lstm_model_forward.1} parent=1 // pred_check
      _
    $region47: #{lstm_model_forward.1} parent=1 // pred_check_branch
      %92 = sbr.rel (0) target = $region49
    $region48: #{lstm_model_forward.1} parent=1 // pred_region
      %93 = dma.done [#allocation4], 2048
    $region49: #{lstm_model_forward.1} parent=1 // pred_fallthru
      _
    // Predicated region
    $region50: #{lstm_model_forward.1} parent=1 // pred_check
      _
    $region51: #{lstm_model_forward.1} parent=1 // pred_check_branch
      %95 = sbr.rel (0) target = $region53
    $region52: #{lstm_model_forward.1} parent=1 // pred_region
      %96 = dma.done [#allocation6], 2048
    $region53: #{lstm_model_forward.1} parent=1 // pred_fallthru
      _
    // Predicated region
    $region54: #{lstm_model_forward.1} parent=1 // pred_check
      _
    $region55: #{lstm_model_forward.1} parent=1 // pred_check_branch
      %98 = sbr.rel (0) target = $region57
    $region56: #{lstm_model_forward.1} parent=1 // pred_region
      %99 = dma.done [#allocation6], 2048
    $region57: #{lstm_model_forward.1} parent=1 // pred_fallthru
      _
    // Predicated region
    $region58: #{lstm_model_forward.1} parent=1 // pred_check
      _
    $region59: #{lstm_model_forward.1} parent=1 // pred_check_branch
      %101 = sbr.rel (0) target = $region61
    $region60: #{lstm_model_forward.1} parent=1 // pred_region
      %102 = dma.done [#allocation9], 512
    $region61: #{lstm_model_forward.1} parent=1 // pred_fallthru
      _
    // Predicated region
    $region62: #{lstm_model_forward.1} parent=1 // pred_check
      _
    $region63: #{lstm_model_forward.1} parent=1 // pred_check_branch
      %104 = sbr.rel (0) target = $region65
    $region64: #{lstm_model_forward.1} parent=1 // pred_region
      %105 = dma.done [#allocation9], 2048
    $region65: #{lstm_model_forward.1} parent=1 // pred_fallthru
      _
    %v106 = vld [vmem:[%s0] sm:$0xff]
    %v107 = vld [vmem:[%s0 + $0x8] sm:$0xff]
    %v108 = vld [vmem:[%s1] sm:$0xff]
    %v109 = vld [vmem:[%s3] sm:$0x1]
    %v111 = vlaneseq
    %v112 = vshrl.u32 %v111, 7
    %v113 = vsub.s32 0, %v112
    %v114 = vrot.slane %v109, %v113
    %vm116 = vcmask 64512
    %v118 = vsel %vm116, %v106, 0
    %v121 = vsel %vm116, %v107, 0
    %123 = vmatprep.subr.mxu0 0.0
    %124 = vmatpush1.msra.mxu0 %v108
    %125 = vmatprep.subr.mxu0 0.0
    %126 = vmatpush1.msra.mxu0 0.0
    %127 = vmatprep.subr.mxu0 0.0
    %128 = vmatpush1.msra.mxu0 0.0
    %129 = vmatprep.subr.mxu0 0.0
    %130 = vmatpush1.msra.mxu0 0.0
    %131 = vmatprep.subr.mxu0 0.0
    %132 = vmatpush1.msra.mxu0 0.0
    %133 = vmatprep.subr.mxu0 0.0
    %134 = vmatpush1.msra.mxu0 0.0
    %135 = vmatprep.subr.mxu0 0.0
    %136 = vmatpush1.msra.mxu0 0.0
    %137 = vmatprep.subr.mxu0 0.0
    %138 = vmatpush1.msra.mxu0 0.0
    %139 = vmatprep.subr.mxu0 0.0
    %140 = vmatpush1.msra.mxu0 0.0
    %141 = vmatprep.subr.mxu0 0.0
    %142 = vmatpush1.msra.mxu0 0.0
    %143 = vmatprep.subr.mxu0 0.0
    %144 = vmatpush1.msra.mxu0 0.0
    %145 = vmatprep.subr.mxu0 0.0
    %146 = vmatpush1.msra.mxu0 0.0
    %147 = vmatprep.subr.mxu0 0.0
    %148 = vmatpush1.msra.mxu0 0.0
    %149 = vmatprep.subr.mxu0 0.0
    %150 = vmatpush1.msra.mxu0 0.0
    %151 = vmatprep.subr.mxu0 0.0
    %152 = vmatpush1.msra.mxu0 0.0
    %153 = vmatprep.subr.mxu0 0.0
    %154 = vmatpush1.msra.mxu0 0.0
    %155 = vmatprep.subr.mxu0 0.0
    %156 = vmatpush1.msra.mxu0 0.0
    %157 = vmatprep.subr.mxu0 0.0
    %158 = vmatpush1.msra.mxu0 0.0
    %159 = vmatprep.subr.mxu0 0.0
    %160 = vmatpush1.msra.mxu0 0.0
    %161 = vmatprep.subr.mxu0 0.0
    %162 = vmatpush1.msra.mxu0 0.0
    %163 = vmatprep.subr.mxu0 0.0
    %164 = vmatpush1.msra.mxu0 0.0
    %165 = vmatprep.subr.mxu0 0.0
    %166 = vmatpush1.msra.mxu0 0.0
    %167 = vmatprep.subr.mxu0 0.0
    %168 = vmatpush1.msra.mxu0 0.0
    %169 = vmatprep.subr.mxu0 0.0
    %170 = vmatpush1.msra.mxu0 0.0
    %171 = vmatprep.subr.mxu0 0.0
    %172 = vmatpush1.msra.mxu0 0.0
    %173 = vmatprep.subr.mxu0 0.0
    %174 = vmatpush1.msra.mxu0 0.0
    %175 = vmatprep.subr.mxu0 0.0
    %176 = vmatpush1.msra.mxu0 0.0
    %177 = vmatprep.subr.mxu0 0.0
    %178 = vmatpush1.msra.mxu0 0.0
    %179 = vmatprep.subr.mxu0 0.0
    %180 = vmatpush1.msra.mxu0 0.0
    %181 = vmatprep.subr.mxu0 0.0
    %182 = vmatpush1.msra.mxu0 0.0
    %183 = vmatprep.subr.mxu0 0.0
    %184 = vmatpush1.msra.mxu0 0.0
    %185 = vmatprep.subr.mxu0 0.0
    %186 = vmatpush1.msra.mxu0 0.0
    %187 = vmatprep.mubr.f32.mxu0 0.0
    %188 = vmatmul.mubr.f32.gmra.mrb[0].mxu0 %v118
    %v189 = vpop.f32.mrb[0].mxu0
    %v190 = vadd.f32 %v114, %v189
    %v191 = vpop.f32.mrb[0].mxu0
    %192 = vmatprep.mubr.f32.mxu0 0.0
    %193 = vmatmul.mubr.f32.gmra.mrb[0].mxu0 %v121
    %v194 = vpop.f32.mrb[0].mxu0
    %v195 = vadd.f32 %v114, %v194
    %v196 = vpop.f32.mrb[0].mxu0
    %197 = vdwg.mxu0
    %s198 = scalar_lea.vmem %s1, 8
    %v199 = vld [vmem:[%s198] sm:$0xff]
    %s200 = scalar_lea.vmem %s3, 1
    %v201 = vld [vmem:[%s200] sm:$0x1]
    %v203 = vlaneseq
    %v204 = vshrl.u32 %v203, 7
    %v205 = vsub.s32 0, %v204
    %v206 = vrot.slane %v201, %v205
    %208 = vmatprep.subr.mxu0 0.0
    %209 = vmatpush1.msra.mxu0 %v199
    %210 = vmatprep.subr.mxu0 0.0
    %211 = vmatpush1.msra.mxu0 0.0
    %212 = vmatprep.subr.mxu0 0.0
    %213 = vmatpush1.msra.mxu0 0.0
    %214 = vmatprep.subr.mxu0 0.0
    %215 = vmatpush1.msra.mxu0 0.0
    %216 = vmatprep.subr.mxu0 0.0
    %217 = vmatpush1.msra.mxu0 0.0
    %218 = vmatprep.subr.mxu0 0.0
    %219 = vmatpush1.msra.mxu0 0.0
    %220 = vmatprep.subr.mxu0 0.0
    %221 = vmatpush1.msra.mxu0 0.0
    %222 = vmatprep.subr.mxu0 0.0
    %223 = vmatpush1.msra.mxu0 0.0
    %224 = vmatprep.subr.mxu0 0.0
    %225 = vmatpush1.msra.mxu0 0.0
    %226 = vmatprep.subr.mxu0 0.0
    %227 = vmatpush1.msra.mxu0 0.0
    %228 = vmatprep.subr.mxu0 0.0
    %229 = vmatpush1.msra.mxu0 0.0
    %230 = vmatprep.subr.mxu0 0.0
    %231 = vmatpush1.msra.mxu0 0.0
    %232 = vmatprep.subr.mxu0 0.0
    %233 = vmatpush1.msra.mxu0 0.0
    %234 = vmatprep.subr.mxu0 0.0
    %235 = vmatpush1.msra.mxu0 0.0
    %236 = vmatprep.subr.mxu0 0.0
    %237 = vmatpush1.msra.mxu0 0.0
    %238 = vmatprep.subr.mxu0 0.0
    %239 = vmatpush1.msra.mxu0 0.0
    %240 = vmatprep.subr.mxu0 0.0
    %241 = vmatpush1.msra.mxu0 0.0
    %242 = vmatprep.subr.mxu0 0.0
    %243 = vmatpush1.msra.mxu0 0.0
    %244 = vmatprep.subr.mxu0 0.0
    %245 = vmatpush1.msra.mxu0 0.0
    %246 = vmatprep.subr.mxu0 0.0
    %247 = vmatpush1.msra.mxu0 0.0
    %248 = vmatprep.subr.mxu0 0.0
    %249 = vmatpush1.msra.mxu0 0.0
    %250 = vmatprep.subr.mxu0 0.0
    %251 = vmatpush1.msra.mxu0 0.0
    %252 = vmatprep.subr.mxu0 0.0
    %253 = vmatpush1.msra.mxu0 0.0
    %254 = vmatprep.subr.mxu0 0.0
    %255 = vmatpush1.msra.mxu0 0.0
    %256 = vmatprep.subr.mxu0 0.0
    %257 = vmatpush1.msra.mxu0 0.0
    %258 = vmatprep.subr.mxu0 0.0
    %259 = vmatpush1.msra.mxu0 0.0
    %260 = vmatprep.subr.mxu0 0.0
    %261 = vmatpush1.msra.mxu0 0.0
    %262 = vmatprep.subr.mxu0 0.0
    %263 = vmatpush1.msra.mxu0 0.0
    %264 = vmatprep.subr.mxu0 0.0
    %265 = vmatpush1.msra.mxu0 0.0
    %266 = vmatprep.subr.mxu0 0.0
    %267 = vmatpush1.msra.mxu0 0.0
    %268 = vmatprep.subr.mxu0 0.0
    %269 = vmatpush1.msra.mxu0 0.0
    %270 = vmatprep.subr.mxu0 0.0
    %271 = vmatpush1.msra.mxu0 0.0
    %272 = vmatprep.mubr.f32.mxu0 0.0
    %273 = vmatmul.mubr.f32.gmra.mrb[0].mxu0 %v118
    %v274 = vpop.f32.mrb[0].mxu0
    %v275 = vadd.f32 %v206, %v274
    %v276 = vpop.f32.mrb[0].mxu0
    %277 = vmatprep.mubr.f32.mxu0 0.0
    %278 = vmatmul.mubr.f32.gmra.mrb[0].mxu0 %v121
    %v279 = vpop.f32.mrb[0].mxu0
    %v280 = vadd.f32 %v206, %v279
    %v281 = vpop.f32.mrb[0].mxu0
    %282 = vdwg.mxu0
    %s283 = scalar_lea.vmem %s1, 16
    %v284 = vld [vmem:[%s283] sm:$0xff]
    %s285 = scalar_lea.vmem %s3, 2
    %v286 = vld [vmem:[%s285] sm:$0x1]
    %v288 = vlaneseq
    %v289 = vshrl.u32 %v288, 7
    %v290 = vsub.s32 0, %v289
    %v291 = vrot.slane %v286, %v290
    %293 = vmatprep.subr.mxu0 0.0
    %294 = vmatpush1.msra.mxu0 %v284
    %295 = vmatprep.subr.mxu0 0.0
    %296 = vmatpush1.msra.mxu0 0.0
    %297 = vmatprep.subr.mxu0 0.0
    %298 = vmatpush1.msra.mxu0 0.0
    %299 = vmatprep.subr.mxu0 0.0
    %300 = vmatpush1.msra.mxu0 0.0
    %301 = vmatprep.subr.mxu0 0.0
    %302 = vmatpush1.msra.mxu0 0.0
    %303 = vmatprep.subr.mxu0 0.0
    %304 = vmatpush1.msra.mxu0 0.0
    %305 = vmatprep.subr.mxu0 0.0
    %306 = vmatpush1.msra.mxu0 0.0
    %307 = vmatprep.subr.mxu0 0.0
    %308 = vmatpush1.msra.mxu0 0.0
    %309 = vmatprep.subr.mxu0 0.0
    %310 = vmatpush1.msra.mxu0 0.0
    %311 = vmatprep.subr.mxu0 0.0
    %312 = vmatpush1.msra.mxu0 0.0
    %313 = vmatprep.subr.mxu0 0.0
    %314 = vmatpush1.msra.mxu0 0.0
    %315 = vmatprep.subr.mxu0 0.0
    %316 = vmatpush1.msra.mxu0 0.0
    %317 = vmatprep.subr.mxu0 0.0
    %318 = vmatpush1.msra.mxu0 0.0
    %319 = vmatprep.subr.mxu0 0.0
    %320 = vmatpush1.msra.mxu0 0.0
    %321 = vmatprep.subr.mxu0 0.0
    %322 = vmatpush1.msra.mxu0 0.0
    %323 = vmatprep.subr.mxu0 0.0
    %324 = vmatpush1.msra.mxu0 0.0
    %325 = vmatprep.subr.mxu0 0.0
    %326 = vmatpush1.msra.mxu0 0.0
    %327 = vmatprep.subr.mxu0 0.0
    %328 = vmatpush1.msra.mxu0 0.0
    %329 = vmatprep.subr.mxu0 0.0
    %330 = vmatpush1.msra.mxu0 0.0
    %331 = vmatprep.subr.mxu0 0.0
    %332 = vmatpush1.msra.mxu0 0.0
    %333 = vmatprep.subr.mxu0 0.0
    %334 = vmatpush1.msra.mxu0 0.0
    %335 = vmatprep.subr.mxu0 0.0
    %336 = vmatpush1.msra.mxu0 0.0
    %337 = vmatprep.subr.mxu0 0.0
    %338 = vmatpush1.msra.mxu0 0.0
    %339 = vmatprep.subr.mxu0 0.0
    %340 = vmatpush1.msra.mxu0 0.0
    %341 = vmatprep.subr.mxu0 0.0
    %342 = vmatpush1.msra.mxu0 0.0
    %343 = vmatprep.subr.mxu0 0.0
    %344 = vmatpush1.msra.mxu0 0.0
    %345 = vmatprep.subr.mxu0 0.0
    %346 = vmatpush1.msra.mxu0 0.0
    %347 = vmatprep.subr.mxu0 0.0
    %348 = vmatpush1.msra.mxu0 0.0
    %349 = vmatprep.subr.mxu0 0.0
    %350 = vmatpush1.msra.mxu0 0.0
    %351 = vmatprep.subr.mxu0 0.0
    %352 = vmatpush1.msra.mxu0 0.0
    %353 = vmatprep.subr.mxu0 0.0
    %354 = vmatpush1.msra.mxu0 0.0
    %355 = vmatprep.subr.mxu0 0.0
    %356 = vmatpush1.msra.mxu0 0.0
    %357 = vmatprep.mubr.f32.mxu0 0.0
    %358 = vmatmul.mubr.f32.gmra.mrb[0].mxu0 %v118
    %v359 = vpop.f32.mrb[0].mxu0
    %v360 = vadd.f32 %v291, %v359
    %v361 = vpop.f32.mrb[0].mxu0
    %362 = vmatprep.mubr.f32.mxu0 0.0
    %363 = vmatmul.mubr.f32.gmra.mrb[0].mxu0 %v121
    %v364 = vpop.f32.mrb[0].mxu0
    %v365 = vadd.f32 %v291, %v364
    %v366 = vpop.f32.mrb[0].mxu0
    %367 = vdwg.mxu0
    %s368 = scalar_lea.vmem %s1, 24
    %v369 = vld [vmem:[%s368] sm:$0xff]
    %s370 = scalar_lea.vmem %s3, 3
    %v371 = vld [vmem:[%s370] sm:$0x1]
    %v373 = vlaneseq
    %v374 = vshrl.u32 %v373, 7
    %v375 = vsub.s32 0, %v374
    %v376 = vrot.slane %v371, %v375
    %378 = vmatprep.subr.mxu0 0.0
    %379 = vmatpush1.msra.mxu0 %v369
    %380 = vmatprep.subr.mxu0 0.0
    %381 = vmatpush1.msra.mxu0 0.0
    %382 = vmatprep.subr.mxu0 0.0
    %383 = vmatpush1.msra.mxu0 0.0
    %384 = vmatprep.subr.mxu0 0.0
    %385 = vmatpush1.msra.mxu0 0.0
    %386 = vmatprep.subr.mxu0 0.0
    %387 = vmatpush1.msra.mxu0 0.0
    %388 = vmatprep.subr.mxu0 0.0
    %389 = vmatpush1.msra.mxu0 0.0
    %390 = vmatprep.subr.mxu0 0.0
    %391 = vmatpush1.msra.mxu0 0.0
    %392 = vmatprep.subr.mxu0 0.0
    %393 = vmatpush1.msra.mxu0 0.0
    %394 = vmatprep.subr.mxu0 0.0
    %395 = vmatpush1.msra.mxu0 0.0
    %396 = vmatprep.subr.mxu0 0.0
    %397 = vmatpush1.msra.mxu0 0.0
    %398 = vmatprep.subr.mxu0 0.0
    %399 = vmatpush1.msra.mxu0 0.0
    %400 = vmatprep.subr.mxu0 0.0
    %401 = vmatpush1.msra.mxu0 0.0
    %402 = vmatprep.subr.mxu0 0.0
    %403 = vmatpush1.msra.mxu0 0.0
    %404 = vmatprep.subr.mxu0 0.0
    %405 = vmatpush1.msra.mxu0 0.0
    %406 = vmatprep.subr.mxu0 0.0
    %407 = vmatpush1.msra.mxu0 0.0
    %408 = vmatprep.subr.mxu0 0.0
    %409 = vmatpush1.msra.mxu0 0.0
    %410 = vmatprep.subr.mxu0 0.0
    %411 = vmatpush1.msra.mxu0 0.0
    %412 = vmatprep.subr.mxu0 0.0
    %413 = vmatpush1.msra.mxu0 0.0
    %414 = vmatprep.subr.mxu0 0.0
    %415 = vmatpush1.msra.mxu0 0.0
    %416 = vmatprep.subr.mxu0 0.0
    %417 = vmatpush1.msra.mxu0 0.0
    %418 = vmatprep.subr.mxu0 0.0
    %419 = vmatpush1.msra.mxu0 0.0
    %420 = vmatprep.subr.mxu0 0.0
    %421 = vmatpush1.msra.mxu0 0.0
    %422 = vmatprep.subr.mxu0 0.0
    %423 = vmatpush1.msra.mxu0 0.0
    %424 = vmatprep.subr.mxu0 0.0
    %425 = vmatpush1.msra.mxu0 0.0
    %426 = vmatprep.subr.mxu0 0.0
    %427 = vmatpush1.msra.mxu0 0.0
    %428 = vmatprep.subr.mxu0 0.0
    %429 = vmatpush1.msra.mxu0 0.0
    %430 = vmatprep.subr.mxu0 0.0
    %431 = vmatpush1.msra.mxu0 0.0
    %432 = vmatprep.subr.mxu0 0.0
    %433 = vmatpush1.msra.mxu0 0.0
    %434 = vmatprep.subr.mxu0 0.0
    %435 = vmatpush1.msra.mxu0 0.0
    %436 = vmatprep.subr.mxu0 0.0
    %437 = vmatpush1.msra.mxu0 0.0
    %438 = vmatprep.subr.mxu0 0.0
    %439 = vmatpush1.msra.mxu0 0.0
    %440 = vmatprep.subr.mxu0 0.0
    %441 = vmatpush1.msra.mxu0 0.0
    %442 = vmatprep.mubr.f32.mxu0 0.0
    %443 = vmatmul.mubr.f32.gmra.mrb[0].mxu0 %v118
    %v444 = vpop.f32.mrb[0].mxu0
    %v445 = vadd.f32 %v376, %v444
    %v446 = vpop.f32.mrb[0].mxu0
    %447 = vmatprep.mubr.f32.mxu0 0.0
    %448 = vmatmul.mubr.f32.gmra.mrb[0].mxu0 %v121
    %v449 = vpop.f32.mrb[0].mxu0
    %v450 = vadd.f32 %v376, %v449
    %v451 = vpop.f32.mrb[0].mxu0
    %452 = vdwg.mxu0
    %v453 = vld [vmem:[%s6] sm:$0x1]
    %v455 = vlaneseq
    %v456 = vshrl.u32 %v455, 7
    %v457 = vsub.s32 0, %v456
    %v458 = vrot.slane %v453, %v457
    %s460 = scalar_lea.vmem %s6, 1
    %v461 = vld [vmem:[%s460] sm:$0x1]
    %v463 = vlaneseq
    %v464 = vshrl.u32 %v463, 7
    %v465 = vsub.s32 0, %v464
    %v466 = vrot.slane %v461, %v465
    %s468 = scalar_lea.vmem %s6, 2
    %v469 = vld [vmem:[%s468] sm:$0x1]
    %v471 = vlaneseq
    %v472 = vshrl.u32 %v471, 7
    %v473 = vsub.s32 0, %v472
    %v474 = vrot.slane %v469, %v473
    %s476 = scalar_lea.vmem %s6, 3
    %v477 = vld [vmem:[%s476] sm:$0x1]
    %v479 = vlaneseq
    %v480 = vshrl.u32 %v479, 7
    %v481 = vsub.s32 0, %v480
    %v482 = vrot.slane %v477, %v481
    %v484 = vld [vmem:[#allocation3] sm:$0xff]
    %v485 = vld [vmem:[#allocation3 + $0x8] sm:$0xff]
    %v486 = vld [vmem:[#allocation3 + $0x10] sm:$0xff]
    %v487 = vld [vmem:[#allocation3 + $0x18] sm:$0xff]
    %vm488 = vcmask 261120
    %v490 = vsel %vm488, 0.0, 0
    %492 = vmatprep.subr.mxu0 0.0
    %493 = vmatpush1.msra.mxu0 %v484
    %494 = vmatprep.subr.mxu0 0.0
    %495 = vmatpush1.msra.mxu0 %v485
    %496 = vmatprep.subr.mxu0 0.0
    %497 = vmatpush1.msra.mxu0 %v486
    %498 = vmatprep.subr.mxu0 0.0
    %499 = vmatpush1.msra.mxu0 %v487
    %500 = vmatprep.subr.mxu0 0.0
    %501 = vmatpush1.msra.mxu0 0.0
    %502 = vmatprep.subr.mxu0 0.0
    %503 = vmatpush1.msra.mxu0 0.0
    %504 = vmatprep.subr.mxu0 0.0
    %505 = vmatpush1.msra.mxu0 0.0
    %506 = vmatprep.subr.mxu0 0.0
    %507 = vmatpush1.msra.mxu0 0.0
    %508 = vmatprep.subr.mxu0 0.0
    %509 = vmatpush1.msra.mxu0 0.0
    %510 = vmatprep.subr.mxu0 0.0
    %511 = vmatpush1.msra.mxu0 0.0
    %512 = vmatprep.subr.mxu0 0.0
    %513 = vmatpush1.msra.mxu0 0.0
    %514 = vmatprep.subr.mxu0 0.0
    %515 = vmatpush1.msra.mxu0 0.0
    %516 = vmatprep.subr.mxu0 0.0
    %517 = vmatpush1.msra.mxu0 0.0
    %518 = vmatprep.subr.mxu0 0.0
    %519 = vmatpush1.msra.mxu0 0.0
    %520 = vmatprep.subr.mxu0 0.0
    %521 = vmatpush1.msra.mxu0 0.0
    %522 = vmatprep.subr.mxu0 0.0
    %523 = vmatpush1.msra.mxu0 0.0
    %524 = vmatprep.subr.mxu0 0.0
    %525 = vmatpush1.msra.mxu0 0.0
    %526 = vmatprep.subr.mxu0 0.0
    %527 = vmatpush1.msra.mxu0 0.0
    %528 = vmatprep.subr.mxu0 0.0
    %529 = vmatpush1.msra.mxu0 0.0
    %530 = vmatprep.subr.mxu0 0.0
    %531 = vmatpush1.msra.mxu0 0.0
    %532 = vmatprep.subr.mxu0 0.0
    %533 = vmatpush1.msra.mxu0 0.0
    %534 = vmatprep.subr.mxu0 0.0
    %535 = vmatpush1.msra.mxu0 0.0
    %536 = vmatprep.subr.mxu0 0.0
    %537 = vmatpush1.msra.mxu0 0.0
    %538 = vmatprep.subr.mxu0 0.0
    %539 = vmatpush1.msra.mxu0 0.0
    %540 = vmatprep.subr.mxu0 0.0
    %541 = vmatpush1.msra.mxu0 0.0
    %542 = vmatprep.subr.mxu0 0.0
    %543 = vmatpush1.msra.mxu0 0.0
    %544 = vmatprep.subr.mxu0 0.0
    %545 = vmatpush1.msra.mxu0 0.0
    %546 = vmatprep.subr.mxu0 0.0
    %547 = vmatpush1.msra.mxu0 0.0
    %548 = vmatprep.subr.mxu0 0.0
    %549 = vmatpush1.msra.mxu0 0.0
    %550 = vmatprep.subr.mxu0 0.0
    %551 = vmatpush1.msra.mxu0 0.0
    %552 = vmatprep.subr.mxu0 0.0
    %553 = vmatpush1.msra.mxu0 0.0
    %554 = vmatprep.subr.mxu0 0.0
    %555 = vmatpush1.msra.mxu0 0.0
    %556 = vmatprep.mubr.f32.mxu0 0.0
    %557 = vmatmul.mubr.f32.gmra.mrb[0].mxu0 %v490
    %v558 = vpop.f32.mrb[0].mxu0
    %v559 = vadd.f32 0.0, %v558
    %v560 = vpop.f32.mrb[0].mxu0
    %561 = vdwg.mxu0
    %v562 = vadd.f32 %v190, %v559
    %s563 = scalar_lea.vmem [#allocation3], 32
    %v564 = vld [vmem:[%s563] sm:$0xff]
    %v565 = vld [vmem:[%s563 + $0x8] sm:$0xff]
    %v566 = vld [vmem:[%s563 + $0x10] sm:$0xff]
    %v567 = vld [vmem:[%s563 + $0x18] sm:$0xff]
    %568 = vmatprep.subr.mxu0 0.0
    %569 = vmatpush1.msra.mxu0 %v564
    %570 = vmatprep.subr.mxu0 0.0
    %571 = vmatpush1.msra.mxu0 %v565
    %572 = vmatprep.subr.mxu0 0.0
    %573 = vmatpush1.msra.mxu0 %v566
    %574 = vmatprep.subr.mxu0 0.0
    %575 = vmatpush1.msra.mxu0 %v567
    %576 = vmatprep.subr.mxu0 0.0
    %577 = vmatpush1.msra.mxu0 0.0
    %578 = vmatprep.subr.mxu0 0.0
    %579 = vmatpush1.msra.mxu0 0.0
    %580 = vmatprep.subr.mxu0 0.0
    %581 = vmatpush1.msra.mxu0 0.0
    %582 = vmatprep.subr.mxu0 0.0
    %583 = vmatpush1.msra.mxu0 0.0
    %584 = vmatprep.subr.mxu0 0.0
    %585 = vmatpush1.msra.mxu0 0.0
    %586 = vmatprep.subr.mxu0 0.0
    %587 = vmatpush1.msra.mxu0 0.0
    %588 = vmatprep.subr.mxu0 0.0
    %589 = vmatpush1.msra.mxu0 0.0
    %590 = vmatprep.subr.mxu0 0.0
    %591 = vmatpush1.msra.mxu0 0.0
    %592 = vmatprep.subr.mxu0 0.0
    %593 = vmatpush1.msra.mxu0 0.0
    %594 = vmatprep.subr.mxu0 0.0
    %595 = vmatpush1.msra.mxu0 0.0
    %596 = vmatprep.subr.mxu0 0.0
    %597 = vmatpush1.msra.mxu0 0.0
    %598 = vmatprep.subr.mxu0 0.0
    %599 = vmatpush1.msra.mxu0 0.0
    %600 = vmatprep.subr.mxu0 0.0
    %601 = vmatpush1.msra.mxu0 0.0
    %602 = vmatprep.subr.mxu0 0.0
    %603 = vmatpush1.msra.mxu0 0.0
    %604 = vmatprep.subr.mxu0 0.0
    %605 = vmatpush1.msra.mxu0 0.0
    %606 = vmatprep.subr.mxu0 0.0
    %607 = vmatpush1.msra.mxu0 0.0
    %608 = vmatprep.subr.mxu0 0.0
    %609 = vmatpush1.msra.mxu0 0.0
    %610 = vmatprep.subr.mxu0 0.0
    %611 = vmatpush1.msra.mxu0 0.0
    %612 = vmatprep.subr.mxu0 0.0
    %613 = vmatpush1.msra.mxu0 0.0
    %614 = vmatprep.subr.mxu0 0.0
    %615 = vmatpush1.msra.mxu0 0.0
    %616 = vmatprep.subr.mxu0 0.0
    %617 = vmatpush1.msra.mxu0 0.0
    %618 = vmatprep.subr.mxu0 0.0
    %619 = vmatpush1.msra.mxu0 0.0
    %620 = vmatprep.subr.mxu0 0.0
    %621 = vmatpush1.msra.mxu0 0.0
    %622 = vmatprep.subr.mxu0 0.0
    %623 = vmatpush1.msra.mxu0 0.0
    %624 = vmatprep.subr.mxu0 0.0
    %625 = vmatpush1.msra.mxu0 0.0
    %626 = vmatprep.subr.mxu0 0.0
    %627 = vmatpush1.msra.mxu0 0.0
    %628 = vmatprep.subr.mxu0 0.0
    %629 = vmatpush1.msra.mxu0 0.0
    %630 = vmatprep.subr.mxu0 0.0
    %631 = vmatpush1.msra.mxu0 0.0
    %632 = vmatprep.mubr.f32.mxu0 0.0
    %633 = vmatmul.mubr.f32.gmra.mrb[0].mxu0 %v490
    %v634 = vpop.f32.mrb[0].mxu0
    %v635 = vadd.f32 0.0, %v634
    %v636 = vpop.f32.mrb[0].mxu0
    %637 = vdwg.mxu0
    %v638 = vadd.f32 %v275, %v635
    %s639 = scalar_lea.vmem [#allocation3], 64
    %v640 = vld [vmem:[%s639] sm:$0xff]
    %v641 = vld [vmem:[%s639 + $0x8] sm:$0xff]
    %v642 = vld [vmem:[%s639 + $0x10] sm:$0xff]
    %v643 = vld [vmem:[%s639 + $0x18] sm:$0xff]
    %644 = vmatprep.subr.mxu0 0.0
    %645 = vmatpush1.msra.mxu0 %v640
    %646 = vmatprep.subr.mxu0 0.0
    %647 = vmatpush1.msra.mxu0 %v641
    %648 = vmatprep.subr.mxu0 0.0
    %649 = vmatpush1.msra.mxu0 %v642
    %650 = vmatprep.subr.mxu0 0.0
    %651 = vmatpush1.msra.mxu0 %v643
    %652 = vmatprep.subr.mxu0 0.0
    %653 = vmatpush1.msra.mxu0 0.0
    %654 = vmatprep.subr.mxu0 0.0
    %655 = vmatpush1.msra.mxu0 0.0
    %656 = vmatprep.subr.mxu0 0.0
    %657 = vmatpush1.msra.mxu0 0.0
    %658 = vmatprep.subr.mxu0 0.0
    %659 = vmatpush1.msra.mxu0 0.0
    %660 = vmatprep.subr.mxu0 0.0
    %661 = vmatpush1.msra.mxu0 0.0
    %662 = vmatprep.subr.mxu0 0.0
    %663 = vmatpush1.msra.mxu0 0.0
    %664 = vmatprep.subr.mxu0 0.0
    %665 = vmatpush1.msra.mxu0 0.0
    %666 = vmatprep.subr.mxu0 0.0
    %667 = vmatpush1.msra.mxu0 0.0
    %668 = vmatprep.subr.mxu0 0.0
    %669 = vmatpush1.msra.mxu0 0.0
    %670 = vmatprep.subr.mxu0 0.0
    %671 = vmatpush1.msra.mxu0 0.0
    %672 = vmatprep.subr.mxu0 0.0
    %673 = vmatpush1.msra.mxu0 0.0
    %674 = vmatprep.subr.mxu0 0.0
    %675 = vmatpush1.msra.mxu0 0.0
    %676 = vmatprep.subr.mxu0 0.0
    %677 = vmatpush1.msra.mxu0 0.0
    %678 = vmatprep.subr.mxu0 0.0
    %679 = vmatpush1.msra.mxu0 0.0
    %680 = vmatprep.subr.mxu0 0.0
    %681 = vmatpush1.msra.mxu0 0.0
    %682 = vmatprep.subr.mxu0 0.0
    %683 = vmatpush1.msra.mxu0 0.0
    %684 = vmatprep.subr.mxu0 0.0
    %685 = vmatpush1.msra.mxu0 0.0
    %686 = vmatprep.subr.mxu0 0.0
    %687 = vmatpush1.msra.mxu0 0.0
    %688 = vmatprep.subr.mxu0 0.0
    %689 = vmatpush1.msra.mxu0 0.0
    %690 = vmatprep.subr.mxu0 0.0
    %691 = vmatpush1.msra.mxu0 0.0
    %692 = vmatprep.subr.mxu0 0.0
    %693 = vmatpush1.msra.mxu0 0.0
    %694 = vmatprep.subr.mxu0 0.0
    %695 = vmatpush1.msra.mxu0 0.0
    %696 = vmatprep.subr.mxu0 0.0
    %697 = vmatpush1.msra.mxu0 0.0
    %698 = vmatprep.subr.mxu0 0.0
    %699 = vmatpush1.msra.mxu0 0.0
    %700 = vmatprep.subr.mxu0 0.0
    %701 = vmatpush1.msra.mxu0 0.0
    %702 = vmatprep.subr.mxu0 0.0
    %703 = vmatpush1.msra.mxu0 0.0
    %704 = vmatprep.subr.mxu0 0.0
    %705 = vmatpush1.msra.mxu0 0.0
    %706 = vmatprep.subr.mxu0 0.0
    %707 = vmatpush1.msra.mxu0 0.0
    %708 = vmatprep.mubr.f32.mxu0 0.0
    %709 = vmatmul.mubr.f32.gmra.mrb[0].mxu0 %v490
    %v710 = vpop.f32.mrb[0].mxu0
    %v711 = vadd.f32 0.0, %v710
    %v712 = vpop.f32.mrb[0].mxu0
    %713 = vdwg.mxu0
    %v714 = vadd.f32 %v360, %v711
    %s715 = scalar_lea.vmem [#allocation3], 96
    %v716 = vld [vmem:[%s715] sm:$0xff]
    %v717 = vld [vmem:[%s715 + $0x8] sm:$0xff]
    %v718 = vld [vmem:[%s715 + $0x10] sm:$0xff]
    %v719 = vld [vmem:[%s715 + $0x18] sm:$0xff]
    %720 = vmatprep.subr.mxu0 0.0
    %721 = vmatpush1.msra.mxu0 %v716
    %722 = vmatprep.subr.mxu0 0.0
    %723 = vmatpush1.msra.mxu0 %v717
    %724 = vmatprep.subr.mxu0 0.0
    %725 = vmatpush1.msra.mxu0 %v718
    %726 = vmatprep.subr.mxu0 0.0
    %727 = vmatpush1.msra.mxu0 %v719
    %728 = vmatprep.subr.mxu0 0.0
    %729 = vmatpush1.msra.mxu0 0.0
    %730 = vmatprep.subr.mxu0 0.0
    %731 = vmatpush1.msra.mxu0 0.0
    %732 = vmatprep.subr.mxu0 0.0
    %733 = vmatpush1.msra.mxu0 0.0
    %734 = vmatprep.subr.mxu0 0.0
    %735 = vmatpush1.msra.mxu0 0.0
    %736 = vmatprep.subr.mxu0 0.0
    %737 = vmatpush1.msra.mxu0 0.0
    %738 = vmatprep.subr.mxu0 0.0
    %739 = vmatpush1.msra.mxu0 0.0
    %740 = vmatprep.subr.mxu0 0.0
    %741 = vmatpush1.msra.mxu0 0.0
    %742 = vmatprep.subr.mxu0 0.0
    %743 = vmatpush1.msra.mxu0 0.0
    %744 = vmatprep.subr.mxu0 0.0
    %745 = vmatpush1.msra.mxu0 0.0
    %746 = vmatprep.subr.mxu0 0.0
    %747 = vmatpush1.msra.mxu0 0.0
    %748 = vmatprep.subr.mxu0 0.0
    %749 = vmatpush1.msra.mxu0 0.0
    %750 = vmatprep.subr.mxu0 0.0
    %751 = vmatpush1.msra.mxu0 0.0
    %752 = vmatprep.subr.mxu0 0.0
    %753 = vmatpush1.msra.mxu0 0.0
    %754 = vmatprep.subr.mxu0 0.0
    %755 = vmatpush1.msra.mxu0 0.0
    %756 = vmatprep.subr.mxu0 0.0
    %757 = vmatpush1.msra.mxu0 0.0
    %758 = vmatprep.subr.mxu0 0.0
    %759 = vmatpush1.msra.mxu0 0.0
    %760 = vmatprep.subr.mxu0 0.0
    %761 = vmatpush1.msra.mxu0 0.0
    %762 = vmatprep.subr.mxu0 0.0
    %763 = vmatpush1.msra.mxu0 0.0
    %764 = vmatprep.subr.mxu0 0.0
    %765 = vmatpush1.msra.mxu0 0.0
    %766 = vmatprep.subr.mxu0 0.0
    %767 = vmatpush1.msra.mxu0 0.0
    %768 = vmatprep.subr.mxu0 0.0
    %769 = vmatpush1.msra.mxu0 0.0
    %770 = vmatprep.subr.mxu0 0.0
    %771 = vmatpush1.msra.mxu0 0.0
    %772 = vmatprep.subr.mxu0 0.0
    %773 = vmatpush1.msra.mxu0 0.0
    %774 = vmatprep.subr.mxu0 0.0
    %775 = vmatpush1.msra.mxu0 0.0
    %776 = vmatprep.subr.mxu0 0.0
    %777 = vmatpush1.msra.mxu0 0.0
    %778 = vmatprep.subr.mxu0 0.0
    %779 = vmatpush1.msra.mxu0 0.0
    %780 = vmatprep.subr.mxu0 0.0
    %781 = vmatpush1.msra.mxu0 0.0
    %782 = vmatprep.subr.mxu0 0.0
    %783 = vmatpush1.msra.mxu0 0.0
    %784 = vmatprep.mubr.f32.mxu0 0.0
    %785 = vmatmul.mubr.f32.gmra.mrb[0].mxu0 %v490
    %v786 = vpop.f32.mrb[0].mxu0
    %v787 = vadd.f32 0.0, %v786
    %v788 = vpop.f32.mrb[0].mxu0
    %789 = vdwg.mxu0
    %v790 = vadd.f32 %v445, %v787
    %v791 = vxor.u32 %v562, 2147483648
    %v792 = vmul.f32 %v791, 1.442695
    %v793 = vpow.pop %v792
    %v794 = vadd.f32 %v793, 1.0
    %v795 = vrcp.pop %v794
    %v796 = vmul.f32 1.0, %v795
    %v797 = vxor.u32 %v638, 2147483648
    %v798 = vmul.f32 %v797, 1.442695
    %v799 = vpow.pop %v798
    %v800 = vadd.f32 %v799, 1.0
    %v801 = vrcp.pop %v800
    %v802 = vmul.f32 1.0, %v801
    %v803 = vtanh.pop %v714
    %v804 = vxor.u32 %v790, 2147483648
    %v805 = vmul.f32 %v804, 1.442695
    %v806 = vpow.pop %v805
    %v807 = vadd.f32 %v806, 1.0
    %v808 = vrcp.pop %v807
    %v809 = vmul.f32 1.0, %v808
    %v810 = vmul.f32 %v802, 0.0
    %v811 = vmul.f32 %v796, %v803
    %v812 = vadd.f32 %v810, %v811
    %v813 = vtanh.pop %v812
    %v814 = vmul.f32 %v809, %v813
    %v815 = vld [vmem:[#allocation5] sm:$0xff]
    %v816 = vld [vmem:[#allocation5 + $0x8] sm:$0xff]
    %v817 = vld [vmem:[#allocation5 + $0x10] sm:$0xff]
    %v818 = vld [vmem:[#allocation5 + $0x18] sm:$0xff]
    %v819 = vld [vmem:[#allocation7] sm:$0xff]
    %v820 = vld [vmem:[#allocation7 + $0x8] sm:$0xff]
    %v821 = vld [vmem:[#allocation7 + $0x10] sm:$0xff]
    %v822 = vld [vmem:[#allocation7 + $0x18] sm:$0xff]
    %823 = vmatprep.subr.mxu0 0.0
    %824 = vmatpush1.msra.mxu0 %v819
    %825 = vmatprep.subr.mxu0 0.0
    %826 = vmatpush1.msra.mxu0 %v820
    %827 = vmatprep.subr.mxu0 0.0
    %828 = vmatpush1.msra.mxu0 %v821
    %829 = vmatprep.subr.mxu0 0.0
    %830 = vmatpush1.msra.mxu0 %v822
    %831 = vmatprep.subr.mxu0 0.0
    %832 = vmatpush1.msra.mxu0 0.0
    %833 = vmatprep.subr.mxu0 0.0
    %834 = vmatpush1.msra.mxu0 0.0
    %835 = vmatprep.subr.mxu0 0.0
    %836 = vmatpush1.msra.mxu0 0.0
    %837 = vmatprep.subr.mxu0 0.0
    %838 = vmatpush1.msra.mxu0 0.0
    %839 = vmatprep.subr.mxu0 0.0
    %840 = vmatpush1.msra.mxu0 0.0
    %841 = vmatprep.subr.mxu0 0.0
    %842 = vmatpush1.msra.mxu0 0.0
    %843 = vmatprep.subr.mxu0 0.0
    %844 = vmatpush1.msra.mxu0 0.0
    %845 = vmatprep.subr.mxu0 0.0
    %846 = vmatpush1.msra.mxu0 0.0
    %847 = vmatprep.subr.mxu0 0.0
    %848 = vmatpush1.msra.mxu0 0.0
    %849 = vmatprep.subr.mxu0 0.0
    %850 = vmatpush1.msra.mxu0 0.0
    %851 = vmatprep.subr.mxu0 0.0
    %852 = vmatpush1.msra.mxu0 0.0
    %853 = vmatprep.subr.mxu0 0.0
    %854 = vmatpush1.msra.mxu0 0.0
    %855 = vmatprep.subr.mxu0 0.0
    %856 = vmatpush1.msra.mxu0 0.0
    %857 = vmatprep.subr.mxu0 0.0
    %858 = vmatpush1.msra.mxu0 0.0
    %859 = vmatprep.subr.mxu0 0.0
    %860 = vmatpush1.msra.mxu0 0.0
    %861 = vmatprep.subr.mxu0 0.0
    %862 = vmatpush1.msra.mxu0 0.0
    %863 = vmatprep.subr.mxu0 0.0
    %864 = vmatpush1.msra.mxu0 0.0
    %865 = vmatprep.subr.mxu0 0.0
    %866 = vmatpush1.msra.mxu0 0.0
    %867 = vmatprep.subr.mxu0 0.0
    %868 = vmatpush1.msra.mxu0 0.0
    %869 = vmatprep.subr.mxu0 0.0
    %870 = vmatpush1.msra.mxu0 0.0
    %871 = vmatprep.subr.mxu0 0.0
    %872 = vmatpush1.msra.mxu0 0.0
    %873 = vmatprep.subr.mxu0 0.0
    %874 = vmatpush1.msra.mxu0 0.0
    %875 = vmatprep.subr.mxu0 0.0
    %876 = vmatpush1.msra.mxu0 0.0
    %877 = vmatprep.subr.mxu0 0.0
    %878 = vmatpush1.msra.mxu0 0.0
    %879 = vmatprep.subr.mxu0 0.0
    %880 = vmatpush1.msra.mxu0 0.0
    %881 = vmatprep.subr.mxu0 0.0
    %882 = vmatpush1.msra.mxu0 0.0
    %883 = vmatprep.subr.mxu0 0.0
    %884 = vmatpush1.msra.mxu0 0.0
    %885 = vmatprep.subr.mxu0 0.0
    %886 = vmatpush1.msra.mxu0 0.0
    %887 = vmatprep.mubr.f32.mxu0 0.0
    %888 = vmatmul.mubr.f32.gmra.mrb[0].mxu0 %v490
    %v889 = vpop.f32.mrb[0].mxu0
    %v890 = vadd.f32 0.0, %v889
    %v891 = vpop.f32.mrb[0].mxu0
    %892 = vdwg.mxu0
    %v894 = vsel %vm488, %v814, 0
    %896 = vmatprep.subr.mxu0 0.0
    %897 = vmatpush1.msra.mxu0 %v815
    %898 = vmatprep.subr.mxu0 0.0
    %899 = vmatpush1.msra.mxu0 %v816
    %900 = vmatprep.subr.mxu0 0.0
    %901 = vmatpush1.msra.mxu0 %v817
    %902 = vmatprep.subr.mxu0 0.0
    %903 = vmatpush1.msra.mxu0 %v818
    %904 = vmatprep.subr.mxu0 0.0
    %905 = vmatpush1.msra.mxu0 0.0
    %906 = vmatprep.subr.mxu0 0.0
    %907 = vmatpush1.msra.mxu0 0.0
    %908 = vmatprep.subr.mxu0 0.0
    %909 = vmatpush1.msra.mxu0 0.0
    %910 = vmatprep.subr.mxu0 0.0
    %911 = vmatpush1.msra.mxu0 0.0
    %912 = vmatprep.subr.mxu0 0.0
    %913 = vmatpush1.msra.mxu0 0.0
    %914 = vmatprep.subr.mxu0 0.0
    %915 = vmatpush1.msra.mxu0 0.0
    %916 = vmatprep.subr.mxu0 0.0
    %917 = vmatpush1.msra.mxu0 0.0
    %918 = vmatprep.subr.mxu0 0.0
    %919 = vmatpush1.msra.mxu0 0.0
    %920 = vmatprep.subr.mxu0 0.0
    %921 = vmatpush1.msra.mxu0 0.0
    %922 = vmatprep.subr.mxu0 0.0
    %923 = vmatpush1.msra.mxu0 0.0
    %924 = vmatprep.subr.mxu0 0.0
    %925 = vmatpush1.msra.mxu0 0.0
    %926 = vmatprep.subr.mxu0 0.0
    %927 = vmatpush1.msra.mxu0 0.0
    %928 = vmatprep.subr.mxu0 0.0
    %929 = vmatpush1.msra.mxu0 0.0
    %930 = vmatprep.subr.mxu0 0.0
    %931 = vmatpush1.msra.mxu0 0.0
    %932 = vmatprep.subr.mxu0 0.0
    %933 = vmatpush1.msra.mxu0 0.0
    %934 = vmatprep.subr.mxu0 0.0
    %935 = vmatpush1.msra.mxu0 0.0
    %936 = vmatprep.subr.mxu0 0.0
    %937 = vmatpush1.msra.mxu0 0.0
    %938 = vmatprep.subr.mxu0 0.0
    %939 = vmatpush1.msra.mxu0 0.0
    %940 = vmatprep.subr.mxu0 0.0
    %941 = vmatpush1.msra.mxu0 0.0
    %942 = vmatprep.subr.mxu0 0.0
    %943 = vmatpush1.msra.mxu0 0.0
    %944 = vmatprep.subr.mxu0 0.0
    %945 = vmatpush1.msra.mxu0 0.0
    %946 = vmatprep.subr.mxu0 0.0
    %947 = vmatpush1.msra.mxu0 0.0
    %948 = vmatprep.subr.mxu0 0.0
    %949 = vmatpush1.msra.mxu0 0.0
    %950 = vmatprep.subr.mxu0 0.0
    %951 = vmatpush1.msra.mxu0 0.0
    %952 = vmatprep.subr.mxu0 0.0
    %953 = vmatpush1.msra.mxu0 0.0
    %954 = vmatprep.subr.mxu0 0.0
    %955 = vmatpush1.msra.mxu0 0.0
    %956 = vmatprep.subr.mxu0 0.0
    %957 = vmatpush1.msra.mxu0 0.0
    %958 = vmatprep.subr.mxu0 0.0
    %959 = vmatpush1.msra.mxu0 0.0
    %960 = vmatprep.mubr.f32.mxu0 0.0
    %961 = vmatmul.mubr.f32.gmra.mrb[0].mxu0 %v894
    %v962 = vpop.f32.mrb[0].mxu0
    %v963 = vadd.f32 %v890, %v962
    %v964 = vpop.f32.mrb[0].mxu0
    %965 = vdwg.mxu0
    %v966 = vadd.f32 %v963, %v458
    %s967 = scalar_lea.vmem [#allocation5], 32
    %v968 = vld [vmem:[%s967] sm:$0xff]
    %v969 = vld [vmem:[%s967 + $0x8] sm:$0xff]
    %v970 = vld [vmem:[%s967 + $0x10] sm:$0xff]
    %v971 = vld [vmem:[%s967 + $0x18] sm:$0xff]
    %s972 = scalar_lea.vmem [#allocation7], 32
    %v973 = vld [vmem:[%s972] sm:$0xff]
    %v974 = vld [vmem:[%s972 + $0x8] sm:$0xff]
    %v975 = vld [vmem:[%s972 + $0x10] sm:$0xff]
    %v976 = vld [vmem:[%s972 + $0x18] sm:$0xff]
    %977 = vmatprep.subr.mxu0 0.0
    %978 = vmatpush1.msra.mxu0 %v973
    %979 = vmatprep.subr.mxu0 0.0
    %980 = vmatpush1.msra.mxu0 %v974
    %981 = vmatprep.subr.mxu0 0.0
    %982 = vmatpush1.msra.mxu0 %v975
    %983 = vmatprep.subr.mxu0 0.0
    %984 = vmatpush1.msra.mxu0 %v976
    %985 = vmatprep.subr.mxu0 0.0
    %986 = vmatpush1.msra.mxu0 0.0
    %987 = vmatprep.subr.mxu0 0.0
    %988 = vmatpush1.msra.mxu0 0.0
    %989 = vmatprep.subr.mxu0 0.0
    %990 = vmatpush1.msra.mxu0 0.0
    %991 = vmatprep.subr.mxu0 0.0
    %992 = vmatpush1.msra.mxu0 0.0
    %993 = vmatprep.subr.mxu0 0.0
    %994 = vmatpush1.msra.mxu0 0.0
    %995 = vmatprep.subr.mxu0 0.0
    %996 = vmatpush1.msra.mxu0 0.0
    %997 = vmatprep.subr.mxu0 0.0
    %998 = vmatpush1.msra.mxu0 0.0
    %999 = vmatprep.subr.mxu0 0.0
    %1000 = vmatpush1.msra.mxu0 0.0
    %1001 = vmatprep.subr.mxu0 0.0
    %1002 = vmatpush1.msra.mxu0 0.0
    %1003 = vmatprep.subr.mxu0 0.0
    %1004 = vmatpush1.msra.mxu0 0.0
    %1005 = vmatprep.subr.mxu0 0.0
    %1006 = vmatpush1.msra.mxu0 0.0
    %1007 = vmatprep.subr.mxu0 0.0
    %1008 = vmatpush1.msra.mxu0 0.0
    %1009 = vmatprep.subr.mxu0 0.0
    %1010 = vmatpush1.msra.mxu0 0.0
    %1011 = vmatprep.subr.mxu0 0.0
    %1012 = vmatpush1.msra.mxu0 0.0
    %1013 = vmatprep.subr.mxu0 0.0
    %1014 = vmatpush1.msra.mxu0 0.0
    %1015 = vmatprep.subr.mxu0 0.0
    %1016 = vmatpush1.msra.mxu0 0.0
    %1017 = vmatprep.subr.mxu0 0.0
    %1018 = vmatpush1.msra.mxu0 0.0
    %1019 = vmatprep.subr.mxu0 0.0
    %1020 = vmatpush1.msra.mxu0 0.0
    %1021 = vmatprep.subr.mxu0 0.0
    %1022 = vmatpush1.msra.mxu0 0.0
    %1023 = vmatprep.subr.mxu0 0.0
    %1024 = vmatpush1.msra.mxu0 0.0
    %1025 = vmatprep.subr.mxu0 0.0
    %1026 = vmatpush1.msra.mxu0 0.0
    %1027 = vmatprep.subr.mxu0 0.0
    %1028 = vmatpush1.msra.mxu0 0.0
    %1029 = vmatprep.subr.mxu0 0.0
    %1030 = vmatpush1.msra.mxu0 0.0
    %1031 = vmatprep.subr.mxu0 0.0
    %1032 = vmatpush1.msra.mxu0 0.0
    %1033 = vmatprep.subr.mxu0 0.0
    %1034 = vmatpush1.msra.mxu0 0.0
    %1035 = vmatprep.subr.mxu0 0.0
    %1036 = vmatpush1.msra.mxu0 0.0
    %1037 = vmatprep.subr.mxu0 0.0
    %1038 = vmatpush1.msra.mxu0 0.0
    %1039 = vmatprep.subr.mxu0 0.0
    %1040 = vmatpush1.msra.mxu0 0.0
    %1041 = vmatprep.mubr.f32.mxu0 0.0
    %1042 = vmatmul.mubr.f32.gmra.mrb[0].mxu0 %v490
    %v1043 = vpop.f32.mrb[0].mxu0
    %v1044 = vadd.f32 0.0, %v1043
    %v1045 = vpop.f32.mrb[0].mxu0
    %1046 = vdwg.mxu0
    %1047 = vmatprep.subr.mxu0 0.0
    %1048 = vmatpush1.msra.mxu0 %v968
    %1049 = vmatprep.subr.mxu0 0.0
    %1050 = vmatpush1.msra.mxu0 %v969
    %1051 = vmatprep.subr.mxu0 0.0
    %1052 = vmatpush1.msra.mxu0 %v970
    %1053 = vmatprep.subr.mxu0 0.0
    %1054 = vmatpush1.msra.mxu0 %v971
    %1055 = vmatprep.subr.mxu0 0.0
    %1056 = vmatpush1.msra.mxu0 0.0
    %1057 = vmatprep.subr.mxu0 0.0
    %1058 = vmatpush1.msra.mxu0 0.0
    %1059 = vmatprep.subr.mxu0 0.0
    %1060 = vmatpush1.msra.mxu0 0.0
    %1061 = vmatprep.subr.mxu0 0.0
    %1062 = vmatpush1.msra.mxu0 0.0
    %1063 = vmatprep.subr.mxu0 0.0
    %1064 = vmatpush1.msra.mxu0 0.0
    %1065 = vmatprep.subr.mxu0 0.0
    %1066 = vmatpush1.msra.mxu0 0.0
    %1067 = vmatprep.subr.mxu0 0.0
    %1068 = vmatpush1.msra.mxu0 0.0
    %1069 = vmatprep.subr.mxu0 0.0
    %1070 = vmatpush1.msra.mxu0 0.0
    %1071 = vmatprep.subr.mxu0 0.0
    %1072 = vmatpush1.msra.mxu0 0.0
    %1073 = vmatprep.subr.mxu0 0.0
    %1074 = vmatpush1.msra.mxu0 0.0
    %1075 = vmatprep.subr.mxu0 0.0
    %1076 = vmatpush1.msra.mxu0 0.0
    %1077 = vmatprep.subr.mxu0 0.0
    %1078 = vmatpush1.msra.mxu0 0.0
    %1079 = vmatprep.subr.mxu0 0.0
    %1080 = vmatpush1.msra.mxu0 0.0
    %1081 = vmatprep.subr.mxu0 0.0
    %1082 = vmatpush1.msra.mxu0 0.0
    %1083 = vmatprep.subr.mxu0 0.0
    %1084 = vmatpush1.msra.mxu0 0.0
    %1085 = vmatprep.subr.mxu0 0.0
    %1086 = vmatpush1.msra.mxu0 0.0
    %1087 = vmatprep.subr.mxu0 0.0
    %1088 = vmatpush1.msra.mxu0 0.0
    %1089 = vmatprep.subr.mxu0 0.0
    %1090 = vmatpush1.msra.mxu0 0.0
    %1091 = vmatprep.subr.mxu0 0.0
    %1092 = vmatpush1.msra.mxu0 0.0
    %1093 = vmatprep.subr.mxu0 0.0
    %1094 = vmatpush1.msra.mxu0 0.0
    %1095 = vmatprep.subr.mxu0 0.0
    %1096 = vmatpush1.msra.mxu0 0.0
    %1097 = vmatprep.subr.mxu0 0.0
    %1098 = vmatpush1.msra.mxu0 0.0
    %1099 = vmatprep.subr.mxu0 0.0
    %1100 = vmatpush1.msra.mxu0 0.0
    %1101 = vmatprep.subr.mxu0 0.0
    %1102 = vmatpush1.msra.mxu0 0.0
    %1103 = vmatprep.subr.mxu0 0.0
    %1104 = vmatpush1.msra.mxu0 0.0
    %1105 = vmatprep.subr.mxu0 0.0
    %1106 = vmatpush1.msra.mxu0 0.0
    %1107 = vmatprep.subr.mxu0 0.0
    %1108 = vmatpush1.msra.mxu0 0.0
    %1109 = vmatprep.subr.mxu0 0.0
    %1110 = vmatpush1.msra.mxu0 0.0
    %1111 = vmatprep.mubr.f32.mxu0 0.0
    %1112 = vmatmul.mubr.f32.gmra.mrb[0].mxu0 %v894
    %v1113 = vpop.f32.mrb[0].mxu0
    %v1114 = vadd.f32 %v1044, %v1113
    %v1115 = vpop.f32.mrb[0].mxu0
    %1116 = vdwg.mxu0
    %v1117 = vadd.f32 %v1114, %v466
    %s1118 = scalar_lea.vmem [#allocation5], 64
    %v1119 = vld [vmem:[%s1118] sm:$0xff]
    %v1120 = vld [vmem:[%s1118 + $0x8] sm:$0xff]
    %v1121 = vld [vmem:[%s1118 + $0x10] sm:$0xff]
    %v1122 = vld [vmem:[%s1118 + $0x18] sm:$0xff]
    %s1123 = scalar_lea.vmem [#allocation7], 64
    %v1124 = vld [vmem:[%s1123] sm:$0xff]
    %v1125 = vld [vmem:[%s1123 + $0x8] sm:$0xff]
    %v1126 = vld [vmem:[%s1123 + $0x10] sm:$0xff]
    %v1127 = vld [vmem:[%s1123 + $0x18] sm:$0xff]
    %1128 = vmatprep.subr.mxu0 0.0
    %1129 = vmatpush1.msra.mxu0 %v1124
    %1130 = vmatprep.subr.mxu0 0.0
    %1131 = vmatpush1.msra.mxu0 %v1125
    %1132 = vmatprep.subr.mxu0 0.0
    %1133 = vmatpush1.msra.mxu0 %v1126
    %1134 = vmatprep.subr.mxu0 0.0
    %1135 = vmatpush1.msra.mxu0 %v1127
    %1136 = vmatprep.subr.mxu0 0.0
    %1137 = vmatpush1.msra.mxu0 0.0
    %1138 = vmatprep.subr.mxu0 0.0
    %1139 = vmatpush1.msra.mxu0 0.0
    %1140 = vmatprep.subr.mxu0 0.0
    %1141 = vmatpush1.msra.mxu0 0.0
    %1142 = vmatprep.subr.mxu0 0.0
    %1143 = vmatpush1.msra.mxu0 0.0
    %1144 = vmatprep.subr.mxu0 0.0
    %1145 = vmatpush1.msra.mxu0 0.0
    %1146 = vmatprep.subr.mxu0 0.0
    %1147 = vmatpush1.msra.mxu0 0.0
    %1148 = vmatprep.subr.mxu0 0.0
    %1149 = vmatpush1.msra.mxu0 0.0
    %1150 = vmatprep.subr.mxu0 0.0
    %1151 = vmatpush1.msra.mxu0 0.0
    %1152 = vmatprep.subr.mxu0 0.0
    %1153 = vmatpush1.msra.mxu0 0.0
    %1154 = vmatprep.subr.mxu0 0.0
    %1155 = vmatpush1.msra.mxu0 0.0
    %1156 = vmatprep.subr.mxu0 0.0
    %1157 = vmatpush1.msra.mxu0 0.0
    %1158 = vmatprep.subr.mxu0 0.0
    %1159 = vmatpush1.msra.mxu0 0.0
    %1160 = vmatprep.subr.mxu0 0.0
    %1161 = vmatpush1.msra.mxu0 0.0
    %1162 = vmatprep.subr.mxu0 0.0
    %1163 = vmatpush1.msra.mxu0 0.0
    %1164 = vmatprep.subr.mxu0 0.0
    %1165 = vmatpush1.msra.mxu0 0.0
    %1166 = vmatprep.subr.mxu0 0.0
    %1167 = vmatpush1.msra.mxu0 0.0
    %1168 = vmatprep.subr.mxu0 0.0
    %1169 = vmatpush1.msra.mxu0 0.0
    %1170 = vmatprep.subr.mxu0 0.0
    %1171 = vmatpush1.msra.mxu0 0.0
    %1172 = vmatprep.subr.mxu0 0.0
    %1173 = vmatpush1.msra.mxu0 0.0
    %1174 = vmatprep.subr.mxu0 0.0
    %1175 = vmatpush1.msra.mxu0 0.0
    %1176 = vmatprep.subr.mxu0 0.0
    %1177 = vmatpush1.msra.mxu0 0.0
    %1178 = vmatprep.subr.mxu0 0.0
    %1179 = vmatpush1.msra.mxu0 0.0
    %1180 = vmatprep.subr.mxu0 0.0
    %1181 = vmatpush1.msra.mxu0 0.0
    %1182 = vmatprep.subr.mxu0 0.0
    %1183 = vmatpush1.msra.mxu0 0.0
    %1184 = vmatprep.subr.mxu0 0.0
    %1185 = vmatpush1.msra.mxu0 0.0
    %1186 = vmatprep.subr.mxu0 0.0
    %1187 = vmatpush1.msra.mxu0 0.0
    %1188 = vmatprep.subr.mxu0 0.0
    %1189 = vmatpush1.msra.mxu0 0.0
    %1190 = vmatprep.subr.mxu0 0.0
    %1191 = vmatpush1.msra.mxu0 0.0
    %1192 = vmatprep.mubr.f32.mxu0 0.0
    %1193 = vmatmul.mubr.f32.gmra.mrb[0].mxu0 %v490
    %v1194 = vpop.f32.mrb[0].mxu0
    %v1195 = vadd.f32 0.0, %v1194
    %v1196 = vpop.f32.mrb[0].mxu0
    %1197 = vdwg.mxu0
    %1198 = vmatprep.subr.mxu0 0.0
    %1199 = vmatpush1.msra.mxu0 %v1119
    %1200 = vmatprep.subr.mxu0 0.0
    %1201 = vmatpush1.msra.mxu0 %v1120
    %1202 = vmatprep.subr.mxu0 0.0
    %1203 = vmatpush1.msra.mxu0 %v1121
    %1204 = vmatprep.subr.mxu0 0.0
    %1205 = vmatpush1.msra.mxu0 %v1122
    %1206 = vmatprep.subr.mxu0 0.0
    %1207 = vmatpush1.msra.mxu0 0.0
    %1208 = vmatprep.subr.mxu0 0.0
    %1209 = vmatpush1.msra.mxu0 0.0
    %1210 = vmatprep.subr.mxu0 0.0
    %1211 = vmatpush1.msra.mxu0 0.0
    %1212 = vmatprep.subr.mxu0 0.0
    %1213 = vmatpush1.msra.mxu0 0.0
    %1214 = vmatprep.subr.mxu0 0.0
    %1215 = vmatpush1.msra.mxu0 0.0
    %1216 = vmatprep.subr.mxu0 0.0
    %1217 = vmatpush1.msra.mxu0 0.0
    %1218 = vmatprep.subr.mxu0 0.0
    %1219 = vmatpush1.msra.mxu0 0.0
    %1220 = vmatprep.subr.mxu0 0.0
    %1221 = vmatpush1.msra.mxu0 0.0
    %1222 = vmatprep.subr.mxu0 0.0
    %1223 = vmatpush1.msra.mxu0 0.0
    %1224 = vmatprep.subr.mxu0 0.0
    %1225 = vmatpush1.msra.mxu0 0.0
    %1226 = vmatprep.subr.mxu0 0.0
    %1227 = vmatpush1.msra.mxu0 0.0
    %1228 = vmatprep.subr.mxu0 0.0
    %1229 = vmatpush1.msra.mxu0 0.0
    %1230 = vmatprep.subr.mxu0 0.0
    %1231 = vmatpush1.msra.mxu0 0.0
    %1232 = vmatprep.subr.mxu0 0.0
    %1233 = vmatpush1.msra.mxu0 0.0
    %1234 = vmatprep.subr.mxu0 0.0
    %1235 = vmatpush1.msra.mxu0 0.0
    %1236 = vmatprep.subr.mxu0 0.0
    %1237 = vmatpush1.msra.mxu0 0.0
    %1238 = vmatprep.subr.mxu0 0.0
    %1239 = vmatpush1.msra.mxu0 0.0
    %1240 = vmatprep.subr.mxu0 0.0
    %1241 = vmatpush1.msra.mxu0 0.0
    %1242 = vmatprep.subr.mxu0 0.0
    %1243 = vmatpush1.msra.mxu0 0.0
    %1244 = vmatprep.subr.mxu0 0.0
    %1245 = vmatpush1.msra.mxu0 0.0
    %1246 = vmatprep.subr.mxu0 0.0
    %1247 = vmatpush1.msra.mxu0 0.0
    %1248 = vmatprep.subr.mxu0 0.0
    %1249 = vmatpush1.msra.mxu0 0.0
    %1250 = vmatprep.subr.mxu0 0.0
    %1251 = vmatpush1.msra.mxu0 0.0
    %1252 = vmatprep.subr.mxu0 0.0
    %1253 = vmatpush1.msra.mxu0 0.0
    %1254 = vmatprep.subr.mxu0 0.0
    %1255 = vmatpush1.msra.mxu0 0.0
    %1256 = vmatprep.subr.mxu0 0.0
    %1257 = vmatpush1.msra.mxu0 0.0
    %1258 = vmatprep.subr.mxu0 0.0
    %1259 = vmatpush1.msra.mxu0 0.0
    %1260 = vmatprep.subr.mxu0 0.0
    %1261 = vmatpush1.msra.mxu0 0.0
    %1262 = vmatprep.mubr.f32.mxu0 0.0
    %1263 = vmatmul.mubr.f32.gmra.mrb[0].mxu0 %v894
    %v1264 = vpop.f32.mrb[0].mxu0
    %v1265 = vadd.f32 %v1195, %v1264
    %v1266 = vpop.f32.mrb[0].mxu0
    %1267 = vdwg.mxu0
    %v1268 = vadd.f32 %v1265, %v474
    %s1269 = scalar_lea.vmem [#allocation5], 96
    %v1270 = vld [vmem:[%s1269] sm:$0xff]
    %v1271 = vld [vmem:[%s1269 + $0x8] sm:$0xff]
    %v1272 = vld [vmem:[%s1269 + $0x10] sm:$0xff]
    %v1273 = vld [vmem:[%s1269 + $0x18] sm:$0xff]
    %s1274 = scalar_lea.vmem [#allocation7], 96
    %v1275 = vld [vmem:[%s1274] sm:$0xff]
    %v1276 = vld [vmem:[%s1274 + $0x8] sm:$0xff]
    %v1277 = vld [vmem:[%s1274 + $0x10] sm:$0xff]
    %v1278 = vld [vmem:[%s1274 + $0x18] sm:$0xff]
    %1279 = vmatprep.subr.mxu0 0.0
    %1280 = vmatpush1.msra.mxu0 %v1275
    %1281 = vmatprep.subr.mxu0 0.0
    %1282 = vmatpush1.msra.mxu0 %v1276
    %1283 = vmatprep.subr.mxu0 0.0
    %1284 = vmatpush1.msra.mxu0 %v1277
    %1285 = vmatprep.subr.mxu0 0.0
    %1286 = vmatpush1.msra.mxu0 %v1278
    %1287 = vmatprep.subr.mxu0 0.0
    %1288 = vmatpush1.msra.mxu0 0.0
    %1289 = vmatprep.subr.mxu0 0.0
    %1290 = vmatpush1.msra.mxu0 0.0
    %1291 = vmatprep.subr.mxu0 0.0
    %1292 = vmatpush1.msra.mxu0 0.0
    %1293 = vmatprep.subr.mxu0 0.0
    %1294 = vmatpush1.msra.mxu0 0.0
    %1295 = vmatprep.subr.mxu0 0.0
    %1296 = vmatpush1.msra.mxu0 0.0
    %1297 = vmatprep.subr.mxu0 0.0
    %1298 = vmatpush1.msra.mxu0 0.0
    %1299 = vmatprep.subr.mxu0 0.0
    %1300 = vmatpush1.msra.mxu0 0.0
    %1301 = vmatprep.subr.mxu0 0.0
    %1302 = vmatpush1.msra.mxu0 0.0
    %1303 = vmatprep.subr.mxu0 0.0
    %1304 = vmatpush1.msra.mxu0 0.0
    %1305 = vmatprep.subr.mxu0 0.0
    %1306 = vmatpush1.msra.mxu0 0.0
    %1307 = vmatprep.subr.mxu0 0.0
    %1308 = vmatpush1.msra.mxu0 0.0
    %1309 = vmatprep.subr.mxu0 0.0
    %1310 = vmatpush1.msra.mxu0 0.0
    %1311 = vmatprep.subr.mxu0 0.0
    %1312 = vmatpush1.msra.mxu0 0.0
    %1313 = vmatprep.subr.mxu0 0.0
    %1314 = vmatpush1.msra.mxu0 0.0
    %1315 = vmatprep.subr.mxu0 0.0
    %1316 = vmatpush1.msra.mxu0 0.0
    %1317 = vmatprep.subr.mxu0 0.0
    %1318 = vmatpush1.msra.mxu0 0.0
    %1319 = vmatprep.subr.mxu0 0.0
    %1320 = vmatpush1.msra.mxu0 0.0
    %1321 = vmatprep.subr.mxu0 0.0
    %1322 = vmatpush1.msra.mxu0 0.0
    %1323 = vmatprep.subr.mxu0 0.0
    %1324 = vmatpush1.msra.mxu0 0.0
    %1325 = vmatprep.subr.mxu0 0.0
    %1326 = vmatpush1.msra.mxu0 0.0
    %1327 = vmatprep.subr.mxu0 0.0
    %1328 = vmatpush1.msra.mxu0 0.0
    %1329 = vmatprep.subr.mxu0 0.0
    %1330 = vmatpush1.msra.mxu0 0.0
    %1331 = vmatprep.subr.mxu0 0.0
    %1332 = vmatpush1.msra.mxu0 0.0
    %1333 = vmatprep.subr.mxu0 0.0
    %1334 = vmatpush1.msra.mxu0 0.0
    %1335 = vmatprep.subr.mxu0 0.0
    %1336 = vmatpush1.msra.mxu0 0.0
    %1337 = vmatprep.subr.mxu0 0.0
    %1338 = vmatpush1.msra.mxu0 0.0
    %1339 = vmatprep.subr.mxu0 0.0
    %1340 = vmatpush1.msra.mxu0 0.0
    %1341 = vmatprep.subr.mxu0 0.0
    %1342 = vmatpush1.msra.mxu0 0.0
    %1343 = vmatprep.mubr.f32.mxu0 0.0
    %1344 = vmatmul.mubr.f32.gmra.mrb[0].mxu0 %v490
    %v1345 = vpop.f32.mrb[0].mxu0
    %v1346 = vadd.f32 0.0, %v1345
    %v1347 = vpop.f32.mrb[0].mxu0
    %1348 = vdwg.mxu0
    %1349 = vmatprep.subr.mxu0 0.0
    %1350 = vmatpush1.msra.mxu0 %v1270
    %1351 = vmatprep.subr.mxu0 0.0
    %1352 = vmatpush1.msra.mxu0 %v1271
    %1353 = vmatprep.subr.mxu0 0.0
    %1354 = vmatpush1.msra.mxu0 %v1272
    %1355 = vmatprep.subr.mxu0 0.0
    %1356 = vmatpush1.msra.mxu0 %v1273
    %1357 = vmatprep.subr.mxu0 0.0
    %1358 = vmatpush1.msra.mxu0 0.0
    %1359 = vmatprep.subr.mxu0 0.0
    %1360 = vmatpush1.msra.mxu0 0.0
    %1361 = vmatprep.subr.mxu0 0.0
    %1362 = vmatpush1.msra.mxu0 0.0
    %1363 = vmatprep.subr.mxu0 0.0
    %1364 = vmatpush1.msra.mxu0 0.0
    %1365 = vmatprep.subr.mxu0 0.0
    %1366 = vmatpush1.msra.mxu0 0.0
    %1367 = vmatprep.subr.mxu0 0.0
    %1368 = vmatpush1.msra.mxu0 0.0
    %1369 = vmatprep.subr.mxu0 0.0
    %1370 = vmatpush1.msra.mxu0 0.0
    %1371 = vmatprep.subr.mxu0 0.0
    %1372 = vmatpush1.msra.mxu0 0.0
    %1373 = vmatprep.subr.mxu0 0.0
    %1374 = vmatpush1.msra.mxu0 0.0
    %1375 = vmatprep.subr.mxu0 0.0
    %1376 = vmatpush1.msra.mxu0 0.0
    %1377 = vmatprep.subr.mxu0 0.0
    %1378 = vmatpush1.msra.mxu0 0.0
    %1379 = vmatprep.subr.mxu0 0.0
    %1380 = vmatpush1.msra.mxu0 0.0
    %1381 = vmatprep.subr.mxu0 0.0
    %1382 = vmatpush1.msra.mxu0 0.0
    %1383 = vmatprep.subr.mxu0 0.0
    %1384 = vmatpush1.msra.mxu0 0.0
    %1385 = vmatprep.subr.mxu0 0.0
    %1386 = vmatpush1.msra.mxu0 0.0
    %1387 = vmatprep.subr.mxu0 0.0
    %1388 = vmatpush1.msra.mxu0 0.0
    %1389 = vmatprep.subr.mxu0 0.0
    %1390 = vmatpush1.msra.mxu0 0.0
    %1391 = vmatprep.subr.mxu0 0.0
    %1392 = vmatpush1.msra.mxu0 0.0
    %1393 = vmatprep.subr.mxu0 0.0
    %1394 = vmatpush1.msra.mxu0 0.0
    %1395 = vmatprep.subr.mxu0 0.0
    %1396 = vmatpush1.msra.mxu0 0.0
    %1397 = vmatprep.subr.mxu0 0.0
    %1398 = vmatpush1.msra.mxu0 0.0
    %1399 = vmatprep.subr.mxu0 0.0
    %1400 = vmatpush1.msra.mxu0 0.0
    %1401 = vmatprep.subr.mxu0 0.0
    %1402 = vmatpush1.msra.mxu0 0.0
    %1403 = vmatprep.subr.mxu0 0.0
    %1404 = vmatpush1.msra.mxu0 0.0
    %1405 = vmatprep.subr.mxu0 0.0
    %1406 = vmatpush1.msra.mxu0 0.0
    %1407 = vmatprep.subr.mxu0 0.0
    %1408 = vmatpush1.msra.mxu0 0.0
    %1409 = vmatprep.subr.mxu0 0.0
    %1410 = vmatpush1.msra.mxu0 0.0
    %1411 = vmatprep.subr.mxu0 0.0
    %1412 = vmatpush1.msra.mxu0 0.0
    %1413 = vmatprep.mubr.f32.mxu0 0.0
    %1414 = vmatmul.mubr.f32.gmra.mrb[0].mxu0 %v894
    %v1415 = vpop.f32.mrb[0].mxu0
    %v1416 = vadd.f32 %v1346, %v1415
    %v1417 = vpop.f32.mrb[0].mxu0
    %1418 = vdwg.mxu0
    %v1419 = vadd.f32 %v1416, %v482
    %v1420 = vxor.u32 %v966, 2147483648
    %v1421 = vmul.f32 %v1420, 1.442695
    %v1422 = vpow.pop %v1421
    %v1423 = vadd.f32 %v1422, 1.0
    %v1424 = vrcp.pop %v1423
    %v1425 = vmul.f32 1.0, %v1424
    %v1426 = vxor.u32 %v1117, 2147483648
    %v1427 = vmul.f32 %v1426, 1.442695
    %v1428 = vpow.pop %v1427
    %v1429 = vadd.f32 %v1428, 1.0
    %v1430 = vrcp.pop %v1429
    %v1431 = vmul.f32 1.0, %v1430
    %v1432 = vtanh.pop %v1268
    %v1433 = vxor.u32 %v1419, 2147483648
    %v1434 = vmul.f32 %v1433, 1.442695
    %v1435 = vpow.pop %v1434
    %v1436 = vadd.f32 %v1435, 1.0
    %v1437 = vrcp.pop %v1436
    %v1438 = vmul.f32 1.0, %v1437
    %v1439 = vmul.f32 %v1431, 0.0
    %v1440 = vmul.f32 %v1425, %v1432
    %v1441 = vadd.f32 %v1439, %v1440
    %v1442 = vtanh.pop %v1441
    %v1443 = vmul.f32 %v1438, %v1442
    %vm1444 = vcmask 254976
    %1445 = vst.msk [vmem:[#allocation2] sm:$0x3] %vm1444, %v1443
    %v1446 = vld [vmem:[#allocation3] sm:$0xff]
    %v1447 = vld [vmem:[#allocation3 + $0x8] sm:$0xff]
    %v1448 = vld [vmem:[#allocation3 + $0x10] sm:$0xff]
    %v1449 = vld [vmem:[#allocation3 + $0x18] sm:$0xff]
    %1450 = vmatprep.subr.mxu0 0.0
    %1451 = vmatpush1.msra.mxu0 %v1446
    %1452 = vmatprep.subr.mxu0 0.0
    %1453 = vmatpush1.msra.mxu0 %v1447
    %1454 = vmatprep.subr.mxu0 0.0
    %1455 = vmatpush1.msra.mxu0 %v1448
    %1456 = vmatprep.subr.mxu0 0.0
    %1457 = vmatpush1.msra.mxu0 %v1449
    %1458 = vmatprep.subr.mxu0 0.0
    %1459 = vmatpush1.msra.mxu0 0.0
    %1460 = vmatprep.subr.mxu0 0.0
    %1461 = vmatpush1.msra.mxu0 0.0
    %1462 = vmatprep.subr.mxu0 0.0
    %1463 = vmatpush1.msra.mxu0 0.0
    %1464 = vmatprep.subr.mxu0 0.0
    %1465 = vmatpush1.msra.mxu0 0.0
    %1466 = vmatprep.subr.mxu0 0.0
    %1467 = vmatpush1.msra.mxu0 0.0
    %1468 = vmatprep.subr.mxu0 0.0
    %1469 = vmatpush1.msra.mxu0 0.0
    %1470 = vmatprep.subr.mxu0 0.0
    %1471 = vmatpush1.msra.mxu0 0.0
    %1472 = vmatprep.subr.mxu0 0.0
    %1473 = vmatpush1.msra.mxu0 0.0
    %1474 = vmatprep.subr.mxu0 0.0
    %1475 = vmatpush1.msra.mxu0 0.0
    %1476 = vmatprep.subr.mxu0 0.0
    %1477 = vmatpush1.msra.mxu0 0.0
    %1478 = vmatprep.subr.mxu0 0.0
    %1479 = vmatpush1.msra.mxu0 0.0
    %1480 = vmatprep.subr.mxu0 0.0
    %1481 = vmatpush1.msra.mxu0 0.0
    %1482 = vmatprep.subr.mxu0 0.0
    %1483 = vmatpush1.msra.mxu0 0.0
    %1484 = vmatprep.subr.mxu0 0.0
    %1485 = vmatpush1.msra.mxu0 0.0
    %1486 = vmatprep.subr.mxu0 0.0
    %1487 = vmatpush1.msra.mxu0 0.0
    %1488 = vmatprep.subr.mxu0 0.0
    %1489 = vmatpush1.msra.mxu0 0.0
    %1490 = vmatprep.subr.mxu0 0.0
    %1491 = vmatpush1.msra.mxu0 0.0
    %1492 = vmatprep.subr.mxu0 0.0
    %1493 = vmatpush1.msra.mxu0 0.0
    %1494 = vmatprep.subr.mxu0 0.0
    %1495 = vmatpush1.msra.mxu0 0.0
    %1496 = vmatprep.subr.mxu0 0.0
    %1497 = vmatpush1.msra.mxu0 0.0
    %1498 = vmatprep.subr.mxu0 0.0
    %1499 = vmatpush1.msra.mxu0 0.0
    %1500 = vmatprep.subr.mxu0 0.0
    %1501 = vmatpush1.msra.mxu0 0.0
    %1502 = vmatprep.subr.mxu0 0.0
    %1503 = vmatpush1.msra.mxu0 0.0
    %1504 = vmatprep.subr.mxu0 0.0
    %1505 = vmatpush1.msra.mxu0 0.0
    %1506 = vmatprep.subr.mxu0 0.0
    %1507 = vmatpush1.msra.mxu0 0.0
    %1508 = vmatprep.subr.mxu0 0.0
    %1509 = vmatpush1.msra.mxu0 0.0
    %1510 = vmatprep.subr.mxu0 0.0
    %1511 = vmatpush1.msra.mxu0 0.0
    %1512 = vmatprep.subr.mxu0 0.0
    %1513 = vmatpush1.msra.mxu0 0.0
    %1514 = vmatprep.mubr.f32.mxu0 0.0
    %1515 = vmatmul.mubr.f32.gmra.mrb[0].mxu0 %v894
    %v1516 = vpop.f32.mrb[0].mxu0
    %v1517 = vadd.f32 0.0, %v1516
    %v1518 = vpop.f32.mrb[0].mxu0
    %1519 = vdwg.mxu0
    %v1521 = vrot.slane %v1517, 6
    %v1523 = vadd.f32 %v190, %v1521
    %v1524 = vld [vmem:[%s563] sm:$0xff]
    %v1525 = vld [vmem:[%s563 + $0x8] sm:$0xff]
    %v1526 = vld [vmem:[%s563 + $0x10] sm:$0xff]
    %v1527 = vld [vmem:[%s563 + $0x18] sm:$0xff]
    %1528 = vmatprep.subr.mxu0 0.0
    %1529 = vmatpush1.msra.mxu0 %v1524
    %1530 = vmatprep.subr.mxu0 0.0
    %1531 = vmatpush1.msra.mxu0 %v1525
    %1532 = vmatprep.subr.mxu0 0.0
    %1533 = vmatpush1.msra.mxu0 %v1526
    %1534 = vmatprep.subr.mxu0 0.0
    %1535 = vmatpush1.msra.mxu0 %v1527
    %1536 = vmatprep.subr.mxu0 0.0
    %1537 = vmatpush1.msra.mxu0 0.0
    %1538 = vmatprep.subr.mxu0 0.0
    %1539 = vmatpush1.msra.mxu0 0.0
    %1540 = vmatprep.subr.mxu0 0.0
    %1541 = vmatpush1.msra.mxu0 0.0
    %1542 = vmatprep.subr.mxu0 0.0
    %1543 = vmatpush1.msra.mxu0 0.0
    %1544 = vmatprep.subr.mxu0 0.0
    %1545 = vmatpush1.msra.mxu0 0.0
    %1546 = vmatprep.subr.mxu0 0.0
    %1547 = vmatpush1.msra.mxu0 0.0
    %1548 = vmatprep.subr.mxu0 0.0
    %1549 = vmatpush1.msra.mxu0 0.0
    %1550 = vmatprep.subr.mxu0 0.0
    %1551 = vmatpush1.msra.mxu0 0.0
    %1552 = vmatprep.subr.mxu0 0.0
    %1553 = vmatpush1.msra.mxu0 0.0
    %1554 = vmatprep.subr.mxu0 0.0
    %1555 = vmatpush1.msra.mxu0 0.0
    %1556 = vmatprep.subr.mxu0 0.0
    %1557 = vmatpush1.msra.mxu0 0.0
    %1558 = vmatprep.subr.mxu0 0.0
    %1559 = vmatpush1.msra.mxu0 0.0
    %1560 = vmatprep.subr.mxu0 0.0
    %1561 = vmatpush1.msra.mxu0 0.0
    %1562 = vmatprep.subr.mxu0 0.0
    %1563 = vmatpush1.msra.mxu0 0.0
    %1564 = vmatprep.subr.mxu0 0.0
    %1565 = vmatpush1.msra.mxu0 0.0
    %1566 = vmatprep.subr.mxu0 0.0
    %1567 = vmatpush1.msra.mxu0 0.0
    %1568 = vmatprep.subr.mxu0 0.0
    %1569 = vmatpush1.msra.mxu0 0.0
    %1570 = vmatprep.subr.mxu0 0.0
    %1571 = vmatpush1.msra.mxu0 0.0
    %1572 = vmatprep.subr.mxu0 0.0
    %1573 = vmatpush1.msra.mxu0 0.0
    %1574 = vmatprep.subr.mxu0 0.0
    %1575 = vmatpush1.msra.mxu0 0.0
    %1576 = vmatprep.subr.mxu0 0.0
    %1577 = vmatpush1.msra.mxu0 0.0
    %1578 = vmatprep.subr.mxu0 0.0
    %1579 = vmatpush1.msra.mxu0 0.0
    %1580 = vmatprep.subr.mxu0 0.0
    %1581 = vmatpush1.msra.mxu0 0.0
    %1582 = vmatprep.subr.mxu0 0.0
    %1583 = vmatpush1.msra.mxu0 0.0
    %1584 = vmatprep.subr.mxu0 0.0
    %1585 = vmatpush1.msra.mxu0 0.0
    %1586 = vmatprep.subr.mxu0 0.0
    %1587 = vmatpush1.msra.mxu0 0.0
    %1588 = vmatprep.subr.mxu0 0.0
    %1589 = vmatpush1.msra.mxu0 0.0
    %1590 = vmatprep.subr.mxu0 0.0
    %1591 = vmatpush1.msra.mxu0 0.0
    %1592 = vmatprep.mubr.f32.mxu0 0.0
    %1593 = vmatmul.mubr.f32.gmra.mrb[0].mxu0 %v894
    %v1594 = vpop.f32.mrb[0].mxu0
    %v1595 = vadd.f32 0.0, %v1594
    %v1596 = vpop.f32.mrb[0].mxu0
    %1597 = vdwg.mxu0
    %v1599 = vrot.slane %v1595, 6
    %v1601 = vadd.f32 %v275, %v1599
    %v1602 = vld [vmem:[%s639] sm:$0xff]
    %v1603 = vld [vmem:[%s639 + $0x8] sm:$0xff]
    %v1604 = vld [vmem:[%s639 + $0x10] sm:$0xff]
    %v1605 = vld [vmem:[%s639 + $0x18] sm:$0xff]
    %1606 = vmatprep.subr.mxu0 0.0
    %1607 = vmatpush1.msra.mxu0 %v1602
    %1608 = vmatprep.subr.mxu0 0.0
    %1609 = vmatpush1.msra.mxu0 %v1603
    %1610 = vmatprep.subr.mxu0 0.0
    %1611 = vmatpush1.msra.mxu0 %v1604
    %1612 = vmatprep.subr.mxu0 0.0
    %1613 = vmatpush1.msra.mxu0 %v1605
    %1614 = vmatprep.subr.mxu0 0.0
    %1615 = vmatpush1.msra.mxu0 0.0
    %1616 = vmatprep.subr.mxu0 0.0
    %1617 = vmatpush1.msra.mxu0 0.0
    %1618 = vmatprep.subr.mxu0 0.0
    %1619 = vmatpush1.msra.mxu0 0.0
    %1620 = vmatprep.subr.mxu0 0.0
    %1621 = vmatpush1.msra.mxu0 0.0
    %1622 = vmatprep.subr.mxu0 0.0
    %1623 = vmatpush1.msra.mxu0 0.0
    %1624 = vmatprep.subr.mxu0 0.0
    %1625 = vmatpush1.msra.mxu0 0.0
    %1626 = vmatprep.subr.mxu0 0.0
    %1627 = vmatpush1.msra.mxu0 0.0
    %1628 = vmatprep.subr.mxu0 0.0
    %1629 = vmatpush1.msra.mxu0 0.0
    %1630 = vmatprep.subr.mxu0 0.0
    %1631 = vmatpush1.msra.mxu0 0.0
    %1632 = vmatprep.subr.mxu0 0.0
    %1633 = vmatpush1.msra.mxu0 0.0
    %1634 = vmatprep.subr.mxu0 0.0
    %1635 = vmatpush1.msra.mxu0 0.0
    %1636 = vmatprep.subr.mxu0 0.0
    %1637 = vmatpush1.msra.mxu0 0.0
    %1638 = vmatprep.subr.mxu0 0.0
    %1639 = vmatpush1.msra.mxu0 0.0
    %1640 = vmatprep.subr.mxu0 0.0
    %1641 = vmatpush1.msra.mxu0 0.0
    %1642 = vmatprep.subr.mxu0 0.0
    %1643 = vmatpush1.msra.mxu0 0.0
    %1644 = vmatprep.subr.mxu0 0.0
    %1645 = vmatpush1.msra.mxu0 0.0
    %1646 = vmatprep.subr.mxu0 0.0
    %1647 = vmatpush1.msra.mxu0 0.0
    %1648 = vmatprep.subr.mxu0 0.0
    %1649 = vmatpush1.msra.mxu0 0.0
    %1650 = vmatprep.subr.mxu0 0.0
    %1651 = vmatpush1.msra.mxu0 0.0
    %1652 = vmatprep.subr.mxu0 0.0
    %1653 = vmatpush1.msra.mxu0 0.0
    %1654 = vmatprep.subr.mxu0 0.0
    %1655 = vmatpush1.msra.mxu0 0.0
    %1656 = vmatprep.subr.mxu0 0.0
    %1657 = vmatpush1.msra.mxu0 0.0
    %1658 = vmatprep.subr.mxu0 0.0
    %1659 = vmatpush1.msra.mxu0 0.0
    %1660 = vmatprep.subr.mxu0 0.0
    %1661 = vmatpush1.msra.mxu0 0.0
    %1662 = vmatprep.subr.mxu0 0.0
    %1663 = vmatpush1.msra.mxu0 0.0
    %1664 = vmatprep.subr.mxu0 0.0
    %1665 = vmatpush1.msra.mxu0 0.0
    %1666 = vmatprep.subr.mxu0 0.0
    %1667 = vmatpush1.msra.mxu0 0.0
    %1668 = vmatprep.subr.mxu0 0.0
    %1669 = vmatpush1.msra.mxu0 0.0
    %1670 = vmatprep.mubr.f32.mxu0 0.0
    %1671 = vmatmul.mubr.f32.gmra.mrb[0].mxu0 %v894
    %v1672 = vpop.f32.mrb[0].mxu0
    %v1673 = vadd.f32 0.0, %v1672
    %v1674 = vpop.f32.mrb[0].mxu0
    %1675 = vdwg.mxu0
    %v1677 = vrot.slane %v1673, 6
    %v1679 = vadd.f32 %v360, %v1677
    %v1680 = vld [vmem:[%s715] sm:$0xff]
    %v1681 = vld [vmem:[%s715 + $0x8] sm:$0xff]
    %v1682 = vld [vmem:[%s715 + $0x10] sm:$0xff]
    %v1683 = vld [vmem:[%s715 + $0x18] sm:$0xff]
    %1684 = vmatprep.subr.mxu0 0.0
    %1685 = vmatpush1.msra.mxu0 %v1680
    %1686 = vmatprep.subr.mxu0 0.0
    %1687 = vmatpush1.msra.mxu0 %v1681
    %1688 = vmatprep.subr.mxu0 0.0
    %1689 = vmatpush1.msra.mxu0 %v1682
    %1690 = vmatprep.subr.mxu0 0.0
    %1691 = vmatpush1.msra.mxu0 %v1683
    %1692 = vmatprep.subr.mxu0 0.0
    %1693 = vmatpush1.msra.mxu0 0.0
    %1694 = vmatprep.subr.mxu0 0.0
    %1695 = vmatpush1.msra.mxu0 0.0
    %1696 = vmatprep.subr.mxu0 0.0
    %1697 = vmatpush1.msra.mxu0 0.0
    %1698 = vmatprep.subr.mxu0 0.0
    %1699 = vmatpush1.msra.mxu0 0.0
    %1700 = vmatprep.subr.mxu0 0.0
    %1701 = vmatpush1.msra.mxu0 0.0
    %1702 = vmatprep.subr.mxu0 0.0
    %1703 = vmatpush1.msra.mxu0 0.0
    %1704 = vmatprep.subr.mxu0 0.0
    %1705 = vmatpush1.msra.mxu0 0.0
    %1706 = vmatprep.subr.mxu0 0.0
    %1707 = vmatpush1.msra.mxu0 0.0
    %1708 = vmatprep.subr.mxu0 0.0
    %1709 = vmatpush1.msra.mxu0 0.0
    %1710 = vmatprep.subr.mxu0 0.0
    %1711 = vmatpush1.msra.mxu0 0.0
    %1712 = vmatprep.subr.mxu0 0.0
    %1713 = vmatpush1.msra.mxu0 0.0
    %1714 = vmatprep.subr.mxu0 0.0
    %1715 = vmatpush1.msra.mxu0 0.0
    %1716 = vmatprep.subr.mxu0 0.0
    %1717 = vmatpush1.msra.mxu0 0.0
    %1718 = vmatprep.subr.mxu0 0.0
    %1719 = vmatpush1.msra.mxu0 0.0
    %1720 = vmatprep.subr.mxu0 0.0
    %1721 = vmatpush1.msra.mxu0 0.0
    %1722 = vmatprep.subr.mxu0 0.0
    %1723 = vmatpush1.msra.mxu0 0.0
    %1724 = vmatprep.subr.mxu0 0.0
    %1725 = vmatpush1.msra.mxu0 0.0
    %1726 = vmatprep.subr.mxu0 0.0
    %1727 = vmatpush1.msra.mxu0 0.0
    %1728 = vmatprep.subr.mxu0 0.0
    %1729 = vmatpush1.msra.mxu0 0.0
    %1730 = vmatprep.subr.mxu0 0.0
    %1731 = vmatpush1.msra.mxu0 0.0
    %1732 = vmatprep.subr.mxu0 0.0
    %1733 = vmatpush1.msra.mxu0 0.0
    %1734 = vmatprep.subr.mxu0 0.0
    %1735 = vmatpush1.msra.mxu0 0.0
    %1736 = vmatprep.subr.mxu0 0.0
    %1737 = vmatpush1.msra.mxu0 0.0
    %1738 = vmatprep.subr.mxu0 0.0
    %1739 = vmatpush1.msra.mxu0 0.0
    %1740 = vmatprep.subr.mxu0 0.0
    %1741 = vmatpush1.msra.mxu0 0.0
    %1742 = vmatprep.subr.mxu0 0.0
    %1743 = vmatpush1.msra.mxu0 0.0
    %1744 = vmatprep.subr.mxu0 0.0
    %1745 = vmatpush1.msra.mxu0 0.0
    %1746 = vmatprep.subr.mxu0 0.0
    %1747 = vmatpush1.msra.mxu0 0.0
    %1748 = vmatprep.mubr.f32.mxu0 0.0
    %1749 = vmatmul.mubr.f32.gmra.mrb[0].mxu0 %v894
    %v1750 = vpop.f32.mrb[0].mxu0
    %v1751 = vadd.f32 0.0, %v1750
    %v1752 = vpop.f32.mrb[0].mxu0
    %1753 = vdwg.mxu0
    %v1755 = vrot.slane %v1751, 6
    %v1757 = vadd.f32 %v445, %v1755
    %v1758 = vxor.u32 %v1523, 2147483648
    %v1759 = vmul.f32 %v1758, 1.442695
    %v1760 = vpow.pop %v1759
    %v1761 = vadd.f32 %v1760, 1.0
    %v1762 = vrcp.pop %v1761
    %v1763 = vmul.f32 1.0, %v1762
    %v1764 = vxor.u32 %v1601, 2147483648
    %v1765 = vmul.f32 %v1764, 1.442695
    %v1766 = vpow.pop %v1765
    %v1767 = vadd.f32 %v1766, 1.0
    %v1768 = vrcp.pop %v1767
    %v1769 = vmul.f32 1.0, %v1768
    %v1770 = vtanh.pop %v1679
    %v1771 = vxor.u32 %v1757, 2147483648
    %v1772 = vmul.f32 %v1771, 1.442695
    %v1773 = vpow.pop %v1772
    %v1774 = vadd.f32 %v1773, 1.0
    %v1775 = vrcp.pop %v1774
    %v1776 = vmul.f32 1.0, %v1775
    %v1778 = vrot.slane %v812, 6
    %v1780 = vmul.f32 %v1769, %v1778
    %v1781 = vmul.f32 %v1763, %v1770
    %v1782 = vadd.f32 %v1780, %v1781
    %v1783 = vtanh.pop %v1782
    %v1784 = vmul.f32 %v1776, %v1783
    %v1785 = vld [vmem:[#allocation5] sm:$0xff]
    %v1786 = vld [vmem:[#allocation5 + $0x8] sm:$0xff]
    %v1787 = vld [vmem:[#allocation5 + $0x10] sm:$0xff]
    %v1788 = vld [vmem:[#allocation5 + $0x18] sm:$0xff]
    %v1789 = vld [vmem:[#allocation7] sm:$0xff]
    %v1790 = vld [vmem:[#allocation7 + $0x8] sm:$0xff]
    %v1791 = vld [vmem:[#allocation7 + $0x10] sm:$0xff]
    %v1792 = vld [vmem:[#allocation7 + $0x18] sm:$0xff]
    %v1794 = vsel %vm488, %v1443, 0
    %1796 = vmatprep.subr.mxu0 0.0
    %1797 = vmatpush1.msra.mxu0 %v1789
    %1798 = vmatprep.subr.mxu0 0.0
    %1799 = vmatpush1.msra.mxu0 %v1790
    %1800 = vmatprep.subr.mxu0 0.0
    %1801 = vmatpush1.msra.mxu0 %v1791
    %1802 = vmatprep.subr.mxu0 0.0
    %1803 = vmatpush1.msra.mxu0 %v1792
    %1804 = vmatprep.subr.mxu0 0.0
    %1805 = vmatpush1.msra.mxu0 0.0
    %1806 = vmatprep.subr.mxu0 0.0
    %1807 = vmatpush1.msra.mxu0 0.0
    %1808 = vmatprep.subr.mxu0 0.0
    %1809 = vmatpush1.msra.mxu0 0.0
    %1810 = vmatprep.subr.mxu0 0.0
    %1811 = vmatpush1.msra.mxu0 0.0
    %1812 = vmatprep.subr.mxu0 0.0
    %1813 = vmatpush1.msra.mxu0 0.0
    %1814 = vmatprep.subr.mxu0 0.0
    %1815 = vmatpush1.msra.mxu0 0.0
    %1816 = vmatprep.subr.mxu0 0.0
    %1817 = vmatpush1.msra.mxu0 0.0
    %1818 = vmatprep.subr.mxu0 0.0
    %1819 = vmatpush1.msra.mxu0 0.0
    %1820 = vmatprep.subr.mxu0 0.0
    %1821 = vmatpush1.msra.mxu0 0.0
    %1822 = vmatprep.subr.mxu0 0.0
    %1823 = vmatpush1.msra.mxu0 0.0
    %1824 = vmatprep.subr.mxu0 0.0
    %1825 = vmatpush1.msra.mxu0 0.0
    %1826 = vmatprep.subr.mxu0 0.0
    %1827 = vmatpush1.msra.mxu0 0.0
    %1828 = vmatprep.subr.mxu0 0.0
    %1829 = vmatpush1.msra.mxu0 0.0
    %1830 = vmatprep.subr.mxu0 0.0
    %1831 = vmatpush1.msra.mxu0 0.0
    %1832 = vmatprep.subr.mxu0 0.0
    %1833 = vmatpush1.msra.mxu0 0.0
    %1834 = vmatprep.subr.mxu0 0.0
    %1835 = vmatpush1.msra.mxu0 0.0
    %1836 = vmatprep.subr.mxu0 0.0
    %1837 = vmatpush1.msra.mxu0 0.0
    %1838 = vmatprep.subr.mxu0 0.0
    %1839 = vmatpush1.msra.mxu0 0.0
    %1840 = vmatprep.subr.mxu0 0.0
    %1841 = vmatpush1.msra.mxu0 0.0
    %1842 = vmatprep.subr.mxu0 0.0
    %1843 = vmatpush1.msra.mxu0 0.0
    %1844 = vmatprep.subr.mxu0 0.0
    %1845 = vmatpush1.msra.mxu0 0.0
    %1846 = vmatprep.subr.mxu0 0.0
    %1847 = vmatpush1.msra.mxu0 0.0
    %1848 = vmatprep.subr.mxu0 0.0
    %1849 = vmatpush1.msra.mxu0 0.0
    %1850 = vmatprep.subr.mxu0 0.0
    %1851 = vmatpush1.msra.mxu0 0.0
    %1852 = vmatprep.subr.mxu0 0.0
    %1853 = vmatpush1.msra.mxu0 0.0
    %1854 = vmatprep.subr.mxu0 0.0
    %1855 = vmatpush1.msra.mxu0 0.0
    %1856 = vmatprep.subr.mxu0 0.0
    %1857 = vmatpush1.msra.mxu0 0.0
    %1858 = vmatprep.subr.mxu0 0.0
    %1859 = vmatpush1.msra.mxu0 0.0
    %1860 = vmatprep.mubr.f32.mxu0 0.0
    %1861 = vmatmul.mubr.f32.gmra.mrb[0].mxu0 %v1794
    %v1862 = vpop.f32.mrb[0].mxu0
    %v1863 = vadd.f32 0.0, %v1862
    %v1864 = vpop.f32.mrb[0].mxu0
    %1865 = vdwg.mxu0
    %v1867 = vrot.slane %v1784, 2
    %v1868 = vsel %vm488, %v1867, 0
    %1870 = vmatprep.subr.mxu0 0.0
    %1871 = vmatpush1.msra.mxu0 %v1785
    %1872 = vmatprep.subr.mxu0 0.0
    %1873 = vmatpush1.msra.mxu0 %v1786
    %1874 = vmatprep.subr.mxu0 0.0
    %1875 = vmatpush1.msra.mxu0 %v1787
    %1876 = vmatprep.subr.mxu0 0.0
    %1877 = vmatpush1.msra.mxu0 %v1788
    %1878 = vmatprep.subr.mxu0 0.0
    %1879 = vmatpush1.msra.mxu0 0.0
    %1880 = vmatprep.subr.mxu0 0.0
    %1881 = vmatpush1.msra.mxu0 0.0
    %1882 = vmatprep.subr.mxu0 0.0
    %1883 = vmatpush1.msra.mxu0 0.0
    %1884 = vmatprep.subr.mxu0 0.0
    %1885 = vmatpush1.msra.mxu0 0.0
    %1886 = vmatprep.subr.mxu0 0.0
    %1887 = vmatpush1.msra.mxu0 0.0
    %1888 = vmatprep.subr.mxu0 0.0
    %1889 = vmatpush1.msra.mxu0 0.0
    %1890 = vmatprep.subr.mxu0 0.0
    %1891 = vmatpush1.msra.mxu0 0.0
    %1892 = vmatprep.subr.mxu0 0.0
    %1893 = vmatpush1.msra.mxu0 0.0
    %1894 = vmatprep.subr.mxu0 0.0
    %1895 = vmatpush1.msra.mxu0 0.0
    %1896 = vmatprep.subr.mxu0 0.0
    %1897 = vmatpush1.msra.mxu0 0.0
    %1898 = vmatprep.subr.mxu0 0.0
    %1899 = vmatpush1.msra.mxu0 0.0
    %1900 = vmatprep.subr.mxu0 0.0
    %1901 = vmatpush1.msra.mxu0 0.0
    %1902 = vmatprep.subr.mxu0 0.0
    %1903 = vmatpush1.msra.mxu0 0.0
    %1904 = vmatprep.subr.mxu0 0.0
    %1905 = vmatpush1.msra.mxu0 0.0
    %1906 = vmatprep.subr.mxu0 0.0
    %1907 = vmatpush1.msra.mxu0 0.0
    %1908 = vmatprep.subr.mxu0 0.0
    %1909 = vmatpush1.msra.mxu0 0.0
    %1910 = vmatprep.subr.mxu0 0.0
    %1911 = vmatpush1.msra.mxu0 0.0
    %1912 = vmatprep.subr.mxu0 0.0
    %1913 = vmatpush1.msra.mxu0 0.0
    %1914 = vmatprep.subr.mxu0 0.0
    %1915 = vmatpush1.msra.mxu0 0.0
    %1916 = vmatprep.subr.mxu0 0.0
    %1917 = vmatpush1.msra.mxu0 0.0
    %1918 = vmatprep.subr.mxu0 0.0
    %1919 = vmatpush1.msra.mxu0 0.0
    %1920 = vmatprep.subr.mxu0 0.0
    %1921 = vmatpush1.msra.mxu0 0.0
    %1922 = vmatprep.subr.mxu0 0.0
    %1923 = vmatpush1.msra.mxu0 0.0
    %1924 = vmatprep.subr.mxu0 0.0
    %1925 = vmatpush1.msra.mxu0 0.0
    %1926 = vmatprep.subr.mxu0 0.0
    %1927 = vmatpush1.msra.mxu0 0.0
    %1928 = vmatprep.subr.mxu0 0.0
    %1929 = vmatpush1.msra.mxu0 0.0
    %1930 = vmatprep.subr.mxu0 0.0
    %1931 = vmatpush1.msra.mxu0 0.0
    %1932 = vmatprep.subr.mxu0 0.0
    %1933 = vmatpush1.msra.mxu0 0.0
    %1934 = vmatprep.mubr.f32.mxu0 0.0
    %1935 = vmatmul.mubr.f32.gmra.mrb[0].mxu0 %v1868
    %v1936 = vpop.f32.mrb[0].mxu0
    %v1937 = vadd.f32 %v1863, %v1936
    %v1938 = vpop.f32.mrb[0].mxu0
    %1939 = vdwg.mxu0
    %v1940 = vadd.f32 %v1937, %v458
    %v1941 = vld [vmem:[%s967] sm:$0xff]
    %v1942 = vld [vmem:[%s967 + $0x8] sm:$0xff]
    %v1943 = vld [vmem:[%s967 + $0x10] sm:$0xff]
    %v1944 = vld [vmem:[%s967 + $0x18] sm:$0xff]
    %v1945 = vld [vmem:[%s972] sm:$0xff]
    %v1946 = vld [vmem:[%s972 + $0x8] sm:$0xff]
    %v1947 = vld [vmem:[%s972 + $0x10] sm:$0xff]
    %v1948 = vld [vmem:[%s972 + $0x18] sm:$0xff]
    %1949 = vmatprep.subr.mxu0 0.0
    %1950 = vmatpush1.msra.mxu0 %v1945
    %1951 = vmatprep.subr.mxu0 0.0
    %1952 = vmatpush1.msra.mxu0 %v1946
    %1953 = vmatprep.subr.mxu0 0.0
    %1954 = vmatpush1.msra.mxu0 %v1947
    %1955 = vmatprep.subr.mxu0 0.0
    %1956 = vmatpush1.msra.mxu0 %v1948
    %1957 = vmatprep.subr.mxu0 0.0
    %1958 = vmatpush1.msra.mxu0 0.0
    %1959 = vmatprep.subr.mxu0 0.0
    %1960 = vmatpush1.msra.mxu0 0.0
    %1961 = vmatprep.subr.mxu0 0.0
    %1962 = vmatpush1.msra.mxu0 0.0
    %1963 = vmatprep.subr.mxu0 0.0
    %1964 = vmatpush1.msra.mxu0 0.0
    %1965 = vmatprep.subr.mxu0 0.0
    %1966 = vmatpush1.msra.mxu0 0.0
    %1967 = vmatprep.subr.mxu0 0.0
    %1968 = vmatpush1.msra.mxu0 0.0
    %1969 = vmatprep.subr.mxu0 0.0
    %1970 = vmatpush1.msra.mxu0 0.0
    %1971 = vmatprep.subr.mxu0 0.0
    %1972 = vmatpush1.msra.mxu0 0.0
    %1973 = vmatprep.subr.mxu0 0.0
    %1974 = vmatpush1.msra.mxu0 0.0
    %1975 = vmatprep.subr.mxu0 0.0
    %1976 = vmatpush1.msra.mxu0 0.0
    %1977 = vmatprep.subr.mxu0 0.0
    %1978 = vmatpush1.msra.mxu0 0.0
    %1979 = vmatprep.subr.mxu0 0.0
    %1980 = vmatpush1.msra.mxu0 0.0
    %1981 = vmatprep.subr.mxu0 0.0
    %1982 = vmatpush1.msra.mxu0 0.0
    %1983 = vmatprep.subr.mxu0 0.0
    %1984 = vmatpush1.msra.mxu0 0.0
    %1985 = vmatprep.subr.mxu0 0.0
    %1986 = vmatpush1.msra.mxu0 0.0
    %1987 = vmatprep.subr.mxu0 0.0
    %1988 = vmatpush1.msra.mxu0 0.0
    %1989 = vmatprep.subr.mxu0 0.0
    %1990 = vmatpush1.msra.mxu0 0.0
    %1991 = vmatprep.subr.mxu0 0.0
    %1992 = vmatpush1.msra.mxu0 0.0
    %1993 = vmatprep.subr.mxu0 0.0
    %1994 = vmatpush1.msra.mxu0 0.0
    %1995 = vmatprep.subr.mxu0 0.0
    %1996 = vmatpush1.msra.mxu0 0.0
    %1997 = vmatprep.subr.mxu0 0.0
    %1998 = vmatpush1.msra.mxu0 0.0
    %1999 = vmatprep.subr.mxu0 0.0
    %2000 = vmatpush1.msra.mxu0 0.0
    %2001 = vmatprep.subr.mxu0 0.0
    %2002 = vmatpush1.msra.mxu0 0.0
    %2003 = vmatprep.subr.mxu0 0.0
    %2004 = vmatpush1.msra.mxu0 0.0
    %2005 = vmatprep.subr.mxu0 0.0
    %2006 = vmatpush1.msra.mxu0 0.0
    %2007 = vmatprep.subr.mxu0 0.0
    %2008 = vmatpush1.msra.mxu0 0.0
    %2009 = vmatprep.subr.mxu0 0.0
    %2010 = vmatpush1.msra.mxu0 0.0
    %2011 = vmatprep.subr.mxu0 0.0
    %2012 = vmatpush1.msra.mxu0 0.0
    %2013 = vmatprep.mubr.f32.mxu0 0.0
    %2014 = vmatmul.mubr.f32.gmra.mrb[0].mxu0 %v1794
    %v2015 = vpop.f32.mrb[0].mxu0
    %v2016 = vadd.f32 0.0, %v2015
    %v2017 = vpop.f32.mrb[0].mxu0
    %2018 = vdwg.mxu0
    %2019 = vmatprep.subr.mxu0 0.0
    %2020 = vmatpush1.msra.mxu0 %v1941
    %2021 = vmatprep.subr.mxu0 0.0
    %2022 = vmatpush1.msra.mxu0 %v1942
    %2023 = vmatprep.subr.mxu0 0.0
    %2024 = vmatpush1.msra.mxu0 %v1943
    %2025 = vmatprep.subr.mxu0 0.0
    %2026 = vmatpush1.msra.mxu0 %v1944
    %2027 = vmatprep.subr.mxu0 0.0
    %2028 = vmatpush1.msra.mxu0 0.0
    %2029 = vmatprep.subr.mxu0 0.0
    %2030 = vmatpush1.msra.mxu0 0.0
    %2031 = vmatprep.subr.mxu0 0.0
    %2032 = vmatpush1.msra.mxu0 0.0
    %2033 = vmatprep.subr.mxu0 0.0
    %2034 = vmatpush1.msra.mxu0 0.0
    %2035 = vmatprep.subr.mxu0 0.0
    %2036 = vmatpush1.msra.mxu0 0.0
    %2037 = vmatprep.subr.mxu0 0.0
    %2038 = vmatpush1.msra.mxu0 0.0
    %2039 = vmatprep.subr.mxu0 0.0
    %2040 = vmatpush1.msra.mxu0 0.0
    %2041 = vmatprep.subr.mxu0 0.0
    %2042 = vmatpush1.msra.mxu0 0.0
    %2043 = vmatprep.subr.mxu0 0.0
    %2044 = vmatpush1.msra.mxu0 0.0
    %2045 = vmatprep.subr.mxu0 0.0
    %2046 = vmatpush1.msra.mxu0 0.0
    %2047 = vmatprep.subr.mxu0 0.0
    %2048 = vmatpush1.msra.mxu0 0.0
    %2049 = vmatprep.subr.mxu0 0.0
    %2050 = vmatpush1.msra.mxu0 0.0
    %2051 = vmatprep.subr.mxu0 0.0
    %2052 = vmatpush1.msra.mxu0 0.0
    %2053 = vmatprep.subr.mxu0 0.0
    %2054 = vmatpush1.msra.mxu0 0.0
    %2055 = vmatprep.subr.mxu0 0.0
    %2056 = vmatpush1.msra.mxu0 0.0
    %2057 = vmatprep.subr.mxu0 0.0
    %2058 = vmatpush1.msra.mxu0 0.0
    %2059 = vmatprep.subr.mxu0 0.0
    %2060 = vmatpush1.msra.mxu0 0.0
    %2061 = vmatprep.subr.mxu0 0.0
    %2062 = vmatpush1.msra.mxu0 0.0
    %2063 = vmatprep.subr.mxu0 0.0
    %2064 = vmatpush1.msra.mxu0 0.0
    %2065 = vmatprep.subr.mxu0 0.0
    %2066 = vmatpush1.msra.mxu0 0.0
    %2067 = vmatprep.subr.mxu0 0.0
    %2068 = vmatpush1.msra.mxu0 0.0
    %2069 = vmatprep.subr.mxu0 0.0
    %2070 = vmatpush1.msra.mxu0 0.0
    %2071 = vmatprep.subr.mxu0 0.0
    %2072 = vmatpush1.msra.mxu0 0.0
    %2073 = vmatprep.subr.mxu0 0.0
    %2074 = vmatpush1.msra.mxu0 0.0
    %2075 = vmatprep.subr.mxu0 0.0
    %2076 = vmatpush1.msra.mxu0 0.0
    %2077 = vmatprep.subr.mxu0 0.0
    %2078 = vmatpush1.msra.mxu0 0.0
    %2079 = vmatprep.subr.mxu0 0.0
    %2080 = vmatpush1.msra.mxu0 0.0
    %2081 = vmatprep.subr.mxu0 0.0
    %2082 = vmatpush1.msra.mxu0 0.0
    %2083 = vmatprep.mubr.f32.mxu0 0.0
    %2084 = vmatmul.mubr.f32.gmra.mrb[0].mxu0 %v1868
    %v2085 = vpop.f32.mrb[0].mxu0
    %v2086 = vadd.f32 %v2016, %v2085
    %v2087 = vpop.f32.mrb[0].mxu0
    %2088 = vdwg.mxu0
    %v2089 = vadd.f32 %v2086, %v466
    %v2090 = vld [vmem:[%s1118] sm:$0xff]
    %v2091 = vld [vmem:[%s1118 + $0x8] sm:$0xff]
    %v2092 = vld [vmem:[%s1118 + $0x10] sm:$0xff]
    %v2093 = vld [vmem:[%s1118 + $0x18] sm:$0xff]
    %v2094 = vld [vmem:[%s1123] sm:$0xff]
    %v2095 = vld [vmem:[%s1123 + $0x8] sm:$0xff]
    %v2096 = vld [vmem:[%s1123 + $0x10] sm:$0xff]
    %v2097 = vld [vmem:[%s1123 + $0x18] sm:$0xff]
    %2098 = vmatprep.subr.mxu0 0.0
    %2099 = vmatpush1.msra.mxu0 %v2094
    %2100 = vmatprep.subr.mxu0 0.0
    %2101 = vmatpush1.msra.mxu0 %v2095
    %2102 = vmatprep.subr.mxu0 0.0
    %2103 = vmatpush1.msra.mxu0 %v2096
    %2104 = vmatprep.subr.mxu0 0.0
    %2105 = vmatpush1.msra.mxu0 %v2097
    %2106 = vmatprep.subr.mxu0 0.0
    %2107 = vmatpush1.msra.mxu0 0.0
    %2108 = vmatprep.subr.mxu0 0.0
    %2109 = vmatpush1.msra.mxu0 0.0
    %2110 = vmatprep.subr.mxu0 0.0
    %2111 = vmatpush1.msra.mxu0 0.0
    %2112 = vmatprep.subr.mxu0 0.0
    %2113 = vmatpush1.msra.mxu0 0.0
    %2114 = vmatprep.subr.mxu0 0.0
    %2115 = vmatpush1.msra.mxu0 0.0
    %2116 = vmatprep.subr.mxu0 0.0
    %2117 = vmatpush1.msra.mxu0 0.0
    %2118 = vmatprep.subr.mxu0 0.0
    %2119 = vmatpush1.msra.mxu0 0.0
    %2120 = vmatprep.subr.mxu0 0.0
    %2121 = vmatpush1.msra.mxu0 0.0
    %2122 = vmatprep.subr.mxu0 0.0
    %2123 = vmatpush1.msra.mxu0 0.0
    %2124 = vmatprep.subr.mxu0 0.0
    %2125 = vmatpush1.msra.mxu0 0.0
    %2126 = vmatprep.subr.mxu0 0.0
    %2127 = vmatpush1.msra.mxu0 0.0
    %2128 = vmatprep.subr.mxu0 0.0
    %2129 = vmatpush1.msra.mxu0 0.0
    %2130 = vmatprep.subr.mxu0 0.0
    %2131 = vmatpush1.msra.mxu0 0.0
    %2132 = vmatprep.subr.mxu0 0.0
    %2133 = vmatpush1.msra.mxu0 0.0
    %2134 = vmatprep.subr.mxu0 0.0
    %2135 = vmatpush1.msra.mxu0 0.0
    %2136 = vmatprep.subr.mxu0 0.0
    %2137 = vmatpush1.msra.mxu0 0.0
    %2138 = vmatprep.subr.mxu0 0.0
    %2139 = vmatpush1.msra.mxu0 0.0
    %2140 = vmatprep.subr.mxu0 0.0
    %2141 = vmatpush1.msra.mxu0 0.0
    %2142 = vmatprep.subr.mxu0 0.0
    %2143 = vmatpush1.msra.mxu0 0.0
    %2144 = vmatprep.subr.mxu0 0.0
    %2145 = vmatpush1.msra.mxu0 0.0
    %2146 = vmatprep.subr.mxu0 0.0
    %2147 = vmatpush1.msra.mxu0 0.0
    %2148 = vmatprep.subr.mxu0 0.0
    %2149 = vmatpush1.msra.mxu0 0.0
    %2150 = vmatprep.subr.mxu0 0.0
    %2151 = vmatpush1.msra.mxu0 0.0
    %2152 = vmatprep.subr.mxu0 0.0
    %2153 = vmatpush1.msra.mxu0 0.0
    %2154 = vmatprep.subr.mxu0 0.0
    %2155 = vmatpush1.msra.mxu0 0.0
    %2156 = vmatprep.subr.mxu0 0.0
    %2157 = vmatpush1.msra.mxu0 0.0
    %2158 = vmatprep.subr.mxu0 0.0
    %2159 = vmatpush1.msra.mxu0 0.0
    %2160 = vmatprep.subr.mxu0 0.0
    %2161 = vmatpush1.msra.mxu0 0.0
    %2162 = vmatprep.mubr.f32.mxu0 0.0
    %2163 = vmatmul.mubr.f32.gmra.mrb[0].mxu0 %v1794
    %v2164 = vpop.f32.mrb[0].mxu0
    %v2165 = vadd.f32 0.0, %v2164
    %v2166 = vpop.f32.mrb[0].mxu0
    %2167 = vdwg.mxu0
    %2168 = vmatprep.subr.mxu0 0.0
    %2169 = vmatpush1.msra.mxu0 %v2090
    %2170 = vmatprep.subr.mxu0 0.0
    %2171 = vmatpush1.msra.mxu0 %v2091
    %2172 = vmatprep.subr.mxu0 0.0
    %2173 = vmatpush1.msra.mxu0 %v2092
    %2174 = vmatprep.subr.mxu0 0.0
    %2175 = vmatpush1.msra.mxu0 %v2093
    %2176 = vmatprep.subr.mxu0 0.0
    %2177 = vmatpush1.msra.mxu0 0.0
    %2178 = vmatprep.subr.mxu0 0.0
    %2179 = vmatpush1.msra.mxu0 0.0
    %2180 = vmatprep.subr.mxu0 0.0
    %2181 = vmatpush1.msra.mxu0 0.0
    %2182 = vmatprep.subr.mxu0 0.0
    %2183 = vmatpush1.msra.mxu0 0.0
    %2184 = vmatprep.subr.mxu0 0.0
    %2185 = vmatpush1.msra.mxu0 0.0
    %2186 = vmatprep.subr.mxu0 0.0
    %2187 = vmatpush1.msra.mxu0 0.0
    %2188 = vmatprep.subr.mxu0 0.0
    %2189 = vmatpush1.msra.mxu0 0.0
    %2190 = vmatprep.subr.mxu0 0.0
    %2191 = vmatpush1.msra.mxu0 0.0
    %2192 = vmatprep.subr.mxu0 0.0
    %2193 = vmatpush1.msra.mxu0 0.0
    %2194 = vmatprep.subr.mxu0 0.0
    %2195 = vmatpush1.msra.mxu0 0.0
    %2196 = vmatprep.subr.mxu0 0.0
    %2197 = vmatpush1.msra.mxu0 0.0
    %2198 = vmatprep.subr.mxu0 0.0
    %2199 = vmatpush1.msra.mxu0 0.0
    %2200 = vmatprep.subr.mxu0 0.0
    %2201 = vmatpush1.msra.mxu0 0.0
    %2202 = vmatprep.subr.mxu0 0.0
    %2203 = vmatpush1.msra.mxu0 0.0
    %2204 = vmatprep.subr.mxu0 0.0
    %2205 = vmatpush1.msra.mxu0 0.0
    %2206 = vmatprep.subr.mxu0 0.0
    %2207 = vmatpush1.msra.mxu0 0.0
    %2208 = vmatprep.subr.mxu0 0.0
    %2209 = vmatpush1.msra.mxu0 0.0
    %2210 = vmatprep.subr.mxu0 0.0
    %2211 = vmatpush1.msra.mxu0 0.0
    %2212 = vmatprep.subr.mxu0 0.0
    %2213 = vmatpush1.msra.mxu0 0.0
    %2214 = vmatprep.subr.mxu0 0.0
    %2215 = vmatpush1.msra.mxu0 0.0
    %2216 = vmatprep.subr.mxu0 0.0
    %2217 = vmatpush1.msra.mxu0 0.0
    %2218 = vmatprep.subr.mxu0 0.0
    %2219 = vmatpush1.msra.mxu0 0.0
    %2220 = vmatprep.subr.mxu0 0.0
    %2221 = vmatpush1.msra.mxu0 0.0
    %2222 = vmatprep.subr.mxu0 0.0
    %2223 = vmatpush1.msra.mxu0 0.0
    %2224 = vmatprep.subr.mxu0 0.0
    %2225 = vmatpush1.msra.mxu0 0.0
    %2226 = vmatprep.subr.mxu0 0.0
    %2227 = vmatpush1.msra.mxu0 0.0
    %2228 = vmatprep.subr.mxu0 0.0
    %2229 = vmatpush1.msra.mxu0 0.0
    %2230 = vmatprep.subr.mxu0 0.0
    %2231 = vmatpush1.msra.mxu0 0.0
    %2232 = vmatprep.mubr.f32.mxu0 0.0
    %2233 = vmatmul.mubr.f32.gmra.mrb[0].mxu0 %v1868
    %v2234 = vpop.f32.mrb[0].mxu0
    %v2235 = vadd.f32 %v2165, %v2234
    %v2236 = vpop.f32.mrb[0].mxu0
    %2237 = vdwg.mxu0
    %v2238 = vadd.f32 %v2235, %v474
    %v2239 = vld [vmem:[%s1269] sm:$0xff]
    %v2240 = vld [vmem:[%s1269 + $0x8] sm:$0xff]
    %v2241 = vld [vmem:[%s1269 + $0x10] sm:$0xff]
    %v2242 = vld [vmem:[%s1269 + $0x18] sm:$0xff]
    %v2243 = vld [vmem:[%s1274] sm:$0xff]
    %v2244 = vld [vmem:[%s1274 + $0x8] sm:$0xff]
    %v2245 = vld [vmem:[%s1274 + $0x10] sm:$0xff]
    %v2246 = vld [vmem:[%s1274 + $0x18] sm:$0xff]
    %2247 = vmatprep.subr.mxu0 0.0
    %2248 = vmatpush1.msra.mxu0 %v2243
    %2249 = vmatprep.subr.mxu0 0.0
    %2250 = vmatpush1.msra.mxu0 %v2244
    %2251 = vmatprep.subr.mxu0 0.0
    %2252 = vmatpush1.msra.mxu0 %v2245
    %2253 = vmatprep.subr.mxu0 0.0
    %2254 = vmatpush1.msra.mxu0 %v2246
    %2255 = vmatprep.subr.mxu0 0.0
    %2256 = vmatpush1.msra.mxu0 0.0
    %2257 = vmatprep.subr.mxu0 0.0
    %2258 = vmatpush1.msra.mxu0 0.0
    %2259 = vmatprep.subr.mxu0 0.0
    %2260 = vmatpush1.msra.mxu0 0.0
    %2261 = vmatprep.subr.mxu0 0.0
    %2262 = vmatpush1.msra.mxu0 0.0
    %2263 = vmatprep.subr.mxu0 0.0
    %2264 = vmatpush1.msra.mxu0 0.0
    %2265 = vmatprep.subr.mxu0 0.0
    %2266 = vmatpush1.msra.mxu0 0.0
    %2267 = vmatprep.subr.mxu0 0.0
    %2268 = vmatpush1.msra.mxu0 0.0
    %2269 = vmatprep.subr.mxu0 0.0
    %2270 = vmatpush1.msra.mxu0 0.0
    %2271 = vmatprep.subr.mxu0 0.0
    %2272 = vmatpush1.msra.mxu0 0.0
    %2273 = vmatprep.subr.mxu0 0.0
    %2274 = vmatpush1.msra.mxu0 0.0
    %2275 = vmatprep.subr.mxu0 0.0
    %2276 = vmatpush1.msra.mxu0 0.0
    %2277 = vmatprep.subr.mxu0 0.0
    %2278 = vmatpush1.msra.mxu0 0.0
    %2279 = vmatprep.subr.mxu0 0.0
    %2280 = vmatpush1.msra.mxu0 0.0
    %2281 = vmatprep.subr.mxu0 0.0
    %2282 = vmatpush1.msra.mxu0 0.0
    %2283 = vmatprep.subr.mxu0 0.0
    %2284 = vmatpush1.msra.mxu0 0.0
    %2285 = vmatprep.subr.mxu0 0.0
    %2286 = vmatpush1.msra.mxu0 0.0
    %2287 = vmatprep.subr.mxu0 0.0
    %2288 = vmatpush1.msra.mxu0 0.0
    %2289 = vmatprep.subr.mxu0 0.0
    %2290 = vmatpush1.msra.mxu0 0.0
    %2291 = vmatprep.subr.mxu0 0.0
    %2292 = vmatpush1.msra.mxu0 0.0
    %2293 = vmatprep.subr.mxu0 0.0
    %2294 = vmatpush1.msra.mxu0 0.0
    %2295 = vmatprep.subr.mxu0 0.0
    %2296 = vmatpush1.msra.mxu0 0.0
    %2297 = vmatprep.subr.mxu0 0.0
    %2298 = vmatpush1.msra.mxu0 0.0
    %2299 = vmatprep.subr.mxu0 0.0
    %2300 = vmatpush1.msra.mxu0 0.0
    %2301 = vmatprep.subr.mxu0 0.0
    %2302 = vmatpush1.msra.mxu0 0.0
    %2303 = vmatprep.subr.mxu0 0.0
    %2304 = vmatpush1.msra.mxu0 0.0
    %2305 = vmatprep.subr.mxu0 0.0
    %2306 = vmatpush1.msra.mxu0 0.0
    %2307 = vmatprep.subr.mxu0 0.0
    %2308 = vmatpush1.msra.mxu0 0.0
    %2309 = vmatprep.subr.mxu0 0.0
    %2310 = vmatpush1.msra.mxu0 0.0
    %2311 = vmatprep.mubr.f32.mxu0 0.0
    %2312 = vmatmul.mubr.f32.gmra.mrb[0].mxu0 %v1794
    %v2313 = vpop.f32.mrb[0].mxu0
    %v2314 = vadd.f32 0.0, %v2313
    %v2315 = vpop.f32.mrb[0].mxu0
    %2316 = vdwg.mxu0
    %2317 = vmatprep.subr.mxu0 0.0
    %2318 = vmatpush1.msra.mxu0 %v2239
    %2319 = vmatprep.subr.mxu0 0.0
    %2320 = vmatpush1.msra.mxu0 %v2240
    %2321 = vmatprep.subr.mxu0 0.0
    %2322 = vmatpush1.msra.mxu0 %v2241
    %2323 = vmatprep.subr.mxu0 0.0
    %2324 = vmatpush1.msra.mxu0 %v2242
    %2325 = vmatprep.subr.mxu0 0.0
    %2326 = vmatpush1.msra.mxu0 0.0
    %2327 = vmatprep.subr.mxu0 0.0
    %2328 = vmatpush1.msra.mxu0 0.0
    %2329 = vmatprep.subr.mxu0 0.0
    %2330 = vmatpush1.msra.mxu0 0.0
    %2331 = vmatprep.subr.mxu0 0.0
    %2332 = vmatpush1.msra.mxu0 0.0
    %2333 = vmatprep.subr.mxu0 0.0
    %2334 = vmatpush1.msra.mxu0 0.0
    %2335 = vmatprep.subr.mxu0 0.0
    %2336 = vmatpush1.msra.mxu0 0.0
    %2337 = vmatprep.subr.mxu0 0.0
    %2338 = vmatpush1.msra.mxu0 0.0
    %2339 = vmatprep.subr.mxu0 0.0
    %2340 = vmatpush1.msra.mxu0 0.0
    %2341 = vmatprep.subr.mxu0 0.0
    %2342 = vmatpush1.msra.mxu0 0.0
    %2343 = vmatprep.subr.mxu0 0.0
    %2344 = vmatpush1.msra.mxu0 0.0
    %2345 = vmatprep.subr.mxu0 0.0
    %2346 = vmatpush1.msra.mxu0 0.0
    %2347 = vmatprep.subr.mxu0 0.0
    %2348 = vmatpush1.msra.mxu0 0.0
    %2349 = vmatprep.subr.mxu0 0.0
    %2350 = vmatpush1.msra.mxu0 0.0
    %2351 = vmatprep.subr.mxu0 0.0
    %2352 = vmatpush1.msra.mxu0 0.0
    %2353 = vmatprep.subr.mxu0 0.0
    %2354 = vmatpush1.msra.mxu0 0.0
    %2355 = vmatprep.subr.mxu0 0.0
    %2356 = vmatpush1.msra.mxu0 0.0
    %2357 = vmatprep.subr.mxu0 0.0
    %2358 = vmatpush1.msra.mxu0 0.0
    %2359 = vmatprep.subr.mxu0 0.0
    %2360 = vmatpush1.msra.mxu0 0.0
    %2361 = vmatprep.subr.mxu0 0.0
    %2362 = vmatpush1.msra.mxu0 0.0
    %2363 = vmatprep.subr.mxu0 0.0
    %2364 = vmatpush1.msra.mxu0 0.0
    %2365 = vmatprep.subr.mxu0 0.0
    %2366 = vmatpush1.msra.mxu0 0.0
    %2367 = vmatprep.subr.mxu0 0.0
    %2368 = vmatpush1.msra.mxu0 0.0
    %2369 = vmatprep.subr.mxu0 0.0
    %2370 = vmatpush1.msra.mxu0 0.0
    %2371 = vmatprep.subr.mxu0 0.0
    %2372 = vmatpush1.msra.mxu0 0.0
    %2373 = vmatprep.subr.mxu0 0.0
    %2374 = vmatpush1.msra.mxu0 0.0
    %2375 = vmatprep.subr.mxu0 0.0
    %2376 = vmatpush1.msra.mxu0 0.0
    %2377 = vmatprep.subr.mxu0 0.0
    %2378 = vmatpush1.msra.mxu0 0.0
    %2379 = vmatprep.subr.mxu0 0.0
    %2380 = vmatpush1.msra.mxu0 0.0
    %2381 = vmatprep.mubr.f32.mxu0 0.0
    %2382 = vmatmul.mubr.f32.gmra.mrb[0].mxu0 %v1868
    %v2383 = vpop.f32.mrb[0].mxu0
    %v2384 = vadd.f32 %v2314, %v2383
    %v2385 = vpop.f32.mrb[0].mxu0
    %2386 = vdwg.mxu0
    %v2387 = vadd.f32 %v2384, %v482
    %v2388 = vxor.u32 %v1940, 2147483648
    %v2389 = vmul.f32 %v2388, 1.442695
    %v2390 = vpow.pop %v2389
    %v2391 = vadd.f32 %v2390, 1.0
    %v2392 = vrcp.pop %v2391
    %v2393 = vmul.f32 1.0, %v2392
    %v2394 = vxor.u32 %v2089, 2147483648
    %v2395 = vmul.f32 %v2394, 1.442695
    %v2396 = vpow.pop %v2395
    %v2397 = vadd.f32 %v2396, 1.0
    %v2398 = vrcp.pop %v2397
    %v2399 = vmul.f32 1.0, %v2398
    %v2400 = vtanh.pop %v2238
    %v2401 = vxor.u32 %v2387, 2147483648
    %v2402 = vmul.f32 %v2401, 1.442695
    %v2403 = vpow.pop %v2402
    %v2404 = vadd.f32 %v2403, 1.0
    %v2405 = vrcp.pop %v2404
    %v2406 = vmul.f32 1.0, %v2405
    %v2407 = vmul.f32 %v2399, %v1441
    %v2408 = vmul.f32 %v2393, %v2400
    %v2409 = vadd.f32 %v2407, %v2408
    %v2410 = vtanh.pop %v2409
    %v2411 = vmul.f32 %v2406, %v2410
    %2412 = vst.msk [vmem:[#allocation2 + $0x2] sm:$0x3] %vm1444, %v2411
    %v2413 = vld [vmem:[#allocation3] sm:$0xff]
    %v2414 = vld [vmem:[#allocation3 + $0x8] sm:$0xff]
    %v2415 = vld [vmem:[#allocation3 + $0x10] sm:$0xff]
    %v2416 = vld [vmem:[#allocation3 + $0x18] sm:$0xff]
    %2417 = vmatprep.subr.mxu0 0.0
    %2418 = vmatpush1.msra.mxu0 %v2413
    %2419 = vmatprep.subr.mxu0 0.0
    %2420 = vmatpush1.msra.mxu0 %v2414
    %2421 = vmatprep.subr.mxu0 0.0
    %2422 = vmatpush1.msra.mxu0 %v2415
    %2423 = vmatprep.subr.mxu0 0.0
    %2424 = vmatpush1.msra.mxu0 %v2416
    %2425 = vmatprep.subr.mxu0 0.0
    %2426 = vmatpush1.msra.mxu0 0.0
    %2427 = vmatprep.subr.mxu0 0.0
    %2428 = vmatpush1.msra.mxu0 0.0
    %2429 = vmatprep.subr.mxu0 0.0
    %2430 = vmatpush1.msra.mxu0 0.0
    %2431 = vmatprep.subr.mxu0 0.0
    %2432 = vmatpush1.msra.mxu0 0.0
    %2433 = vmatprep.subr.mxu0 0.0
    %2434 = vmatpush1.msra.mxu0 0.0
    %2435 = vmatprep.subr.mxu0 0.0
    %2436 = vmatpush1.msra.mxu0 0.0
    %2437 = vmatprep.subr.mxu0 0.0
    %2438 = vmatpush1.msra.mxu0 0.0
    %2439 = vmatprep.subr.mxu0 0.0
    %2440 = vmatpush1.msra.mxu0 0.0
    %2441 = vmatprep.subr.mxu0 0.0
    %2442 = vmatpush1.msra.mxu0 0.0
    %2443 = vmatprep.subr.mxu0 0.0
    %2444 = vmatpush1.msra.mxu0 0.0
    %2445 = vmatprep.subr.mxu0 0.0
    %2446 = vmatpush1.msra.mxu0 0.0
    %2447 = vmatprep.subr.mxu0 0.0
    %2448 = vmatpush1.msra.mxu0 0.0
    %2449 = vmatprep.subr.mxu0 0.0
    %2450 = vmatpush1.msra.mxu0 0.0
    %2451 = vmatprep.subr.mxu0 0.0
    %2452 = vmatpush1.msra.mxu0 0.0
    %2453 = vmatprep.subr.mxu0 0.0
    %2454 = vmatpush1.msra.mxu0 0.0
    %2455 = vmatprep.subr.mxu0 0.0
    %2456 = vmatpush1.msra.mxu0 0.0
    %2457 = vmatprep.subr.mxu0 0.0
    %2458 = vmatpush1.msra.mxu0 0.0
    %2459 = vmatprep.subr.mxu0 0.0
    %2460 = vmatpush1.msra.mxu0 0.0
    %2461 = vmatprep.subr.mxu0 0.0
    %2462 = vmatpush1.msra.mxu0 0.0
    %2463 = vmatprep.subr.mxu0 0.0
    %2464 = vmatpush1.msra.mxu0 0.0
    %2465 = vmatprep.subr.mxu0 0.0
    %2466 = vmatpush1.msra.mxu0 0.0
    %2467 = vmatprep.subr.mxu0 0.0
    %2468 = vmatpush1.msra.mxu0 0.0
    %2469 = vmatprep.subr.mxu0 0.0
    %2470 = vmatpush1.msra.mxu0 0.0
    %2471 = vmatprep.subr.mxu0 0.0
    %2472 = vmatpush1.msra.mxu0 0.0
    %2473 = vmatprep.subr.mxu0 0.0
    %2474 = vmatpush1.msra.mxu0 0.0
    %2475 = vmatprep.subr.mxu0 0.0
    %2476 = vmatpush1.msra.mxu0 0.0
    %2477 = vmatprep.subr.mxu0 0.0
    %2478 = vmatpush1.msra.mxu0 0.0
    %2479 = vmatprep.subr.mxu0 0.0
    %2480 = vmatpush1.msra.mxu0 0.0
    %2481 = vmatprep.mubr.f32.mxu0 0.0
    %2482 = vmatmul.mubr.f32.gmra.mrb[0].mxu0 %v1868
    %v2483 = vpop.f32.mrb[0].mxu0
    %v2484 = vadd.f32 0.0, %v2483
    %v2485 = vpop.f32.mrb[0].mxu0
    %2486 = vdwg.mxu0
    %v2488 = vrot.slane %v2484, 4
    %v2490 = vadd.f32 %v190, %v2488
    %v2491 = vld [vmem:[%s563] sm:$0xff]
    %v2492 = vld [vmem:[%s563 + $0x8] sm:$0xff]
    %v2493 = vld [vmem:[%s563 + $0x10] sm:$0xff]
    %v2494 = vld [vmem:[%s563 + $0x18] sm:$0xff]
    %2495 = vmatprep.subr.mxu0 0.0
    %2496 = vmatpush1.msra.mxu0 %v2491
    %2497 = vmatprep.subr.mxu0 0.0
    %2498 = vmatpush1.msra.mxu0 %v2492
    %2499 = vmatprep.subr.mxu0 0.0
    %2500 = vmatpush1.msra.mxu0 %v2493
    %2501 = vmatprep.subr.mxu0 0.0
    %2502 = vmatpush1.msra.mxu0 %v2494
    %2503 = vmatprep.subr.mxu0 0.0
    %2504 = vmatpush1.msra.mxu0 0.0
    %2505 = vmatprep.subr.mxu0 0.0
    %2506 = vmatpush1.msra.mxu0 0.0
    %2507 = vmatprep.subr.mxu0 0.0
    %2508 = vmatpush1.msra.mxu0 0.0
    %2509 = vmatprep.subr.mxu0 0.0
    %2510 = vmatpush1.msra.mxu0 0.0
    %2511 = vmatprep.subr.mxu0 0.0
    %2512 = vmatpush1.msra.mxu0 0.0
    %2513 = vmatprep.subr.mxu0 0.0
    %2514 = vmatpush1.msra.mxu0 0.0
    %2515 = vmatprep.subr.mxu0 0.0
    %2516 = vmatpush1.msra.mxu0 0.0
    %2517 = vmatprep.subr.mxu0 0.0
    %2518 = vmatpush1.msra.mxu0 0.0
    %2519 = vmatprep.subr.mxu0 0.0
    %2520 = vmatpush1.msra.mxu0 0.0
    %2521 = vmatprep.subr.mxu0 0.0
    %2522 = vmatpush1.msra.mxu0 0.0
    %2523 = vmatprep.subr.mxu0 0.0
    %2524 = vmatpush1.msra.mxu0 0.0
    %2525 = vmatprep.subr.mxu0 0.0
    %2526 = vmatpush1.msra.mxu0 0.0
    %2527 = vmatprep.subr.mxu0 0.0
    %2528 = vmatpush1.msra.mxu0 0.0
    %2529 = vmatprep.subr.mxu0 0.0
    %2530 = vmatpush1.msra.mxu0 0.0
    %2531 = vmatprep.subr.mxu0 0.0
    %2532 = vmatpush1.msra.mxu0 0.0
    %2533 = vmatprep.subr.mxu0 0.0
    %2534 = vmatpush1.msra.mxu0 0.0
    %2535 = vmatprep.subr.mxu0 0.0
    %2536 = vmatpush1.msra.mxu0 0.0
    %2537 = vmatprep.subr.mxu0 0.0
    %2538 = vmatpush1.msra.mxu0 0.0
    %2539 = vmatprep.subr.mxu0 0.0
    %2540 = vmatpush1.msra.mxu0 0.0
    %2541 = vmatprep.subr.mxu0 0.0
    %2542 = vmatpush1.msra.mxu0 0.0
    %2543 = vmatprep.subr.mxu0 0.0
    %2544 = vmatpush1.msra.mxu0 0.0
    %2545 = vmatprep.subr.mxu0 0.0
    %2546 = vmatpush1.msra.mxu0 0.0
    %2547 = vmatprep.subr.mxu0 0.0
    %2548 = vmatpush1.msra.mxu0 0.0
    %2549 = vmatprep.subr.mxu0 0.0
    %2550 = vmatpush1.msra.mxu0 0.0
    %2551 = vmatprep.subr.mxu0 0.0
    %2552 = vmatpush1.msra.mxu0 0.0
    %2553 = vmatprep.subr.mxu0 0.0
    %2554 = vmatpush1.msra.mxu0 0.0
    %2555 = vmatprep.subr.mxu0 0.0
    %2556 = vmatpush1.msra.mxu0 0.0
    %2557 = vmatprep.subr.mxu0 0.0
    %2558 = vmatpush1.msra.mxu0 0.0
    %2559 = vmatprep.mubr.f32.mxu0 0.0
    %2560 = vmatmul.mubr.f32.gmra.mrb[0].mxu0 %v1868
    %v2561 = vpop.f32.mrb[0].mxu0
    %v2562 = vadd.f32 0.0, %v2561
    %v2563 = vpop.f32.mrb[0].mxu0
    %2564 = vdwg.mxu0
    %v2566 = vrot.slane %v2562, 4
    %v2568 = vadd.f32 %v275, %v2566
    %v2569 = vld [vmem:[%s639] sm:$0xff]
    %v2570 = vld [vmem:[%s639 + $0x8] sm:$0xff]
    %v2571 = vld [vmem:[%s639 + $0x10] sm:$0xff]
    %v2572 = vld [vmem:[%s639 + $0x18] sm:$0xff]
    %2573 = vmatprep.subr.mxu0 0.0
    %2574 = vmatpush1.msra.mxu0 %v2569
    %2575 = vmatprep.subr.mxu0 0.0
    %2576 = vmatpush1.msra.mxu0 %v2570
    %2577 = vmatprep.subr.mxu0 0.0
    %2578 = vmatpush1.msra.mxu0 %v2571
    %2579 = vmatprep.subr.mxu0 0.0
    %2580 = vmatpush1.msra.mxu0 %v2572
    %2581 = vmatprep.subr.mxu0 0.0
    %2582 = vmatpush1.msra.mxu0 0.0
    %2583 = vmatprep.subr.mxu0 0.0
    %2584 = vmatpush1.msra.mxu0 0.0
    %2585 = vmatprep.subr.mxu0 0.0
    %2586 = vmatpush1.msra.mxu0 0.0
    %2587 = vmatprep.subr.mxu0 0.0
    %2588 = vmatpush1.msra.mxu0 0.0
    %2589 = vmatprep.subr.mxu0 0.0
    %2590 = vmatpush1.msra.mxu0 0.0
    %2591 = vmatprep.subr.mxu0 0.0
    %2592 = vmatpush1.msra.mxu0 0.0
    %2593 = vmatprep.subr.mxu0 0.0
    %2594 = vmatpush1.msra.mxu0 0.0
    %2595 = vmatprep.subr.mxu0 0.0
    %2596 = vmatpush1.msra.mxu0 0.0
    %2597 = vmatprep.subr.mxu0 0.0
    %2598 = vmatpush1.msra.mxu0 0.0
    %2599 = vmatprep.subr.mxu0 0.0
    %2600 = vmatpush1.msra.mxu0 0.0
    %2601 = vmatprep.subr.mxu0 0.0
    %2602 = vmatpush1.msra.mxu0 0.0
    %2603 = vmatprep.subr.mxu0 0.0
    %2604 = vmatpush1.msra.mxu0 0.0
    %2605 = vmatprep.subr.mxu0 0.0
    %2606 = vmatpush1.msra.mxu0 0.0
    %2607 = vmatprep.subr.mxu0 0.0
    %2608 = vmatpush1.msra.mxu0 0.0
    %2609 = vmatprep.subr.mxu0 0.0
    %2610 = vmatpush1.msra.mxu0 0.0
    %2611 = vmatprep.subr.mxu0 0.0
    %2612 = vmatpush1.msra.mxu0 0.0
    %2613 = vmatprep.subr.mxu0 0.0
    %2614 = vmatpush1.msra.mxu0 0.0
    %2615 = vmatprep.subr.mxu0 0.0
    %2616 = vmatpush1.msra.mxu0 0.0
    %2617 = vmatprep.subr.mxu0 0.0
    %2618 = vmatpush1.msra.mxu0 0.0
    %2619 = vmatprep.subr.mxu0 0.0
    %2620 = vmatpush1.msra.mxu0 0.0
    %2621 = vmatprep.subr.mxu0 0.0
    %2622 = vmatpush1.msra.mxu0 0.0
    %2623 = vmatprep.subr.mxu0 0.0
    %2624 = vmatpush1.msra.mxu0 0.0
    %2625 = vmatprep.subr.mxu0 0.0
    %2626 = vmatpush1.msra.mxu0 0.0
    %2627 = vmatprep.subr.mxu0 0.0
    %2628 = vmatpush1.msra.mxu0 0.0
    %2629 = vmatprep.subr.mxu0 0.0
    %2630 = vmatpush1.msra.mxu0 0.0
    %2631 = vmatprep.subr.mxu0 0.0
    %2632 = vmatpush1.msra.mxu0 0.0
    %2633 = vmatprep.subr.mxu0 0.0
    %2634 = vmatpush1.msra.mxu0 0.0
    %2635 = vmatprep.subr.mxu0 0.0
    %2636 = vmatpush1.msra.mxu0 0.0
    %2637 = vmatprep.mubr.f32.mxu0 0.0
    %2638 = vmatmul.mubr.f32.gmra.mrb[0].mxu0 %v1868
    %v2639 = vpop.f32.mrb[0].mxu0
    %v2640 = vadd.f32 0.0, %v2639
    %v2641 = vpop.f32.mrb[0].mxu0
    %2642 = vdwg.mxu0
    %v2644 = vrot.slane %v2640, 4
    %v2646 = vadd.f32 %v360, %v2644
    %v2647 = vld [vmem:[%s715] sm:$0xff]
    %v2648 = vld [vmem:[%s715 + $0x8] sm:$0xff]
    %v2649 = vld [vmem:[%s715 + $0x10] sm:$0xff]
    %v2650 = vld [vmem:[%s715 + $0x18] sm:$0xff]
    %2651 = vmatprep.subr.mxu0 0.0
    %2652 = vmatpush1.msra.mxu0 %v2647
    %2653 = vmatprep.subr.mxu0 0.0
    %2654 = vmatpush1.msra.mxu0 %v2648
    %2655 = vmatprep.subr.mxu0 0.0
    %2656 = vmatpush1.msra.mxu0 %v2649
    %2657 = vmatprep.subr.mxu0 0.0
    %2658 = vmatpush1.msra.mxu0 %v2650
    %2659 = vmatprep.subr.mxu0 0.0
    %2660 = vmatpush1.msra.mxu0 0.0
    %2661 = vmatprep.subr.mxu0 0.0
    %2662 = vmatpush1.msra.mxu0 0.0
    %2663 = vmatprep.subr.mxu0 0.0
    %2664 = vmatpush1.msra.mxu0 0.0
    %2665 = vmatprep.subr.mxu0 0.0
    %2666 = vmatpush1.msra.mxu0 0.0
    %2667 = vmatprep.subr.mxu0 0.0
    %2668 = vmatpush1.msra.mxu0 0.0
    %2669 = vmatprep.subr.mxu0 0.0
    %2670 = vmatpush1.msra.mxu0 0.0
    %2671 = vmatprep.subr.mxu0 0.0
    %2672 = vmatpush1.msra.mxu0 0.0
    %2673 = vmatprep.subr.mxu0 0.0
    %2674 = vmatpush1.msra.mxu0 0.0
    %2675 = vmatprep.subr.mxu0 0.0
    %2676 = vmatpush1.msra.mxu0 0.0
    %2677 = vmatprep.subr.mxu0 0.0
    %2678 = vmatpush1.msra.mxu0 0.0
    %2679 = vmatprep.subr.mxu0 0.0
    %2680 = vmatpush1.msra.mxu0 0.0
    %2681 = vmatprep.subr.mxu0 0.0
    %2682 = vmatpush1.msra.mxu0 0.0
    %2683 = vmatprep.subr.mxu0 0.0
    %2684 = vmatpush1.msra.mxu0 0.0
    %2685 = vmatprep.subr.mxu0 0.0
    %2686 = vmatpush1.msra.mxu0 0.0
    %2687 = vmatprep.subr.mxu0 0.0
    %2688 = vmatpush1.msra.mxu0 0.0
    %2689 = vmatprep.subr.mxu0 0.0
    %2690 = vmatpush1.msra.mxu0 0.0
    %2691 = vmatprep.subr.mxu0 0.0
    %2692 = vmatpush1.msra.mxu0 0.0
    %2693 = vmatprep.subr.mxu0 0.0
    %2694 = vmatpush1.msra.mxu0 0.0
    %2695 = vmatprep.subr.mxu0 0.0
    %2696 = vmatpush1.msra.mxu0 0.0
    %2697 = vmatprep.subr.mxu0 0.0
    %2698 = vmatpush1.msra.mxu0 0.0
    %2699 = vmatprep.subr.mxu0 0.0
    %2700 = vmatpush1.msra.mxu0 0.0
    %2701 = vmatprep.subr.mxu0 0.0
    %2702 = vmatpush1.msra.mxu0 0.0
    %2703 = vmatprep.subr.mxu0 0.0
    %2704 = vmatpush1.msra.mxu0 0.0
    %2705 = vmatprep.subr.mxu0 0.0
    %2706 = vmatpush1.msra.mxu0 0.0
    %2707 = vmatprep.subr.mxu0 0.0
    %2708 = vmatpush1.msra.mxu0 0.0
    %2709 = vmatprep.subr.mxu0 0.0
    %2710 = vmatpush1.msra.mxu0 0.0
    %2711 = vmatprep.subr.mxu0 0.0
    %2712 = vmatpush1.msra.mxu0 0.0
    %2713 = vmatprep.subr.mxu0 0.0
    %2714 = vmatpush1.msra.mxu0 0.0
    %2715 = vmatprep.mubr.f32.mxu0 0.0
    %2716 = vmatmul.mubr.f32.gmra.mrb[0].mxu0 %v1868
    %v2717 = vpop.f32.mrb[0].mxu0
    %v2718 = vadd.f32 0.0, %v2717
    %v2719 = vpop.f32.mrb[0].mxu0
    %2720 = vdwg.mxu0
    %v2722 = vrot.slane %v2718, 4
    %v2724 = vadd.f32 %v445, %v2722
    %v2725 = vxor.u32 %v2490, 2147483648
    %v2726 = vmul.f32 %v2725, 1.442695
    %v2727 = vpow.pop %v2726
    %v2728 = vadd.f32 %v2727, 1.0
    %v2729 = vrcp.pop %v2728
    %v2730 = vmul.f32 1.0, %v2729
    %v2731 = vxor.u32 %v2568, 2147483648
    %v2732 = vmul.f32 %v2731, 1.442695
    %v2733 = vpow.pop %v2732
    %v2734 = vadd.f32 %v2733, 1.0
    %v2735 = vrcp.pop %v2734
    %v2736 = vmul.f32 1.0, %v2735
    %v2737 = vtanh.pop %v2646
    %v2738 = vxor.u32 %v2724, 2147483648
    %v2739 = vmul.f32 %v2738, 1.442695
    %v2740 = vpow.pop %v2739
    %v2741 = vadd.f32 %v2740, 1.0
    %v2742 = vrcp.pop %v2741
    %v2743 = vmul.f32 1.0, %v2742
    %v2745 = vrot.slane %v1782, 6
    %v2747 = vmul.f32 %v2736, %v2745
    %v2748 = vmul.f32 %v2730, %v2737
    %v2749 = vadd.f32 %v2747, %v2748
    %v2750 = vtanh.pop %v2749
    %v2751 = vmul.f32 %v2743, %v2750
    %v2752 = vld [vmem:[#allocation5] sm:$0xff]
    %v2753 = vld [vmem:[#allocation5 + $0x8] sm:$0xff]
    %v2754 = vld [vmem:[#allocation5 + $0x10] sm:$0xff]
    %v2755 = vld [vmem:[#allocation5 + $0x18] sm:$0xff]
    %v2756 = vld [vmem:[#allocation7] sm:$0xff]
    %v2757 = vld [vmem:[#allocation7 + $0x8] sm:$0xff]
    %v2758 = vld [vmem:[#allocation7 + $0x10] sm:$0xff]
    %v2759 = vld [vmem:[#allocation7 + $0x18] sm:$0xff]
    %v2761 = vsel %vm488, %v2411, 0
    %2763 = vmatprep.subr.mxu0 0.0
    %2764 = vmatpush1.msra.mxu0 %v2756
    %2765 = vmatprep.subr.mxu0 0.0
    %2766 = vmatpush1.msra.mxu0 %v2757
    %2767 = vmatprep.subr.mxu0 0.0
    %2768 = vmatpush1.msra.mxu0 %v2758
    %2769 = vmatprep.subr.mxu0 0.0
    %2770 = vmatpush1.msra.mxu0 %v2759
    %2771 = vmatprep.subr.mxu0 0.0
    %2772 = vmatpush1.msra.mxu0 0.0
    %2773 = vmatprep.subr.mxu0 0.0
    %2774 = vmatpush1.msra.mxu0 0.0
    %2775 = vmatprep.subr.mxu0 0.0
    %2776 = vmatpush1.msra.mxu0 0.0
    %2777 = vmatprep.subr.mxu0 0.0
    %2778 = vmatpush1.msra.mxu0 0.0
    %2779 = vmatprep.subr.mxu0 0.0
    %2780 = vmatpush1.msra.mxu0 0.0
    %2781 = vmatprep.subr.mxu0 0.0
    %2782 = vmatpush1.msra.mxu0 0.0
    %2783 = vmatprep.subr.mxu0 0.0
    %2784 = vmatpush1.msra.mxu0 0.0
    %2785 = vmatprep.subr.mxu0 0.0
    %2786 = vmatpush1.msra.mxu0 0.0
    %2787 = vmatprep.subr.mxu0 0.0
    %2788 = vmatpush1.msra.mxu0 0.0
    %2789 = vmatprep.subr.mxu0 0.0
    %2790 = vmatpush1.msra.mxu0 0.0
    %2791 = vmatprep.subr.mxu0 0.0
    %2792 = vmatpush1.msra.mxu0 0.0
    %2793 = vmatprep.subr.mxu0 0.0
    %2794 = vmatpush1.msra.mxu0 0.0
    %2795 = vmatprep.subr.mxu0 0.0
    %2796 = vmatpush1.msra.mxu0 0.0
    %2797 = vmatprep.subr.mxu0 0.0
    %2798 = vmatpush1.msra.mxu0 0.0
    %2799 = vmatprep.subr.mxu0 0.0
    %2800 = vmatpush1.msra.mxu0 0.0
    %2801 = vmatprep.subr.mxu0 0.0
    %2802 = vmatpush1.msra.mxu0 0.0
    %2803 = vmatprep.subr.mxu0 0.0
    %2804 = vmatpush1.msra.mxu0 0.0
    %2805 = vmatprep.subr.mxu0 0.0
    %2806 = vmatpush1.msra.mxu0 0.0
    %2807 = vmatprep.subr.mxu0 0.0
    %2808 = vmatpush1.msra.mxu0 0.0
    %2809 = vmatprep.subr.mxu0 0.0
    %2810 = vmatpush1.msra.mxu0 0.0
    %2811 = vmatprep.subr.mxu0 0.0
    %2812 = vmatpush1.msra.mxu0 0.0
    %2813 = vmatprep.subr.mxu0 0.0
    %2814 = vmatpush1.msra.mxu0 0.0
    %2815 = vmatprep.subr.mxu0 0.0
    %2816 = vmatpush1.msra.mxu0 0.0
    %2817 = vmatprep.subr.mxu0 0.0
    %2818 = vmatpush1.msra.mxu0 0.0
    %2819 = vmatprep.subr.mxu0 0.0
    %2820 = vmatpush1.msra.mxu0 0.0
    %2821 = vmatprep.subr.mxu0 0.0
    %2822 = vmatpush1.msra.mxu0 0.0
    %2823 = vmatprep.subr.mxu0 0.0
    %2824 = vmatpush1.msra.mxu0 0.0
    %2825 = vmatprep.subr.mxu0 0.0
    %2826 = vmatpush1.msra.mxu0 0.0
    %2827 = vmatprep.mubr.f32.mxu0 0.0
    %2828 = vmatmul.mubr.f32.gmra.mrb[0].mxu0 %v2761
    %v2829 = vpop.f32.mrb[0].mxu0
    %v2830 = vadd.f32 0.0, %v2829
    %v2831 = vpop.f32.mrb[0].mxu0
    %2832 = vdwg.mxu0
    %v2834 = vrot.slane %v2751, 4
    %v2835 = vsel %vm488, %v2834, 0
    %2837 = vmatprep.subr.mxu0 0.0
    %2838 = vmatpush1.msra.mxu0 %v2752
    %2839 = vmatprep.subr.mxu0 0.0
    %2840 = vmatpush1.msra.mxu0 %v2753
    %2841 = vmatprep.subr.mxu0 0.0
    %2842 = vmatpush1.msra.mxu0 %v2754
    %2843 = vmatprep.subr.mxu0 0.0
    %2844 = vmatpush1.msra.mxu0 %v2755
    %2845 = vmatprep.subr.mxu0 0.0
    %2846 = vmatpush1.msra.mxu0 0.0
    %2847 = vmatprep.subr.mxu0 0.0
    %2848 = vmatpush1.msra.mxu0 0.0
    %2849 = vmatprep.subr.mxu0 0.0
    %2850 = vmatpush1.msra.mxu0 0.0
    %2851 = vmatprep.subr.mxu0 0.0
    %2852 = vmatpush1.msra.mxu0 0.0
    %2853 = vmatprep.subr.mxu0 0.0
    %2854 = vmatpush1.msra.mxu0 0.0
    %2855 = vmatprep.subr.mxu0 0.0
    %2856 = vmatpush1.msra.mxu0 0.0
    %2857 = vmatprep.subr.mxu0 0.0
    %2858 = vmatpush1.msra.mxu0 0.0
    %2859 = vmatprep.subr.mxu0 0.0
    %2860 = vmatpush1.msra.mxu0 0.0
    %2861 = vmatprep.subr.mxu0 0.0
    %2862 = vmatpush1.msra.mxu0 0.0
    %2863 = vmatprep.subr.mxu0 0.0
    %2864 = vmatpush1.msra.mxu0 0.0
    %2865 = vmatprep.subr.mxu0 0.0
    %2866 = vmatpush1.msra.mxu0 0.0
    %2867 = vmatprep.subr.mxu0 0.0
    %2868 = vmatpush1.msra.mxu0 0.0
    %2869 = vmatprep.subr.mxu0 0.0
    %2870 = vmatpush1.msra.mxu0 0.0
    %2871 = vmatprep.subr.mxu0 0.0
    %2872 = vmatpush1.msra.mxu0 0.0
    %2873 = vmatprep.subr.mxu0 0.0
    %2874 = vmatpush1.msra.mxu0 0.0
    %2875 = vmatprep.subr.mxu0 0.0
    %2876 = vmatpush1.msra.mxu0 0.0
    %2877 = vmatprep.subr.mxu0 0.0
    %2878 = vmatpush1.msra.mxu0 0.0
    %2879 = vmatprep.subr.mxu0 0.0
    %2880 = vmatpush1.msra.mxu0 0.0
    %2881 = vmatprep.subr.mxu0 0.0
    %2882 = vmatpush1.msra.mxu0 0.0
    %2883 = vmatprep.subr.mxu0 0.0
    %2884 = vmatpush1.msra.mxu0 0.0
    %2885 = vmatprep.subr.mxu0 0.0
    %2886 = vmatpush1.msra.mxu0 0.0
    %2887 = vmatprep.subr.mxu0 0.0
    %2888 = vmatpush1.msra.mxu0 0.0
    %2889 = vmatprep.subr.mxu0 0.0
    %2890 = vmatpush1.msra.mxu0 0.0
    %2891 = vmatprep.subr.mxu0 0.0
    %2892 = vmatpush1.msra.mxu0 0.0
    %2893 = vmatprep.subr.mxu0 0.0
    %2894 = vmatpush1.msra.mxu0 0.0
    %2895 = vmatprep.subr.mxu0 0.0
    %2896 = vmatpush1.msra.mxu0 0.0
    %2897 = vmatprep.subr.mxu0 0.0
    %2898 = vmatpush1.msra.mxu0 0.0
    %2899 = vmatprep.subr.mxu0 0.0
    %2900 = vmatpush1.msra.mxu0 0.0
    %2901 = vmatprep.mubr.f32.mxu0 0.0
    %2902 = vmatmul.mubr.f32.gmra.mrb[0].mxu0 %v2835
    %v2903 = vpop.f32.mrb[0].mxu0
    %v2904 = vadd.f32 %v2830, %v2903
    %v2905 = vpop.f32.mrb[0].mxu0
    %2906 = vdwg.mxu0
    %v2907 = vadd.f32 %v2904, %v458
    %v2908 = vld [vmem:[%s967] sm:$0xff]
    %v2909 = vld [vmem:[%s967 + $0x8] sm:$0xff]
    %v2910 = vld [vmem:[%s967 + $0x10] sm:$0xff]
    %v2911 = vld [vmem:[%s967 + $0x18] sm:$0xff]
    %v2912 = vld [vmem:[%s972] sm:$0xff]
    %v2913 = vld [vmem:[%s972 + $0x8] sm:$0xff]
    %v2914 = vld [vmem:[%s972 + $0x10] sm:$0xff]
    %v2915 = vld [vmem:[%s972 + $0x18] sm:$0xff]
    %2916 = vmatprep.subr.mxu0 0.0
    %2917 = vmatpush1.msra.mxu0 %v2912
    %2918 = vmatprep.subr.mxu0 0.0
    %2919 = vmatpush1.msra.mxu0 %v2913
    %2920 = vmatprep.subr.mxu0 0.0
    %2921 = vmatpush1.msra.mxu0 %v2914
    %2922 = vmatprep.subr.mxu0 0.0
    %2923 = vmatpush1.msra.mxu0 %v2915
    %2924 = vmatprep.subr.mxu0 0.0
    %2925 = vmatpush1.msra.mxu0 0.0
    %2926 = vmatprep.subr.mxu0 0.0
    %2927 = vmatpush1.msra.mxu0 0.0
    %2928 = vmatprep.subr.mxu0 0.0
    %2929 = vmatpush1.msra.mxu0 0.0
    %2930 = vmatprep.subr.mxu0 0.0
    %2931 = vmatpush1.msra.mxu0 0.0
    %2932 = vmatprep.subr.mxu0 0.0
    %2933 = vmatpush1.msra.mxu0 0.0
    %2934 = vmatprep.subr.mxu0 0.0
    %2935 = vmatpush1.msra.mxu0 0.0
    %2936 = vmatprep.subr.mxu0 0.0
    %2937 = vmatpush1.msra.mxu0 0.0
    %2938 = vmatprep.subr.mxu0 0.0
    %2939 = vmatpush1.msra.mxu0 0.0
    %2940 = vmatprep.subr.mxu0 0.0
    %2941 = vmatpush1.msra.mxu0 0.0
    %2942 = vmatprep.subr.mxu0 0.0
    %2943 = vmatpush1.msra.mxu0 0.0
    %2944 = vmatprep.subr.mxu0 0.0
    %2945 = vmatpush1.msra.mxu0 0.0
    %2946 = vmatprep.subr.mxu0 0.0
    %2947 = vmatpush1.msra.mxu0 0.0
    %2948 = vmatprep.subr.mxu0 0.0
    %2949 = vmatpush1.msra.mxu0 0.0
    %2950 = vmatprep.subr.mxu0 0.0
    %2951 = vmatpush1.msra.mxu0 0.0
    %2952 = vmatprep.subr.mxu0 0.0
    %2953 = vmatpush1.msra.mxu0 0.0
    %2954 = vmatprep.subr.mxu0 0.0
    %2955 = vmatpush1.msra.mxu0 0.0
    %2956 = vmatprep.subr.mxu0 0.0
    %2957 = vmatpush1.msra.mxu0 0.0
    %2958 = vmatprep.subr.mxu0 0.0
    %2959 = vmatpush1.msra.mxu0 0.0
    %2960 = vmatprep.subr.mxu0 0.0
    %2961 = vmatpush1.msra.mxu0 0.0
    %2962 = vmatprep.subr.mxu0 0.0
    %2963 = vmatpush1.msra.mxu0 0.0
    %2964 = vmatprep.subr.mxu0 0.0
    %2965 = vmatpush1.msra.mxu0 0.0
    %2966 = vmatprep.subr.mxu0 0.0
    %2967 = vmatpush1.msra.mxu0 0.0
    %2968 = vmatprep.subr.mxu0 0.0
    %2969 = vmatpush1.msra.mxu0 0.0
    %2970 = vmatprep.subr.mxu0 0.0
    %2971 = vmatpush1.msra.mxu0 0.0
    %2972 = vmatprep.subr.mxu0 0.0
    %2973 = vmatpush1.msra.mxu0 0.0
    %2974 = vmatprep.subr.mxu0 0.0
    %2975 = vmatpush1.msra.mxu0 0.0
    %2976 = vmatprep.subr.mxu0 0.0
    %2977 = vmatpush1.msra.mxu0 0.0
    %2978 = vmatprep.subr.mxu0 0.0
    %2979 = vmatpush1.msra.mxu0 0.0
    %2980 = vmatprep.mubr.f32.mxu0 0.0
    %2981 = vmatmul.mubr.f32.gmra.mrb[0].mxu0 %v2761
    %v2982 = vpop.f32.mrb[0].mxu0
    %v2983 = vadd.f32 0.0, %v2982
    %v2984 = vpop.f32.mrb[0].mxu0
    %2985 = vdwg.mxu0
    %2986 = vmatprep.subr.mxu0 0.0
    %2987 = vmatpush1.msra.mxu0 %v2908
    %2988 = vmatprep.subr.mxu0 0.0
    %2989 = vmatpush1.msra.mxu0 %v2909
    %2990 = vmatprep.subr.mxu0 0.0
    %2991 = vmatpush1.msra.mxu0 %v2910
    %2992 = vmatprep.subr.mxu0 0.0
    %2993 = vmatpush1.msra.mxu0 %v2911
    %2994 = vmatprep.subr.mxu0 0.0
    %2995 = vmatpush1.msra.mxu0 0.0
    %2996 = vmatprep.subr.mxu0 0.0
    %2997 = vmatpush1.msra.mxu0 0.0
    %2998 = vmatprep.subr.mxu0 0.0
    %2999 = vmatpush1.msra.mxu0 0.0
    %3000 = vmatprep.subr.mxu0 0.0
    %3001 = vmatpush1.msra.mxu0 0.0
    %3002 = vmatprep.subr.mxu0 0.0
    %3003 = vmatpush1.msra.mxu0 0.0
    %3004 = vmatprep.subr.mxu0 0.0
    %3005 = vmatpush1.msra.mxu0 0.0
    %3006 = vmatprep.subr.mxu0 0.0
    %3007 = vmatpush1.msra.mxu0 0.0
    %3008 = vmatprep.subr.mxu0 0.0
    %3009 = vmatpush1.msra.mxu0 0.0
    %3010 = vmatprep.subr.mxu0 0.0
    %3011 = vmatpush1.msra.mxu0 0.0
    %3012 = vmatprep.subr.mxu0 0.0
    %3013 = vmatpush1.msra.mxu0 0.0
    %3014 = vmatprep.subr.mxu0 0.0
    %3015 = vmatpush1.msra.mxu0 0.0
    %3016 = vmatprep.subr.mxu0 0.0
    %3017 = vmatpush1.msra.mxu0 0.0
    %3018 = vmatprep.subr.mxu0 0.0
    %3019 = vmatpush1.msra.mxu0 0.0
    %3020 = vmatprep.subr.mxu0 0.0
    %3021 = vmatpush1.msra.mxu0 0.0
    %3022 = vmatprep.subr.mxu0 0.0
    %3023 = vmatpush1.msra.mxu0 0.0
    %3024 = vmatprep.subr.mxu0 0.0
    %3025 = vmatpush1.msra.mxu0 0.0
    %3026 = vmatprep.subr.mxu0 0.0
    %3027 = vmatpush1.msra.mxu0 0.0
    %3028 = vmatprep.subr.mxu0 0.0
    %3029 = vmatpush1.msra.mxu0 0.0
    %3030 = vmatprep.subr.mxu0 0.0
    %3031 = vmatpush1.msra.mxu0 0.0
    %3032 = vmatprep.subr.mxu0 0.0
    %3033 = vmatpush1.msra.mxu0 0.0
    %3034 = vmatprep.subr.mxu0 0.0
    %3035 = vmatpush1.msra.mxu0 0.0
    %3036 = vmatprep.subr.mxu0 0.0
    %3037 = vmatpush1.msra.mxu0 0.0
    %3038 = vmatprep.subr.mxu0 0.0
    %3039 = vmatpush1.msra.mxu0 0.0
    %3040 = vmatprep.subr.mxu0 0.0
    %3041 = vmatpush1.msra.mxu0 0.0
    %3042 = vmatprep.subr.mxu0 0.0
    %3043 = vmatpush1.msra.mxu0 0.0
    %3044 = vmatprep.subr.mxu0 0.0
    %3045 = vmatpush1.msra.mxu0 0.0
    %3046 = vmatprep.subr.mxu0 0.0
    %3047 = vmatpush1.msra.mxu0 0.0
    %3048 = vmatprep.subr.mxu0 0.0
    %3049 = vmatpush1.msra.mxu0 0.0
    %3050 = vmatprep.mubr.f32.mxu0 0.0
    %3051 = vmatmul.mubr.f32.gmra.mrb[0].mxu0 %v2835
    %v3052 = vpop.f32.mrb[0].mxu0
    %v3053 = vadd.f32 %v2983, %v3052
    %v3054 = vpop.f32.mrb[0].mxu0
    %3055 = vdwg.mxu0
    %v3056 = vadd.f32 %v3053, %v466
    %v3057 = vld [vmem:[%s1118] sm:$0xff]
    %v3058 = vld [vmem:[%s1118 + $0x8] sm:$0xff]
    %v3059 = vld [vmem:[%s1118 + $0x10] sm:$0xff]
    %v3060 = vld [vmem:[%s1118 + $0x18] sm:$0xff]
    %v3061 = vld [vmem:[%s1123] sm:$0xff]
    %v3062 = vld [vmem:[%s1123 + $0x8] sm:$0xff]
    %v3063 = vld [vmem:[%s1123 + $0x10] sm:$0xff]
    %v3064 = vld [vmem:[%s1123 + $0x18] sm:$0xff]
    %3065 = vmatprep.subr.mxu0 0.0
    %3066 = vmatpush1.msra.mxu0 %v3061
    %3067 = vmatprep.subr.mxu0 0.0
    %3068 = vmatpush1.msra.mxu0 %v3062
    %3069 = vmatprep.subr.mxu0 0.0
    %3070 = vmatpush1.msra.mxu0 %v3063
    %3071 = vmatprep.subr.mxu0 0.0
    %3072 = vmatpush1.msra.mxu0 %v3064
    %3073 = vmatprep.subr.mxu0 0.0
    %3074 = vmatpush1.msra.mxu0 0.0
    %3075 = vmatprep.subr.mxu0 0.0
    %3076 = vmatpush1.msra.mxu0 0.0
    %3077 = vmatprep.subr.mxu0 0.0
    %3078 = vmatpush1.msra.mxu0 0.0
    %3079 = vmatprep.subr.mxu0 0.0
    %3080 = vmatpush1.msra.mxu0 0.0
    %3081 = vmatprep.subr.mxu0 0.0
    %3082 = vmatpush1.msra.mxu0 0.0
    %3083 = vmatprep.subr.mxu0 0.0
    %3084 = vmatpush1.msra.mxu0 0.0
    %3085 = vmatprep.subr.mxu0 0.0
    %3086 = vmatpush1.msra.mxu0 0.0
    %3087 = vmatprep.subr.mxu0 0.0
    %3088 = vmatpush1.msra.mxu0 0.0
    %3089 = vmatprep.subr.mxu0 0.0
    %3090 = vmatpush1.msra.mxu0 0.0
    %3091 = vmatprep.subr.mxu0 0.0
    %3092 = vmatpush1.msra.mxu0 0.0
    %3093 = vmatprep.subr.mxu0 0.0
    %3094 = vmatpush1.msra.mxu0 0.0
    %3095 = vmatprep.subr.mxu0 0.0
    %3096 = vmatpush1.msra.mxu0 0.0
    %3097 = vmatprep.subr.mxu0 0.0
    %3098 = vmatpush1.msra.mxu0 0.0
    %3099 = vmatprep.subr.mxu0 0.0
    %3100 = vmatpush1.msra.mxu0 0.0
    %3101 = vmatprep.subr.mxu0 0.0
    %3102 = vmatpush1.msra.mxu0 0.0
    %3103 = vmatprep.subr.mxu0 0.0
    %3104 = vmatpush1.msra.mxu0 0.0
    %3105 = vmatprep.subr.mxu0 0.0
    %3106 = vmatpush1.msra.mxu0 0.0
    %3107 = vmatprep.subr.mxu0 0.0
    %3108 = vmatpush1.msra.mxu0 0.0
    %3109 = vmatprep.subr.mxu0 0.0
    %3110 = vmatpush1.msra.mxu0 0.0
    %3111 = vmatprep.subr.mxu0 0.0
    %3112 = vmatpush1.msra.mxu0 0.0
    %3113 = vmatprep.subr.mxu0 0.0
    %3114 = vmatpush1.msra.mxu0 0.0
    %3115 = vmatprep.subr.mxu0 0.0
    %3116 = vmatpush1.msra.mxu0 0.0
    %3117 = vmatprep.subr.mxu0 0.0
    %3118 = vmatpush1.msra.mxu0 0.0
    %3119 = vmatprep.subr.mxu0 0.0
    %3120 = vmatpush1.msra.mxu0 0.0
    %3121 = vmatprep.subr.mxu0 0.0
    %3122 = vmatpush1.msra.mxu0 0.0
    %3123 = vmatprep.subr.mxu0 0.0
    %3124 = vmatpush1.msra.mxu0 0.0
    %3125 = vmatprep.subr.mxu0 0.0
    %3126 = vmatpush1.msra.mxu0 0.0
    %3127 = vmatprep.subr.mxu0 0.0
    %3128 = vmatpush1.msra.mxu0 0.0
    %3129 = vmatprep.mubr.f32.mxu0 0.0
    %3130 = vmatmul.mubr.f32.gmra.mrb[0].mxu0 %v2761
    %v3131 = vpop.f32.mrb[0].mxu0
    %v3132 = vadd.f32 0.0, %v3131
    %v3133 = vpop.f32.mrb[0].mxu0
    %3134 = vdwg.mxu0
    %3135 = vmatprep.subr.mxu0 0.0
    %3136 = vmatpush1.msra.mxu0 %v3057
    %3137 = vmatprep.subr.mxu0 0.0
    %3138 = vmatpush1.msra.mxu0 %v3058
    %3139 = vmatprep.subr.mxu0 0.0
    %3140 = vmatpush1.msra.mxu0 %v3059
    %3141 = vmatprep.subr.mxu0 0.0
    %3142 = vmatpush1.msra.mxu0 %v3060
    %3143 = vmatprep.subr.mxu0 0.0
    %3144 = vmatpush1.msra.mxu0 0.0
    %3145 = vmatprep.subr.mxu0 0.0
    %3146 = vmatpush1.msra.mxu0 0.0
    %3147 = vmatprep.subr.mxu0 0.0
    %3148 = vmatpush1.msra.mxu0 0.0
    %3149 = vmatprep.subr.mxu0 0.0
    %3150 = vmatpush1.msra.mxu0 0.0
    %3151 = vmatprep.subr.mxu0 0.0
    %3152 = vmatpush1.msra.mxu0 0.0
    %3153 = vmatprep.subr.mxu0 0.0
    %3154 = vmatpush1.msra.mxu0 0.0
    %3155 = vmatprep.subr.mxu0 0.0
    %3156 = vmatpush1.msra.mxu0 0.0
    %3157 = vmatprep.subr.mxu0 0.0
    %3158 = vmatpush1.msra.mxu0 0.0
    %3159 = vmatprep.subr.mxu0 0.0
    %3160 = vmatpush1.msra.mxu0 0.0
    %3161 = vmatprep.subr.mxu0 0.0
    %3162 = vmatpush1.msra.mxu0 0.0
    %3163 = vmatprep.subr.mxu0 0.0
    %3164 = vmatpush1.msra.mxu0 0.0
    %3165 = vmatprep.subr.mxu0 0.0
    %3166 = vmatpush1.msra.mxu0 0.0
    %3167 = vmatprep.subr.mxu0 0.0
    %3168 = vmatpush1.msra.mxu0 0.0
    %3169 = vmatprep.subr.mxu0 0.0
    %3170 = vmatpush1.msra.mxu0 0.0
    %3171 = vmatprep.subr.mxu0 0.0
    %3172 = vmatpush1.msra.mxu0 0.0
    %3173 = vmatprep.subr.mxu0 0.0
    %3174 = vmatpush1.msra.mxu0 0.0
    %3175 = vmatprep.subr.mxu0 0.0
    %3176 = vmatpush1.msra.mxu0 0.0
    %3177 = vmatprep.subr.mxu0 0.0
    %3178 = vmatpush1.msra.mxu0 0.0
    %3179 = vmatprep.subr.mxu0 0.0
    %3180 = vmatpush1.msra.mxu0 0.0
    %3181 = vmatprep.subr.mxu0 0.0
    %3182 = vmatpush1.msra.mxu0 0.0
    %3183 = vmatprep.subr.mxu0 0.0
    %3184 = vmatpush1.msra.mxu0 0.0
    %3185 = vmatprep.subr.mxu0 0.0
    %3186 = vmatpush1.msra.mxu0 0.0
    %3187 = vmatprep.subr.mxu0 0.0
    %3188 = vmatpush1.msra.mxu0 0.0
    %3189 = vmatprep.subr.mxu0 0.0
    %3190 = vmatpush1.msra.mxu0 0.0
    %3191 = vmatprep.subr.mxu0 0.0
    %3192 = vmatpush1.msra.mxu0 0.0
    %3193 = vmatprep.subr.mxu0 0.0
    %3194 = vmatpush1.msra.mxu0 0.0
    %3195 = vmatprep.subr.mxu0 0.0
    %3196 = vmatpush1.msra.mxu0 0.0
    %3197 = vmatprep.subr.mxu0 0.0
    %3198 = vmatpush1.msra.mxu0 0.0
    %3199 = vmatprep.mubr.f32.mxu0 0.0
    %3200 = vmatmul.mubr.f32.gmra.mrb[0].mxu0 %v2835
    %v3201 = vpop.f32.mrb[0].mxu0
    %v3202 = vadd.f32 %v3132, %v3201
    %v3203 = vpop.f32.mrb[0].mxu0
    %3204 = vdwg.mxu0
    %v3205 = vadd.f32 %v3202, %v474
    %v3206 = vld [vmem:[%s1269] sm:$0xff]
    %v3207 = vld [vmem:[%s1269 + $0x8] sm:$0xff]
    %v3208 = vld [vmem:[%s1269 + $0x10] sm:$0xff]
    %v3209 = vld [vmem:[%s1269 + $0x18] sm:$0xff]
    %v3210 = vld [vmem:[%s1274] sm:$0xff]
    %v3211 = vld [vmem:[%s1274 + $0x8] sm:$0xff]
    %v3212 = vld [vmem:[%s1274 + $0x10] sm:$0xff]
    %v3213 = vld [vmem:[%s1274 + $0x18] sm:$0xff]
    %3214 = vmatprep.subr.mxu0 0.0
    %3215 = vmatpush1.msra.mxu0 %v3210
    %3216 = vmatprep.subr.mxu0 0.0
    %3217 = vmatpush1.msra.mxu0 %v3211
    %3218 = vmatprep.subr.mxu0 0.0
    %3219 = vmatpush1.msra.mxu0 %v3212
    %3220 = vmatprep.subr.mxu0 0.0
    %3221 = vmatpush1.msra.mxu0 %v3213
    %3222 = vmatprep.subr.mxu0 0.0
    %3223 = vmatpush1.msra.mxu0 0.0
    %3224 = vmatprep.subr.mxu0 0.0
    %3225 = vmatpush1.msra.mxu0 0.0
    %3226 = vmatprep.subr.mxu0 0.0
    %3227 = vmatpush1.msra.mxu0 0.0
    %3228 = vmatprep.subr.mxu0 0.0
    %3229 = vmatpush1.msra.mxu0 0.0
    %3230 = vmatprep.subr.mxu0 0.0
    %3231 = vmatpush1.msra.mxu0 0.0
    %3232 = vmatprep.subr.mxu0 0.0
    %3233 = vmatpush1.msra.mxu0 0.0
    %3234 = vmatprep.subr.mxu0 0.0
    %3235 = vmatpush1.msra.mxu0 0.0
    %3236 = vmatprep.subr.mxu0 0.0
    %3237 = vmatpush1.msra.mxu0 0.0
    %3238 = vmatprep.subr.mxu0 0.0
    %3239 = vmatpush1.msra.mxu0 0.0
    %3240 = vmatprep.subr.mxu0 0.0
    %3241 = vmatpush1.msra.mxu0 0.0
    %3242 = vmatprep.subr.mxu0 0.0
    %3243 = vmatpush1.msra.mxu0 0.0
    %3244 = vmatprep.subr.mxu0 0.0
    %3245 = vmatpush1.msra.mxu0 0.0
    %3246 = vmatprep.subr.mxu0 0.0
    %3247 = vmatpush1.msra.mxu0 0.0
    %3248 = vmatprep.subr.mxu0 0.0
    %3249 = vmatpush1.msra.mxu0 0.0
    %3250 = vmatprep.subr.mxu0 0.0
    %3251 = vmatpush1.msra.mxu0 0.0
    %3252 = vmatprep.subr.mxu0 0.0
    %3253 = vmatpush1.msra.mxu0 0.0
    %3254 = vmatprep.subr.mxu0 0.0
    %3255 = vmatpush1.msra.mxu0 0.0
    %3256 = vmatprep.subr.mxu0 0.0
    %3257 = vmatpush1.msra.mxu0 0.0
    %3258 = vmatprep.subr.mxu0 0.0
    %3259 = vmatpush1.msra.mxu0 0.0
    %3260 = vmatprep.subr.mxu0 0.0
    %3261 = vmatpush1.msra.mxu0 0.0
    %3262 = vmatprep.subr.mxu0 0.0
    %3263 = vmatpush1.msra.mxu0 0.0
    %3264 = vmatprep.subr.mxu0 0.0
    %3265 = vmatpush1.msra.mxu0 0.0
    %3266 = vmatprep.subr.mxu0 0.0
    %3267 = vmatpush1.msra.mxu0 0.0
    %3268 = vmatprep.subr.mxu0 0.0
    %3269 = vmatpush1.msra.mxu0 0.0
    %3270 = vmatprep.subr.mxu0 0.0
    %3271 = vmatpush1.msra.mxu0 0.0
    %3272 = vmatprep.subr.mxu0 0.0
    %3273 = vmatpush1.msra.mxu0 0.0
    %3274 = vmatprep.subr.mxu0 0.0
    %3275 = vmatpush1.msra.mxu0 0.0
    %3276 = vmatprep.subr.mxu0 0.0
    %3277 = vmatpush1.msra.mxu0 0.0
    %3278 = vmatprep.mubr.f32.mxu0 0.0
    %3279 = vmatmul.mubr.f32.gmra.mrb[0].mxu0 %v2761
    %v3280 = vpop.f32.mrb[0].mxu0
    %v3281 = vadd.f32 0.0, %v3280
    %v3282 = vpop.f32.mrb[0].mxu0
    %3283 = vdwg.mxu0
    %3284 = vmatprep.subr.mxu0 0.0
    %3285 = vmatpush1.msra.mxu0 %v3206
    %3286 = vmatprep.subr.mxu0 0.0
    %3287 = vmatpush1.msra.mxu0 %v3207
    %3288 = vmatprep.subr.mxu0 0.0
    %3289 = vmatpush1.msra.mxu0 %v3208
    %3290 = vmatprep.subr.mxu0 0.0
    %3291 = vmatpush1.msra.mxu0 %v3209
    %3292 = vmatprep.subr.mxu0 0.0
    %3293 = vmatpush1.msra.mxu0 0.0
    %3294 = vmatprep.subr.mxu0 0.0
    %3295 = vmatpush1.msra.mxu0 0.0
    %3296 = vmatprep.subr.mxu0 0.0
    %3297 = vmatpush1.msra.mxu0 0.0
    %3298 = vmatprep.subr.mxu0 0.0
    %3299 = vmatpush1.msra.mxu0 0.0
    %3300 = vmatprep.subr.mxu0 0.0
    %3301 = vmatpush1.msra.mxu0 0.0
    %3302 = vmatprep.subr.mxu0 0.0
    %3303 = vmatpush1.msra.mxu0 0.0
    %3304 = vmatprep.subr.mxu0 0.0
    %3305 = vmatpush1.msra.mxu0 0.0
    %3306 = vmatprep.subr.mxu0 0.0
    %3307 = vmatpush1.msra.mxu0 0.0
    %3308 = vmatprep.subr.mxu0 0.0
    %3309 = vmatpush1.msra.mxu0 0.0
    %3310 = vmatprep.subr.mxu0 0.0
    %3311 = vmatpush1.msra.mxu0 0.0
    %3312 = vmatprep.subr.mxu0 0.0
    %3313 = vmatpush1.msra.mxu0 0.0
    %3314 = vmatprep.subr.mxu0 0.0
    %3315 = vmatpush1.msra.mxu0 0.0
    %3316 = vmatprep.subr.mxu0 0.0
    %3317 = vmatpush1.msra.mxu0 0.0
    %3318 = vmatprep.subr.mxu0 0.0
    %3319 = vmatpush1.msra.mxu0 0.0
    %3320 = vmatprep.subr.mxu0 0.0
    %3321 = vmatpush1.msra.mxu0 0.0
    %3322 = vmatprep.subr.mxu0 0.0
    %3323 = vmatpush1.msra.mxu0 0.0
    %3324 = vmatprep.subr.mxu0 0.0
    %3325 = vmatpush1.msra.mxu0 0.0
    %3326 = vmatprep.subr.mxu0 0.0
    %3327 = vmatpush1.msra.mxu0 0.0
    %3328 = vmatprep.subr.mxu0 0.0
    %3329 = vmatpush1.msra.mxu0 0.0
    %3330 = vmatprep.subr.mxu0 0.0
    %3331 = vmatpush1.msra.mxu0 0.0
    %3332 = vmatprep.subr.mxu0 0.0
    %3333 = vmatpush1.msra.mxu0 0.0
    %3334 = vmatprep.subr.mxu0 0.0
    %3335 = vmatpush1.msra.mxu0 0.0
    %3336 = vmatprep.subr.mxu0 0.0
    %3337 = vmatpush1.msra.mxu0 0.0
    %3338 = vmatprep.subr.mxu0 0.0
    %3339 = vmatpush1.msra.mxu0 0.0
    %3340 = vmatprep.subr.mxu0 0.0
    %3341 = vmatpush1.msra.mxu0 0.0
    %3342 = vmatprep.subr.mxu0 0.0
    %3343 = vmatpush1.msra.mxu0 0.0
    %3344 = vmatprep.subr.mxu0 0.0
    %3345 = vmatpush1.msra.mxu0 0.0
    %3346 = vmatprep.subr.mxu0 0.0
    %3347 = vmatpush1.msra.mxu0 0.0
    %3348 = vmatprep.mubr.f32.mxu0 0.0
    %3349 = vmatmul.mubr.f32.gmra.mrb[0].mxu0 %v2835
    %v3350 = vpop.f32.mrb[0].mxu0
    %v3351 = vadd.f32 %v3281, %v3350
    %v3352 = vpop.f32.mrb[0].mxu0
    %3353 = vdwg.mxu0
    %v3354 = vadd.f32 %v3351, %v482
    %v3355 = vxor.u32 %v2907, 2147483648
    %v3356 = vmul.f32 %v3355, 1.442695
    %v3357 = vpow.pop %v3356
    %v3358 = vadd.f32 %v3357, 1.0
    %v3359 = vrcp.pop %v3358
    %v3360 = vmul.f32 1.0, %v3359
    %v3361 = vxor.u32 %v3056, 2147483648
    %v3362 = vmul.f32 %v3361, 1.442695
    %v3363 = vpow.pop %v3362
    %v3364 = vadd.f32 %v3363, 1.0
    %v3365 = vrcp.pop %v3364
    %v3366 = vmul.f32 1.0, %v3365
    %v3367 = vtanh.pop %v3205
    %v3368 = vxor.u32 %v3354, 2147483648
    %v3369 = vmul.f32 %v3368, 1.442695
    %v3370 = vpow.pop %v3369
    %v3371 = vadd.f32 %v3370, 1.0
    %v3372 = vrcp.pop %v3371
    %v3373 = vmul.f32 1.0, %v3372
    %v3374 = vmul.f32 %v3366, %v2409
    %v3375 = vmul.f32 %v3360, %v3367
    %v3376 = vadd.f32 %v3374, %v3375
    %v3377 = vtanh.pop %v3376
    %v3378 = vmul.f32 %v3373, %v3377
    %3379 = vst.msk [vmem:[#allocation2 + $0x4] sm:$0x3] %vm1444, %v3378
    %v3380 = vld [vmem:[#allocation3] sm:$0xff]
    %v3381 = vld [vmem:[#allocation3 + $0x8] sm:$0xff]
    %v3382 = vld [vmem:[#allocation3 + $0x10] sm:$0xff]
    %v3383 = vld [vmem:[#allocation3 + $0x18] sm:$0xff]
    %3384 = vmatprep.subr.mxu0 0.0
    %3385 = vmatpush1.msra.mxu0 %v3380
    %3386 = vmatprep.subr.mxu0 0.0
    %3387 = vmatpush1.msra.mxu0 %v3381
    %3388 = vmatprep.subr.mxu0 0.0
    %3389 = vmatpush1.msra.mxu0 %v3382
    %3390 = vmatprep.subr.mxu0 0.0
    %3391 = vmatpush1.msra.mxu0 %v3383
    %3392 = vmatprep.subr.mxu0 0.0
    %3393 = vmatpush1.msra.mxu0 0.0
    %3394 = vmatprep.subr.mxu0 0.0
    %3395 = vmatpush1.msra.mxu0 0.0
    %3396 = vmatprep.subr.mxu0 0.0
    %3397 = vmatpush1.msra.mxu0 0.0
    %3398 = vmatprep.subr.mxu0 0.0
    %3399 = vmatpush1.msra.mxu0 0.0
    %3400 = vmatprep.subr.mxu0 0.0
    %3401 = vmatpush1.msra.mxu0 0.0
    %3402 = vmatprep.subr.mxu0 0.0
    %3403 = vmatpush1.msra.mxu0 0.0
    %3404 = vmatprep.subr.mxu0 0.0
    %3405 = vmatpush1.msra.mxu0 0.0
    %3406 = vmatprep.subr.mxu0 0.0
    %3407 = vmatpush1.msra.mxu0 0.0
    %3408 = vmatprep.subr.mxu0 0.0
    %3409 = vmatpush1.msra.mxu0 0.0
    %3410 = vmatprep.subr.mxu0 0.0
    %3411 = vmatpush1.msra.mxu0 0.0
    %3412 = vmatprep.subr.mxu0 0.0
    %3413 = vmatpush1.msra.mxu0 0.0
    %3414 = vmatprep.subr.mxu0 0.0
    %3415 = vmatpush1.msra.mxu0 0.0
    %3416 = vmatprep.subr.mxu0 0.0
    %3417 = vmatpush1.msra.mxu0 0.0
    %3418 = vmatprep.subr.mxu0 0.0
    %3419 = vmatpush1.msra.mxu0 0.0
    %3420 = vmatprep.subr.mxu0 0.0
    %3421 = vmatpush1.msra.mxu0 0.0
    %3422 = vmatprep.subr.mxu0 0.0
    %3423 = vmatpush1.msra.mxu0 0.0
    %3424 = vmatprep.subr.mxu0 0.0
    %3425 = vmatpush1.msra.mxu0 0.0
    %3426 = vmatprep.subr.mxu0 0.0
    %3427 = vmatpush1.msra.mxu0 0.0
    %3428 = vmatprep.subr.mxu0 0.0
    %3429 = vmatpush1.msra.mxu0 0.0
    %3430 = vmatprep.subr.mxu0 0.0
    %3431 = vmatpush1.msra.mxu0 0.0
    %3432 = vmatprep.subr.mxu0 0.0
    %3433 = vmatpush1.msra.mxu0 0.0
    %3434 = vmatprep.subr.mxu0 0.0
    %3435 = vmatpush1.msra.mxu0 0.0
    %3436 = vmatprep.subr.mxu0 0.0
    %3437 = vmatpush1.msra.mxu0 0.0
    %3438 = vmatprep.subr.mxu0 0.0
    %3439 = vmatpush1.msra.mxu0 0.0
    %3440 = vmatprep.subr.mxu0 0.0
    %3441 = vmatpush1.msra.mxu0 0.0
    %3442 = vmatprep.subr.mxu0 0.0
    %3443 = vmatpush1.msra.mxu0 0.0
    %3444 = vmatprep.subr.mxu0 0.0
    %3445 = vmatpush1.msra.mxu0 0.0
    %3446 = vmatprep.subr.mxu0 0.0
    %3447 = vmatpush1.msra.mxu0 0.0
    %3448 = vmatprep.mubr.f32.mxu0 0.0
    %3449 = vmatmul.mubr.f32.gmra.mrb[0].mxu0 %v2835
    %v3450 = vpop.f32.mrb[0].mxu0
    %v3451 = vadd.f32 0.0, %v3450
    %v3452 = vpop.f32.mrb[0].mxu0
    %3453 = vdwg.mxu0
    %v3455 = vrot.slane %v3451, 2
    %v3457 = vadd.f32 %v190, %v3455
    %v3458 = vld [vmem:[%s563] sm:$0xff]
    %v3459 = vld [vmem:[%s563 + $0x8] sm:$0xff]
    %v3460 = vld [vmem:[%s563 + $0x10] sm:$0xff]
    %v3461 = vld [vmem:[%s563 + $0x18] sm:$0xff]
    %3462 = vmatprep.subr.mxu0 0.0
    %3463 = vmatpush1.msra.mxu0 %v3458
    %3464 = vmatprep.subr.mxu0 0.0
    %3465 = vmatpush1.msra.mxu0 %v3459
    %3466 = vmatprep.subr.mxu0 0.0
    %3467 = vmatpush1.msra.mxu0 %v3460
    %3468 = vmatprep.subr.mxu0 0.0
    %3469 = vmatpush1.msra.mxu0 %v3461
    %3470 = vmatprep.subr.mxu0 0.0
    %3471 = vmatpush1.msra.mxu0 0.0
    %3472 = vmatprep.subr.mxu0 0.0
    %3473 = vmatpush1.msra.mxu0 0.0
    %3474 = vmatprep.subr.mxu0 0.0
    %3475 = vmatpush1.msra.mxu0 0.0
    %3476 = vmatprep.subr.mxu0 0.0
    %3477 = vmatpush1.msra.mxu0 0.0
    %3478 = vmatprep.subr.mxu0 0.0
    %3479 = vmatpush1.msra.mxu0 0.0
    %3480 = vmatprep.subr.mxu0 0.0
    %3481 = vmatpush1.msra.mxu0 0.0
    %3482 = vmatprep.subr.mxu0 0.0
    %3483 = vmatpush1.msra.mxu0 0.0
    %3484 = vmatprep.subr.mxu0 0.0
    %3485 = vmatpush1.msra.mxu0 0.0
    %3486 = vmatprep.subr.mxu0 0.0
    %3487 = vmatpush1.msra.mxu0 0.0
    %3488 = vmatprep.subr.mxu0 0.0
    %3489 = vmatpush1.msra.mxu0 0.0
    %3490 = vmatprep.subr.mxu0 0.0
    %3491 = vmatpush1.msra.mxu0 0.0
    %3492 = vmatprep.subr.mxu0 0.0
    %3493 = vmatpush1.msra.mxu0 0.0
    %3494 = vmatprep.subr.mxu0 0.0
    %3495 = vmatpush1.msra.mxu0 0.0
    %3496 = vmatprep.subr.mxu0 0.0
    %3497 = vmatpush1.msra.mxu0 0.0
    %3498 = vmatprep.subr.mxu0 0.0
    %3499 = vmatpush1.msra.mxu0 0.0
    %3500 = vmatprep.subr.mxu0 0.0
    %3501 = vmatpush1.msra.mxu0 0.0
    %3502 = vmatprep.subr.mxu0 0.0
    %3503 = vmatpush1.msra.mxu0 0.0
    %3504 = vmatprep.subr.mxu0 0.0
    %3505 = vmatpush1.msra.mxu0 0.0
    %3506 = vmatprep.subr.mxu0 0.0
    %3507 = vmatpush1.msra.mxu0 0.0
    %3508 = vmatprep.subr.mxu0 0.0
    %3509 = vmatpush1.msra.mxu0 0.0
    %3510 = vmatprep.subr.mxu0 0.0
    %3511 = vmatpush1.msra.mxu0 0.0
    %3512 = vmatprep.subr.mxu0 0.0
    %3513 = vmatpush1.msra.mxu0 0.0
    %3514 = vmatprep.subr.mxu0 0.0
    %3515 = vmatpush1.msra.mxu0 0.0
    %3516 = vmatprep.subr.mxu0 0.0
    %3517 = vmatpush1.msra.mxu0 0.0
    %3518 = vmatprep.subr.mxu0 0.0
    %3519 = vmatpush1.msra.mxu0 0.0
    %3520 = vmatprep.subr.mxu0 0.0
    %3521 = vmatpush1.msra.mxu0 0.0
    %3522 = vmatprep.subr.mxu0 0.0
    %3523 = vmatpush1.msra.mxu0 0.0
    %3524 = vmatprep.subr.mxu0 0.0
    %3525 = vmatpush1.msra.mxu0 0.0
    %3526 = vmatprep.mubr.f32.mxu0 0.0
    %3527 = vmatmul.mubr.f32.gmra.mrb[0].mxu0 %v2835
    %v3528 = vpop.f32.mrb[0].mxu0
    %v3529 = vadd.f32 0.0, %v3528
    %v3530 = vpop.f32.mrb[0].mxu0
    %3531 = vdwg.mxu0
    %v3533 = vrot.slane %v3529, 2
    %v3535 = vadd.f32 %v275, %v3533
    %v3536 = vld [vmem:[%s639] sm:$0xff]
    %v3537 = vld [vmem:[%s639 + $0x8] sm:$0xff]
    %v3538 = vld [vmem:[%s639 + $0x10] sm:$0xff]
    %v3539 = vld [vmem:[%s639 + $0x18] sm:$0xff]
    %3540 = vmatprep.subr.mxu0 0.0
    %3541 = vmatpush1.msra.mxu0 %v3536
    %3542 = vmatprep.subr.mxu0 0.0
    %3543 = vmatpush1.msra.mxu0 %v3537
    %3544 = vmatprep.subr.mxu0 0.0
    %3545 = vmatpush1.msra.mxu0 %v3538
    %3546 = vmatprep.subr.mxu0 0.0
    %3547 = vmatpush1.msra.mxu0 %v3539
    %3548 = vmatprep.subr.mxu0 0.0
    %3549 = vmatpush1.msra.mxu0 0.0
    %3550 = vmatprep.subr.mxu0 0.0
    %3551 = vmatpush1.msra.mxu0 0.0
    %3552 = vmatprep.subr.mxu0 0.0
    %3553 = vmatpush1.msra.mxu0 0.0
    %3554 = vmatprep.subr.mxu0 0.0
    %3555 = vmatpush1.msra.mxu0 0.0
    %3556 = vmatprep.subr.mxu0 0.0
    %3557 = vmatpush1.msra.mxu0 0.0
    %3558 = vmatprep.subr.mxu0 0.0
    %3559 = vmatpush1.msra.mxu0 0.0
    %3560 = vmatprep.subr.mxu0 0.0
    %3561 = vmatpush1.msra.mxu0 0.0
    %3562 = vmatprep.subr.mxu0 0.0
    %3563 = vmatpush1.msra.mxu0 0.0
    %3564 = vmatprep.subr.mxu0 0.0
    %3565 = vmatpush1.msra.mxu0 0.0
    %3566 = vmatprep.subr.mxu0 0.0
    %3567 = vmatpush1.msra.mxu0 0.0
    %3568 = vmatprep.subr.mxu0 0.0
    %3569 = vmatpush1.msra.mxu0 0.0
    %3570 = vmatprep.subr.mxu0 0.0
    %3571 = vmatpush1.msra.mxu0 0.0
    %3572 = vmatprep.subr.mxu0 0.0
    %3573 = vmatpush1.msra.mxu0 0.0
    %3574 = vmatprep.subr.mxu0 0.0
    %3575 = vmatpush1.msra.mxu0 0.0
    %3576 = vmatprep.subr.mxu0 0.0
    %3577 = vmatpush1.msra.mxu0 0.0
    %3578 = vmatprep.subr.mxu0 0.0
    %3579 = vmatpush1.msra.mxu0 0.0
    %3580 = vmatprep.subr.mxu0 0.0
    %3581 = vmatpush1.msra.mxu0 0.0
    %3582 = vmatprep.subr.mxu0 0.0
    %3583 = vmatpush1.msra.mxu0 0.0
    %3584 = vmatprep.subr.mxu0 0.0
    %3585 = vmatpush1.msra.mxu0 0.0
    %3586 = vmatprep.subr.mxu0 0.0
    %3587 = vmatpush1.msra.mxu0 0.0
    %3588 = vmatprep.subr.mxu0 0.0
    %3589 = vmatpush1.msra.mxu0 0.0
    %3590 = vmatprep.subr.mxu0 0.0
    %3591 = vmatpush1.msra.mxu0 0.0
    %3592 = vmatprep.subr.mxu0 0.0
    %3593 = vmatpush1.msra.mxu0 0.0
    %3594 = vmatprep.subr.mxu0 0.0
    %3595 = vmatpush1.msra.mxu0 0.0
    %3596 = vmatprep.subr.mxu0 0.0
    %3597 = vmatpush1.msra.mxu0 0.0
    %3598 = vmatprep.subr.mxu0 0.0
    %3599 = vmatpush1.msra.mxu0 0.0
    %3600 = vmatprep.subr.mxu0 0.0
    %3601 = vmatpush1.msra.mxu0 0.0
    %3602 = vmatprep.subr.mxu0 0.0
    %3603 = vmatpush1.msra.mxu0 0.0
    %3604 = vmatprep.mubr.f32.mxu0 0.0
    %3605 = vmatmul.mubr.f32.gmra.mrb[0].mxu0 %v2835
    %v3606 = vpop.f32.mrb[0].mxu0
    %v3607 = vadd.f32 0.0, %v3606
    %v3608 = vpop.f32.mrb[0].mxu0
    %3609 = vdwg.mxu0
    %v3611 = vrot.slane %v3607, 2
    %v3613 = vadd.f32 %v360, %v3611
    %v3614 = vld [vmem:[%s715] sm:$0xff]
    %v3615 = vld [vmem:[%s715 + $0x8] sm:$0xff]
    %v3616 = vld [vmem:[%s715 + $0x10] sm:$0xff]
    %v3617 = vld [vmem:[%s715 + $0x18] sm:$0xff]
    %3618 = vmatprep.subr.mxu0 0.0
    %3619 = vmatpush1.msra.mxu0 %v3614
    %3620 = vmatprep.subr.mxu0 0.0
    %3621 = vmatpush1.msra.mxu0 %v3615
    %3622 = vmatprep.subr.mxu0 0.0
    %3623 = vmatpush1.msra.mxu0 %v3616
    %3624 = vmatprep.subr.mxu0 0.0
    %3625 = vmatpush1.msra.mxu0 %v3617
    %3626 = vmatprep.subr.mxu0 0.0
    %3627 = vmatpush1.msra.mxu0 0.0
    %3628 = vmatprep.subr.mxu0 0.0
    %3629 = vmatpush1.msra.mxu0 0.0
    %3630 = vmatprep.subr.mxu0 0.0
    %3631 = vmatpush1.msra.mxu0 0.0
    %3632 = vmatprep.subr.mxu0 0.0
    %3633 = vmatpush1.msra.mxu0 0.0
    %3634 = vmatprep.subr.mxu0 0.0
    %3635 = vmatpush1.msra.mxu0 0.0
    %3636 = vmatprep.subr.mxu0 0.0
    %3637 = vmatpush1.msra.mxu0 0.0
    %3638 = vmatprep.subr.mxu0 0.0
    %3639 = vmatpush1.msra.mxu0 0.0
    %3640 = vmatprep.subr.mxu0 0.0
    %3641 = vmatpush1.msra.mxu0 0.0
    %3642 = vmatprep.subr.mxu0 0.0
    %3643 = vmatpush1.msra.mxu0 0.0
    %3644 = vmatprep.subr.mxu0 0.0
    %3645 = vmatpush1.msra.mxu0 0.0
    %3646 = vmatprep.subr.mxu0 0.0
    %3647 = vmatpush1.msra.mxu0 0.0
    %3648 = vmatprep.subr.mxu0 0.0
    %3649 = vmatpush1.msra.mxu0 0.0
    %3650 = vmatprep.subr.mxu0 0.0
    %3651 = vmatpush1.msra.mxu0 0.0
    %3652 = vmatprep.subr.mxu0 0.0
    %3653 = vmatpush1.msra.mxu0 0.0
    %3654 = vmatprep.subr.mxu0 0.0
    %3655 = vmatpush1.msra.mxu0 0.0
    %3656 = vmatprep.subr.mxu0 0.0
    %3657 = vmatpush1.msra.mxu0 0.0
    %3658 = vmatprep.subr.mxu0 0.0
    %3659 = vmatpush1.msra.mxu0 0.0
    %3660 = vmatprep.subr.mxu0 0.0
    %3661 = vmatpush1.msra.mxu0 0.0
    %3662 = vmatprep.subr.mxu0 0.0
    %3663 = vmatpush1.msra.mxu0 0.0
    %3664 = vmatprep.subr.mxu0 0.0
    %3665 = vmatpush1.msra.mxu0 0.0
    %3666 = vmatprep.subr.mxu0 0.0
    %3667 = vmatpush1.msra.mxu0 0.0
    %3668 = vmatprep.subr.mxu0 0.0
    %3669 = vmatpush1.msra.mxu0 0.0
    %3670 = vmatprep.subr.mxu0 0.0
    %3671 = vmatpush1.msra.mxu0 0.0
    %3672 = vmatprep.subr.mxu0 0.0
    %3673 = vmatpush1.msra.mxu0 0.0
    %3674 = vmatprep.subr.mxu0 0.0
    %3675 = vmatpush1.msra.mxu0 0.0
    %3676 = vmatprep.subr.mxu0 0.0
    %3677 = vmatpush1.msra.mxu0 0.0
    %3678 = vmatprep.subr.mxu0 0.0
    %3679 = vmatpush1.msra.mxu0 0.0
    %3680 = vmatprep.subr.mxu0 0.0
    %3681 = vmatpush1.msra.mxu0 0.0
    %3682 = vmatprep.mubr.f32.mxu0 0.0
    %3683 = vmatmul.mubr.f32.gmra.mrb[0].mxu0 %v2835
    %v3684 = vpop.f32.mrb[0].mxu0
    %v3685 = vadd.f32 0.0, %v3684
    %v3686 = vpop.f32.mrb[0].mxu0
    %3687 = vdwg.mxu0
    %v3689 = vrot.slane %v3685, 2
    %v3691 = vadd.f32 %v445, %v3689
    %v3692 = vxor.u32 %v3457, 2147483648
    %v3693 = vmul.f32 %v3692, 1.442695
    %v3694 = vpow.pop %v3693
    %v3695 = vadd.f32 %v3694, 1.0
    %v3696 = vrcp.pop %v3695
    %v3697 = vmul.f32 1.0, %v3696
    %v3698 = vxor.u32 %v3535, 2147483648
    %v3699 = vmul.f32 %v3698, 1.442695
    %v3700 = vpow.pop %v3699
    %v3701 = vadd.f32 %v3700, 1.0
    %v3702 = vrcp.pop %v3701
    %v3703 = vmul.f32 1.0, %v3702
    %v3704 = vtanh.pop %v3613
    %v3705 = vxor.u32 %v3691, 2147483648
    %v3706 = vmul.f32 %v3705, 1.442695
    %v3707 = vpow.pop %v3706
    %v3708 = vadd.f32 %v3707, 1.0
    %v3709 = vrcp.pop %v3708
    %v3710 = vmul.f32 1.0, %v3709
    %v3712 = vrot.slane %v2749, 6
    %v3714 = vmul.f32 %v3703, %v3712
    %v3715 = vmul.f32 %v3697, %v3704
    %v3716 = vadd.f32 %v3714, %v3715
    %v3717 = vtanh.pop %v3716
    %v3718 = vmul.f32 %v3710, %v3717
    %v3719 = vld [vmem:[#allocation5] sm:$0xff]
    %v3720 = vld [vmem:[#allocation5 + $0x8] sm:$0xff]
    %v3721 = vld [vmem:[#allocation5 + $0x10] sm:$0xff]
    %v3722 = vld [vmem:[#allocation5 + $0x18] sm:$0xff]
    %v3723 = vld [vmem:[#allocation7] sm:$0xff]
    %v3724 = vld [vmem:[#allocation7 + $0x8] sm:$0xff]
    %v3725 = vld [vmem:[#allocation7 + $0x10] sm:$0xff]
    %v3726 = vld [vmem:[#allocation7 + $0x18] sm:$0xff]
    %v3728 = vsel %vm488, %v3378, 0
    %3730 = vmatprep.subr.mxu0 0.0
    %3731 = vmatpush1.msra.mxu0 %v3723
    %3732 = vmatprep.subr.mxu0 0.0
    %3733 = vmatpush1.msra.mxu0 %v3724
    %3734 = vmatprep.subr.mxu0 0.0
    %3735 = vmatpush1.msra.mxu0 %v3725
    %3736 = vmatprep.subr.mxu0 0.0
    %3737 = vmatpush1.msra.mxu0 %v3726
    %3738 = vmatprep.subr.mxu0 0.0
    %3739 = vmatpush1.msra.mxu0 0.0
    %3740 = vmatprep.subr.mxu0 0.0
    %3741 = vmatpush1.msra.mxu0 0.0
    %3742 = vmatprep.subr.mxu0 0.0
    %3743 = vmatpush1.msra.mxu0 0.0
    %3744 = vmatprep.subr.mxu0 0.0
    %3745 = vmatpush1.msra.mxu0 0.0
    %3746 = vmatprep.subr.mxu0 0.0
    %3747 = vmatpush1.msra.mxu0 0.0
    %3748 = vmatprep.subr.mxu0 0.0
    %3749 = vmatpush1.msra.mxu0 0.0
    %3750 = vmatprep.subr.mxu0 0.0
    %3751 = vmatpush1.msra.mxu0 0.0
    %3752 = vmatprep.subr.mxu0 0.0
    %3753 = vmatpush1.msra.mxu0 0.0
    %3754 = vmatprep.subr.mxu0 0.0
    %3755 = vmatpush1.msra.mxu0 0.0
    %3756 = vmatprep.subr.mxu0 0.0
    %3757 = vmatpush1.msra.mxu0 0.0
    %3758 = vmatprep.subr.mxu0 0.0
    %3759 = vmatpush1.msra.mxu0 0.0
    %3760 = vmatprep.subr.mxu0 0.0
    %3761 = vmatpush1.msra.mxu0 0.0
    %3762 = vmatprep.subr.mxu0 0.0
    %3763 = vmatpush1.msra.mxu0 0.0
    %3764 = vmatprep.subr.mxu0 0.0
    %3765 = vmatpush1.msra.mxu0 0.0
    %3766 = vmatprep.subr.mxu0 0.0
    %3767 = vmatpush1.msra.mxu0 0.0
    %3768 = vmatprep.subr.mxu0 0.0
    %3769 = vmatpush1.msra.mxu0 0.0
    %3770 = vmatprep.subr.mxu0 0.0
    %3771 = vmatpush1.msra.mxu0 0.0
    %3772 = vmatprep.subr.mxu0 0.0
    %3773 = vmatpush1.msra.mxu0 0.0
    %3774 = vmatprep.subr.mxu0 0.0
    %3775 = vmatpush1.msra.mxu0 0.0
    %3776 = vmatprep.subr.mxu0 0.0
    %3777 = vmatpush1.msra.mxu0 0.0
    %3778 = vmatprep.subr.mxu0 0.0
    %3779 = vmatpush1.msra.mxu0 0.0
    %3780 = vmatprep.subr.mxu0 0.0
    %3781 = vmatpush1.msra.mxu0 0.0
    %3782 = vmatprep.subr.mxu0 0.0
    %3783 = vmatpush1.msra.mxu0 0.0
    %3784 = vmatprep.subr.mxu0 0.0
    %3785 = vmatpush1.msra.mxu0 0.0
    %3786 = vmatprep.subr.mxu0 0.0
    %3787 = vmatpush1.msra.mxu0 0.0
    %3788 = vmatprep.subr.mxu0 0.0
    %3789 = vmatpush1.msra.mxu0 0.0
    %3790 = vmatprep.subr.mxu0 0.0
    %3791 = vmatpush1.msra.mxu0 0.0
    %3792 = vmatprep.subr.mxu0 0.0
    %3793 = vmatpush1.msra.mxu0 0.0
    %3794 = vmatprep.mubr.f32.mxu0 0.0
    %3795 = vmatmul.mubr.f32.gmra.mrb[0].mxu0 %v3728
    %v3796 = vpop.f32.mrb[0].mxu0
    %v3797 = vadd.f32 0.0, %v3796
    %v3798 = vpop.f32.mrb[0].mxu0
    %3799 = vdwg.mxu0
    %v3801 = vrot.slane %v3718, 6
    %v3802 = vsel %vm488, %v3801, 0
    %3804 = vmatprep.subr.mxu0 0.0
    %3805 = vmatpush1.msra.mxu0 %v3719
    %3806 = vmatprep.subr.mxu0 0.0
    %3807 = vmatpush1.msra.mxu0 %v3720
    %3808 = vmatprep.subr.mxu0 0.0
    %3809 = vmatpush1.msra.mxu0 %v3721
    %3810 = vmatprep.subr.mxu0 0.0
    %3811 = vmatpush1.msra.mxu0 %v3722
    %3812 = vmatprep.subr.mxu0 0.0
    %3813 = vmatpush1.msra.mxu0 0.0
    %3814 = vmatprep.subr.mxu0 0.0
    %3815 = vmatpush1.msra.mxu0 0.0
    %3816 = vmatprep.subr.mxu0 0.0
    %3817 = vmatpush1.msra.mxu0 0.0
    %3818 = vmatprep.subr.mxu0 0.0
    %3819 = vmatpush1.msra.mxu0 0.0
    %3820 = vmatprep.subr.mxu0 0.0
    %3821 = vmatpush1.msra.mxu0 0.0
    %3822 = vmatprep.subr.mxu0 0.0
    %3823 = vmatpush1.msra.mxu0 0.0
    %3824 = vmatprep.subr.mxu0 0.0
    %3825 = vmatpush1.msra.mxu0 0.0
    %3826 = vmatprep.subr.mxu0 0.0
    %3827 = vmatpush1.msra.mxu0 0.0
    %3828 = vmatprep.subr.mxu0 0.0
    %3829 = vmatpush1.msra.mxu0 0.0
    %3830 = vmatprep.subr.mxu0 0.0
    %3831 = vmatpush1.msra.mxu0 0.0
    %3832 = vmatprep.subr.mxu0 0.0
    %3833 = vmatpush1.msra.mxu0 0.0
    %3834 = vmatprep.subr.mxu0 0.0
    %3835 = vmatpush1.msra.mxu0 0.0
    %3836 = vmatprep.subr.mxu0 0.0
    %3837 = vmatpush1.msra.mxu0 0.0
    %3838 = vmatprep.subr.mxu0 0.0
    %3839 = vmatpush1.msra.mxu0 0.0
    %3840 = vmatprep.subr.mxu0 0.0
    %3841 = vmatpush1.msra.mxu0 0.0
    %3842 = vmatprep.subr.mxu0 0.0
    %3843 = vmatpush1.msra.mxu0 0.0
    %3844 = vmatprep.subr.mxu0 0.0
    %3845 = vmatpush1.msra.mxu0 0.0
    %3846 = vmatprep.subr.mxu0 0.0
    %3847 = vmatpush1.msra.mxu0 0.0
    %3848 = vmatprep.subr.mxu0 0.0
    %3849 = vmatpush1.msra.mxu0 0.0
    %3850 = vmatprep.subr.mxu0 0.0
    %3851 = vmatpush1.msra.mxu0 0.0
    %3852 = vmatprep.subr.mxu0 0.0
    %3853 = vmatpush1.msra.mxu0 0.0
    %3854 = vmatprep.subr.mxu0 0.0
    %3855 = vmatpush1.msra.mxu0 0.0
    %3856 = vmatprep.subr.mxu0 0.0
    %3857 = vmatpush1.msra.mxu0 0.0
    %3858 = vmatprep.subr.mxu0 0.0
    %3859 = vmatpush1.msra.mxu0 0.0
    %3860 = vmatprep.subr.mxu0 0.0
    %3861 = vmatpush1.msra.mxu0 0.0
    %3862 = vmatprep.subr.mxu0 0.0
    %3863 = vmatpush1.msra.mxu0 0.0
    %3864 = vmatprep.subr.mxu0 0.0
    %3865 = vmatpush1.msra.mxu0 0.0
    %3866 = vmatprep.subr.mxu0 0.0
    %3867 = vmatpush1.msra.mxu0 0.0
    %3868 = vmatprep.mubr.f32.mxu0 0.0
    %3869 = vmatmul.mubr.f32.gmra.mrb[0].mxu0 %v3802
    %v3870 = vpop.f32.mrb[0].mxu0
    %v3871 = vadd.f32 %v3797, %v3870
    %v3872 = vpop.f32.mrb[0].mxu0
    %3873 = vdwg.mxu0
    %v3874 = vadd.f32 %v3871, %v458
    %v3875 = vld [vmem:[%s967] sm:$0xff]
    %v3876 = vld [vmem:[%s967 + $0x8] sm:$0xff]
    %v3877 = vld [vmem:[%s967 + $0x10] sm:$0xff]
    %v3878 = vld [vmem:[%s967 + $0x18] sm:$0xff]
    %v3879 = vld [vmem:[%s972] sm:$0xff]
    %v3880 = vld [vmem:[%s972 + $0x8] sm:$0xff]
    %v3881 = vld [vmem:[%s972 + $0x10] sm:$0xff]
    %v3882 = vld [vmem:[%s972 + $0x18] sm:$0xff]
    %3883 = vmatprep.subr.mxu0 0.0
    %3884 = vmatpush1.msra.mxu0 %v3879
    %3885 = vmatprep.subr.mxu0 0.0
    %3886 = vmatpush1.msra.mxu0 %v3880
    %3887 = vmatprep.subr.mxu0 0.0
    %3888 = vmatpush1.msra.mxu0 %v3881
    %3889 = vmatprep.subr.mxu0 0.0
    %3890 = vmatpush1.msra.mxu0 %v3882
    %3891 = vmatprep.subr.mxu0 0.0
    %3892 = vmatpush1.msra.mxu0 0.0
    %3893 = vmatprep.subr.mxu0 0.0
    %3894 = vmatpush1.msra.mxu0 0.0
    %3895 = vmatprep.subr.mxu0 0.0
    %3896 = vmatpush1.msra.mxu0 0.0
    %3897 = vmatprep.subr.mxu0 0.0
    %3898 = vmatpush1.msra.mxu0 0.0
    %3899 = vmatprep.subr.mxu0 0.0
    %3900 = vmatpush1.msra.mxu0 0.0
    %3901 = vmatprep.subr.mxu0 0.0
    %3902 = vmatpush1.msra.mxu0 0.0
    %3903 = vmatprep.subr.mxu0 0.0
    %3904 = vmatpush1.msra.mxu0 0.0
    %3905 = vmatprep.subr.mxu0 0.0
    %3906 = vmatpush1.msra.mxu0 0.0
    %3907 = vmatprep.subr.mxu0 0.0
    %3908 = vmatpush1.msra.mxu0 0.0
    %3909 = vmatprep.subr.mxu0 0.0
    %3910 = vmatpush1.msra.mxu0 0.0
    %3911 = vmatprep.subr.mxu0 0.0
    %3912 = vmatpush1.msra.mxu0 0.0
    %3913 = vmatprep.subr.mxu0 0.0
    %3914 = vmatpush1.msra.mxu0 0.0
    %3915 = vmatprep.subr.mxu0 0.0
    %3916 = vmatpush1.msra.mxu0 0.0
    %3917 = vmatprep.subr.mxu0 0.0
    %3918 = vmatpush1.msra.mxu0 0.0
    %3919 = vmatprep.subr.mxu0 0.0
    %3920 = vmatpush1.msra.mxu0 0.0
    %3921 = vmatprep.subr.mxu0 0.0
    %3922 = vmatpush1.msra.mxu0 0.0
    %3923 = vmatprep.subr.mxu0 0.0
    %3924 = vmatpush1.msra.mxu0 0.0
    %3925 = vmatprep.subr.mxu0 0.0
    %3926 = vmatpush1.msra.mxu0 0.0
    %3927 = vmatprep.subr.mxu0 0.0
    %3928 = vmatpush1.msra.mxu0 0.0
    %3929 = vmatprep.subr.mxu0 0.0
    %3930 = vmatpush1.msra.mxu0 0.0
    %3931 = vmatprep.subr.mxu0 0.0
    %3932 = vmatpush1.msra.mxu0 0.0
    %3933 = vmatprep.subr.mxu0 0.0
    %3934 = vmatpush1.msra.mxu0 0.0
    %3935 = vmatprep.subr.mxu0 0.0
    %3936 = vmatpush1.msra.mxu0 0.0
    %3937 = vmatprep.subr.mxu0 0.0
    %3938 = vmatpush1.msra.mxu0 0.0
    %3939 = vmatprep.subr.mxu0 0.0
    %3940 = vmatpush1.msra.mxu0 0.0
    %3941 = vmatprep.subr.mxu0 0.0
    %3942 = vmatpush1.msra.mxu0 0.0
    %3943 = vmatprep.subr.mxu0 0.0
    %3944 = vmatpush1.msra.mxu0 0.0
    %3945 = vmatprep.subr.mxu0 0.0
    %3946 = vmatpush1.msra.mxu0 0.0
    %3947 = vmatprep.mubr.f32.mxu0 0.0
    %3948 = vmatmul.mubr.f32.gmra.mrb[0].mxu0 %v3728
    %v3949 = vpop.f32.mrb[0].mxu0
    %v3950 = vadd.f32 0.0, %v3949
    %v3951 = vpop.f32.mrb[0].mxu0
    %3952 = vdwg.mxu0
    %3953 = vmatprep.subr.mxu0 0.0
    %3954 = vmatpush1.msra.mxu0 %v3875
    %3955 = vmatprep.subr.mxu0 0.0
    %3956 = vmatpush1.msra.mxu0 %v3876
    %3957 = vmatprep.subr.mxu0 0.0
    %3958 = vmatpush1.msra.mxu0 %v3877
    %3959 = vmatprep.subr.mxu0 0.0
    %3960 = vmatpush1.msra.mxu0 %v3878
    %3961 = vmatprep.subr.mxu0 0.0
    %3962 = vmatpush1.msra.mxu0 0.0
    %3963 = vmatprep.subr.mxu0 0.0
    %3964 = vmatpush1.msra.mxu0 0.0
    %3965 = vmatprep.subr.mxu0 0.0
    %3966 = vmatpush1.msra.mxu0 0.0
    %3967 = vmatprep.subr.mxu0 0.0
    %3968 = vmatpush1.msra.mxu0 0.0
    %3969 = vmatprep.subr.mxu0 0.0
    %3970 = vmatpush1.msra.mxu0 0.0
    %3971 = vmatprep.subr.mxu0 0.0
    %3972 = vmatpush1.msra.mxu0 0.0
    %3973 = vmatprep.subr.mxu0 0.0
    %3974 = vmatpush1.msra.mxu0 0.0
    %3975 = vmatprep.subr.mxu0 0.0
    %3976 = vmatpush1.msra.mxu0 0.0
    %3977 = vmatprep.subr.mxu0 0.0
    %3978 = vmatpush1.msra.mxu0 0.0
    %3979 = vmatprep.subr.mxu0 0.0
    %3980 = vmatpush1.msra.mxu0 0.0
    %3981 = vmatprep.subr.mxu0 0.0
    %3982 = vmatpush1.msra.mxu0 0.0
    %3983 = vmatprep.subr.mxu0 0.0
    %3984 = vmatpush1.msra.mxu0 0.0
    %3985 = vmatprep.subr.mxu0 0.0
    %3986 = vmatpush1.msra.mxu0 0.0
    %3987 = vmatprep.subr.mxu0 0.0
    %3988 = vmatpush1.msra.mxu0 0.0
    %3989 = vmatprep.subr.mxu0 0.0
    %3990 = vmatpush1.msra.mxu0 0.0
    %3991 = vmatprep.subr.mxu0 0.0
    %3992 = vmatpush1.msra.mxu0 0.0
    %3993 = vmatprep.subr.mxu0 0.0
    %3994 = vmatpush1.msra.mxu0 0.0
    %3995 = vmatprep.subr.mxu0 0.0
    %3996 = vmatpush1.msra.mxu0 0.0
    %3997 = vmatprep.subr.mxu0 0.0
    %3998 = vmatpush1.msra.mxu0 0.0
    %3999 = vmatprep.subr.mxu0 0.0
    %4000 = vmatpush1.msra.mxu0 0.0
    %4001 = vmatprep.subr.mxu0 0.0
    %4002 = vmatpush1.msra.mxu0 0.0
    %4003 = vmatprep.subr.mxu0 0.0
    %4004 = vmatpush1.msra.mxu0 0.0
    %4005 = vmatprep.subr.mxu0 0.0
    %4006 = vmatpush1.msra.mxu0 0.0
    %4007 = vmatprep.subr.mxu0 0.0
    %4008 = vmatpush1.msra.mxu0 0.0
    %4009 = vmatprep.subr.mxu0 0.0
    %4010 = vmatpush1.msra.mxu0 0.0
    %4011 = vmatprep.subr.mxu0 0.0
    %4012 = vmatpush1.msra.mxu0 0.0
    %4013 = vmatprep.subr.mxu0 0.0
    %4014 = vmatpush1.msra.mxu0 0.0
    %4015 = vmatprep.subr.mxu0 0.0
    %4016 = vmatpush1.msra.mxu0 0.0
    %4017 = vmatprep.mubr.f32.mxu0 0.0
    %4018 = vmatmul.mubr.f32.gmra.mrb[0].mxu0 %v3802
    %v4019 = vpop.f32.mrb[0].mxu0
    %v4020 = vadd.f32 %v3950, %v4019
    %v4021 = vpop.f32.mrb[0].mxu0
    %4022 = vdwg.mxu0
    %v4023 = vadd.f32 %v4020, %v466
    %v4024 = vld [vmem:[%s1118] sm:$0xff]
    %v4025 = vld [vmem:[%s1118 + $0x8] sm:$0xff]
    %v4026 = vld [vmem:[%s1118 + $0x10] sm:$0xff]
    %v4027 = vld [vmem:[%s1118 + $0x18] sm:$0xff]
    %v4028 = vld [vmem:[%s1123] sm:$0xff]
    %v4029 = vld [vmem:[%s1123 + $0x8] sm:$0xff]
    %v4030 = vld [vmem:[%s1123 + $0x10] sm:$0xff]
    %v4031 = vld [vmem:[%s1123 + $0x18] sm:$0xff]
    %4032 = vmatprep.subr.mxu0 0.0
    %4033 = vmatpush1.msra.mxu0 %v4028
    %4034 = vmatprep.subr.mxu0 0.0
    %4035 = vmatpush1.msra.mxu0 %v4029
    %4036 = vmatprep.subr.mxu0 0.0
    %4037 = vmatpush1.msra.mxu0 %v4030
    %4038 = vmatprep.subr.mxu0 0.0
    %4039 = vmatpush1.msra.mxu0 %v4031
    %4040 = vmatprep.subr.mxu0 0.0
    %4041 = vmatpush1.msra.mxu0 0.0
    %4042 = vmatprep.subr.mxu0 0.0
    %4043 = vmatpush1.msra.mxu0 0.0
    %4044 = vmatprep.subr.mxu0 0.0
    %4045 = vmatpush1.msra.mxu0 0.0
    %4046 = vmatprep.subr.mxu0 0.0
    %4047 = vmatpush1.msra.mxu0 0.0
    %4048 = vmatprep.subr.mxu0 0.0
    %4049 = vmatpush1.msra.mxu0 0.0
    %4050 = vmatprep.subr.mxu0 0.0
    %4051 = vmatpush1.msra.mxu0 0.0
    %4052 = vmatprep.subr.mxu0 0.0
    %4053 = vmatpush1.msra.mxu0 0.0
    %4054 = vmatprep.subr.mxu0 0.0
    %4055 = vmatpush1.msra.mxu0 0.0
    %4056 = vmatprep.subr.mxu0 0.0
    %4057 = vmatpush1.msra.mxu0 0.0
    %4058 = vmatprep.subr.mxu0 0.0
    %4059 = vmatpush1.msra.mxu0 0.0
    %4060 = vmatprep.subr.mxu0 0.0
    %4061 = vmatpush1.msra.mxu0 0.0
    %4062 = vmatprep.subr.mxu0 0.0
    %4063 = vmatpush1.msra.mxu0 0.0
    %4064 = vmatprep.subr.mxu0 0.0
    %4065 = vmatpush1.msra.mxu0 0.0
    %4066 = vmatprep.subr.mxu0 0.0
    %4067 = vmatpush1.msra.mxu0 0.0
    %4068 = vmatprep.subr.mxu0 0.0
    %4069 = vmatpush1.msra.mxu0 0.0
    %4070 = vmatprep.subr.mxu0 0.0
    %4071 = vmatpush1.msra.mxu0 0.0
    %4072 = vmatprep.subr.mxu0 0.0
    %4073 = vmatpush1.msra.mxu0 0.0
    %4074 = vmatprep.subr.mxu0 0.0
    %4075 = vmatpush1.msra.mxu0 0.0
    %4076 = vmatprep.subr.mxu0 0.0
    %4077 = vmatpush1.msra.mxu0 0.0
    %4078 = vmatprep.subr.mxu0 0.0
    %4079 = vmatpush1.msra.mxu0 0.0
    %4080 = vmatprep.subr.mxu0 0.0
    %4081 = vmatpush1.msra.mxu0 0.0
    %4082 = vmatprep.subr.mxu0 0.0
    %4083 = vmatpush1.msra.mxu0 0.0
    %4084 = vmatprep.subr.mxu0 0.0
    %4085 = vmatpush1.msra.mxu0 0.0
    %4086 = vmatprep.subr.mxu0 0.0
    %4087 = vmatpush1.msra.mxu0 0.0
    %4088 = vmatprep.subr.mxu0 0.0
    %4089 = vmatpush1.msra.mxu0 0.0
    %4090 = vmatprep.subr.mxu0 0.0
    %4091 = vmatpush1.msra.mxu0 0.0
    %4092 = vmatprep.subr.mxu0 0.0
    %4093 = vmatpush1.msra.mxu0 0.0
    %4094 = vmatprep.subr.mxu0 0.0
    %4095 = vmatpush1.msra.mxu0 0.0
    %4096 = vmatprep.mubr.f32.mxu0 0.0
    %4097 = vmatmul.mubr.f32.gmra.mrb[0].mxu0 %v3728
    %v4098 = vpop.f32.mrb[0].mxu0
    %v4099 = vadd.f32 0.0, %v4098
    %v4100 = vpop.f32.mrb[0].mxu0
    %4101 = vdwg.mxu0
    %4102 = vmatprep.subr.mxu0 0.0
    %4103 = vmatpush1.msra.mxu0 %v4024
    %4104 = vmatprep.subr.mxu0 0.0
    %4105 = vmatpush1.msra.mxu0 %v4025
    %4106 = vmatprep.subr.mxu0 0.0
    %4107 = vmatpush1.msra.mxu0 %v4026
    %4108 = vmatprep.subr.mxu0 0.0
    %4109 = vmatpush1.msra.mxu0 %v4027
    %4110 = vmatprep.subr.mxu0 0.0
    %4111 = vmatpush1.msra.mxu0 0.0
    %4112 = vmatprep.subr.mxu0 0.0
    %4113 = vmatpush1.msra.mxu0 0.0
    %4114 = vmatprep.subr.mxu0 0.0
    %4115 = vmatpush1.msra.mxu0 0.0
    %4116 = vmatprep.subr.mxu0 0.0
    %4117 = vmatpush1.msra.mxu0 0.0
    %4118 = vmatprep.subr.mxu0 0.0
    %4119 = vmatpush1.msra.mxu0 0.0
    %4120 = vmatprep.subr.mxu0 0.0
    %4121 = vmatpush1.msra.mxu0 0.0
    %4122 = vmatprep.subr.mxu0 0.0
    %4123 = vmatpush1.msra.mxu0 0.0
    %4124 = vmatprep.subr.mxu0 0.0
    %4125 = vmatpush1.msra.mxu0 0.0
    %4126 = vmatprep.subr.mxu0 0.0
    %4127 = vmatpush1.msra.mxu0 0.0
    %4128 = vmatprep.subr.mxu0 0.0
    %4129 = vmatpush1.msra.mxu0 0.0
    %4130 = vmatprep.subr.mxu0 0.0
    %4131 = vmatpush1.msra.mxu0 0.0
    %4132 = vmatprep.subr.mxu0 0.0
    %4133 = vmatpush1.msra.mxu0 0.0
    %4134 = vmatprep.subr.mxu0 0.0
    %4135 = vmatpush1.msra.mxu0 0.0
    %4136 = vmatprep.subr.mxu0 0.0
    %4137 = vmatpush1.msra.mxu0 0.0
    %4138 = vmatprep.subr.mxu0 0.0
    %4139 = vmatpush1.msra.mxu0 0.0
    %4140 = vmatprep.subr.mxu0 0.0
    %4141 = vmatpush1.msra.mxu0 0.0
    %4142 = vmatprep.subr.mxu0 0.0
    %4143 = vmatpush1.msra.mxu0 0.0
    %4144 = vmatprep.subr.mxu0 0.0
    %4145 = vmatpush1.msra.mxu0 0.0
    %4146 = vmatprep.subr.mxu0 0.0
    %4147 = vmatpush1.msra.mxu0 0.0
    %4148 = vmatprep.subr.mxu0 0.0
    %4149 = vmatpush1.msra.mxu0 0.0
    %4150 = vmatprep.subr.mxu0 0.0
    %4151 = vmatpush1.msra.mxu0 0.0
    %4152 = vmatprep.subr.mxu0 0.0
    %4153 = vmatpush1.msra.mxu0 0.0
    %4154 = vmatprep.subr.mxu0 0.0
    %4155 = vmatpush1.msra.mxu0 0.0
    %4156 = vmatprep.subr.mxu0 0.0
    %4157 = vmatpush1.msra.mxu0 0.0
    %4158 = vmatprep.subr.mxu0 0.0
    %4159 = vmatpush1.msra.mxu0 0.0
    %4160 = vmatprep.subr.mxu0 0.0
    %4161 = vmatpush1.msra.mxu0 0.0
    %4162 = vmatprep.subr.mxu0 0.0
    %4163 = vmatpush1.msra.mxu0 0.0
    %4164 = vmatprep.subr.mxu0 0.0
    %4165 = vmatpush1.msra.mxu0 0.0
    %4166 = vmatprep.mubr.f32.mxu0 0.0
    %4167 = vmatmul.mubr.f32.gmra.mrb[0].mxu0 %v3802
    %v4168 = vpop.f32.mrb[0].mxu0
    %v4169 = vadd.f32 %v4099, %v4168
    %v4170 = vpop.f32.mrb[0].mxu0
    %4171 = vdwg.mxu0
    %v4172 = vadd.f32 %v4169, %v474
    %v4173 = vld [vmem:[%s1269] sm:$0xff]
    %v4174 = vld [vmem:[%s1269 + $0x8] sm:$0xff]
    %v4175 = vld [vmem:[%s1269 + $0x10] sm:$0xff]
    %v4176 = vld [vmem:[%s1269 + $0x18] sm:$0xff]
    %v4177 = vld [vmem:[%s1274] sm:$0xff]
    %v4178 = vld [vmem:[%s1274 + $0x8] sm:$0xff]
    %v4179 = vld [vmem:[%s1274 + $0x10] sm:$0xff]
    %v4180 = vld [vmem:[%s1274 + $0x18] sm:$0xff]
    %4181 = vmatprep.subr.mxu0 0.0
    %4182 = vmatpush1.msra.mxu0 %v4177
    %4183 = vmatprep.subr.mxu0 0.0
    %4184 = vmatpush1.msra.mxu0 %v4178
    %4185 = vmatprep.subr.mxu0 0.0
    %4186 = vmatpush1.msra.mxu0 %v4179
    %4187 = vmatprep.subr.mxu0 0.0
    %4188 = vmatpush1.msra.mxu0 %v4180
    %4189 = vmatprep.subr.mxu0 0.0
    %4190 = vmatpush1.msra.mxu0 0.0
    %4191 = vmatprep.subr.mxu0 0.0
    %4192 = vmatpush1.msra.mxu0 0.0
    %4193 = vmatprep.subr.mxu0 0.0
    %4194 = vmatpush1.msra.mxu0 0.0
    %4195 = vmatprep.subr.mxu0 0.0
    %4196 = vmatpush1.msra.mxu0 0.0
    %4197 = vmatprep.subr.mxu0 0.0
    %4198 = vmatpush1.msra.mxu0 0.0
    %4199 = vmatprep.subr.mxu0 0.0
    %4200 = vmatpush1.msra.mxu0 0.0
    %4201 = vmatprep.subr.mxu0 0.0
    %4202 = vmatpush1.msra.mxu0 0.0
    %4203 = vmatprep.subr.mxu0 0.0
    %4204 = vmatpush1.msra.mxu0 0.0
    %4205 = vmatprep.subr.mxu0 0.0
    %4206 = vmatpush1.msra.mxu0 0.0
    %4207 = vmatprep.subr.mxu0 0.0
    %4208 = vmatpush1.msra.mxu0 0.0
    %4209 = vmatprep.subr.mxu0 0.0
    %4210 = vmatpush1.msra.mxu0 0.0
    %4211 = vmatprep.subr.mxu0 0.0
    %4212 = vmatpush1.msra.mxu0 0.0
    %4213 = vmatprep.subr.mxu0 0.0
    %4214 = vmatpush1.msra.mxu0 0.0
    %4215 = vmatprep.subr.mxu0 0.0
    %4216 = vmatpush1.msra.mxu0 0.0
    %4217 = vmatprep.subr.mxu0 0.0
    %4218 = vmatpush1.msra.mxu0 0.0
    %4219 = vmatprep.subr.mxu0 0.0
    %4220 = vmatpush1.msra.mxu0 0.0
    %4221 = vmatprep.subr.mxu0 0.0
    %4222 = vmatpush1.msra.mxu0 0.0
    %4223 = vmatprep.subr.mxu0 0.0
    %4224 = vmatpush1.msra.mxu0 0.0
    %4225 = vmatprep.subr.mxu0 0.0
    %4226 = vmatpush1.msra.mxu0 0.0
    %4227 = vmatprep.subr.mxu0 0.0
    %4228 = vmatpush1.msra.mxu0 0.0
    %4229 = vmatprep.subr.mxu0 0.0
    %4230 = vmatpush1.msra.mxu0 0.0
    %4231 = vmatprep.subr.mxu0 0.0
    %4232 = vmatpush1.msra.mxu0 0.0
    %4233 = vmatprep.subr.mxu0 0.0
    %4234 = vmatpush1.msra.mxu0 0.0
    %4235 = vmatprep.subr.mxu0 0.0
    %4236 = vmatpush1.msra.mxu0 0.0
    %4237 = vmatprep.subr.mxu0 0.0
    %4238 = vmatpush1.msra.mxu0 0.0
    %4239 = vmatprep.subr.mxu0 0.0
    %4240 = vmatpush1.msra.mxu0 0.0
    %4241 = vmatprep.subr.mxu0 0.0
    %4242 = vmatpush1.msra.mxu0 0.0
    %4243 = vmatprep.subr.mxu0 0.0
    %4244 = vmatpush1.msra.mxu0 0.0
    %4245 = vmatprep.mubr.f32.mxu0 0.0
    %4246 = vmatmul.mubr.f32.gmra.mrb[0].mxu0 %v3728
    %v4247 = vpop.f32.mrb[0].mxu0
    %v4248 = vadd.f32 0.0, %v4247
    %v4249 = vpop.f32.mrb[0].mxu0
    %4250 = vdwg.mxu0
    %4251 = vmatprep.subr.mxu0 0.0
    %4252 = vmatpush1.msra.mxu0 %v4173
    %4253 = vmatprep.subr.mxu0 0.0
    %4254 = vmatpush1.msra.mxu0 %v4174
    %4255 = vmatprep.subr.mxu0 0.0
    %4256 = vmatpush1.msra.mxu0 %v4175
    %4257 = vmatprep.subr.mxu0 0.0
    %4258 = vmatpush1.msra.mxu0 %v4176
    %4259 = vmatprep.subr.mxu0 0.0
    %4260 = vmatpush1.msra.mxu0 0.0
    %4261 = vmatprep.subr.mxu0 0.0
    %4262 = vmatpush1.msra.mxu0 0.0
    %4263 = vmatprep.subr.mxu0 0.0
    %4264 = vmatpush1.msra.mxu0 0.0
    %4265 = vmatprep.subr.mxu0 0.0
    %4266 = vmatpush1.msra.mxu0 0.0
    %4267 = vmatprep.subr.mxu0 0.0
    %4268 = vmatpush1.msra.mxu0 0.0
    %4269 = vmatprep.subr.mxu0 0.0
    %4270 = vmatpush1.msra.mxu0 0.0
    %4271 = vmatprep.subr.mxu0 0.0
    %4272 = vmatpush1.msra.mxu0 0.0
    %4273 = vmatprep.subr.mxu0 0.0
    %4274 = vmatpush1.msra.mxu0 0.0
    %4275 = vmatprep.subr.mxu0 0.0
    %4276 = vmatpush1.msra.mxu0 0.0
    %4277 = vmatprep.subr.mxu0 0.0
    %4278 = vmatpush1.msra.mxu0 0.0
    %4279 = vmatprep.subr.mxu0 0.0
    %4280 = vmatpush1.msra.mxu0 0.0
    %4281 = vmatprep.subr.mxu0 0.0
    %4282 = vmatpush1.msra.mxu0 0.0
    %4283 = vmatprep.subr.mxu0 0.0
    %4284 = vmatpush1.msra.mxu0 0.0
    %4285 = vmatprep.subr.mxu0 0.0
    %4286 = vmatpush1.msra.mxu0 0.0
    %4287 = vmatprep.subr.mxu0 0.0
    %4288 = vmatpush1.msra.mxu0 0.0
    %4289 = vmatprep.subr.mxu0 0.0
    %4290 = vmatpush1.msra.mxu0 0.0
    %4291 = vmatprep.subr.mxu0 0.0
    %4292 = vmatpush1.msra.mxu0 0.0
    %4293 = vmatprep.subr.mxu0 0.0
    %4294 = vmatpush1.msra.mxu0 0.0
    %4295 = vmatprep.subr.mxu0 0.0
    %4296 = vmatpush1.msra.mxu0 0.0
    %4297 = vmatprep.subr.mxu0 0.0
    %4298 = vmatpush1.msra.mxu0 0.0
    %4299 = vmatprep.subr.mxu0 0.0
    %4300 = vmatpush1.msra.mxu0 0.0
    %4301 = vmatprep.subr.mxu0 0.0
    %4302 = vmatpush1.msra.mxu0 0.0
    %4303 = vmatprep.subr.mxu0 0.0
    %4304 = vmatpush1.msra.mxu0 0.0
    %4305 = vmatprep.subr.mxu0 0.0
    %4306 = vmatpush1.msra.mxu0 0.0
    %4307 = vmatprep.subr.mxu0 0.0
    %4308 = vmatpush1.msra.mxu0 0.0
    %4309 = vmatprep.subr.mxu0 0.0
    %4310 = vmatpush1.msra.mxu0 0.0
    %4311 = vmatprep.subr.mxu0 0.0
    %4312 = vmatpush1.msra.mxu0 0.0
    %4313 = vmatprep.subr.mxu0 0.0
    %4314 = vmatpush1.msra.mxu0 0.0
    %4315 = vmatprep.mubr.f32.mxu0 0.0
    %4316 = vmatmul.mubr.f32.gmra.mrb[0].mxu0 %v3802
    %v4317 = vpop.f32.mrb[0].mxu0
    %v4318 = vadd.f32 %v4248, %v4317
    %v4319 = vpop.f32.mrb[0].mxu0
    %4320 = vdwg.mxu0
    %v4321 = vadd.f32 %v4318, %v482
    %v4322 = vxor.u32 %v3874, 2147483648
    %v4323 = vmul.f32 %v4322, 1.442695
    %v4324 = vpow.pop %v4323
    %v4325 = vadd.f32 %v4324, 1.0
    %v4326 = vrcp.pop %v4325
    %v4327 = vmul.f32 1.0, %v4326
    %v4328 = vxor.u32 %v4023, 2147483648
    %v4329 = vmul.f32 %v4328, 1.442695
    %v4330 = vpow.pop %v4329
    %v4331 = vadd.f32 %v4330, 1.0
    %v4332 = vrcp.pop %v4331
    %v4333 = vmul.f32 1.0, %v4332
    %v4334 = vtanh.pop %v4172
    %v4335 = vxor.u32 %v4321, 2147483648
    %v4336 = vmul.f32 %v4335, 1.442695
    %v4337 = vpow.pop %v4336
    %v4338 = vadd.f32 %v4337, 1.0
    %v4339 = vrcp.pop %v4338
    %v4340 = vmul.f32 1.0, %v4339
    %v4341 = vmul.f32 %v4333, %v3376
    %v4342 = vmul.f32 %v4327, %v4334
    %v4343 = vadd.f32 %v4341, %v4342
    %v4344 = vtanh.pop %v4343
    %v4345 = vmul.f32 %v4340, %v4344
    %4346 = vst.msk [vmem:[#allocation2 + $0x6] sm:$0x3] %vm1444, %v4345
    %v4347 = vld [vmem:[#allocation3] sm:$0xff]
    %v4348 = vld [vmem:[#allocation3 + $0x8] sm:$0xff]
    %v4349 = vld [vmem:[#allocation3 + $0x10] sm:$0xff]
    %v4350 = vld [vmem:[#allocation3 + $0x18] sm:$0xff]
    %4351 = vmatprep.subr.mxu0 0.0
    %4352 = vmatpush1.msra.mxu0 %v4347
    %4353 = vmatprep.subr.mxu0 0.0
    %4354 = vmatpush1.msra.mxu0 %v4348
    %4355 = vmatprep.subr.mxu0 0.0
    %4356 = vmatpush1.msra.mxu0 %v4349
    %4357 = vmatprep.subr.mxu0 0.0
    %4358 = vmatpush1.msra.mxu0 %v4350
    %4359 = vmatprep.subr.mxu0 0.0
    %4360 = vmatpush1.msra.mxu0 0.0
    %4361 = vmatprep.subr.mxu0 0.0
    %4362 = vmatpush1.msra.mxu0 0.0
    %4363 = vmatprep.subr.mxu0 0.0
    %4364 = vmatpush1.msra.mxu0 0.0
    %4365 = vmatprep.subr.mxu0 0.0
    %4366 = vmatpush1.msra.mxu0 0.0
    %4367 = vmatprep.subr.mxu0 0.0
    %4368 = vmatpush1.msra.mxu0 0.0
    %4369 = vmatprep.subr.mxu0 0.0
    %4370 = vmatpush1.msra.mxu0 0.0
    %4371 = vmatprep.subr.mxu0 0.0
    %4372 = vmatpush1.msra.mxu0 0.0
    %4373 = vmatprep.subr.mxu0 0.0
    %4374 = vmatpush1.msra.mxu0 0.0
    %4375 = vmatprep.subr.mxu0 0.0
    %4376 = vmatpush1.msra.mxu0 0.0
    %4377 = vmatprep.subr.mxu0 0.0
    %4378 = vmatpush1.msra.mxu0 0.0
    %4379 = vmatprep.subr.mxu0 0.0
    %4380 = vmatpush1.msra.mxu0 0.0
    %4381 = vmatprep.subr.mxu0 0.0
    %4382 = vmatpush1.msra.mxu0 0.0
    %4383 = vmatprep.subr.mxu0 0.0
    %4384 = vmatpush1.msra.mxu0 0.0
    %4385 = vmatprep.subr.mxu0 0.0
    %4386 = vmatpush1.msra.mxu0 0.0
    %4387 = vmatprep.subr.mxu0 0.0
    %4388 = vmatpush1.msra.mxu0 0.0
    %4389 = vmatprep.subr.mxu0 0.0
    %4390 = vmatpush1.msra.mxu0 0.0
    %4391 = vmatprep.subr.mxu0 0.0
    %4392 = vmatpush1.msra.mxu0 0.0
    %4393 = vmatprep.subr.mxu0 0.0
    %4394 = vmatpush1.msra.mxu0 0.0
    %4395 = vmatprep.subr.mxu0 0.0
    %4396 = vmatpush1.msra.mxu0 0.0
    %4397 = vmatprep.subr.mxu0 0.0
    %4398 = vmatpush1.msra.mxu0 0.0
    %4399 = vmatprep.subr.mxu0 0.0
    %4400 = vmatpush1.msra.mxu0 0.0
    %4401 = vmatprep.subr.mxu0 0.0
    %4402 = vmatpush1.msra.mxu0 0.0
    %4403 = vmatprep.subr.mxu0 0.0
    %4404 = vmatpush1.msra.mxu0 0.0
    %4405 = vmatprep.subr.mxu0 0.0
    %4406 = vmatpush1.msra.mxu0 0.0
    %4407 = vmatprep.subr.mxu0 0.0
    %4408 = vmatpush1.msra.mxu0 0.0
    %4409 = vmatprep.subr.mxu0 0.0
    %4410 = vmatpush1.msra.mxu0 0.0
    %4411 = vmatprep.subr.mxu0 0.0
    %4412 = vmatpush1.msra.mxu0 0.0
    %4413 = vmatprep.subr.mxu0 0.0
    %4414 = vmatpush1.msra.mxu0 0.0
    %4415 = vmatprep.mubr.f32.mxu0 0.0
    %4416 = vmatmul.mubr.f32.gmra.mrb[0].mxu0 %v3802
    %v4417 = vpop.f32.mrb[0].mxu0
    %v4418 = vadd.f32 0.0, %v4417
    %v4419 = vpop.f32.mrb[0].mxu0
    %4420 = vdwg.mxu0
    %v4421 = vadd.f32 %v195, %v4418
    %v4422 = vld [vmem:[%s563] sm:$0xff]
    %v4423 = vld [vmem:[%s563 + $0x8] sm:$0xff]
    %v4424 = vld [vmem:[%s563 + $0x10] sm:$0xff]
    %v4425 = vld [vmem:[%s563 + $0x18] sm:$0xff]
    %4426 = vmatprep.subr.mxu0 0.0
    %4427 = vmatpush1.msra.mxu0 %v4422
    %4428 = vmatprep.subr.mxu0 0.0
    %4429 = vmatpush1.msra.mxu0 %v4423
    %4430 = vmatprep.subr.mxu0 0.0
    %4431 = vmatpush1.msra.mxu0 %v4424
    %4432 = vmatprep.subr.mxu0 0.0
    %4433 = vmatpush1.msra.mxu0 %v4425
    %4434 = vmatprep.subr.mxu0 0.0
    %4435 = vmatpush1.msra.mxu0 0.0
    %4436 = vmatprep.subr.mxu0 0.0
    %4437 = vmatpush1.msra.mxu0 0.0
    %4438 = vmatprep.subr.mxu0 0.0
    %4439 = vmatpush1.msra.mxu0 0.0
    %4440 = vmatprep.subr.mxu0 0.0
    %4441 = vmatpush1.msra.mxu0 0.0
    %4442 = vmatprep.subr.mxu0 0.0
    %4443 = vmatpush1.msra.mxu0 0.0
    %4444 = vmatprep.subr.mxu0 0.0
    %4445 = vmatpush1.msra.mxu0 0.0
    %4446 = vmatprep.subr.mxu0 0.0
    %4447 = vmatpush1.msra.mxu0 0.0
    %4448 = vmatprep.subr.mxu0 0.0
    %4449 = vmatpush1.msra.mxu0 0.0
    %4450 = vmatprep.subr.mxu0 0.0
    %4451 = vmatpush1.msra.mxu0 0.0
    %4452 = vmatprep.subr.mxu0 0.0
    %4453 = vmatpush1.msra.mxu0 0.0
    %4454 = vmatprep.subr.mxu0 0.0
    %4455 = vmatpush1.msra.mxu0 0.0
    %4456 = vmatprep.subr.mxu0 0.0
    %4457 = vmatpush1.msra.mxu0 0.0
    %4458 = vmatprep.subr.mxu0 0.0
    %4459 = vmatpush1.msra.mxu0 0.0
    %4460 = vmatprep.subr.mxu0 0.0
    %4461 = vmatpush1.msra.mxu0 0.0
    %4462 = vmatprep.subr.mxu0 0.0
    %4463 = vmatpush1.msra.mxu0 0.0
    %4464 = vmatprep.subr.mxu0 0.0
    %4465 = vmatpush1.msra.mxu0 0.0
    %4466 = vmatprep.subr.mxu0 0.0
    %4467 = vmatpush1.msra.mxu0 0.0
    %4468 = vmatprep.subr.mxu0 0.0
    %4469 = vmatpush1.msra.mxu0 0.0
    %4470 = vmatprep.subr.mxu0 0.0
    %4471 = vmatpush1.msra.mxu0 0.0
    %4472 = vmatprep.subr.mxu0 0.0
    %4473 = vmatpush1.msra.mxu0 0.0
    %4474 = vmatprep.subr.mxu0 0.0
    %4475 = vmatpush1.msra.mxu0 0.0
    %4476 = vmatprep.subr.mxu0 0.0
    %4477 = vmatpush1.msra.mxu0 0.0
    %4478 = vmatprep.subr.mxu0 0.0
    %4479 = vmatpush1.msra.mxu0 0.0
    %4480 = vmatprep.subr.mxu0 0.0
    %4481 = vmatpush1.msra.mxu0 0.0
    %4482 = vmatprep.subr.mxu0 0.0
    %4483 = vmatpush1.msra.mxu0 0.0
    %4484 = vmatprep.subr.mxu0 0.0
    %4485 = vmatpush1.msra.mxu0 0.0
    %4486 = vmatprep.subr.mxu0 0.0
    %4487 = vmatpush1.msra.mxu0 0.0
    %4488 = vmatprep.subr.mxu0 0.0
    %4489 = vmatpush1.msra.mxu0 0.0
    %4490 = vmatprep.mubr.f32.mxu0 0.0
    %4491 = vmatmul.mubr.f32.gmra.mrb[0].mxu0 %v3802
    %v4492 = vpop.f32.mrb[0].mxu0
    %v4493 = vadd.f32 0.0, %v4492
    %v4494 = vpop.f32.mrb[0].mxu0
    %4495 = vdwg.mxu0
    %v4496 = vadd.f32 %v280, %v4493
    %v4497 = vld [vmem:[%s639] sm:$0xff]
    %v4498 = vld [vmem:[%s639 + $0x8] sm:$0xff]
    %v4499 = vld [vmem:[%s639 + $0x10] sm:$0xff]
    %v4500 = vld [vmem:[%s639 + $0x18] sm:$0xff]
    %4501 = vmatprep.subr.mxu0 0.0
    %4502 = vmatpush1.msra.mxu0 %v4497
    %4503 = vmatprep.subr.mxu0 0.0
    %4504 = vmatpush1.msra.mxu0 %v4498
    %4505 = vmatprep.subr.mxu0 0.0
    %4506 = vmatpush1.msra.mxu0 %v4499
    %4507 = vmatprep.subr.mxu0 0.0
    %4508 = vmatpush1.msra.mxu0 %v4500
    %4509 = vmatprep.subr.mxu0 0.0
    %4510 = vmatpush1.msra.mxu0 0.0
    %4511 = vmatprep.subr.mxu0 0.0
    %4512 = vmatpush1.msra.mxu0 0.0
    %4513 = vmatprep.subr.mxu0 0.0
    %4514 = vmatpush1.msra.mxu0 0.0
    %4515 = vmatprep.subr.mxu0 0.0
    %4516 = vmatpush1.msra.mxu0 0.0
    %4517 = vmatprep.subr.mxu0 0.0
    %4518 = vmatpush1.msra.mxu0 0.0
    %4519 = vmatprep.subr.mxu0 0.0
    %4520 = vmatpush1.msra.mxu0 0.0
    %4521 = vmatprep.subr.mxu0 0.0
    %4522 = vmatpush1.msra.mxu0 0.0
    %4523 = vmatprep.subr.mxu0 0.0
    %4524 = vmatpush1.msra.mxu0 0.0
    %4525 = vmatprep.subr.mxu0 0.0
    %4526 = vmatpush1.msra.mxu0 0.0
    %4527 = vmatprep.subr.mxu0 0.0
    %4528 = vmatpush1.msra.mxu0 0.0
    %4529 = vmatprep.subr.mxu0 0.0
    %4530 = vmatpush1.msra.mxu0 0.0
    %4531 = vmatprep.subr.mxu0 0.0
    %4532 = vmatpush1.msra.mxu0 0.0
    %4533 = vmatprep.subr.mxu0 0.0
    %4534 = vmatpush1.msra.mxu0 0.0
    %4535 = vmatprep.subr.mxu0 0.0
    %4536 = vmatpush1.msra.mxu0 0.0
    %4537 = vmatprep.subr.mxu0 0.0
    %4538 = vmatpush1.msra.mxu0 0.0
    %4539 = vmatprep.subr.mxu0 0.0
    %4540 = vmatpush1.msra.mxu0 0.0
    %4541 = vmatprep.subr.mxu0 0.0
    %4542 = vmatpush1.msra.mxu0 0.0
    %4543 = vmatprep.subr.mxu0 0.0
    %4544 = vmatpush1.msra.mxu0 0.0
    %4545 = vmatprep.subr.mxu0 0.0
    %4546 = vmatpush1.msra.mxu0 0.0
    %4547 = vmatprep.subr.mxu0 0.0
    %4548 = vmatpush1.msra.mxu0 0.0
    %4549 = vmatprep.subr.mxu0 0.0
    %4550 = vmatpush1.msra.mxu0 0.0
    %4551 = vmatprep.subr.mxu0 0.0
    %4552 = vmatpush1.msra.mxu0 0.0
    %4553 = vmatprep.subr.mxu0 0.0
    %4554 = vmatpush1.msra.mxu0 0.0
    %4555 = vmatprep.subr.mxu0 0.0
    %4556 = vmatpush1.msra.mxu0 0.0
    %4557 = vmatprep.subr.mxu0 0.0
    %4558 = vmatpush1.msra.mxu0 0.0
    %4559 = vmatprep.subr.mxu0 0.0
    %4560 = vmatpush1.msra.mxu0 0.0
    %4561 = vmatprep.subr.mxu0 0.0
    %4562 = vmatpush1.msra.mxu0 0.0
    %4563 = vmatprep.subr.mxu0 0.0
    %4564 = vmatpush1.msra.mxu0 0.0
    %4565 = vmatprep.mubr.f32.mxu0 0.0
    %4566 = vmatmul.mubr.f32.gmra.mrb[0].mxu0 %v3802
    %v4567 = vpop.f32.mrb[0].mxu0
    %v4568 = vadd.f32 0.0, %v4567
    %v4569 = vpop.f32.mrb[0].mxu0
    %4570 = vdwg.mxu0
    %v4571 = vadd.f32 %v365, %v4568
    %v4572 = vld [vmem:[%s715] sm:$0xff]
    %v4573 = vld [vmem:[%s715 + $0x8] sm:$0xff]
    %v4574 = vld [vmem:[%s715 + $0x10] sm:$0xff]
    %v4575 = vld [vmem:[%s715 + $0x18] sm:$0xff]
    %4576 = vmatprep.subr.mxu0 0.0
    %4577 = vmatpush1.msra.mxu0 %v4572
    %4578 = vmatprep.subr.mxu0 0.0
    %4579 = vmatpush1.msra.mxu0 %v4573
    %4580 = vmatprep.subr.mxu0 0.0
    %4581 = vmatpush1.msra.mxu0 %v4574
    %4582 = vmatprep.subr.mxu0 0.0
    %4583 = vmatpush1.msra.mxu0 %v4575
    %4584 = vmatprep.subr.mxu0 0.0
    %4585 = vmatpush1.msra.mxu0 0.0
    %4586 = vmatprep.subr.mxu0 0.0
    %4587 = vmatpush1.msra.mxu0 0.0
    %4588 = vmatprep.subr.mxu0 0.0
    %4589 = vmatpush1.msra.mxu0 0.0
    %4590 = vmatprep.subr.mxu0 0.0
    %4591 = vmatpush1.msra.mxu0 0.0
    %4592 = vmatprep.subr.mxu0 0.0
    %4593 = vmatpush1.msra.mxu0 0.0
    %4594 = vmatprep.subr.mxu0 0.0
    %4595 = vmatpush1.msra.mxu0 0.0
    %4596 = vmatprep.subr.mxu0 0.0
    %4597 = vmatpush1.msra.mxu0 0.0
    %4598 = vmatprep.subr.mxu0 0.0
    %4599 = vmatpush1.msra.mxu0 0.0
    %4600 = vmatprep.subr.mxu0 0.0
    %4601 = vmatpush1.msra.mxu0 0.0
    %4602 = vmatprep.subr.mxu0 0.0
    %4603 = vmatpush1.msra.mxu0 0.0
    %4604 = vmatprep.subr.mxu0 0.0
    %4605 = vmatpush1.msra.mxu0 0.0
    %4606 = vmatprep.subr.mxu0 0.0
    %4607 = vmatpush1.msra.mxu0 0.0
    %4608 = vmatprep.subr.mxu0 0.0
    %4609 = vmatpush1.msra.mxu0 0.0
    %4610 = vmatprep.subr.mxu0 0.0
    %4611 = vmatpush1.msra.mxu0 0.0
    %4612 = vmatprep.subr.mxu0 0.0
    %4613 = vmatpush1.msra.mxu0 0.0
    %4614 = vmatprep.subr.mxu0 0.0
    %4615 = vmatpush1.msra.mxu0 0.0
    %4616 = vmatprep.subr.mxu0 0.0
    %4617 = vmatpush1.msra.mxu0 0.0
    %4618 = vmatprep.subr.mxu0 0.0
    %4619 = vmatpush1.msra.mxu0 0.0
    %4620 = vmatprep.subr.mxu0 0.0
    %4621 = vmatpush1.msra.mxu0 0.0
    %4622 = vmatprep.subr.mxu0 0.0
    %4623 = vmatpush1.msra.mxu0 0.0
    %4624 = vmatprep.subr.mxu0 0.0
    %4625 = vmatpush1.msra.mxu0 0.0
    %4626 = vmatprep.subr.mxu0 0.0
    %4627 = vmatpush1.msra.mxu0 0.0
    %4628 = vmatprep.subr.mxu0 0.0
    %4629 = vmatpush1.msra.mxu0 0.0
    %4630 = vmatprep.subr.mxu0 0.0
    %4631 = vmatpush1.msra.mxu0 0.0
    %4632 = vmatprep.subr.mxu0 0.0
    %4633 = vmatpush1.msra.mxu0 0.0
    %4634 = vmatprep.subr.mxu0 0.0
    %4635 = vmatpush1.msra.mxu0 0.0
    %4636 = vmatprep.subr.mxu0 0.0
    %4637 = vmatpush1.msra.mxu0 0.0
    %4638 = vmatprep.subr.mxu0 0.0
    %4639 = vmatpush1.msra.mxu0 0.0
    %4640 = vmatprep.mubr.f32.mxu0 0.0
    %4641 = vmatmul.mubr.f32.gmra.mrb[0].mxu0 %v3802
    %v4642 = vpop.f32.mrb[0].mxu0
    %v4643 = vadd.f32 0.0, %v4642
    %v4644 = vpop.f32.mrb[0].mxu0
    %4645 = vdwg.mxu0
    %v4646 = vadd.f32 %v450, %v4643
    %v4647 = vxor.u32 %v4421, 2147483648
    %v4648 = vmul.f32 %v4647, 1.442695
    %v4649 = vpow.pop %v4648
    %v4650 = vadd.f32 %v4649, 1.0
    %v4651 = vrcp.pop %v4650
    %v4652 = vmul.f32 1.0, %v4651
    %v4653 = vxor.u32 %v4496, 2147483648
    %v4654 = vmul.f32 %v4653, 1.442695
    %v4655 = vpow.pop %v4654
    %v4656 = vadd.f32 %v4655, 1.0
    %v4657 = vrcp.pop %v4656
    %v4658 = vmul.f32 1.0, %v4657
    %v4659 = vtanh.pop %v4571
    %v4660 = vxor.u32 %v4646, 2147483648
    %v4661 = vmul.f32 %v4660, 1.442695
    %v4662 = vpow.pop %v4661
    %v4663 = vadd.f32 %v4662, 1.0
    %v4664 = vrcp.pop %v4663
    %v4665 = vmul.f32 1.0, %v4664
    %v4667 = vrot.slane %v3716, 6
    %v4669 = vmul.f32 %v4658, %v4667
    %v4670 = vmul.f32 %v4652, %v4659
    %v4671 = vadd.f32 %v4669, %v4670
    %v4672 = vtanh.pop %v4671
    %v4673 = vmul.f32 %v4665, %v4672
    %v4674 = vld [vmem:[#allocation5] sm:$0xff]
    %v4675 = vld [vmem:[#allocation5 + $0x8] sm:$0xff]
    %v4676 = vld [vmem:[#allocation5 + $0x10] sm:$0xff]
    %v4677 = vld [vmem:[#allocation5 + $0x18] sm:$0xff]
    %v4678 = vld [vmem:[#allocation7] sm:$0xff]
    %v4679 = vld [vmem:[#allocation7 + $0x8] sm:$0xff]
    %v4680 = vld [vmem:[#allocation7 + $0x10] sm:$0xff]
    %v4681 = vld [vmem:[#allocation7 + $0x18] sm:$0xff]
    %v4683 = vsel %vm488, %v4345, 0
    %4685 = vmatprep.subr.mxu0 0.0
    %4686 = vmatpush1.msra.mxu0 %v4678
    %4687 = vmatprep.subr.mxu0 0.0
    %4688 = vmatpush1.msra.mxu0 %v4679
    %4689 = vmatprep.subr.mxu0 0.0
    %4690 = vmatpush1.msra.mxu0 %v4680
    %4691 = vmatprep.subr.mxu0 0.0
    %4692 = vmatpush1.msra.mxu0 %v4681
    %4693 = vmatprep.subr.mxu0 0.0
    %4694 = vmatpush1.msra.mxu0 0.0
    %4695 = vmatprep.subr.mxu0 0.0
    %4696 = vmatpush1.msra.mxu0 0.0
    %4697 = vmatprep.subr.mxu0 0.0
    %4698 = vmatpush1.msra.mxu0 0.0
    %4699 = vmatprep.subr.mxu0 0.0
    %4700 = vmatpush1.msra.mxu0 0.0
    %4701 = vmatprep.subr.mxu0 0.0
    %4702 = vmatpush1.msra.mxu0 0.0
    %4703 = vmatprep.subr.mxu0 0.0
    %4704 = vmatpush1.msra.mxu0 0.0
    %4705 = vmatprep.subr.mxu0 0.0
    %4706 = vmatpush1.msra.mxu0 0.0
    %4707 = vmatprep.subr.mxu0 0.0
    %4708 = vmatpush1.msra.mxu0 0.0
    %4709 = vmatprep.subr.mxu0 0.0
    %4710 = vmatpush1.msra.mxu0 0.0
    %4711 = vmatprep.subr.mxu0 0.0
    %4712 = vmatpush1.msra.mxu0 0.0
    %4713 = vmatprep.subr.mxu0 0.0
    %4714 = vmatpush1.msra.mxu0 0.0
    %4715 = vmatprep.subr.mxu0 0.0
    %4716 = vmatpush1.msra.mxu0 0.0
    %4717 = vmatprep.subr.mxu0 0.0
    %4718 = vmatpush1.msra.mxu0 0.0
    %4719 = vmatprep.subr.mxu0 0.0
    %4720 = vmatpush1.msra.mxu0 0.0
    %4721 = vmatprep.subr.mxu0 0.0
    %4722 = vmatpush1.msra.mxu0 0.0
    %4723 = vmatprep.subr.mxu0 0.0
    %4724 = vmatpush1.msra.mxu0 0.0
    %4725 = vmatprep.subr.mxu0 0.0
    %4726 = vmatpush1.msra.mxu0 0.0
    %4727 = vmatprep.subr.mxu0 0.0
    %4728 = vmatpush1.msra.mxu0 0.0
    %4729 = vmatprep.subr.mxu0 0.0
    %4730 = vmatpush1.msra.mxu0 0.0
    %4731 = vmatprep.subr.mxu0 0.0
    %4732 = vmatpush1.msra.mxu0 0.0
    %4733 = vmatprep.subr.mxu0 0.0
    %4734 = vmatpush1.msra.mxu0 0.0
    %4735 = vmatprep.subr.mxu0 0.0
    %4736 = vmatpush1.msra.mxu0 0.0
    %4737 = vmatprep.subr.mxu0 0.0
    %4738 = vmatpush1.msra.mxu0 0.0
    %4739 = vmatprep.subr.mxu0 0.0
    %4740 = vmatpush1.msra.mxu0 0.0
    %4741 = vmatprep.subr.mxu0 0.0
    %4742 = vmatpush1.msra.mxu0 0.0
    %4743 = vmatprep.subr.mxu0 0.0
    %4744 = vmatpush1.msra.mxu0 0.0
    %4745 = vmatprep.subr.mxu0 0.0
    %4746 = vmatpush1.msra.mxu0 0.0
    %4747 = vmatprep.subr.mxu0 0.0
    %4748 = vmatpush1.msra.mxu0 0.0
    %4749 = vmatprep.mubr.f32.mxu0 0.0
    %4750 = vmatmul.mubr.f32.gmra.mrb[0].mxu0 %v4683
    %v4751 = vpop.f32.mrb[0].mxu0
    %v4752 = vadd.f32 0.0, %v4751
    %v4753 = vpop.f32.mrb[0].mxu0
    %4754 = vdwg.mxu0
    %v4756 = vsel %vm488, %v4673, 0
    %4758 = vmatprep.subr.mxu0 0.0
    %4759 = vmatpush1.msra.mxu0 %v4674
    %4760 = vmatprep.subr.mxu0 0.0
    %4761 = vmatpush1.msra.mxu0 %v4675
    %4762 = vmatprep.subr.mxu0 0.0
    %4763 = vmatpush1.msra.mxu0 %v4676
    %4764 = vmatprep.subr.mxu0 0.0
    %4765 = vmatpush1.msra.mxu0 %v4677
    %4766 = vmatprep.subr.mxu0 0.0
    %4767 = vmatpush1.msra.mxu0 0.0
    %4768 = vmatprep.subr.mxu0 0.0
    %4769 = vmatpush1.msra.mxu0 0.0
    %4770 = vmatprep.subr.mxu0 0.0
    %4771 = vmatpush1.msra.mxu0 0.0
    %4772 = vmatprep.subr.mxu0 0.0
    %4773 = vmatpush1.msra.mxu0 0.0
    %4774 = vmatprep.subr.mxu0 0.0
    %4775 = vmatpush1.msra.mxu0 0.0
    %4776 = vmatprep.subr.mxu0 0.0
    %4777 = vmatpush1.msra.mxu0 0.0
    %4778 = vmatprep.subr.mxu0 0.0
    %4779 = vmatpush1.msra.mxu0 0.0
    %4780 = vmatprep.subr.mxu0 0.0
    %4781 = vmatpush1.msra.mxu0 0.0
    %4782 = vmatprep.subr.mxu0 0.0
    %4783 = vmatpush1.msra.mxu0 0.0
    %4784 = vmatprep.subr.mxu0 0.0
    %4785 = vmatpush1.msra.mxu0 0.0
    %4786 = vmatprep.subr.mxu0 0.0
    %4787 = vmatpush1.msra.mxu0 0.0
    %4788 = vmatprep.subr.mxu0 0.0
    %4789 = vmatpush1.msra.mxu0 0.0
    %4790 = vmatprep.subr.mxu0 0.0
    %4791 = vmatpush1.msra.mxu0 0.0
    %4792 = vmatprep.subr.mxu0 0.0
    %4793 = vmatpush1.msra.mxu0 0.0
    %4794 = vmatprep.subr.mxu0 0.0
    %4795 = vmatpush1.msra.mxu0 0.0
    %4796 = vmatprep.subr.mxu0 0.0
    %4797 = vmatpush1.msra.mxu0 0.0
    %4798 = vmatprep.subr.mxu0 0.0
    %4799 = vmatpush1.msra.mxu0 0.0
    %4800 = vmatprep.subr.mxu0 0.0
    %4801 = vmatpush1.msra.mxu0 0.0
    %4802 = vmatprep.subr.mxu0 0.0
    %4803 = vmatpush1.msra.mxu0 0.0
    %4804 = vmatprep.subr.mxu0 0.0
    %4805 = vmatpush1.msra.mxu0 0.0
    %4806 = vmatprep.subr.mxu0 0.0
    %4807 = vmatpush1.msra.mxu0 0.0
    %4808 = vmatprep.subr.mxu0 0.0
    %4809 = vmatpush1.msra.mxu0 0.0
    %4810 = vmatprep.subr.mxu0 0.0
    %4811 = vmatpush1.msra.mxu0 0.0
    %4812 = vmatprep.subr.mxu0 0.0
    %4813 = vmatpush1.msra.mxu0 0.0
    %4814 = vmatprep.subr.mxu0 0.0
    %4815 = vmatpush1.msra.mxu0 0.0
    %4816 = vmatprep.subr.mxu0 0.0
    %4817 = vmatpush1.msra.mxu0 0.0
    %4818 = vmatprep.subr.mxu0 0.0
    %4819 = vmatpush1.msra.mxu0 0.0
    %4820 = vmatprep.subr.mxu0 0.0
    %4821 = vmatpush1.msra.mxu0 0.0
    %4822 = vmatprep.mubr.f32.mxu0 0.0
    %4823 = vmatmul.mubr.f32.gmra.mrb[0].mxu0 %v4756
    %v4824 = vpop.f32.mrb[0].mxu0
    %v4825 = vadd.f32 %v4752, %v4824
    %v4826 = vpop.f32.mrb[0].mxu0
    %4827 = vdwg.mxu0
    %v4828 = vadd.f32 %v4825, %v458
    %v4829 = vld [vmem:[%s967] sm:$0xff]
    %v4830 = vld [vmem:[%s967 + $0x8] sm:$0xff]
    %v4831 = vld [vmem:[%s967 + $0x10] sm:$0xff]
    %v4832 = vld [vmem:[%s967 + $0x18] sm:$0xff]
    %v4833 = vld [vmem:[%s972] sm:$0xff]
    %v4834 = vld [vmem:[%s972 + $0x8] sm:$0xff]
    %v4835 = vld [vmem:[%s972 + $0x10] sm:$0xff]
    %v4836 = vld [vmem:[%s972 + $0x18] sm:$0xff]
    %4837 = vmatprep.subr.mxu0 0.0
    %4838 = vmatpush1.msra.mxu0 %v4833
    %4839 = vmatprep.subr.mxu0 0.0
    %4840 = vmatpush1.msra.mxu0 %v4834
    %4841 = vmatprep.subr.mxu0 0.0
    %4842 = vmatpush1.msra.mxu0 %v4835
    %4843 = vmatprep.subr.mxu0 0.0
    %4844 = vmatpush1.msra.mxu0 %v4836
    %4845 = vmatprep.subr.mxu0 0.0
    %4846 = vmatpush1.msra.mxu0 0.0
    %4847 = vmatprep.subr.mxu0 0.0
    %4848 = vmatpush1.msra.mxu0 0.0
    %4849 = vmatprep.subr.mxu0 0.0
    %4850 = vmatpush1.msra.mxu0 0.0
    %4851 = vmatprep.subr.mxu0 0.0
    %4852 = vmatpush1.msra.mxu0 0.0
    %4853 = vmatprep.subr.mxu0 0.0
    %4854 = vmatpush1.msra.mxu0 0.0
    %4855 = vmatprep.subr.mxu0 0.0
    %4856 = vmatpush1.msra.mxu0 0.0
    %4857 = vmatprep.subr.mxu0 0.0
    %4858 = vmatpush1.msra.mxu0 0.0
    %4859 = vmatprep.subr.mxu0 0.0
    %4860 = vmatpush1.msra.mxu0 0.0
    %4861 = vmatprep.subr.mxu0 0.0
    %4862 = vmatpush1.msra.mxu0 0.0
    %4863 = vmatprep.subr.mxu0 0.0
    %4864 = vmatpush1.msra.mxu0 0.0
    %4865 = vmatprep.subr.mxu0 0.0
    %4866 = vmatpush1.msra.mxu0 0.0
    %4867 = vmatprep.subr.mxu0 0.0
    %4868 = vmatpush1.msra.mxu0 0.0
    %4869 = vmatprep.subr.mxu0 0.0
    %4870 = vmatpush1.msra.mxu0 0.0
    %4871 = vmatprep.subr.mxu0 0.0
    %4872 = vmatpush1.msra.mxu0 0.0
    %4873 = vmatprep.subr.mxu0 0.0
    %4874 = vmatpush1.msra.mxu0 0.0
    %4875 = vmatprep.subr.mxu0 0.0
    %4876 = vmatpush1.msra.mxu0 0.0
    %4877 = vmatprep.subr.mxu0 0.0
    %4878 = vmatpush1.msra.mxu0 0.0
    %4879 = vmatprep.subr.mxu0 0.0
    %4880 = vmatpush1.msra.mxu0 0.0
    %4881 = vmatprep.subr.mxu0 0.0
    %4882 = vmatpush1.msra.mxu0 0.0
    %4883 = vmatprep.subr.mxu0 0.0
    %4884 = vmatpush1.msra.mxu0 0.0
    %4885 = vmatprep.subr.mxu0 0.0
    %4886 = vmatpush1.msra.mxu0 0.0
    %4887 = vmatprep.subr.mxu0 0.0
    %4888 = vmatpush1.msra.mxu0 0.0
    %4889 = vmatprep.subr.mxu0 0.0
    %4890 = vmatpush1.msra.mxu0 0.0
    %4891 = vmatprep.subr.mxu0 0.0
    %4892 = vmatpush1.msra.mxu0 0.0
    %4893 = vmatprep.subr.mxu0 0.0
    %4894 = vmatpush1.msra.mxu0 0.0
    %4895 = vmatprep.subr.mxu0 0.0
    %4896 = vmatpush1.msra.mxu0 0.0
    %4897 = vmatprep.subr.mxu0 0.0
    %4898 = vmatpush1.msra.mxu0 0.0
    %4899 = vmatprep.subr.mxu0 0.0
    %4900 = vmatpush1.msra.mxu0 0.0
    %4901 = vmatprep.mubr.f32.mxu0 0.0
    %4902 = vmatmul.mubr.f32.gmra.mrb[0].mxu0 %v4683
    %v4903 = vpop.f32.mrb[0].mxu0
    %v4904 = vadd.f32 0.0, %v4903
    %v4905 = vpop.f32.mrb[0].mxu0
    %4906 = vdwg.mxu0
    %4907 = vmatprep.subr.mxu0 0.0
    %4908 = vmatpush1.msra.mxu0 %v4829
    %4909 = vmatprep.subr.mxu0 0.0
    %4910 = vmatpush1.msra.mxu0 %v4830
    %4911 = vmatprep.subr.mxu0 0.0
    %4912 = vmatpush1.msra.mxu0 %v4831
    %4913 = vmatprep.subr.mxu0 0.0
    %4914 = vmatpush1.msra.mxu0 %v4832
    %4915 = vmatprep.subr.mxu0 0.0
    %4916 = vmatpush1.msra.mxu0 0.0
    %4917 = vmatprep.subr.mxu0 0.0
    %4918 = vmatpush1.msra.mxu0 0.0
    %4919 = vmatprep.subr.mxu0 0.0
    %4920 = vmatpush1.msra.mxu0 0.0
    %4921 = vmatprep.subr.mxu0 0.0
    %4922 = vmatpush1.msra.mxu0 0.0
    %4923 = vmatprep.subr.mxu0 0.0
    %4924 = vmatpush1.msra.mxu0 0.0
    %4925 = vmatprep.subr.mxu0 0.0
    %4926 = vmatpush1.msra.mxu0 0.0
    %4927 = vmatprep.subr.mxu0 0.0
    %4928 = vmatpush1.msra.mxu0 0.0
    %4929 = vmatprep.subr.mxu0 0.0
    %4930 = vmatpush1.msra.mxu0 0.0
    %4931 = vmatprep.subr.mxu0 0.0
    %4932 = vmatpush1.msra.mxu0 0.0
    %4933 = vmatprep.subr.mxu0 0.0
    %4934 = vmatpush1.msra.mxu0 0.0
    %4935 = vmatprep.subr.mxu0 0.0
    %4936 = vmatpush1.msra.mxu0 0.0
    %4937 = vmatprep.subr.mxu0 0.0
    %4938 = vmatpush1.msra.mxu0 0.0
    %4939 = vmatprep.subr.mxu0 0.0
    %4940 = vmatpush1.msra.mxu0 0.0
    %4941 = vmatprep.subr.mxu0 0.0
    %4942 = vmatpush1.msra.mxu0 0.0
    %4943 = vmatprep.subr.mxu0 0.0
    %4944 = vmatpush1.msra.mxu0 0.0
    %4945 = vmatprep.subr.mxu0 0.0
    %4946 = vmatpush1.msra.mxu0 0.0
    %4947 = vmatprep.subr.mxu0 0.0
    %4948 = vmatpush1.msra.mxu0 0.0
    %4949 = vmatprep.subr.mxu0 0.0
    %4950 = vmatpush1.msra.mxu0 0.0
    %4951 = vmatprep.subr.mxu0 0.0
    %4952 = vmatpush1.msra.mxu0 0.0
    %4953 = vmatprep.subr.mxu0 0.0
    %4954 = vmatpush1.msra.mxu0 0.0
    %4955 = vmatprep.subr.mxu0 0.0
    %4956 = vmatpush1.msra.mxu0 0.0
    %4957 = vmatprep.subr.mxu0 0.0
    %4958 = vmatpush1.msra.mxu0 0.0
    %4959 = vmatprep.subr.mxu0 0.0
    %4960 = vmatpush1.msra.mxu0 0.0
    %4961 = vmatprep.subr.mxu0 0.0
    %4962 = vmatpush1.msra.mxu0 0.0
    %4963 = vmatprep.subr.mxu0 0.0
    %4964 = vmatpush1.msra.mxu0 0.0
    %4965 = vmatprep.subr.mxu0 0.0
    %4966 = vmatpush1.msra.mxu0 0.0
    %4967 = vmatprep.subr.mxu0 0.0
    %4968 = vmatpush1.msra.mxu0 0.0
    %4969 = vmatprep.subr.mxu0 0.0
    %4970 = vmatpush1.msra.mxu0 0.0
    %4971 = vmatprep.mubr.f32.mxu0 0.0
    %4972 = vmatmul.mubr.f32.gmra.mrb[0].mxu0 %v4756
    %v4973 = vpop.f32.mrb[0].mxu0
    %v4974 = vadd.f32 %v4904, %v4973
    %v4975 = vpop.f32.mrb[0].mxu0
    %4976 = vdwg.mxu0
    %v4977 = vadd.f32 %v4974, %v466
    %v4978 = vld [vmem:[%s1118] sm:$0xff]
    %v4979 = vld [vmem:[%s1118 + $0x8] sm:$0xff]
    %v4980 = vld [vmem:[%s1118 + $0x10] sm:$0xff]
    %v4981 = vld [vmem:[%s1118 + $0x18] sm:$0xff]
    %v4982 = vld [vmem:[%s1123] sm:$0xff]
    %v4983 = vld [vmem:[%s1123 + $0x8] sm:$0xff]
    %v4984 = vld [vmem:[%s1123 + $0x10] sm:$0xff]
    %v4985 = vld [vmem:[%s1123 + $0x18] sm:$0xff]
    %4986 = vmatprep.subr.mxu0 0.0
    %4987 = vmatpush1.msra.mxu0 %v4982
    %4988 = vmatprep.subr.mxu0 0.0
    %4989 = vmatpush1.msra.mxu0 %v4983
    %4990 = vmatprep.subr.mxu0 0.0
    %4991 = vmatpush1.msra.mxu0 %v4984
    %4992 = vmatprep.subr.mxu0 0.0
    %4993 = vmatpush1.msra.mxu0 %v4985
    %4994 = vmatprep.subr.mxu0 0.0
    %4995 = vmatpush1.msra.mxu0 0.0
    %4996 = vmatprep.subr.mxu0 0.0
    %4997 = vmatpush1.msra.mxu0 0.0
    %4998 = vmatprep.subr.mxu0 0.0
    %4999 = vmatpush1.msra.mxu0 0.0
    %5000 = vmatprep.subr.mxu0 0.0
    %5001 = vmatpush1.msra.mxu0 0.0
    %5002 = vmatprep.subr.mxu0 0.0
    %5003 = vmatpush1.msra.mxu0 0.0
    %5004 = vmatprep.subr.mxu0 0.0
    %5005 = vmatpush1.msra.mxu0 0.0
    %5006 = vmatprep.subr.mxu0 0.0
    %5007 = vmatpush1.msra.mxu0 0.0
    %5008 = vmatprep.subr.mxu0 0.0
    %5009 = vmatpush1.msra.mxu0 0.0
    %5010 = vmatprep.subr.mxu0 0.0
    %5011 = vmatpush1.msra.mxu0 0.0
    %5012 = vmatprep.subr.mxu0 0.0
    %5013 = vmatpush1.msra.mxu0 0.0
    %5014 = vmatprep.subr.mxu0 0.0
    %5015 = vmatpush1.msra.mxu0 0.0
    %5016 = vmatprep.subr.mxu0 0.0
    %5017 = vmatpush1.msra.mxu0 0.0
    %5018 = vmatprep.subr.mxu0 0.0
    %5019 = vmatpush1.msra.mxu0 0.0
    %5020 = vmatprep.subr.mxu0 0.0
    %5021 = vmatpush1.msra.mxu0 0.0
    %5022 = vmatprep.subr.mxu0 0.0
    %5023 = vmatpush1.msra.mxu0 0.0
    %5024 = vmatprep.subr.mxu0 0.0
    %5025 = vmatpush1.msra.mxu0 0.0
    %5026 = vmatprep.subr.mxu0 0.0
    %5027 = vmatpush1.msra.mxu0 0.0
    %5028 = vmatprep.subr.mxu0 0.0
    %5029 = vmatpush1.msra.mxu0 0.0
    %5030 = vmatprep.subr.mxu0 0.0
    %5031 = vmatpush1.msra.mxu0 0.0
    %5032 = vmatprep.subr.mxu0 0.0
    %5033 = vmatpush1.msra.mxu0 0.0
    %5034 = vmatprep.subr.mxu0 0.0
    %5035 = vmatpush1.msra.mxu0 0.0
    %5036 = vmatprep.subr.mxu0 0.0
    %5037 = vmatpush1.msra.mxu0 0.0
    %5038 = vmatprep.subr.mxu0 0.0
    %5039 = vmatpush1.msra.mxu0 0.0
    %5040 = vmatprep.subr.mxu0 0.0
    %5041 = vmatpush1.msra.mxu0 0.0
    %5042 = vmatprep.subr.mxu0 0.0
    %5043 = vmatpush1.msra.mxu0 0.0
    %5044 = vmatprep.subr.mxu0 0.0
    %5045 = vmatpush1.msra.mxu0 0.0
    %5046 = vmatprep.subr.mxu0 0.0
    %5047 = vmatpush1.msra.mxu0 0.0
    %5048 = vmatprep.subr.mxu0 0.0
    %5049 = vmatpush1.msra.mxu0 0.0
    %5050 = vmatprep.mubr.f32.mxu0 0.0
    %5051 = vmatmul.mubr.f32.gmra.mrb[0].mxu0 %v4683
    %v5052 = vpop.f32.mrb[0].mxu0
    %v5053 = vadd.f32 0.0, %v5052
    %v5054 = vpop.f32.mrb[0].mxu0
    %5055 = vdwg.mxu0
    %5056 = vmatprep.subr.mxu0 0.0
    %5057 = vmatpush1.msra.mxu0 %v4978
    %5058 = vmatprep.subr.mxu0 0.0
    %5059 = vmatpush1.msra.mxu0 %v4979
    %5060 = vmatprep.subr.mxu0 0.0
    %5061 = vmatpush1.msra.mxu0 %v4980
    %5062 = vmatprep.subr.mxu0 0.0
    %5063 = vmatpush1.msra.mxu0 %v4981
    %5064 = vmatprep.subr.mxu0 0.0
    %5065 = vmatpush1.msra.mxu0 0.0
    %5066 = vmatprep.subr.mxu0 0.0
    %5067 = vmatpush1.msra.mxu0 0.0
    %5068 = vmatprep.subr.mxu0 0.0
    %5069 = vmatpush1.msra.mxu0 0.0
    %5070 = vmatprep.subr.mxu0 0.0
    %5071 = vmatpush1.msra.mxu0 0.0
    %5072 = vmatprep.subr.mxu0 0.0
    %5073 = vmatpush1.msra.mxu0 0.0
    %5074 = vmatprep.subr.mxu0 0.0
    %5075 = vmatpush1.msra.mxu0 0.0
    %5076 = vmatprep.subr.mxu0 0.0
    %5077 = vmatpush1.msra.mxu0 0.0
    %5078 = vmatprep.subr.mxu0 0.0
    %5079 = vmatpush1.msra.mxu0 0.0
    %5080 = vmatprep.subr.mxu0 0.0
    %5081 = vmatpush1.msra.mxu0 0.0
    %5082 = vmatprep.subr.mxu0 0.0
    %5083 = vmatpush1.msra.mxu0 0.0
    %5084 = vmatprep.subr.mxu0 0.0
    %5085 = vmatpush1.msra.mxu0 0.0
    %5086 = vmatprep.subr.mxu0 0.0
    %5087 = vmatpush1.msra.mxu0 0.0
    %5088 = vmatprep.subr.mxu0 0.0
    %5089 = vmatpush1.msra.mxu0 0.0
    %5090 = vmatprep.subr.mxu0 0.0
    %5091 = vmatpush1.msra.mxu0 0.0
    %5092 = vmatprep.subr.mxu0 0.0
    %5093 = vmatpush1.msra.mxu0 0.0
    %5094 = vmatprep.subr.mxu0 0.0
    %5095 = vmatpush1.msra.mxu0 0.0
    %5096 = vmatprep.subr.mxu0 0.0
    %5097 = vmatpush1.msra.mxu0 0.0
    %5098 = vmatprep.subr.mxu0 0.0
    %5099 = vmatpush1.msra.mxu0 0.0
    %5100 = vmatprep.subr.mxu0 0.0
    %5101 = vmatpush1.msra.mxu0 0.0
    %5102 = vmatprep.subr.mxu0 0.0
    %5103 = vmatpush1.msra.mxu0 0.0
    %5104 = vmatprep.subr.mxu0 0.0
    %5105 = vmatpush1.msra.mxu0 0.0
    %5106 = vmatprep.subr.mxu0 0.0
    %5107 = vmatpush1.msra.mxu0 0.0
    %5108 = vmatprep.subr.mxu0 0.0
    %5109 = vmatpush1.msra.mxu0 0.0
    %5110 = vmatprep.subr.mxu0 0.0
    %5111 = vmatpush1.msra.mxu0 0.0
    %5112 = vmatprep.subr.mxu0 0.0
    %5113 = vmatpush1.msra.mxu0 0.0
    %5114 = vmatprep.subr.mxu0 0.0
    %5115 = vmatpush1.msra.mxu0 0.0
    %5116 = vmatprep.subr.mxu0 0.0
    %5117 = vmatpush1.msra.mxu0 0.0
    %5118 = vmatprep.subr.mxu0 0.0
    %5119 = vmatpush1.msra.mxu0 0.0
    %5120 = vmatprep.mubr.f32.mxu0 0.0
    %5121 = vmatmul.mubr.f32.gmra.mrb[0].mxu0 %v4756
    %v5122 = vpop.f32.mrb[0].mxu0
    %v5123 = vadd.f32 %v5053, %v5122
    %v5124 = vpop.f32.mrb[0].mxu0
    %5125 = vdwg.mxu0
    %v5126 = vadd.f32 %v5123, %v474
    %v5127 = vld [vmem:[%s1269] sm:$0xff]
    %v5128 = vld [vmem:[%s1269 + $0x8] sm:$0xff]
    %v5129 = vld [vmem:[%s1269 + $0x10] sm:$0xff]
    %v5130 = vld [vmem:[%s1269 + $0x18] sm:$0xff]
    %v5131 = vld [vmem:[%s1274] sm:$0xff]
    %v5132 = vld [vmem:[%s1274 + $0x8] sm:$0xff]
    %v5133 = vld [vmem:[%s1274 + $0x10] sm:$0xff]
    %v5134 = vld [vmem:[%s1274 + $0x18] sm:$0xff]
    %5135 = vmatprep.subr.mxu0 0.0
    %5136 = vmatpush1.msra.mxu0 %v5131
    %5137 = vmatprep.subr.mxu0 0.0
    %5138 = vmatpush1.msra.mxu0 %v5132
    %5139 = vmatprep.subr.mxu0 0.0
    %5140 = vmatpush1.msra.mxu0 %v5133
    %5141 = vmatprep.subr.mxu0 0.0
    %5142 = vmatpush1.msra.mxu0 %v5134
    %5143 = vmatprep.subr.mxu0 0.0
    %5144 = vmatpush1.msra.mxu0 0.0
    %5145 = vmatprep.subr.mxu0 0.0
    %5146 = vmatpush1.msra.mxu0 0.0
    %5147 = vmatprep.subr.mxu0 0.0
    %5148 = vmatpush1.msra.mxu0 0.0
    %5149 = vmatprep.subr.mxu0 0.0
    %5150 = vmatpush1.msra.mxu0 0.0
    %5151 = vmatprep.subr.mxu0 0.0
    %5152 = vmatpush1.msra.mxu0 0.0
    %5153 = vmatprep.subr.mxu0 0.0
    %5154 = vmatpush1.msra.mxu0 0.0
    %5155 = vmatprep.subr.mxu0 0.0
    %5156 = vmatpush1.msra.mxu0 0.0
    %5157 = vmatprep.subr.mxu0 0.0
    %5158 = vmatpush1.msra.mxu0 0.0
    %5159 = vmatprep.subr.mxu0 0.0
    %5160 = vmatpush1.msra.mxu0 0.0
    %5161 = vmatprep.subr.mxu0 0.0
    %5162 = vmatpush1.msra.mxu0 0.0
    %5163 = vmatprep.subr.mxu0 0.0
    %5164 = vmatpush1.msra.mxu0 0.0
    %5165 = vmatprep.subr.mxu0 0.0
    %5166 = vmatpush1.msra.mxu0 0.0
    %5167 = vmatprep.subr.mxu0 0.0
    %5168 = vmatpush1.msra.mxu0 0.0
    %5169 = vmatprep.subr.mxu0 0.0
    %5170 = vmatpush1.msra.mxu0 0.0
    %5171 = vmatprep.subr.mxu0 0.0
    %5172 = vmatpush1.msra.mxu0 0.0
    %5173 = vmatprep.subr.mxu0 0.0
    %5174 = vmatpush1.msra.mxu0 0.0
    %5175 = vmatprep.subr.mxu0 0.0
    %5176 = vmatpush1.msra.mxu0 0.0
    %5177 = vmatprep.subr.mxu0 0.0
    %5178 = vmatpush1.msra.mxu0 0.0
    %5179 = vmatprep.subr.mxu0 0.0
    %5180 = vmatpush1.msra.mxu0 0.0
    %5181 = vmatprep.subr.mxu0 0.0
    %5182 = vmatpush1.msra.mxu0 0.0
    %5183 = vmatprep.subr.mxu0 0.0
    %5184 = vmatpush1.msra.mxu0 0.0
    %5185 = vmatprep.subr.mxu0 0.0
    %5186 = vmatpush1.msra.mxu0 0.0
    %5187 = vmatprep.subr.mxu0 0.0
    %5188 = vmatpush1.msra.mxu0 0.0
    %5189 = vmatprep.subr.mxu0 0.0
    %5190 = vmatpush1.msra.mxu0 0.0
    %5191 = vmatprep.subr.mxu0 0.0
    %5192 = vmatpush1.msra.mxu0 0.0
    %5193 = vmatprep.subr.mxu0 0.0
    %5194 = vmatpush1.msra.mxu0 0.0
    %5195 = vmatprep.subr.mxu0 0.0
    %5196 = vmatpush1.msra.mxu0 0.0
    %5197 = vmatprep.subr.mxu0 0.0
    %5198 = vmatpush1.msra.mxu0 0.0
    %5199 = vmatprep.mubr.f32.mxu0 0.0
    %5200 = vmatmul.mubr.f32.gmra.mrb[0].mxu0 %v4683
    %v5201 = vpop.f32.mrb[0].mxu0
    %v5202 = vadd.f32 0.0, %v5201
    %v5203 = vpop.f32.mrb[0].mxu0
    %5204 = vdwg.mxu0
    %5205 = vmatprep.subr.mxu0 0.0
    %5206 = vmatpush1.msra.mxu0 %v5127
    %5207 = vmatprep.subr.mxu0 0.0
    %5208 = vmatpush1.msra.mxu0 %v5128
    %5209 = vmatprep.subr.mxu0 0.0
    %5210 = vmatpush1.msra.mxu0 %v5129
    %5211 = vmatprep.subr.mxu0 0.0
    %5212 = vmatpush1.msra.mxu0 %v5130
    %5213 = vmatprep.subr.mxu0 0.0
    %5214 = vmatpush1.msra.mxu0 0.0
    %5215 = vmatprep.subr.mxu0 0.0
    %5216 = vmatpush1.msra.mxu0 0.0
    %5217 = vmatprep.subr.mxu0 0.0
    %5218 = vmatpush1.msra.mxu0 0.0
    %5219 = vmatprep.subr.mxu0 0.0
    %5220 = vmatpush1.msra.mxu0 0.0
    %5221 = vmatprep.subr.mxu0 0.0
    %5222 = vmatpush1.msra.mxu0 0.0
    %5223 = vmatprep.subr.mxu0 0.0
    %5224 = vmatpush1.msra.mxu0 0.0
    %5225 = vmatprep.subr.mxu0 0.0
    %5226 = vmatpush1.msra.mxu0 0.0
    %5227 = vmatprep.subr.mxu0 0.0
    %5228 = vmatpush1.msra.mxu0 0.0
    %5229 = vmatprep.subr.mxu0 0.0
    %5230 = vmatpush1.msra.mxu0 0.0
    %5231 = vmatprep.subr.mxu0 0.0
    %5232 = vmatpush1.msra.mxu0 0.0
    %5233 = vmatprep.subr.mxu0 0.0
    %5234 = vmatpush1.msra.mxu0 0.0
    %5235 = vmatprep.subr.mxu0 0.0
    %5236 = vmatpush1.msra.mxu0 0.0
    %5237 = vmatprep.subr.mxu0 0.0
    %5238 = vmatpush1.msra.mxu0 0.0
    %5239 = vmatprep.subr.mxu0 0.0
    %5240 = vmatpush1.msra.mxu0 0.0
    %5241 = vmatprep.subr.mxu0 0.0
    %5242 = vmatpush1.msra.mxu0 0.0
    %5243 = vmatprep.subr.mxu0 0.0
    %5244 = vmatpush1.msra.mxu0 0.0
    %5245 = vmatprep.subr.mxu0 0.0
    %5246 = vmatpush1.msra.mxu0 0.0
    %5247 = vmatprep.subr.mxu0 0.0
    %5248 = vmatpush1.msra.mxu0 0.0
    %5249 = vmatprep.subr.mxu0 0.0
    %5250 = vmatpush1.msra.mxu0 0.0
    %5251 = vmatprep.subr.mxu0 0.0
    %5252 = vmatpush1.msra.mxu0 0.0
    %5253 = vmatprep.subr.mxu0 0.0
    %5254 = vmatpush1.msra.mxu0 0.0
    %5255 = vmatprep.subr.mxu0 0.0
    %5256 = vmatpush1.msra.mxu0 0.0
    %5257 = vmatprep.subr.mxu0 0.0
    %5258 = vmatpush1.msra.mxu0 0.0
    %5259 = vmatprep.subr.mxu0 0.0
    %5260 = vmatpush1.msra.mxu0 0.0
    %5261 = vmatprep.subr.mxu0 0.0
    %5262 = vmatpush1.msra.mxu0 0.0
    %5263 = vmatprep.subr.mxu0 0.0
    %5264 = vmatpush1.msra.mxu0 0.0
    %5265 = vmatprep.subr.mxu0 0.0
    %5266 = vmatpush1.msra.mxu0 0.0
    %5267 = vmatprep.subr.mxu0 0.0
    %5268 = vmatpush1.msra.mxu0 0.0
    %5269 = vmatprep.mubr.f32.mxu0 0.0
    %5270 = vmatmul.mubr.f32.gmra.mrb[0].mxu0 %v4756
    %v5271 = vpop.f32.mrb[0].mxu0
    %v5272 = vadd.f32 %v5202, %v5271
    %v5273 = vpop.f32.mrb[0].mxu0
    %5274 = vdwg.mxu0
    %v5275 = vadd.f32 %v5272, %v482
    %v5276 = vxor.u32 %v4828, 2147483648
    %v5277 = vmul.f32 %v5276, 1.442695
    %v5278 = vpow.pop %v5277
    %v5279 = vadd.f32 %v5278, 1.0
    %v5280 = vrcp.pop %v5279
    %v5281 = vmul.f32 1.0, %v5280
    %v5282 = vxor.u32 %v4977, 2147483648
    %v5283 = vmul.f32 %v5282, 1.442695
    %v5284 = vpow.pop %v5283
    %v5285 = vadd.f32 %v5284, 1.0
    %v5286 = vrcp.pop %v5285
    %v5287 = vmul.f32 1.0, %v5286
    %v5288 = vtanh.pop %v5126
    %v5289 = vxor.u32 %v5275, 2147483648
    %v5290 = vmul.f32 %v5289, 1.442695
    %v5291 = vpow.pop %v5290
    %v5292 = vadd.f32 %v5291, 1.0
    %v5293 = vrcp.pop %v5292
    %v5294 = vmul.f32 1.0, %v5293
    %v5295 = vmul.f32 %v5287, %v4343
    %v5296 = vmul.f32 %v5281, %v5288
    %v5297 = vadd.f32 %v5295, %v5296
    %v5298 = vtanh.pop %v5297
    %v5299 = vmul.f32 %v5294, %v5298
    %5300 = vst.msk [vmem:[#allocation2 + $0x8] sm:$0x3] %vm1444, %v5299
    %v5301 = vld [vmem:[#allocation3] sm:$0xff]
    %v5302 = vld [vmem:[#allocation3 + $0x8] sm:$0xff]
    %v5303 = vld [vmem:[#allocation3 + $0x10] sm:$0xff]
    %v5304 = vld [vmem:[#allocation3 + $0x18] sm:$0xff]
    %5305 = vmatprep.subr.mxu0 0.0
    %5306 = vmatpush1.msra.mxu0 %v5301
    %5307 = vmatprep.subr.mxu0 0.0
    %5308 = vmatpush1.msra.mxu0 %v5302
    %5309 = vmatprep.subr.mxu0 0.0
    %5310 = vmatpush1.msra.mxu0 %v5303
    %5311 = vmatprep.subr.mxu0 0.0
    %5312 = vmatpush1.msra.mxu0 %v5304
    %5313 = vmatprep.subr.mxu0 0.0
    %5314 = vmatpush1.msra.mxu0 0.0
    %5315 = vmatprep.subr.mxu0 0.0
    %5316 = vmatpush1.msra.mxu0 0.0
    %5317 = vmatprep.subr.mxu0 0.0
    %5318 = vmatpush1.msra.mxu0 0.0
    %5319 = vmatprep.subr.mxu0 0.0
    %5320 = vmatpush1.msra.mxu0 0.0
    %5321 = vmatprep.subr.mxu0 0.0
    %5322 = vmatpush1.msra.mxu0 0.0
    %5323 = vmatprep.subr.mxu0 0.0
    %5324 = vmatpush1.msra.mxu0 0.0
    %5325 = vmatprep.subr.mxu0 0.0
    %5326 = vmatpush1.msra.mxu0 0.0
    %5327 = vmatprep.subr.mxu0 0.0
    %5328 = vmatpush1.msra.mxu0 0.0
    %5329 = vmatprep.subr.mxu0 0.0
    %5330 = vmatpush1.msra.mxu0 0.0
    %5331 = vmatprep.subr.mxu0 0.0
    %5332 = vmatpush1.msra.mxu0 0.0
    %5333 = vmatprep.subr.mxu0 0.0
    %5334 = vmatpush1.msra.mxu0 0.0
    %5335 = vmatprep.subr.mxu0 0.0
    %5336 = vmatpush1.msra.mxu0 0.0
    %5337 = vmatprep.subr.mxu0 0.0
    %5338 = vmatpush1.msra.mxu0 0.0
    %5339 = vmatprep.subr.mxu0 0.0
    %5340 = vmatpush1.msra.mxu0 0.0
    %5341 = vmatprep.subr.mxu0 0.0
    %5342 = vmatpush1.msra.mxu0 0.0
    %5343 = vmatprep.subr.mxu0 0.0
    %5344 = vmatpush1.msra.mxu0 0.0
    %5345 = vmatprep.subr.mxu0 0.0
    %5346 = vmatpush1.msra.mxu0 0.0
    %5347 = vmatprep.subr.mxu0 0.0
    %5348 = vmatpush1.msra.mxu0 0.0
    %5349 = vmatprep.subr.mxu0 0.0
    %5350 = vmatpush1.msra.mxu0 0.0
    %5351 = vmatprep.subr.mxu0 0.0
    %5352 = vmatpush1.msra.mxu0 0.0
    %5353 = vmatprep.subr.mxu0 0.0
    %5354 = vmatpush1.msra.mxu0 0.0
    %5355 = vmatprep.subr.mxu0 0.0
    %5356 = vmatpush1.msra.mxu0 0.0
    %5357 = vmatprep.subr.mxu0 0.0
    %5358 = vmatpush1.msra.mxu0 0.0
    %5359 = vmatprep.subr.mxu0 0.0
    %5360 = vmatpush1.msra.mxu0 0.0
    %5361 = vmatprep.subr.mxu0 0.0
    %5362 = vmatpush1.msra.mxu0 0.0
    %5363 = vmatprep.subr.mxu0 0.0
    %5364 = vmatpush1.msra.mxu0 0.0
    %5365 = vmatprep.subr.mxu0 0.0
    %5366 = vmatpush1.msra.mxu0 0.0
    %5367 = vmatprep.subr.mxu0 0.0
    %5368 = vmatpush1.msra.mxu0 0.0
    %5369 = vmatprep.mubr.f32.mxu0 0.0
    %5370 = vmatmul.mubr.f32.gmra.mrb[0].mxu0 %v4756
    %v5371 = vpop.f32.mrb[0].mxu0
    %v5372 = vadd.f32 0.0, %v5371
    %v5373 = vpop.f32.mrb[0].mxu0
    %5374 = vdwg.mxu0
    %v5376 = vrot.slane %v5372, 6
    %v5378 = vadd.f32 %v195, %v5376
    %v5379 = vld [vmem:[%s563] sm:$0xff]
    %v5380 = vld [vmem:[%s563 + $0x8] sm:$0xff]
    %v5381 = vld [vmem:[%s563 + $0x10] sm:$0xff]
    %v5382 = vld [vmem:[%s563 + $0x18] sm:$0xff]
    %5383 = vmatprep.subr.mxu0 0.0
    %5384 = vmatpush1.msra.mxu0 %v5379
    %5385 = vmatprep.subr.mxu0 0.0
    %5386 = vmatpush1.msra.mxu0 %v5380
    %5387 = vmatprep.subr.mxu0 0.0
    %5388 = vmatpush1.msra.mxu0 %v5381
    %5389 = vmatprep.subr.mxu0 0.0
    %5390 = vmatpush1.msra.mxu0 %v5382
    %5391 = vmatprep.subr.mxu0 0.0
    %5392 = vmatpush1.msra.mxu0 0.0
    %5393 = vmatprep.subr.mxu0 0.0
    %5394 = vmatpush1.msra.mxu0 0.0
    %5395 = vmatprep.subr.mxu0 0.0
    %5396 = vmatpush1.msra.mxu0 0.0
    %5397 = vmatprep.subr.mxu0 0.0
    %5398 = vmatpush1.msra.mxu0 0.0
    %5399 = vmatprep.subr.mxu0 0.0
    %5400 = vmatpush1.msra.mxu0 0.0
    %5401 = vmatprep.subr.mxu0 0.0
    %5402 = vmatpush1.msra.mxu0 0.0
    %5403 = vmatprep.subr.mxu0 0.0
    %5404 = vmatpush1.msra.mxu0 0.0
    %5405 = vmatprep.subr.mxu0 0.0
    %5406 = vmatpush1.msra.mxu0 0.0
    %5407 = vmatprep.subr.mxu0 0.0
    %5408 = vmatpush1.msra.mxu0 0.0
    %5409 = vmatprep.subr.mxu0 0.0
    %5410 = vmatpush1.msra.mxu0 0.0
    %5411 = vmatprep.subr.mxu0 0.0
    %5412 = vmatpush1.msra.mxu0 0.0
    %5413 = vmatprep.subr.mxu0 0.0
    %5414 = vmatpush1.msra.mxu0 0.0
    %5415 = vmatprep.subr.mxu0 0.0
    %5416 = vmatpush1.msra.mxu0 0.0
    %5417 = vmatprep.subr.mxu0 0.0
    %5418 = vmatpush1.msra.mxu0 0.0
    %5419 = vmatprep.subr.mxu0 0.0
    %5420 = vmatpush1.msra.mxu0 0.0
    %5421 = vmatprep.subr.mxu0 0.0
    %5422 = vmatpush1.msra.mxu0 0.0
    %5423 = vmatprep.subr.mxu0 0.0
    %5424 = vmatpush1.msra.mxu0 0.0
    %5425 = vmatprep.subr.mxu0 0.0
    %5426 = vmatpush1.msra.mxu0 0.0
    %5427 = vmatprep.subr.mxu0 0.0
    %5428 = vmatpush1.msra.mxu0 0.0
    %5429 = vmatprep.subr.mxu0 0.0
    %5430 = vmatpush1.msra.mxu0 0.0
    %5431 = vmatprep.subr.mxu0 0.0
    %5432 = vmatpush1.msra.mxu0 0.0
    %5433 = vmatprep.subr.mxu0 0.0
    %5434 = vmatpush1.msra.mxu0 0.0
    %5435 = vmatprep.subr.mxu0 0.0
    %5436 = vmatpush1.msra.mxu0 0.0
    %5437 = vmatprep.subr.mxu0 0.0
    %5438 = vmatpush1.msra.mxu0 0.0
    %5439 = vmatprep.subr.mxu0 0.0
    %5440 = vmatpush1.msra.mxu0 0.0
    %5441 = vmatprep.subr.mxu0 0.0
    %5442 = vmatpush1.msra.mxu0 0.0
    %5443 = vmatprep.subr.mxu0 0.0
    %5444 = vmatpush1.msra.mxu0 0.0
    %5445 = vmatprep.subr.mxu0 0.0
    %5446 = vmatpush1.msra.mxu0 0.0
    %5447 = vmatprep.mubr.f32.mxu0 0.0
    %5448 = vmatmul.mubr.f32.gmra.mrb[0].mxu0 %v4756
    %v5449 = vpop.f32.mrb[0].mxu0
    %v5450 = vadd.f32 0.0, %v5449
    %v5451 = vpop.f32.mrb[0].mxu0
    %5452 = vdwg.mxu0
    %v5454 = vrot.slane %v5450, 6
    %v5456 = vadd.f32 %v280, %v5454
    %v5457 = vld [vmem:[%s639] sm:$0xff]
    %v5458 = vld [vmem:[%s639 + $0x8] sm:$0xff]
    %v5459 = vld [vmem:[%s639 + $0x10] sm:$0xff]
    %v5460 = vld [vmem:[%s639 + $0x18] sm:$0xff]
    %5461 = vmatprep.subr.mxu0 0.0
    %5462 = vmatpush1.msra.mxu0 %v5457
    %5463 = vmatprep.subr.mxu0 0.0
    %5464 = vmatpush1.msra.mxu0 %v5458
    %5465 = vmatprep.subr.mxu0 0.0
    %5466 = vmatpush1.msra.mxu0 %v5459
    %5467 = vmatprep.subr.mxu0 0.0
    %5468 = vmatpush1.msra.mxu0 %v5460
    %5469 = vmatprep.subr.mxu0 0.0
    %5470 = vmatpush1.msra.mxu0 0.0
    %5471 = vmatprep.subr.mxu0 0.0
    %5472 = vmatpush1.msra.mxu0 0.0
    %5473 = vmatprep.subr.mxu0 0.0
    %5474 = vmatpush1.msra.mxu0 0.0
    %5475 = vmatprep.subr.mxu0 0.0
    %5476 = vmatpush1.msra.mxu0 0.0
    %5477 = vmatprep.subr.mxu0 0.0
    %5478 = vmatpush1.msra.mxu0 0.0
    %5479 = vmatprep.subr.mxu0 0.0
    %5480 = vmatpush1.msra.mxu0 0.0
    %5481 = vmatprep.subr.mxu0 0.0
    %5482 = vmatpush1.msra.mxu0 0.0
    %5483 = vmatprep.subr.mxu0 0.0
    %5484 = vmatpush1.msra.mxu0 0.0
    %5485 = vmatprep.subr.mxu0 0.0
    %5486 = vmatpush1.msra.mxu0 0.0
    %5487 = vmatprep.subr.mxu0 0.0
    %5488 = vmatpush1.msra.mxu0 0.0
    %5489 = vmatprep.subr.mxu0 0.0
    %5490 = vmatpush1.msra.mxu0 0.0
    %5491 = vmatprep.subr.mxu0 0.0
    %5492 = vmatpush1.msra.mxu0 0.0
    %5493 = vmatprep.subr.mxu0 0.0
    %5494 = vmatpush1.msra.mxu0 0.0
    %5495 = vmatprep.subr.mxu0 0.0
    %5496 = vmatpush1.msra.mxu0 0.0
    %5497 = vmatprep.subr.mxu0 0.0
    %5498 = vmatpush1.msra.mxu0 0.0
    %5499 = vmatprep.subr.mxu0 0.0
    %5500 = vmatpush1.msra.mxu0 0.0
    %5501 = vmatprep.subr.mxu0 0.0
    %5502 = vmatpush1.msra.mxu0 0.0
    %5503 = vmatprep.subr.mxu0 0.0
    %5504 = vmatpush1.msra.mxu0 0.0
    %5505 = vmatprep.subr.mxu0 0.0
    %5506 = vmatpush1.msra.mxu0 0.0
    %5507 = vmatprep.subr.mxu0 0.0
    %5508 = vmatpush1.msra.mxu0 0.0
    %5509 = vmatprep.subr.mxu0 0.0
    %5510 = vmatpush1.msra.mxu0 0.0
    %5511 = vmatprep.subr.mxu0 0.0
    %5512 = vmatpush1.msra.mxu0 0.0
    %5513 = vmatprep.subr.mxu0 0.0
    %5514 = vmatpush1.msra.mxu0 0.0
    %5515 = vmatprep.subr.mxu0 0.0
    %5516 = vmatpush1.msra.mxu0 0.0
    %5517 = vmatprep.subr.mxu0 0.0
    %5518 = vmatpush1.msra.mxu0 0.0
    %5519 = vmatprep.subr.mxu0 0.0
    %5520 = vmatpush1.msra.mxu0 0.0
    %5521 = vmatprep.subr.mxu0 0.0
    %5522 = vmatpush1.msra.mxu0 0.0
    %5523 = vmatprep.subr.mxu0 0.0
    %5524 = vmatpush1.msra.mxu0 0.0
    %5525 = vmatprep.mubr.f32.mxu0 0.0
    %5526 = vmatmul.mubr.f32.gmra.mrb[0].mxu0 %v4756
    %v5527 = vpop.f32.mrb[0].mxu0
    %v5528 = vadd.f32 0.0, %v5527
    %v5529 = vpop.f32.mrb[0].mxu0
    %5530 = vdwg.mxu0
    %v5532 = vrot.slane %v5528, 6
    %v5534 = vadd.f32 %v365, %v5532
    %v5535 = vld [vmem:[%s715] sm:$0xff]
    %v5536 = vld [vmem:[%s715 + $0x8] sm:$0xff]
    %v5537 = vld [vmem:[%s715 + $0x10] sm:$0xff]
    %v5538 = vld [vmem:[%s715 + $0x18] sm:$0xff]
    %5539 = vmatprep.subr.mxu0 0.0
    %5540 = vmatpush1.msra.mxu0 %v5535
    %5541 = vmatprep.subr.mxu0 0.0
    %5542 = vmatpush1.msra.mxu0 %v5536
    %5543 = vmatprep.subr.mxu0 0.0
    %5544 = vmatpush1.msra.mxu0 %v5537
    %5545 = vmatprep.subr.mxu0 0.0
    %5546 = vmatpush1.msra.mxu0 %v5538
    %5547 = vmatprep.subr.mxu0 0.0
    %5548 = vmatpush1.msra.mxu0 0.0
    %5549 = vmatprep.subr.mxu0 0.0
    %5550 = vmatpush1.msra.mxu0 0.0
    %5551 = vmatprep.subr.mxu0 0.0
    %5552 = vmatpush1.msra.mxu0 0.0
    %5553 = vmatprep.subr.mxu0 0.0
    %5554 = vmatpush1.msra.mxu0 0.0
    %5555 = vmatprep.subr.mxu0 0.0
    %5556 = vmatpush1.msra.mxu0 0.0
    %5557 = vmatprep.subr.mxu0 0.0
    %5558 = vmatpush1.msra.mxu0 0.0
    %5559 = vmatprep.subr.mxu0 0.0
    %5560 = vmatpush1.msra.mxu0 0.0
    %5561 = vmatprep.subr.mxu0 0.0
    %5562 = vmatpush1.msra.mxu0 0.0
    %5563 = vmatprep.subr.mxu0 0.0
    %5564 = vmatpush1.msra.mxu0 0.0
    %5565 = vmatprep.subr.mxu0 0.0
    %5566 = vmatpush1.msra.mxu0 0.0
    %5567 = vmatprep.subr.mxu0 0.0
    %5568 = vmatpush1.msra.mxu0 0.0
    %5569 = vmatprep.subr.mxu0 0.0
    %5570 = vmatpush1.msra.mxu0 0.0
    %5571 = vmatprep.subr.mxu0 0.0
    %5572 = vmatpush1.msra.mxu0 0.0
    %5573 = vmatprep.subr.mxu0 0.0
    %5574 = vmatpush1.msra.mxu0 0.0
    %5575 = vmatprep.subr.mxu0 0.0
    %5576 = vmatpush1.msra.mxu0 0.0
    %5577 = vmatprep.subr.mxu0 0.0
    %5578 = vmatpush1.msra.mxu0 0.0
    %5579 = vmatprep.subr.mxu0 0.0
    %5580 = vmatpush1.msra.mxu0 0.0
    %5581 = vmatprep.subr.mxu0 0.0
    %5582 = vmatpush1.msra.mxu0 0.0
    %5583 = vmatprep.subr.mxu0 0.0
    %5584 = vmatpush1.msra.mxu0 0.0
    %5585 = vmatprep.subr.mxu0 0.0
    %5586 = vmatpush1.msra.mxu0 0.0
    %5587 = vmatprep.subr.mxu0 0.0
    %5588 = vmatpush1.msra.mxu0 0.0
    %5589 = vmatprep.subr.mxu0 0.0
    %5590 = vmatpush1.msra.mxu0 0.0
    %5591 = vmatprep.subr.mxu0 0.0
    %5592 = vmatpush1.msra.mxu0 0.0
    %5593 = vmatprep.subr.mxu0 0.0
    %5594 = vmatpush1.msra.mxu0 0.0
    %5595 = vmatprep.subr.mxu0 0.0
    %5596 = vmatpush1.msra.mxu0 0.0
    %5597 = vmatprep.subr.mxu0 0.0
    %5598 = vmatpush1.msra.mxu0 0.0
    %5599 = vmatprep.subr.mxu0 0.0
    %5600 = vmatpush1.msra.mxu0 0.0
    %5601 = vmatprep.subr.mxu0 0.0
    %5602 = vmatpush1.msra.mxu0 0.0
    %5603 = vmatprep.mubr.f32.mxu0 0.0
    %5604 = vmatmul.mubr.f32.gmra.mrb[0].mxu0 %v4756
    %v5605 = vpop.f32.mrb[0].mxu0
    %v5606 = vadd.f32 0.0, %v5605
    %v5607 = vpop.f32.mrb[0].mxu0
    %5608 = vdwg.mxu0
    %v5610 = vrot.slane %v5606, 6
    %v5612 = vadd.f32 %v450, %v5610
    %v5613 = vxor.u32 %v5378, 2147483648
    %v5614 = vmul.f32 %v5613, 1.442695
    %v5615 = vpow.pop %v5614
    %v5616 = vadd.f32 %v5615, 1.0
    %v5617 = vrcp.pop %v5616
    %v5618 = vmul.f32 1.0, %v5617
    %v5619 = vxor.u32 %v5456, 2147483648
    %v5620 = vmul.f32 %v5619, 1.442695
    %v5621 = vpow.pop %v5620
    %v5622 = vadd.f32 %v5621, 1.0
    %v5623 = vrcp.pop %v5622
    %v5624 = vmul.f32 1.0, %v5623
    %v5625 = vtanh.pop %v5534
    %v5626 = vxor.u32 %v5612, 2147483648
    %v5627 = vmul.f32 %v5626, 1.442695
    %v5628 = vpow.pop %v5627
    %v5629 = vadd.f32 %v5628, 1.0
    %v5630 = vrcp.pop %v5629
    %v5631 = vmul.f32 1.0, %v5630
    %v5633 = vrot.slane %v4671, 6
    %v5635 = vmul.f32 %v5624, %v5633
    %v5636 = vmul.f32 %v5618, %v5625
    %v5637 = vadd.f32 %v5635, %v5636
    %v5638 = vtanh.pop %v5637
    %v5639 = vmul.f32 %v5631, %v5638
    %v5640 = vld [vmem:[#allocation5] sm:$0xff]
    %v5641 = vld [vmem:[#allocation5 + $0x8] sm:$0xff]
    %v5642 = vld [vmem:[#allocation5 + $0x10] sm:$0xff]
    %v5643 = vld [vmem:[#allocation5 + $0x18] sm:$0xff]
    %v5644 = vld [vmem:[#allocation7] sm:$0xff]
    %v5645 = vld [vmem:[#allocation7 + $0x8] sm:$0xff]
    %v5646 = vld [vmem:[#allocation7 + $0x10] sm:$0xff]
    %v5647 = vld [vmem:[#allocation7 + $0x18] sm:$0xff]
    %v5649 = vsel %vm488, %v5299, 0
    %5651 = vmatprep.subr.mxu0 0.0
    %5652 = vmatpush1.msra.mxu0 %v5644
    %5653 = vmatprep.subr.mxu0 0.0
    %5654 = vmatpush1.msra.mxu0 %v5645
    %5655 = vmatprep.subr.mxu0 0.0
    %5656 = vmatpush1.msra.mxu0 %v5646
    %5657 = vmatprep.subr.mxu0 0.0
    %5658 = vmatpush1.msra.mxu0 %v5647
    %5659 = vmatprep.subr.mxu0 0.0
    %5660 = vmatpush1.msra.mxu0 0.0
    %5661 = vmatprep.subr.mxu0 0.0
    %5662 = vmatpush1.msra.mxu0 0.0
    %5663 = vmatprep.subr.mxu0 0.0
    %5664 = vmatpush1.msra.mxu0 0.0
    %5665 = vmatprep.subr.mxu0 0.0
    %5666 = vmatpush1.msra.mxu0 0.0
    %5667 = vmatprep.subr.mxu0 0.0
    %5668 = vmatpush1.msra.mxu0 0.0
    %5669 = vmatprep.subr.mxu0 0.0
    %5670 = vmatpush1.msra.mxu0 0.0
    %5671 = vmatprep.subr.mxu0 0.0
    %5672 = vmatpush1.msra.mxu0 0.0
    %5673 = vmatprep.subr.mxu0 0.0
    %5674 = vmatpush1.msra.mxu0 0.0
    %5675 = vmatprep.subr.mxu0 0.0
    %5676 = vmatpush1.msra.mxu0 0.0
    %5677 = vmatprep.subr.mxu0 0.0
    %5678 = vmatpush1.msra.mxu0 0.0
    %5679 = vmatprep.subr.mxu0 0.0
    %5680 = vmatpush1.msra.mxu0 0.0
    %5681 = vmatprep.subr.mxu0 0.0
    %5682 = vmatpush1.msra.mxu0 0.0
    %5683 = vmatprep.subr.mxu0 0.0
    %5684 = vmatpush1.msra.mxu0 0.0
    %5685 = vmatprep.subr.mxu0 0.0
    %5686 = vmatpush1.msra.mxu0 0.0
    %5687 = vmatprep.subr.mxu0 0.0
    %5688 = vmatpush1.msra.mxu0 0.0
    %5689 = vmatprep.subr.mxu0 0.0
    %5690 = vmatpush1.msra.mxu0 0.0
    %5691 = vmatprep.subr.mxu0 0.0
    %5692 = vmatpush1.msra.mxu0 0.0
    %5693 = vmatprep.subr.mxu0 0.0
    %5694 = vmatpush1.msra.mxu0 0.0
    %5695 = vmatprep.subr.mxu0 0.0
    %5696 = vmatpush1.msra.mxu0 0.0
    %5697 = vmatprep.subr.mxu0 0.0
    %5698 = vmatpush1.msra.mxu0 0.0
    %5699 = vmatprep.subr.mxu0 0.0
    %5700 = vmatpush1.msra.mxu0 0.0
    %5701 = vmatprep.subr.mxu0 0.0
    %5702 = vmatpush1.msra.mxu0 0.0
    %5703 = vmatprep.subr.mxu0 0.0
    %5704 = vmatpush1.msra.mxu0 0.0
    %5705 = vmatprep.subr.mxu0 0.0
    %5706 = vmatpush1.msra.mxu0 0.0
    %5707 = vmatprep.subr.mxu0 0.0
    %5708 = vmatpush1.msra.mxu0 0.0
    %5709 = vmatprep.subr.mxu0 0.0
    %5710 = vmatpush1.msra.mxu0 0.0
    %5711 = vmatprep.subr.mxu0 0.0
    %5712 = vmatpush1.msra.mxu0 0.0
    %5713 = vmatprep.subr.mxu0 0.0
    %5714 = vmatpush1.msra.mxu0 0.0
    %5715 = vmatprep.mubr.f32.mxu0 0.0
    %5716 = vmatmul.mubr.f32.gmra.mrb[0].mxu0 %v5649
    %v5717 = vpop.f32.mrb[0].mxu0
    %v5718 = vadd.f32 0.0, %v5717
    %v5719 = vpop.f32.mrb[0].mxu0
    %5720 = vdwg.mxu0
    %v5722 = vrot.slane %v5639, 2
    %v5723 = vsel %vm488, %v5722, 0
    %5725 = vmatprep.subr.mxu0 0.0
    %5726 = vmatpush1.msra.mxu0 %v5640
    %5727 = vmatprep.subr.mxu0 0.0
    %5728 = vmatpush1.msra.mxu0 %v5641
    %5729 = vmatprep.subr.mxu0 0.0
    %5730 = vmatpush1.msra.mxu0 %v5642
    %5731 = vmatprep.subr.mxu0 0.0
    %5732 = vmatpush1.msra.mxu0 %v5643
    %5733 = vmatprep.subr.mxu0 0.0
    %5734 = vmatpush1.msra.mxu0 0.0
    %5735 = vmatprep.subr.mxu0 0.0
    %5736 = vmatpush1.msra.mxu0 0.0
    %5737 = vmatprep.subr.mxu0 0.0
    %5738 = vmatpush1.msra.mxu0 0.0
    %5739 = vmatprep.subr.mxu0 0.0
    %5740 = vmatpush1.msra.mxu0 0.0
    %5741 = vmatprep.subr.mxu0 0.0
    %5742 = vmatpush1.msra.mxu0 0.0
    %5743 = vmatprep.subr.mxu0 0.0
    %5744 = vmatpush1.msra.mxu0 0.0
    %5745 = vmatprep.subr.mxu0 0.0
    %5746 = vmatpush1.msra.mxu0 0.0
    %5747 = vmatprep.subr.mxu0 0.0
    %5748 = vmatpush1.msra.mxu0 0.0
    %5749 = vmatprep.subr.mxu0 0.0
    %5750 = vmatpush1.msra.mxu0 0.0
    %5751 = vmatprep.subr.mxu0 0.0
    %5752 = vmatpush1.msra.mxu0 0.0
    %5753 = vmatprep.subr.mxu0 0.0
    %5754 = vmatpush1.msra.mxu0 0.0
    %5755 = vmatprep.subr.mxu0 0.0
    %5756 = vmatpush1.msra.mxu0 0.0
    %5757 = vmatprep.subr.mxu0 0.0
    %5758 = vmatpush1.msra.mxu0 0.0
    %5759 = vmatprep.subr.mxu0 0.0
    %5760 = vmatpush1.msra.mxu0 0.0
    %5761 = vmatprep.subr.mxu0 0.0
    %5762 = vmatpush1.msra.mxu0 0.0
    %5763 = vmatprep.subr.mxu0 0.0
    %5764 = vmatpush1.msra.mxu0 0.0
    %5765 = vmatprep.subr.mxu0 0.0
    %5766 = vmatpush1.msra.mxu0 0.0
    %5767 = vmatprep.subr.mxu0 0.0
    %5768 = vmatpush1.msra.mxu0 0.0
    %5769 = vmatprep.subr.mxu0 0.0
    %5770 = vmatpush1.msra.mxu0 0.0
    %5771 = vmatprep.subr.mxu0 0.0
    %5772 = vmatpush1.msra.mxu0 0.0
    %5773 = vmatprep.subr.mxu0 0.0
    %5774 = vmatpush1.msra.mxu0 0.0
    %5775 = vmatprep.subr.mxu0 0.0
    %5776 = vmatpush1.msra.mxu0 0.0
    %5777 = vmatprep.subr.mxu0 0.0
    %5778 = vmatpush1.msra.mxu0 0.0
    %5779 = vmatprep.subr.mxu0 0.0
    %5780 = vmatpush1.msra.mxu0 0.0
    %5781 = vmatprep.subr.mxu0 0.0
    %5782 = vmatpush1.msra.mxu0 0.0
    %5783 = vmatprep.subr.mxu0 0.0
    %5784 = vmatpush1.msra.mxu0 0.0
    %5785 = vmatprep.subr.mxu0 0.0
    %5786 = vmatpush1.msra.mxu0 0.0
    %5787 = vmatprep.subr.mxu0 0.0
    %5788 = vmatpush1.msra.mxu0 0.0
    %5789 = vmatprep.mubr.f32.mxu0 0.0
    %5790 = vmatmul.mubr.f32.gmra.mrb[0].mxu0 %v5723
    %v5791 = vpop.f32.mrb[0].mxu0
    %v5792 = vadd.f32 %v5718, %v5791
    %v5793 = vpop.f32.mrb[0].mxu0
    %5794 = vdwg.mxu0
    %v5795 = vadd.f32 %v5792, %v458
    %v5796 = vld [vmem:[%s967] sm:$0xff]
    %v5797 = vld [vmem:[%s967 + $0x8] sm:$0xff]
    %v5798 = vld [vmem:[%s967 + $0x10] sm:$0xff]
    %v5799 = vld [vmem:[%s967 + $0x18] sm:$0xff]
    %v5800 = vld [vmem:[%s972] sm:$0xff]
    %v5801 = vld [vmem:[%s972 + $0x8] sm:$0xff]
    %v5802 = vld [vmem:[%s972 + $0x10] sm:$0xff]
    %v5803 = vld [vmem:[%s972 + $0x18] sm:$0xff]
    %5804 = vmatprep.subr.mxu0 0.0
    %5805 = vmatpush1.msra.mxu0 %v5800
    %5806 = vmatprep.subr.mxu0 0.0
    %5807 = vmatpush1.msra.mxu0 %v5801
    %5808 = vmatprep.subr.mxu0 0.0
    %5809 = vmatpush1.msra.mxu0 %v5802
    %5810 = vmatprep.subr.mxu0 0.0
    %5811 = vmatpush1.msra.mxu0 %v5803
    %5812 = vmatprep.subr.mxu0 0.0
    %5813 = vmatpush1.msra.mxu0 0.0
    %5814 = vmatprep.subr.mxu0 0.0
    %5815 = vmatpush1.msra.mxu0 0.0
    %5816 = vmatprep.subr.mxu0 0.0
    %5817 = vmatpush1.msra.mxu0 0.0
    %5818 = vmatprep.subr.mxu0 0.0
    %5819 = vmatpush1.msra.mxu0 0.0
    %5820 = vmatprep.subr.mxu0 0.0
    %5821 = vmatpush1.msra.mxu0 0.0
    %5822 = vmatprep.subr.mxu0 0.0
    %5823 = vmatpush1.msra.mxu0 0.0
    %5824 = vmatprep.subr.mxu0 0.0
    %5825 = vmatpush1.msra.mxu0 0.0
    %5826 = vmatprep.subr.mxu0 0.0
    %5827 = vmatpush1.msra.mxu0 0.0
    %5828 = vmatprep.subr.mxu0 0.0
    %5829 = vmatpush1.msra.mxu0 0.0
    %5830 = vmatprep.subr.mxu0 0.0
    %5831 = vmatpush1.msra.mxu0 0.0
    %5832 = vmatprep.subr.mxu0 0.0
    %5833 = vmatpush1.msra.mxu0 0.0
    %5834 = vmatprep.subr.mxu0 0.0
    %5835 = vmatpush1.msra.mxu0 0.0
    %5836 = vmatprep.subr.mxu0 0.0
    %5837 = vmatpush1.msra.mxu0 0.0
    %5838 = vmatprep.subr.mxu0 0.0
    %5839 = vmatpush1.msra.mxu0 0.0
    %5840 = vmatprep.subr.mxu0 0.0
    %5841 = vmatpush1.msra.mxu0 0.0
    %5842 = vmatprep.subr.mxu0 0.0
    %5843 = vmatpush1.msra.mxu0 0.0
    %5844 = vmatprep.subr.mxu0 0.0
    %5845 = vmatpush1.msra.mxu0 0.0
    %5846 = vmatprep.subr.mxu0 0.0
    %5847 = vmatpush1.msra.mxu0 0.0
    %5848 = vmatprep.subr.mxu0 0.0
    %5849 = vmatpush1.msra.mxu0 0.0
    %5850 = vmatprep.subr.mxu0 0.0
    %5851 = vmatpush1.msra.mxu0 0.0
    %5852 = vmatprep.subr.mxu0 0.0
    %5853 = vmatpush1.msra.mxu0 0.0
    %5854 = vmatprep.subr.mxu0 0.0
    %5855 = vmatpush1.msra.mxu0 0.0
    %5856 = vmatprep.subr.mxu0 0.0
    %5857 = vmatpush1.msra.mxu0 0.0
    %5858 = vmatprep.subr.mxu0 0.0
    %5859 = vmatpush1.msra.mxu0 0.0
    %5860 = vmatprep.subr.mxu0 0.0
    %5861 = vmatpush1.msra.mxu0 0.0
    %5862 = vmatprep.subr.mxu0 0.0
    %5863 = vmatpush1.msra.mxu0 0.0
    %5864 = vmatprep.subr.mxu0 0.0
    %5865 = vmatpush1.msra.mxu0 0.0
    %5866 = vmatprep.subr.mxu0 0.0
    %5867 = vmatpush1.msra.mxu0 0.0
    %5868 = vmatprep.mubr.f32.mxu0 0.0
    %5869 = vmatmul.mubr.f32.gmra.mrb[0].mxu0 %v5649
    %v5870 = vpop.f32.mrb[0].mxu0
    %v5871 = vadd.f32 0.0, %v5870
    %v5872 = vpop.f32.mrb[0].mxu0
    %5873 = vdwg.mxu0
    %5874 = vmatprep.subr.mxu0 0.0
    %5875 = vmatpush1.msra.mxu0 %v5796
    %5876 = vmatprep.subr.mxu0 0.0
    %5877 = vmatpush1.msra.mxu0 %v5797
    %5878 = vmatprep.subr.mxu0 0.0
    %5879 = vmatpush1.msra.mxu0 %v5798
    %5880 = vmatprep.subr.mxu0 0.0
    %5881 = vmatpush1.msra.mxu0 %v5799
    %5882 = vmatprep.subr.mxu0 0.0
    %5883 = vmatpush1.msra.mxu0 0.0
    %5884 = vmatprep.subr.mxu0 0.0
    %5885 = vmatpush1.msra.mxu0 0.0
    %5886 = vmatprep.subr.mxu0 0.0
    %5887 = vmatpush1.msra.mxu0 0.0
    %5888 = vmatprep.subr.mxu0 0.0
    %5889 = vmatpush1.msra.mxu0 0.0
    %5890 = vmatprep.subr.mxu0 0.0
    %5891 = vmatpush1.msra.mxu0 0.0
    %5892 = vmatprep.subr.mxu0 0.0
    %5893 = vmatpush1.msra.mxu0 0.0
    %5894 = vmatprep.subr.mxu0 0.0
    %5895 = vmatpush1.msra.mxu0 0.0
    %5896 = vmatprep.subr.mxu0 0.0
    %5897 = vmatpush1.msra.mxu0 0.0
    %5898 = vmatprep.subr.mxu0 0.0
    %5899 = vmatpush1.msra.mxu0 0.0
    %5900 = vmatprep.subr.mxu0 0.0
    %5901 = vmatpush1.msra.mxu0 0.0
    %5902 = vmatprep.subr.mxu0 0.0
    %5903 = vmatpush1.msra.mxu0 0.0
    %5904 = vmatprep.subr.mxu0 0.0
    %5905 = vmatpush1.msra.mxu0 0.0
    %5906 = vmatprep.subr.mxu0 0.0
    %5907 = vmatpush1.msra.mxu0 0.0
    %5908 = vmatprep.subr.mxu0 0.0
    %5909 = vmatpush1.msra.mxu0 0.0
    %5910 = vmatprep.subr.mxu0 0.0
    %5911 = vmatpush1.msra.mxu0 0.0
    %5912 = vmatprep.subr.mxu0 0.0
    %5913 = vmatpush1.msra.mxu0 0.0
    %5914 = vmatprep.subr.mxu0 0.0
    %5915 = vmatpush1.msra.mxu0 0.0
    %5916 = vmatprep.subr.mxu0 0.0
    %5917 = vmatpush1.msra.mxu0 0.0
    %5918 = vmatprep.subr.mxu0 0.0
    %5919 = vmatpush1.msra.mxu0 0.0
    %5920 = vmatprep.subr.mxu0 0.0
    %5921 = vmatpush1.msra.mxu0 0.0
    %5922 = vmatprep.subr.mxu0 0.0
    %5923 = vmatpush1.msra.mxu0 0.0
    %5924 = vmatprep.subr.mxu0 0.0
    %5925 = vmatpush1.msra.mxu0 0.0
    %5926 = vmatprep.subr.mxu0 0.0
    %5927 = vmatpush1.msra.mxu0 0.0
    %5928 = vmatprep.subr.mxu0 0.0
    %5929 = vmatpush1.msra.mxu0 0.0
    %5930 = vmatprep.subr.mxu0 0.0
    %5931 = vmatpush1.msra.mxu0 0.0
    %5932 = vmatprep.subr.mxu0 0.0
    %5933 = vmatpush1.msra.mxu0 0.0
    %5934 = vmatprep.subr.mxu0 0.0
    %5935 = vmatpush1.msra.mxu0 0.0
    %5936 = vmatprep.subr.mxu0 0.0
    %5937 = vmatpush1.msra.mxu0 0.0
    %5938 = vmatprep.mubr.f32.mxu0 0.0
    %5939 = vmatmul.mubr.f32.gmra.mrb[0].mxu0 %v5723
    %v5940 = vpop.f32.mrb[0].mxu0
    %v5941 = vadd.f32 %v5871, %v5940
    %v5942 = vpop.f32.mrb[0].mxu0
    %5943 = vdwg.mxu0
    %v5944 = vadd.f32 %v5941, %v466
    %v5945 = vld [vmem:[%s1118] sm:$0xff]
    %v5946 = vld [vmem:[%s1118 + $0x8] sm:$0xff]
    %v5947 = vld [vmem:[%s1118 + $0x10] sm:$0xff]
    %v5948 = vld [vmem:[%s1118 + $0x18] sm:$0xff]
    %v5949 = vld [vmem:[%s1123] sm:$0xff]
    %v5950 = vld [vmem:[%s1123 + $0x8] sm:$0xff]
    %v5951 = vld [vmem:[%s1123 + $0x10] sm:$0xff]
    %v5952 = vld [vmem:[%s1123 + $0x18] sm:$0xff]
    %5953 = vmatprep.subr.mxu0 0.0
    %5954 = vmatpush1.msra.mxu0 %v5949
    %5955 = vmatprep.subr.mxu0 0.0
    %5956 = vmatpush1.msra.mxu0 %v5950
    %5957 = vmatprep.subr.mxu0 0.0
    %5958 = vmatpush1.msra.mxu0 %v5951
    %5959 = vmatprep.subr.mxu0 0.0
    %5960 = vmatpush1.msra.mxu0 %v5952
    %5961 = vmatprep.subr.mxu0 0.0
    %5962 = vmatpush1.msra.mxu0 0.0
    %5963 = vmatprep.subr.mxu0 0.0
    %5964 = vmatpush1.msra.mxu0 0.0
    %5965 = vmatprep.subr.mxu0 0.0
    %5966 = vmatpush1.msra.mxu0 0.0
    %5967 = vmatprep.subr.mxu0 0.0
    %5968 = vmatpush1.msra.mxu0 0.0
    %5969 = vmatprep.subr.mxu0 0.0
    %5970 = vmatpush1.msra.mxu0 0.0
    %5971 = vmatprep.subr.mxu0 0.0
    %5972 = vmatpush1.msra.mxu0 0.0
    %5973 = vmatprep.subr.mxu0 0.0
    %5974 = vmatpush1.msra.mxu0 0.0
    %5975 = vmatprep.subr.mxu0 0.0
    %5976 = vmatpush1.msra.mxu0 0.0
    %5977 = vmatprep.subr.mxu0 0.0
    %5978 = vmatpush1.msra.mxu0 0.0
    %5979 = vmatprep.subr.mxu0 0.0
    %5980 = vmatpush1.msra.mxu0 0.0
    %5981 = vmatprep.subr.mxu0 0.0
    %5982 = vmatpush1.msra.mxu0 0.0
    %5983 = vmatprep.subr.mxu0 0.0
    %5984 = vmatpush1.msra.mxu0 0.0
    %5985 = vmatprep.subr.mxu0 0.0
    %5986 = vmatpush1.msra.mxu0 0.0
    %5987 = vmatprep.subr.mxu0 0.0
    %5988 = vmatpush1.msra.mxu0 0.0
    %5989 = vmatprep.subr.mxu0 0.0
    %5990 = vmatpush1.msra.mxu0 0.0
    %5991 = vmatprep.subr.mxu0 0.0
    %5992 = vmatpush1.msra.mxu0 0.0
    %5993 = vmatprep.subr.mxu0 0.0
    %5994 = vmatpush1.msra.mxu0 0.0
    %5995 = vmatprep.subr.mxu0 0.0
    %5996 = vmatpush1.msra.mxu0 0.0
    %5997 = vmatprep.subr.mxu0 0.0
    %5998 = vmatpush1.msra.mxu0 0.0
    %5999 = vmatprep.subr.mxu0 0.0
    %6000 = vmatpush1.msra.mxu0 0.0
    %6001 = vmatprep.subr.mxu0 0.0
    %6002 = vmatpush1.msra.mxu0 0.0
    %6003 = vmatprep.subr.mxu0 0.0
    %6004 = vmatpush1.msra.mxu0 0.0
    %6005 = vmatprep.subr.mxu0 0.0
    %6006 = vmatpush1.msra.mxu0 0.0
    %6007 = vmatprep.subr.mxu0 0.0
    %6008 = vmatpush1.msra.mxu0 0.0
    %6009 = vmatprep.subr.mxu0 0.0
    %6010 = vmatpush1.msra.mxu0 0.0
    %6011 = vmatprep.subr.mxu0 0.0
    %6012 = vmatpush1.msra.mxu0 0.0
    %6013 = vmatprep.subr.mxu0 0.0
    %6014 = vmatpush1.msra.mxu0 0.0
    %6015 = vmatprep.subr.mxu0 0.0
    %6016 = vmatpush1.msra.mxu0 0.0
    %6017 = vmatprep.mubr.f32.mxu0 0.0
    %6018 = vmatmul.mubr.f32.gmra.mrb[0].mxu0 %v5649
    %v6019 = vpop.f32.mrb[0].mxu0
    %v6020 = vadd.f32 0.0, %v6019
    %v6021 = vpop.f32.mrb[0].mxu0
    %6022 = vdwg.mxu0
    %6023 = vmatprep.subr.mxu0 0.0
    %6024 = vmatpush1.msra.mxu0 %v5945
    %6025 = vmatprep.subr.mxu0 0.0
    %6026 = vmatpush1.msra.mxu0 %v5946
    %6027 = vmatprep.subr.mxu0 0.0
    %6028 = vmatpush1.msra.mxu0 %v5947
    %6029 = vmatprep.subr.mxu0 0.0
    %6030 = vmatpush1.msra.mxu0 %v5948
    %6031 = vmatprep.subr.mxu0 0.0
    %6032 = vmatpush1.msra.mxu0 0.0
    %6033 = vmatprep.subr.mxu0 0.0
    %6034 = vmatpush1.msra.mxu0 0.0
    %6035 = vmatprep.subr.mxu0 0.0
    %6036 = vmatpush1.msra.mxu0 0.0
    %6037 = vmatprep.subr.mxu0 0.0
    %6038 = vmatpush1.msra.mxu0 0.0
    %6039 = vmatprep.subr.mxu0 0.0
    %6040 = vmatpush1.msra.mxu0 0.0
    %6041 = vmatprep.subr.mxu0 0.0
    %6042 = vmatpush1.msra.mxu0 0.0
    %6043 = vmatprep.subr.mxu0 0.0
    %6044 = vmatpush1.msra.mxu0 0.0
    %6045 = vmatprep.subr.mxu0 0.0
    %6046 = vmatpush1.msra.mxu0 0.0
    %6047 = vmatprep.subr.mxu0 0.0
    %6048 = vmatpush1.msra.mxu0 0.0
    %6049 = vmatprep.subr.mxu0 0.0
    %6050 = vmatpush1.msra.mxu0 0.0
    %6051 = vmatprep.subr.mxu0 0.0
    %6052 = vmatpush1.msra.mxu0 0.0
    %6053 = vmatprep.subr.mxu0 0.0
    %6054 = vmatpush1.msra.mxu0 0.0
    %6055 = vmatprep.subr.mxu0 0.0
    %6056 = vmatpush1.msra.mxu0 0.0
    %6057 = vmatprep.subr.mxu0 0.0
    %6058 = vmatpush1.msra.mxu0 0.0
    %6059 = vmatprep.subr.mxu0 0.0
    %6060 = vmatpush1.msra.mxu0 0.0
    %6061 = vmatprep.subr.mxu0 0.0
    %6062 = vmatpush1.msra.mxu0 0.0
    %6063 = vmatprep.subr.mxu0 0.0
    %6064 = vmatpush1.msra.mxu0 0.0
    %6065 = vmatprep.subr.mxu0 0.0
    %6066 = vmatpush1.msra.mxu0 0.0
    %6067 = vmatprep.subr.mxu0 0.0
    %6068 = vmatpush1.msra.mxu0 0.0
    %6069 = vmatprep.subr.mxu0 0.0
    %6070 = vmatpush1.msra.mxu0 0.0
    %6071 = vmatprep.subr.mxu0 0.0
    %6072 = vmatpush1.msra.mxu0 0.0
    %6073 = vmatprep.subr.mxu0 0.0
    %6074 = vmatpush1.msra.mxu0 0.0
    %6075 = vmatprep.subr.mxu0 0.0
    %6076 = vmatpush1.msra.mxu0 0.0
    %6077 = vmatprep.subr.mxu0 0.0
    %6078 = vmatpush1.msra.mxu0 0.0
    %6079 = vmatprep.subr.mxu0 0.0
    %6080 = vmatpush1.msra.mxu0 0.0
    %6081 = vmatprep.subr.mxu0 0.0
    %6082 = vmatpush1.msra.mxu0 0.0
    %6083 = vmatprep.subr.mxu0 0.0
    %6084 = vmatpush1.msra.mxu0 0.0
    %6085 = vmatprep.subr.mxu0 0.0
    %6086 = vmatpush1.msra.mxu0 0.0
    %6087 = vmatprep.mubr.f32.mxu0 0.0
    %6088 = vmatmul.mubr.f32.gmra.mrb[0].mxu0 %v5723
    %v6089 = vpop.f32.mrb[0].mxu0
    %v6090 = vadd.f32 %v6020, %v6089
    %v6091 = vpop.f32.mrb[0].mxu0
    %6092 = vdwg.mxu0
    %v6093 = vadd.f32 %v6090, %v474
    %v6094 = vld [vmem:[%s1269] sm:$0xff]
    %v6095 = vld [vmem:[%s1269 + $0x8] sm:$0xff]
    %v6096 = vld [vmem:[%s1269 + $0x10] sm:$0xff]
    %v6097 = vld [vmem:[%s1269 + $0x18] sm:$0xff]
    %v6098 = vld [vmem:[%s1274] sm:$0xff]
    %v6099 = vld [vmem:[%s1274 + $0x8] sm:$0xff]
    %v6100 = vld [vmem:[%s1274 + $0x10] sm:$0xff]
    %v6101 = vld [vmem:[%s1274 + $0x18] sm:$0xff]
    %6102 = vmatprep.subr.mxu0 0.0
    %6103 = vmatpush1.msra.mxu0 %v6098
    %6104 = vmatprep.subr.mxu0 0.0
    %6105 = vmatpush1.msra.mxu0 %v6099
    %6106 = vmatprep.subr.mxu0 0.0
    %6107 = vmatpush1.msra.mxu0 %v6100
    %6108 = vmatprep.subr.mxu0 0.0
    %6109 = vmatpush1.msra.mxu0 %v6101
    %6110 = vmatprep.subr.mxu0 0.0
    %6111 = vmatpush1.msra.mxu0 0.0
    %6112 = vmatprep.subr.mxu0 0.0
    %6113 = vmatpush1.msra.mxu0 0.0
    %6114 = vmatprep.subr.mxu0 0.0
    %6115 = vmatpush1.msra.mxu0 0.0
    %6116 = vmatprep.subr.mxu0 0.0
    %6117 = vmatpush1.msra.mxu0 0.0
    %6118 = vmatprep.subr.mxu0 0.0
    %6119 = vmatpush1.msra.mxu0 0.0
    %6120 = vmatprep.subr.mxu0 0.0
    %6121 = vmatpush1.msra.mxu0 0.0
    %6122 = vmatprep.subr.mxu0 0.0
    %6123 = vmatpush1.msra.mxu0 0.0
    %6124 = vmatprep.subr.mxu0 0.0
    %6125 = vmatpush1.msra.mxu0 0.0
    %6126 = vmatprep.subr.mxu0 0.0
    %6127 = vmatpush1.msra.mxu0 0.0
    %6128 = vmatprep.subr.mxu0 0.0
    %6129 = vmatpush1.msra.mxu0 0.0
    %6130 = vmatprep.subr.mxu0 0.0
    %6131 = vmatpush1.msra.mxu0 0.0
    %6132 = vmatprep.subr.mxu0 0.0
    %6133 = vmatpush1.msra.mxu0 0.0
    %6134 = vmatprep.subr.mxu0 0.0
    %6135 = vmatpush1.msra.mxu0 0.0
    %6136 = vmatprep.subr.mxu0 0.0
    %6137 = vmatpush1.msra.mxu0 0.0
    %6138 = vmatprep.subr.mxu0 0.0
    %6139 = vmatpush1.msra.mxu0 0.0
    %6140 = vmatprep.subr.mxu0 0.0
    %6141 = vmatpush1.msra.mxu0 0.0
    %6142 = vmatprep.subr.mxu0 0.0
    %6143 = vmatpush1.msra.mxu0 0.0
    %6144 = vmatprep.subr.mxu0 0.0
    %6145 = vmatpush1.msra.mxu0 0.0
    %6146 = vmatprep.subr.mxu0 0.0
    %6147 = vmatpush1.msra.mxu0 0.0
    %6148 = vmatprep.subr.mxu0 0.0
    %6149 = vmatpush1.msra.mxu0 0.0
    %6150 = vmatprep.subr.mxu0 0.0
    %6151 = vmatpush1.msra.mxu0 0.0
    %6152 = vmatprep.subr.mxu0 0.0
    %6153 = vmatpush1.msra.mxu0 0.0
    %6154 = vmatprep.subr.mxu0 0.0
    %6155 = vmatpush1.msra.mxu0 0.0
    %6156 = vmatprep.subr.mxu0 0.0
    %6157 = vmatpush1.msra.mxu0 0.0
    %6158 = vmatprep.subr.mxu0 0.0
    %6159 = vmatpush1.msra.mxu0 0.0
    %6160 = vmatprep.subr.mxu0 0.0
    %6161 = vmatpush1.msra.mxu0 0.0
    %6162 = vmatprep.subr.mxu0 0.0
    %6163 = vmatpush1.msra.mxu0 0.0
    %6164 = vmatprep.subr.mxu0 0.0
    %6165 = vmatpush1.msra.mxu0 0.0
    %6166 = vmatprep.mubr.f32.mxu0 0.0
    %6167 = vmatmul.mubr.f32.gmra.mrb[0].mxu0 %v5649
    %v6168 = vpop.f32.mrb[0].mxu0
    %v6169 = vadd.f32 0.0, %v6168
    %v6170 = vpop.f32.mrb[0].mxu0
    %6171 = vdwg.mxu0
    %6172 = vmatprep.subr.mxu0 0.0
    %6173 = vmatpush1.msra.mxu0 %v6094
    %6174 = vmatprep.subr.mxu0 0.0
    %6175 = vmatpush1.msra.mxu0 %v6095
    %6176 = vmatprep.subr.mxu0 0.0
    %6177 = vmatpush1.msra.mxu0 %v6096
    %6178 = vmatprep.subr.mxu0 0.0
    %6179 = vmatpush1.msra.mxu0 %v6097
    %6180 = vmatprep.subr.mxu0 0.0
    %6181 = vmatpush1.msra.mxu0 0.0
    %6182 = vmatprep.subr.mxu0 0.0
    %6183 = vmatpush1.msra.mxu0 0.0
    %6184 = vmatprep.subr.mxu0 0.0
    %6185 = vmatpush1.msra.mxu0 0.0
    %6186 = vmatprep.subr.mxu0 0.0
    %6187 = vmatpush1.msra.mxu0 0.0
    %6188 = vmatprep.subr.mxu0 0.0
    %6189 = vmatpush1.msra.mxu0 0.0
    %6190 = vmatprep.subr.mxu0 0.0
    %6191 = vmatpush1.msra.mxu0 0.0
    %6192 = vmatprep.subr.mxu0 0.0
    %6193 = vmatpush1.msra.mxu0 0.0
    %6194 = vmatprep.subr.mxu0 0.0
    %6195 = vmatpush1.msra.mxu0 0.0
    %6196 = vmatprep.subr.mxu0 0.0
    %6197 = vmatpush1.msra.mxu0 0.0
    %6198 = vmatprep.subr.mxu0 0.0
    %6199 = vmatpush1.msra.mxu0 0.0
    %6200 = vmatprep.subr.mxu0 0.0
    %6201 = vmatpush1.msra.mxu0 0.0
    %6202 = vmatprep.subr.mxu0 0.0
    %6203 = vmatpush1.msra.mxu0 0.0
    %6204 = vmatprep.subr.mxu0 0.0
    %6205 = vmatpush1.msra.mxu0 0.0
    %6206 = vmatprep.subr.mxu0 0.0
    %6207 = vmatpush1.msra.mxu0 0.0
    %6208 = vmatprep.subr.mxu0 0.0
    %6209 = vmatpush1.msra.mxu0 0.0
    %6210 = vmatprep.subr.mxu0 0.0
    %6211 = vmatpush1.msra.mxu0 0.0
    %6212 = vmatprep.subr.mxu0 0.0
    %6213 = vmatpush1.msra.mxu0 0.0
    %6214 = vmatprep.subr.mxu0 0.0
    %6215 = vmatpush1.msra.mxu0 0.0
    %6216 = vmatprep.subr.mxu0 0.0
    %6217 = vmatpush1.msra.mxu0 0.0
    %6218 = vmatprep.subr.mxu0 0.0
    %6219 = vmatpush1.msra.mxu0 0.0
    %6220 = vmatprep.subr.mxu0 0.0
    %6221 = vmatpush1.msra.mxu0 0.0
    %6222 = vmatprep.subr.mxu0 0.0
    %6223 = vmatpush1.msra.mxu0 0.0
    %6224 = vmatprep.subr.mxu0 0.0
    %6225 = vmatpush1.msra.mxu0 0.0
    %6226 = vmatprep.subr.mxu0 0.0
    %6227 = vmatpush1.msra.mxu0 0.0
    %6228 = vmatprep.subr.mxu0 0.0
    %6229 = vmatpush1.msra.mxu0 0.0
    %6230 = vmatprep.subr.mxu0 0.0
    %6231 = vmatpush1.msra.mxu0 0.0
    %6232 = vmatprep.subr.mxu0 0.0
    %6233 = vmatpush1.msra.mxu0 0.0
    %6234 = vmatprep.subr.mxu0 0.0
    %6235 = vmatpush1.msra.mxu0 0.0
    %6236 = vmatprep.mubr.f32.mxu0 0.0
    %6237 = vmatmul.mubr.f32.gmra.mrb[0].mxu0 %v5723
    %v6238 = vpop.f32.mrb[0].mxu0
    %v6239 = vadd.f32 %v6169, %v6238
    %v6240 = vpop.f32.mrb[0].mxu0
    %6241 = vdwg.mxu0
    %v6242 = vadd.f32 %v6239, %v482
    %v6243 = vxor.u32 %v5795, 2147483648
    %v6244 = vmul.f32 %v6243, 1.442695
    %v6245 = vpow.pop %v6244
    %v6246 = vadd.f32 %v6245, 1.0
    %v6247 = vrcp.pop %v6246
    %v6248 = vmul.f32 1.0, %v6247
    %v6249 = vxor.u32 %v5944, 2147483648
    %v6250 = vmul.f32 %v6249, 1.442695
    %v6251 = vpow.pop %v6250
    %v6252 = vadd.f32 %v6251, 1.0
    %v6253 = vrcp.pop %v6252
    %v6254 = vmul.f32 1.0, %v6253
    %v6255 = vtanh.pop %v6093
    %v6256 = vxor.u32 %v6242, 2147483648
    %v6257 = vmul.f32 %v6256, 1.442695
    %v6258 = vpow.pop %v6257
    %v6259 = vadd.f32 %v6258, 1.0
    %v6260 = vrcp.pop %v6259
    %v6261 = vmul.f32 1.0, %v6260
    %v6262 = vmul.f32 %v6254, %v5297
    %v6263 = vmul.f32 %v6248, %v6255
    %v6264 = vadd.f32 %v6262, %v6263
    %v6265 = vtanh.pop %v6264
    %v6266 = vmul.f32 %v6261, %v6265
    %6267 = vst.msk [vmem:[#allocation2 + $0xa] sm:$0x3] %vm1444, %v6266
    %v6268 = vld [vmem:[#allocation3] sm:$0xff]
    %v6269 = vld [vmem:[#allocation3 + $0x8] sm:$0xff]
    %v6270 = vld [vmem:[#allocation3 + $0x10] sm:$0xff]
    %v6271 = vld [vmem:[#allocation3 + $0x18] sm:$0xff]
    %6272 = vmatprep.subr.mxu0 0.0
    %6273 = vmatpush1.msra.mxu0 %v6268
    %6274 = vmatprep.subr.mxu0 0.0
    %6275 = vmatpush1.msra.mxu0 %v6269
    %6276 = vmatprep.subr.mxu0 0.0
    %6277 = vmatpush1.msra.mxu0 %v6270
    %6278 = vmatprep.subr.mxu0 0.0
    %6279 = vmatpush1.msra.mxu0 %v6271
    %6280 = vmatprep.subr.mxu0 0.0
    %6281 = vmatpush1.msra.mxu0 0.0
    %6282 = vmatprep.subr.mxu0 0.0
    %6283 = vmatpush1.msra.mxu0 0.0
    %6284 = vmatprep.subr.mxu0 0.0
    %6285 = vmatpush1.msra.mxu0 0.0
    %6286 = vmatprep.subr.mxu0 0.0
    %6287 = vmatpush1.msra.mxu0 0.0
    %6288 = vmatprep.subr.mxu0 0.0
    %6289 = vmatpush1.msra.mxu0 0.0
    %6290 = vmatprep.subr.mxu0 0.0
    %6291 = vmatpush1.msra.mxu0 0.0
    %6292 = vmatprep.subr.mxu0 0.0
    %6293 = vmatpush1.msra.mxu0 0.0
    %6294 = vmatprep.subr.mxu0 0.0
    %6295 = vmatpush1.msra.mxu0 0.0
    %6296 = vmatprep.subr.mxu0 0.0
    %6297 = vmatpush1.msra.mxu0 0.0
    %6298 = vmatprep.subr.mxu0 0.0
    %6299 = vmatpush1.msra.mxu0 0.0
    %6300 = vmatprep.subr.mxu0 0.0
    %6301 = vmatpush1.msra.mxu0 0.0
    %6302 = vmatprep.subr.mxu0 0.0
    %6303 = vmatpush1.msra.mxu0 0.0
    %6304 = vmatprep.subr.mxu0 0.0
    %6305 = vmatpush1.msra.mxu0 0.0
    %6306 = vmatprep.subr.mxu0 0.0
    %6307 = vmatpush1.msra.mxu0 0.0
    %6308 = vmatprep.subr.mxu0 0.0
    %6309 = vmatpush1.msra.mxu0 0.0
    %6310 = vmatprep.subr.mxu0 0.0
    %6311 = vmatpush1.msra.mxu0 0.0
    %6312 = vmatprep.subr.mxu0 0.0
    %6313 = vmatpush1.msra.mxu0 0.0
    %6314 = vmatprep.subr.mxu0 0.0
    %6315 = vmatpush1.msra.mxu0 0.0
    %6316 = vmatprep.subr.mxu0 0.0
    %6317 = vmatpush1.msra.mxu0 0.0
    %6318 = vmatprep.subr.mxu0 0.0
    %6319 = vmatpush1.msra.mxu0 0.0
    %6320 = vmatprep.subr.mxu0 0.0
    %6321 = vmatpush1.msra.mxu0 0.0
    %6322 = vmatprep.subr.mxu0 0.0
    %6323 = vmatpush1.msra.mxu0 0.0
    %6324 = vmatprep.subr.mxu0 0.0
    %6325 = vmatpush1.msra.mxu0 0.0
    %6326 = vmatprep.subr.mxu0 0.0
    %6327 = vmatpush1.msra.mxu0 0.0
    %6328 = vmatprep.subr.mxu0 0.0
    %6329 = vmatpush1.msra.mxu0 0.0
    %6330 = vmatprep.subr.mxu0 0.0
    %6331 = vmatpush1.msra.mxu0 0.0
    %6332 = vmatprep.subr.mxu0 0.0
    %6333 = vmatpush1.msra.mxu0 0.0
    %6334 = vmatprep.subr.mxu0 0.0
    %6335 = vmatpush1.msra.mxu0 0.0
    %6336 = vmatprep.mubr.f32.mxu0 0.0
    %6337 = vmatmul.mubr.f32.gmra.mrb[0].mxu0 %v5723
    %v6338 = vpop.f32.mrb[0].mxu0
    %v6339 = vadd.f32 0.0, %v6338
    %v6340 = vpop.f32.mrb[0].mxu0
    %6341 = vdwg.mxu0
    %v6343 = vrot.slane %v6339, 4
    %v6345 = vadd.f32 %v195, %v6343
    %v6346 = vld [vmem:[%s563] sm:$0xff]
    %v6347 = vld [vmem:[%s563 + $0x8] sm:$0xff]
    %v6348 = vld [vmem:[%s563 + $0x10] sm:$0xff]
    %v6349 = vld [vmem:[%s563 + $0x18] sm:$0xff]
    %6350 = vmatprep.subr.mxu0 0.0
    %6351 = vmatpush1.msra.mxu0 %v6346
    %6352 = vmatprep.subr.mxu0 0.0
    %6353 = vmatpush1.msra.mxu0 %v6347
    %6354 = vmatprep.subr.mxu0 0.0
    %6355 = vmatpush1.msra.mxu0 %v6348
    %6356 = vmatprep.subr.mxu0 0.0
    %6357 = vmatpush1.msra.mxu0 %v6349
    %6358 = vmatprep.subr.mxu0 0.0
    %6359 = vmatpush1.msra.mxu0 0.0
    %6360 = vmatprep.subr.mxu0 0.0
    %6361 = vmatpush1.msra.mxu0 0.0
    %6362 = vmatprep.subr.mxu0 0.0
    %6363 = vmatpush1.msra.mxu0 0.0
    %6364 = vmatprep.subr.mxu0 0.0
    %6365 = vmatpush1.msra.mxu0 0.0
    %6366 = vmatprep.subr.mxu0 0.0
    %6367 = vmatpush1.msra.mxu0 0.0
    %6368 = vmatprep.subr.mxu0 0.0
    %6369 = vmatpush1.msra.mxu0 0.0
    %6370 = vmatprep.subr.mxu0 0.0
    %6371 = vmatpush1.msra.mxu0 0.0
    %6372 = vmatprep.subr.mxu0 0.0
    %6373 = vmatpush1.msra.mxu0 0.0
    %6374 = vmatprep.subr.mxu0 0.0
    %6375 = vmatpush1.msra.mxu0 0.0
    %6376 = vmatprep.subr.mxu0 0.0
    %6377 = vmatpush1.msra.mxu0 0.0
    %6378 = vmatprep.subr.mxu0 0.0
    %6379 = vmatpush1.msra.mxu0 0.0
    %6380 = vmatprep.subr.mxu0 0.0
    %6381 = vmatpush1.msra.mxu0 0.0
    %6382 = vmatprep.subr.mxu0 0.0
    %6383 = vmatpush1.msra.mxu0 0.0
    %6384 = vmatprep.subr.mxu0 0.0
    %6385 = vmatpush1.msra.mxu0 0.0
    %6386 = vmatprep.subr.mxu0 0.0
    %6387 = vmatpush1.msra.mxu0 0.0
    %6388 = vmatprep.subr.mxu0 0.0
    %6389 = vmatpush1.msra.mxu0 0.0
    %6390 = vmatprep.subr.mxu0 0.0
    %6391 = vmatpush1.msra.mxu0 0.0
    %6392 = vmatprep.subr.mxu0 0.0
    %6393 = vmatpush1.msra.mxu0 0.0
    %6394 = vmatprep.subr.mxu0 0.0
    %6395 = vmatpush1.msra.mxu0 0.0
    %6396 = vmatprep.subr.mxu0 0.0
    %6397 = vmatpush1.msra.mxu0 0.0
    %6398 = vmatprep.subr.mxu0 0.0
    %6399 = vmatpush1.msra.mxu0 0.0
    %6400 = vmatprep.subr.mxu0 0.0
    %6401 = vmatpush1.msra.mxu0 0.0
    %6402 = vmatprep.subr.mxu0 0.0
    %6403 = vmatpush1.msra.mxu0 0.0
    %6404 = vmatprep.subr.mxu0 0.0
    %6405 = vmatpush1.msra.mxu0 0.0
    %6406 = vmatprep.subr.mxu0 0.0
    %6407 = vmatpush1.msra.mxu0 0.0
    %6408 = vmatprep.subr.mxu0 0.0
    %6409 = vmatpush1.msra.mxu0 0.0
    %6410 = vmatprep.subr.mxu0 0.0
    %6411 = vmatpush1.msra.mxu0 0.0
    %6412 = vmatprep.subr.mxu0 0.0
    %6413 = vmatpush1.msra.mxu0 0.0
    %6414 = vmatprep.mubr.f32.mxu0 0.0
    %6415 = vmatmul.mubr.f32.gmra.mrb[0].mxu0 %v5723
    %v6416 = vpop.f32.mrb[0].mxu0
    %v6417 = vadd.f32 0.0, %v6416
    %v6418 = vpop.f32.mrb[0].mxu0
    %6419 = vdwg.mxu0
    %v6421 = vrot.slane %v6417, 4
    %v6423 = vadd.f32 %v280, %v6421
    %v6424 = vld [vmem:[%s639] sm:$0xff]
    %v6425 = vld [vmem:[%s639 + $0x8] sm:$0xff]
    %v6426 = vld [vmem:[%s639 + $0x10] sm:$0xff]
    %v6427 = vld [vmem:[%s639 + $0x18] sm:$0xff]
    %6428 = vmatprep.subr.mxu0 0.0
    %6429 = vmatpush1.msra.mxu0 %v6424
    %6430 = vmatprep.subr.mxu0 0.0
    %6431 = vmatpush1.msra.mxu0 %v6425
    %6432 = vmatprep.subr.mxu0 0.0
    %6433 = vmatpush1.msra.mxu0 %v6426
    %6434 = vmatprep.subr.mxu0 0.0
    %6435 = vmatpush1.msra.mxu0 %v6427
    %6436 = vmatprep.subr.mxu0 0.0
    %6437 = vmatpush1.msra.mxu0 0.0
    %6438 = vmatprep.subr.mxu0 0.0
    %6439 = vmatpush1.msra.mxu0 0.0
    %6440 = vmatprep.subr.mxu0 0.0
    %6441 = vmatpush1.msra.mxu0 0.0
    %6442 = vmatprep.subr.mxu0 0.0
    %6443 = vmatpush1.msra.mxu0 0.0
    %6444 = vmatprep.subr.mxu0 0.0
    %6445 = vmatpush1.msra.mxu0 0.0
    %6446 = vmatprep.subr.mxu0 0.0
    %6447 = vmatpush1.msra.mxu0 0.0
    %6448 = vmatprep.subr.mxu0 0.0
    %6449 = vmatpush1.msra.mxu0 0.0
    %6450 = vmatprep.subr.mxu0 0.0
    %6451 = vmatpush1.msra.mxu0 0.0
    %6452 = vmatprep.subr.mxu0 0.0
    %6453 = vmatpush1.msra.mxu0 0.0
    %6454 = vmatprep.subr.mxu0 0.0
    %6455 = vmatpush1.msra.mxu0 0.0
    %6456 = vmatprep.subr.mxu0 0.0
    %6457 = vmatpush1.msra.mxu0 0.0
    %6458 = vmatprep.subr.mxu0 0.0
    %6459 = vmatpush1.msra.mxu0 0.0
    %6460 = vmatprep.subr.mxu0 0.0
    %6461 = vmatpush1.msra.mxu0 0.0
    %6462 = vmatprep.subr.mxu0 0.0
    %6463 = vmatpush1.msra.mxu0 0.0
    %6464 = vmatprep.subr.mxu0 0.0
    %6465 = vmatpush1.msra.mxu0 0.0
    %6466 = vmatprep.subr.mxu0 0.0
    %6467 = vmatpush1.msra.mxu0 0.0
    %6468 = vmatprep.subr.mxu0 0.0
    %6469 = vmatpush1.msra.mxu0 0.0
    %6470 = vmatprep.subr.mxu0 0.0
    %6471 = vmatpush1.msra.mxu0 0.0
    %6472 = vmatprep.subr.mxu0 0.0
    %6473 = vmatpush1.msra.mxu0 0.0
    %6474 = vmatprep.subr.mxu0 0.0
    %6475 = vmatpush1.msra.mxu0 0.0
    %6476 = vmatprep.subr.mxu0 0.0
    %6477 = vmatpush1.msra.mxu0 0.0
    %6478 = vmatprep.subr.mxu0 0.0
    %6479 = vmatpush1.msra.mxu0 0.0
    %6480 = vmatprep.subr.mxu0 0.0
    %6481 = vmatpush1.msra.mxu0 0.0
    %6482 = vmatprep.subr.mxu0 0.0
    %6483 = vmatpush1.msra.mxu0 0.0
    %6484 = vmatprep.subr.mxu0 0.0
    %6485 = vmatpush1.msra.mxu0 0.0
    %6486 = vmatprep.subr.mxu0 0.0
    %6487 = vmatpush1.msra.mxu0 0.0
    %6488 = vmatprep.subr.mxu0 0.0
    %6489 = vmatpush1.msra.mxu0 0.0
    %6490 = vmatprep.subr.mxu0 0.0
    %6491 = vmatpush1.msra.mxu0 0.0
    %6492 = vmatprep.mubr.f32.mxu0 0.0
    %6493 = vmatmul.mubr.f32.gmra.mrb[0].mxu0 %v5723
    %v6494 = vpop.f32.mrb[0].mxu0
    %v6495 = vadd.f32 0.0, %v6494
    %v6496 = vpop.f32.mrb[0].mxu0
    %6497 = vdwg.mxu0
    %v6499 = vrot.slane %v6495, 4
    %v6501 = vadd.f32 %v365, %v6499
    %v6502 = vld [vmem:[%s715] sm:$0xff]
    %v6503 = vld [vmem:[%s715 + $0x8] sm:$0xff]
    %v6504 = vld [vmem:[%s715 + $0x10] sm:$0xff]
    %v6505 = vld [vmem:[%s715 + $0x18] sm:$0xff]
    %6506 = vmatprep.subr.mxu0 0.0
    %6507 = vmatpush1.msra.mxu0 %v6502
    %6508 = vmatprep.subr.mxu0 0.0
    %6509 = vmatpush1.msra.mxu0 %v6503
    %6510 = vmatprep.subr.mxu0 0.0
    %6511 = vmatpush1.msra.mxu0 %v6504
    %6512 = vmatprep.subr.mxu0 0.0
    %6513 = vmatpush1.msra.mxu0 %v6505
    %6514 = vmatprep.subr.mxu0 0.0
    %6515 = vmatpush1.msra.mxu0 0.0
    %6516 = vmatprep.subr.mxu0 0.0
    %6517 = vmatpush1.msra.mxu0 0.0
    %6518 = vmatprep.subr.mxu0 0.0
    %6519 = vmatpush1.msra.mxu0 0.0
    %6520 = vmatprep.subr.mxu0 0.0
    %6521 = vmatpush1.msra.mxu0 0.0
    %6522 = vmatprep.subr.mxu0 0.0
    %6523 = vmatpush1.msra.mxu0 0.0
    %6524 = vmatprep.subr.mxu0 0.0
    %6525 = vmatpush1.msra.mxu0 0.0
    %6526 = vmatprep.subr.mxu0 0.0
    %6527 = vmatpush1.msra.mxu0 0.0
    %6528 = vmatprep.subr.mxu0 0.0
    %6529 = vmatpush1.msra.mxu0 0.0
    %6530 = vmatprep.subr.mxu0 0.0
    %6531 = vmatpush1.msra.mxu0 0.0
    %6532 = vmatprep.subr.mxu0 0.0
    %6533 = vmatpush1.msra.mxu0 0.0
    %6534 = vmatprep.subr.mxu0 0.0
    %6535 = vmatpush1.msra.mxu0 0.0
    %6536 = vmatprep.subr.mxu0 0.0
    %6537 = vmatpush1.msra.mxu0 0.0
    %6538 = vmatprep.subr.mxu0 0.0
    %6539 = vmatpush1.msra.mxu0 0.0
    %6540 = vmatprep.subr.mxu0 0.0
    %6541 = vmatpush1.msra.mxu0 0.0
    %6542 = vmatprep.subr.mxu0 0.0
    %6543 = vmatpush1.msra.mxu0 0.0
    %6544 = vmatprep.subr.mxu0 0.0
    %6545 = vmatpush1.msra.mxu0 0.0
    %6546 = vmatprep.subr.mxu0 0.0
    %6547 = vmatpush1.msra.mxu0 0.0
    %6548 = vmatprep.subr.mxu0 0.0
    %6549 = vmatpush1.msra.mxu0 0.0
    %6550 = vmatprep.subr.mxu0 0.0
    %6551 = vmatpush1.msra.mxu0 0.0
    %6552 = vmatprep.subr.mxu0 0.0
    %6553 = vmatpush1.msra.mxu0 0.0
    %6554 = vmatprep.subr.mxu0 0.0
    %6555 = vmatpush1.msra.mxu0 0.0
    %6556 = vmatprep.subr.mxu0 0.0
    %6557 = vmatpush1.msra.mxu0 0.0
    %6558 = vmatprep.subr.mxu0 0.0
    %6559 = vmatpush1.msra.mxu0 0.0
    %6560 = vmatprep.subr.mxu0 0.0
    %6561 = vmatpush1.msra.mxu0 0.0
    %6562 = vmatprep.subr.mxu0 0.0
    %6563 = vmatpush1.msra.mxu0 0.0
    %6564 = vmatprep.subr.mxu0 0.0
    %6565 = vmatpush1.msra.mxu0 0.0
    %6566 = vmatprep.subr.mxu0 0.0
    %6567 = vmatpush1.msra.mxu0 0.0
    %6568 = vmatprep.subr.mxu0 0.0
    %6569 = vmatpush1.msra.mxu0 0.0
    %6570 = vmatprep.mubr.f32.mxu0 0.0
    %6571 = vmatmul.mubr.f32.gmra.mrb[0].mxu0 %v5723
    %v6572 = vpop.f32.mrb[0].mxu0
    %v6573 = vadd.f32 0.0, %v6572
    %v6574 = vpop.f32.mrb[0].mxu0
    %6575 = vdwg.mxu0
    %v6577 = vrot.slane %v6573, 4
    %v6579 = vadd.f32 %v450, %v6577
    %v6580 = vxor.u32 %v6345, 2147483648
    %v6581 = vmul.f32 %v6580, 1.442695
    %v6582 = vpow.pop %v6581
    %v6583 = vadd.f32 %v6582, 1.0
    %v6584 = vrcp.pop %v6583
    %v6585 = vmul.f32 1.0, %v6584
    %v6586 = vxor.u32 %v6423, 2147483648
    %v6587 = vmul.f32 %v6586, 1.442695
    %v6588 = vpow.pop %v6587
    %v6589 = vadd.f32 %v6588, 1.0
    %v6590 = vrcp.pop %v6589
    %v6591 = vmul.f32 1.0, %v6590
    %v6592 = vtanh.pop %v6501
    %v6593 = vxor.u32 %v6579, 2147483648
    %v6594 = vmul.f32 %v6593, 1.442695
    %v6595 = vpow.pop %v6594
    %v6596 = vadd.f32 %v6595, 1.0
    %v6597 = vrcp.pop %v6596
    %v6598 = vmul.f32 1.0, %v6597
    %v6600 = vrot.slane %v5637, 6
    %v6602 = vmul.f32 %v6591, %v6600
    %v6603 = vmul.f32 %v6585, %v6592
    %v6604 = vadd.f32 %v6602, %v6603
    %v6605 = vtanh.pop %v6604
    %v6606 = vmul.f32 %v6598, %v6605
    %v6607 = vld [vmem:[#allocation5] sm:$0xff]
    %v6608 = vld [vmem:[#allocation5 + $0x8] sm:$0xff]
    %v6609 = vld [vmem:[#allocation5 + $0x10] sm:$0xff]
    %v6610 = vld [vmem:[#allocation5 + $0x18] sm:$0xff]
    %v6611 = vld [vmem:[#allocation7] sm:$0xff]
    %v6612 = vld [vmem:[#allocation7 + $0x8] sm:$0xff]
    %v6613 = vld [vmem:[#allocation7 + $0x10] sm:$0xff]
    %v6614 = vld [vmem:[#allocation7 + $0x18] sm:$0xff]
    %v6616 = vsel %vm488, %v6266, 0
    %6618 = vmatprep.subr.mxu0 0.0
    %6619 = vmatpush1.msra.mxu0 %v6611
    %6620 = vmatprep.subr.mxu0 0.0
    %6621 = vmatpush1.msra.mxu0 %v6612
    %6622 = vmatprep.subr.mxu0 0.0
    %6623 = vmatpush1.msra.mxu0 %v6613
    %6624 = vmatprep.subr.mxu0 0.0
    %6625 = vmatpush1.msra.mxu0 %v6614
    %6626 = vmatprep.subr.mxu0 0.0
    %6627 = vmatpush1.msra.mxu0 0.0
    %6628 = vmatprep.subr.mxu0 0.0
    %6629 = vmatpush1.msra.mxu0 0.0
    %6630 = vmatprep.subr.mxu0 0.0
    %6631 = vmatpush1.msra.mxu0 0.0
    %6632 = vmatprep.subr.mxu0 0.0
    %6633 = vmatpush1.msra.mxu0 0.0
    %6634 = vmatprep.subr.mxu0 0.0
    %6635 = vmatpush1.msra.mxu0 0.0
    %6636 = vmatprep.subr.mxu0 0.0
    %6637 = vmatpush1.msra.mxu0 0.0
    %6638 = vmatprep.subr.mxu0 0.0
    %6639 = vmatpush1.msra.mxu0 0.0
    %6640 = vmatprep.subr.mxu0 0.0
    %6641 = vmatpush1.msra.mxu0 0.0
    %6642 = vmatprep.subr.mxu0 0.0
    %6643 = vmatpush1.msra.mxu0 0.0
    %6644 = vmatprep.subr.mxu0 0.0
    %6645 = vmatpush1.msra.mxu0 0.0
    %6646 = vmatprep.subr.mxu0 0.0
    %6647 = vmatpush1.msra.mxu0 0.0
    %6648 = vmatprep.subr.mxu0 0.0
    %6649 = vmatpush1.msra.mxu0 0.0
    %6650 = vmatprep.subr.mxu0 0.0
    %6651 = vmatpush1.msra.mxu0 0.0
    %6652 = vmatprep.subr.mxu0 0.0
    %6653 = vmatpush1.msra.mxu0 0.0
    %6654 = vmatprep.subr.mxu0 0.0
    %6655 = vmatpush1.msra.mxu0 0.0
    %6656 = vmatprep.subr.mxu0 0.0
    %6657 = vmatpush1.msra.mxu0 0.0
    %6658 = vmatprep.subr.mxu0 0.0
    %6659 = vmatpush1.msra.mxu0 0.0
    %6660 = vmatprep.subr.mxu0 0.0
    %6661 = vmatpush1.msra.mxu0 0.0
    %6662 = vmatprep.subr.mxu0 0.0
    %6663 = vmatpush1.msra.mxu0 0.0
    %6664 = vmatprep.subr.mxu0 0.0
    %6665 = vmatpush1.msra.mxu0 0.0
    %6666 = vmatprep.subr.mxu0 0.0
    %6667 = vmatpush1.msra.mxu0 0.0
    %6668 = vmatprep.subr.mxu0 0.0
    %6669 = vmatpush1.msra.mxu0 0.0
    %6670 = vmatprep.subr.mxu0 0.0
    %6671 = vmatpush1.msra.mxu0 0.0
    %6672 = vmatprep.subr.mxu0 0.0
    %6673 = vmatpush1.msra.mxu0 0.0
    %6674 = vmatprep.subr.mxu0 0.0
    %6675 = vmatpush1.msra.mxu0 0.0
    %6676 = vmatprep.subr.mxu0 0.0
    %6677 = vmatpush1.msra.mxu0 0.0
    %6678 = vmatprep.subr.mxu0 0.0
    %6679 = vmatpush1.msra.mxu0 0.0
    %6680 = vmatprep.subr.mxu0 0.0
    %6681 = vmatpush1.msra.mxu0 0.0
    %6682 = vmatprep.mubr.f32.mxu0 0.0
    %6683 = vmatmul.mubr.f32.gmra.mrb[0].mxu0 %v6616
    %v6684 = vpop.f32.mrb[0].mxu0
    %v6685 = vadd.f32 0.0, %v6684
    %v6686 = vpop.f32.mrb[0].mxu0
    %6687 = vdwg.mxu0
    %v6689 = vrot.slane %v6606, 4
    %v6690 = vsel %vm488, %v6689, 0
    %6692 = vmatprep.subr.mxu0 0.0
    %6693 = vmatpush1.msra.mxu0 %v6607
    %6694 = vmatprep.subr.mxu0 0.0
    %6695 = vmatpush1.msra.mxu0 %v6608
    %6696 = vmatprep.subr.mxu0 0.0
    %6697 = vmatpush1.msra.mxu0 %v6609
    %6698 = vmatprep.subr.mxu0 0.0
    %6699 = vmatpush1.msra.mxu0 %v6610
    %6700 = vmatprep.subr.mxu0 0.0
    %6701 = vmatpush1.msra.mxu0 0.0
    %6702 = vmatprep.subr.mxu0 0.0
    %6703 = vmatpush1.msra.mxu0 0.0
    %6704 = vmatprep.subr.mxu0 0.0
    %6705 = vmatpush1.msra.mxu0 0.0
    %6706 = vmatprep.subr.mxu0 0.0
    %6707 = vmatpush1.msra.mxu0 0.0
    %6708 = vmatprep.subr.mxu0 0.0
    %6709 = vmatpush1.msra.mxu0 0.0
    %6710 = vmatprep.subr.mxu0 0.0
    %6711 = vmatpush1.msra.mxu0 0.0
    %6712 = vmatprep.subr.mxu0 0.0
    %6713 = vmatpush1.msra.mxu0 0.0
    %6714 = vmatprep.subr.mxu0 0.0
    %6715 = vmatpush1.msra.mxu0 0.0
    %6716 = vmatprep.subr.mxu0 0.0
    %6717 = vmatpush1.msra.mxu0 0.0
    %6718 = vmatprep.subr.mxu0 0.0
    %6719 = vmatpush1.msra.mxu0 0.0
    %6720 = vmatprep.subr.mxu0 0.0
    %6721 = vmatpush1.msra.mxu0 0.0
    %6722 = vmatprep.subr.mxu0 0.0
    %6723 = vmatpush1.msra.mxu0 0.0
    %6724 = vmatprep.subr.mxu0 0.0
    %6725 = vmatpush1.msra.mxu0 0.0
    %6726 = vmatprep.subr.mxu0 0.0
    %6727 = vmatpush1.msra.mxu0 0.0
    %6728 = vmatprep.subr.mxu0 0.0
    %6729 = vmatpush1.msra.mxu0 0.0
    %6730 = vmatprep.subr.mxu0 0.0
    %6731 = vmatpush1.msra.mxu0 0.0
    %6732 = vmatprep.subr.mxu0 0.0
    %6733 = vmatpush1.msra.mxu0 0.0
    %6734 = vmatprep.subr.mxu0 0.0
    %6735 = vmatpush1.msra.mxu0 0.0
    %6736 = vmatprep.subr.mxu0 0.0
    %6737 = vmatpush1.msra.mxu0 0.0
    %6738 = vmatprep.subr.mxu0 0.0
    %6739 = vmatpush1.msra.mxu0 0.0
    %6740 = vmatprep.subr.mxu0 0.0
    %6741 = vmatpush1.msra.mxu0 0.0
    %6742 = vmatprep.subr.mxu0 0.0
    %6743 = vmatpush1.msra.mxu0 0.0
    %6744 = vmatprep.subr.mxu0 0.0
    %6745 = vmatpush1.msra.mxu0 0.0
    %6746 = vmatprep.subr.mxu0 0.0
    %6747 = vmatpush1.msra.mxu0 0.0
    %6748 = vmatprep.subr.mxu0 0.0
    %6749 = vmatpush1.msra.mxu0 0.0
    %6750 = vmatprep.subr.mxu0 0.0
    %6751 = vmatpush1.msra.mxu0 0.0
    %6752 = vmatprep.subr.mxu0 0.0
    %6753 = vmatpush1.msra.mxu0 0.0
    %6754 = vmatprep.subr.mxu0 0.0
    %6755 = vmatpush1.msra.mxu0 0.0
    %6756 = vmatprep.mubr.f32.mxu0 0.0
    %6757 = vmatmul.mubr.f32.gmra.mrb[0].mxu0 %v6690
    %v6758 = vpop.f32.mrb[0].mxu0
    %v6759 = vadd.f32 %v6685, %v6758
    %v6760 = vpop.f32.mrb[0].mxu0
    %6761 = vdwg.mxu0
    %v6762 = vadd.f32 %v6759, %v458
    %v6763 = vld [vmem:[%s967] sm:$0xff]
    %v6764 = vld [vmem:[%s967 + $0x8] sm:$0xff]
    %v6765 = vld [vmem:[%s967 + $0x10] sm:$0xff]
    %v6766 = vld [vmem:[%s967 + $0x18] sm:$0xff]
    %v6767 = vld [vmem:[%s972] sm:$0xff]
    %v6768 = vld [vmem:[%s972 + $0x8] sm:$0xff]
    %v6769 = vld [vmem:[%s972 + $0x10] sm:$0xff]
    %v6770 = vld [vmem:[%s972 + $0x18] sm:$0xff]
    %6771 = vmatprep.subr.mxu0 0.0
    %6772 = vmatpush1.msra.mxu0 %v6767
    %6773 = vmatprep.subr.mxu0 0.0
    %6774 = vmatpush1.msra.mxu0 %v6768
    %6775 = vmatprep.subr.mxu0 0.0
    %6776 = vmatpush1.msra.mxu0 %v6769
    %6777 = vmatprep.subr.mxu0 0.0
    %6778 = vmatpush1.msra.mxu0 %v6770
    %6779 = vmatprep.subr.mxu0 0.0
    %6780 = vmatpush1.msra.mxu0 0.0
    %6781 = vmatprep.subr.mxu0 0.0
    %6782 = vmatpush1.msra.mxu0 0.0
    %6783 = vmatprep.subr.mxu0 0.0
    %6784 = vmatpush1.msra.mxu0 0.0
    %6785 = vmatprep.subr.mxu0 0.0
    %6786 = vmatpush1.msra.mxu0 0.0
    %6787 = vmatprep.subr.mxu0 0.0
    %6788 = vmatpush1.msra.mxu0 0.0
    %6789 = vmatprep.subr.mxu0 0.0
    %6790 = vmatpush1.msra.mxu0 0.0
    %6791 = vmatprep.subr.mxu0 0.0
    %6792 = vmatpush1.msra.mxu0 0.0
    %6793 = vmatprep.subr.mxu0 0.0
    %6794 = vmatpush1.msra.mxu0 0.0
    %6795 = vmatprep.subr.mxu0 0.0
    %6796 = vmatpush1.msra.mxu0 0.0
    %6797 = vmatprep.subr.mxu0 0.0
    %6798 = vmatpush1.msra.mxu0 0.0
    %6799 = vmatprep.subr.mxu0 0.0
    %6800 = vmatpush1.msra.mxu0 0.0
    %6801 = vmatprep.subr.mxu0 0.0
    %6802 = vmatpush1.msra.mxu0 0.0
    %6803 = vmatprep.subr.mxu0 0.0
    %6804 = vmatpush1.msra.mxu0 0.0
    %6805 = vmatprep.subr.mxu0 0.0
    %6806 = vmatpush1.msra.mxu0 0.0
    %6807 = vmatprep.subr.mxu0 0.0
    %6808 = vmatpush1.msra.mxu0 0.0
    %6809 = vmatprep.subr.mxu0 0.0
    %6810 = vmatpush1.msra.mxu0 0.0
    %6811 = vmatprep.subr.mxu0 0.0
    %6812 = vmatpush1.msra.mxu0 0.0
    %6813 = vmatprep.subr.mxu0 0.0
    %6814 = vmatpush1.msra.mxu0 0.0
    %6815 = vmatprep.subr.mxu0 0.0
    %6816 = vmatpush1.msra.mxu0 0.0
    %6817 = vmatprep.subr.mxu0 0.0
    %6818 = vmatpush1.msra.mxu0 0.0
    %6819 = vmatprep.subr.mxu0 0.0
    %6820 = vmatpush1.msra.mxu0 0.0
    %6821 = vmatprep.subr.mxu0 0.0
    %6822 = vmatpush1.msra.mxu0 0.0
    %6823 = vmatprep.subr.mxu0 0.0
    %6824 = vmatpush1.msra.mxu0 0.0
    %6825 = vmatprep.subr.mxu0 0.0
    %6826 = vmatpush1.msra.mxu0 0.0
    %6827 = vmatprep.subr.mxu0 0.0
    %6828 = vmatpush1.msra.mxu0 0.0
    %6829 = vmatprep.subr.mxu0 0.0
    %6830 = vmatpush1.msra.mxu0 0.0
    %6831 = vmatprep.subr.mxu0 0.0
    %6832 = vmatpush1.msra.mxu0 0.0
    %6833 = vmatprep.subr.mxu0 0.0
    %6834 = vmatpush1.msra.mxu0 0.0
    %6835 = vmatprep.mubr.f32.mxu0 0.0
    %6836 = vmatmul.mubr.f32.gmra.mrb[0].mxu0 %v6616
    %v6837 = vpop.f32.mrb[0].mxu0
    %v6838 = vadd.f32 0.0, %v6837
    %v6839 = vpop.f32.mrb[0].mxu0
    %6840 = vdwg.mxu0
    %6841 = vmatprep.subr.mxu0 0.0
    %6842 = vmatpush1.msra.mxu0 %v6763
    %6843 = vmatprep.subr.mxu0 0.0
    %6844 = vmatpush1.msra.mxu0 %v6764
    %6845 = vmatprep.subr.mxu0 0.0
    %6846 = vmatpush1.msra.mxu0 %v6765
    %6847 = vmatprep.subr.mxu0 0.0
    %6848 = vmatpush1.msra.mxu0 %v6766
    %6849 = vmatprep.subr.mxu0 0.0
    %6850 = vmatpush1.msra.mxu0 0.0
    %6851 = vmatprep.subr.mxu0 0.0
    %6852 = vmatpush1.msra.mxu0 0.0
    %6853 = vmatprep.subr.mxu0 0.0
    %6854 = vmatpush1.msra.mxu0 0.0
    %6855 = vmatprep.subr.mxu0 0.0
    %6856 = vmatpush1.msra.mxu0 0.0
    %6857 = vmatprep.subr.mxu0 0.0
    %6858 = vmatpush1.msra.mxu0 0.0
    %6859 = vmatprep.subr.mxu0 0.0
    %6860 = vmatpush1.msra.mxu0 0.0
    %6861 = vmatprep.subr.mxu0 0.0
    %6862 = vmatpush1.msra.mxu0 0.0
    %6863 = vmatprep.subr.mxu0 0.0
    %6864 = vmatpush1.msra.mxu0 0.0
    %6865 = vmatprep.subr.mxu0 0.0
    %6866 = vmatpush1.msra.mxu0 0.0
    %6867 = vmatprep.subr.mxu0 0.0
    %6868 = vmatpush1.msra.mxu0 0.0
    %6869 = vmatprep.subr.mxu0 0.0
    %6870 = vmatpush1.msra.mxu0 0.0
    %6871 = vmatprep.subr.mxu0 0.0
    %6872 = vmatpush1.msra.mxu0 0.0
    %6873 = vmatprep.subr.mxu0 0.0
    %6874 = vmatpush1.msra.mxu0 0.0
    %6875 = vmatprep.subr.mxu0 0.0
    %6876 = vmatpush1.msra.mxu0 0.0
    %6877 = vmatprep.subr.mxu0 0.0
    %6878 = vmatpush1.msra.mxu0 0.0
    %6879 = vmatprep.subr.mxu0 0.0
    %6880 = vmatpush1.msra.mxu0 0.0
    %6881 = vmatprep.subr.mxu0 0.0
    %6882 = vmatpush1.msra.mxu0 0.0
    %6883 = vmatprep.subr.mxu0 0.0
    %6884 = vmatpush1.msra.mxu0 0.0
    %6885 = vmatprep.subr.mxu0 0.0
    %6886 = vmatpush1.msra.mxu0 0.0
    %6887 = vmatprep.subr.mxu0 0.0
    %6888 = vmatpush1.msra.mxu0 0.0
    %6889 = vmatprep.subr.mxu0 0.0
    %6890 = vmatpush1.msra.mxu0 0.0
    %6891 = vmatprep.subr.mxu0 0.0
    %6892 = vmatpush1.msra.mxu0 0.0
    %6893 = vmatprep.subr.mxu0 0.0
    %6894 = vmatpush1.msra.mxu0 0.0
    %6895 = vmatprep.subr.mxu0 0.0
    %6896 = vmatpush1.msra.mxu0 0.0
    %6897 = vmatprep.subr.mxu0 0.0
    %6898 = vmatpush1.msra.mxu0 0.0
    %6899 = vmatprep.subr.mxu0 0.0
    %6900 = vmatpush1.msra.mxu0 0.0
    %6901 = vmatprep.subr.mxu0 0.0
    %6902 = vmatpush1.msra.mxu0 0.0
    %6903 = vmatprep.subr.mxu0 0.0
    %6904 = vmatpush1.msra.mxu0 0.0
    %6905 = vmatprep.mubr.f32.mxu0 0.0
    %6906 = vmatmul.mubr.f32.gmra.mrb[0].mxu0 %v6690
    %v6907 = vpop.f32.mrb[0].mxu0
    %v6908 = vadd.f32 %v6838, %v6907
    %v6909 = vpop.f32.mrb[0].mxu0
    %6910 = vdwg.mxu0
    %v6911 = vadd.f32 %v6908, %v466
    %v6912 = vld [vmem:[%s1118] sm:$0xff]
    %v6913 = vld [vmem:[%s1118 + $0x8] sm:$0xff]
    %v6914 = vld [vmem:[%s1118 + $0x10] sm:$0xff]
    %v6915 = vld [vmem:[%s1118 + $0x18] sm:$0xff]
    %v6916 = vld [vmem:[%s1123] sm:$0xff]
    %v6917 = vld [vmem:[%s1123 + $0x8] sm:$0xff]
    %v6918 = vld [vmem:[%s1123 + $0x10] sm:$0xff]
    %v6919 = vld [vmem:[%s1123 + $0x18] sm:$0xff]
    %6920 = vmatprep.subr.mxu0 0.0
    %6921 = vmatpush1.msra.mxu0 %v6916
    %6922 = vmatprep.subr.mxu0 0.0
    %6923 = vmatpush1.msra.mxu0 %v6917
    %6924 = vmatprep.subr.mxu0 0.0
    %6925 = vmatpush1.msra.mxu0 %v6918
    %6926 = vmatprep.subr.mxu0 0.0
    %6927 = vmatpush1.msra.mxu0 %v6919
    %6928 = vmatprep.subr.mxu0 0.0
    %6929 = vmatpush1.msra.mxu0 0.0
    %6930 = vmatprep.subr.mxu0 0.0
    %6931 = vmatpush1.msra.mxu0 0.0
    %6932 = vmatprep.subr.mxu0 0.0
    %6933 = vmatpush1.msra.mxu0 0.0
    %6934 = vmatprep.subr.mxu0 0.0
    %6935 = vmatpush1.msra.mxu0 0.0
    %6936 = vmatprep.subr.mxu0 0.0
    %6937 = vmatpush1.msra.mxu0 0.0
    %6938 = vmatprep.subr.mxu0 0.0
    %6939 = vmatpush1.msra.mxu0 0.0
    %6940 = vmatprep.subr.mxu0 0.0
    %6941 = vmatpush1.msra.mxu0 0.0
    %6942 = vmatprep.subr.mxu0 0.0
    %6943 = vmatpush1.msra.mxu0 0.0
    %6944 = vmatprep.subr.mxu0 0.0
    %6945 = vmatpush1.msra.mxu0 0.0
    %6946 = vmatprep.subr.mxu0 0.0
    %6947 = vmatpush1.msra.mxu0 0.0
    %6948 = vmatprep.subr.mxu0 0.0
    %6949 = vmatpush1.msra.mxu0 0.0
    %6950 = vmatprep.subr.mxu0 0.0
    %6951 = vmatpush1.msra.mxu0 0.0
    %6952 = vmatprep.subr.mxu0 0.0
    %6953 = vmatpush1.msra.mxu0 0.0
    %6954 = vmatprep.subr.mxu0 0.0
    %6955 = vmatpush1.msra.mxu0 0.0
    %6956 = vmatprep.subr.mxu0 0.0
    %6957 = vmatpush1.msra.mxu0 0.0
    %6958 = vmatprep.subr.mxu0 0.0
    %6959 = vmatpush1.msra.mxu0 0.0
    %6960 = vmatprep.subr.mxu0 0.0
    %6961 = vmatpush1.msra.mxu0 0.0
    %6962 = vmatprep.subr.mxu0 0.0
    %6963 = vmatpush1.msra.mxu0 0.0
    %6964 = vmatprep.subr.mxu0 0.0
    %6965 = vmatpush1.msra.mxu0 0.0
    %6966 = vmatprep.subr.mxu0 0.0
    %6967 = vmatpush1.msra.mxu0 0.0
    %6968 = vmatprep.subr.mxu0 0.0
    %6969 = vmatpush1.msra.mxu0 0.0
    %6970 = vmatprep.subr.mxu0 0.0
    %6971 = vmatpush1.msra.mxu0 0.0
    %6972 = vmatprep.subr.mxu0 0.0
    %6973 = vmatpush1.msra.mxu0 0.0
    %6974 = vmatprep.subr.mxu0 0.0
    %6975 = vmatpush1.msra.mxu0 0.0
    %6976 = vmatprep.subr.mxu0 0.0
    %6977 = vmatpush1.msra.mxu0 0.0
    %6978 = vmatprep.subr.mxu0 0.0
    %6979 = vmatpush1.msra.mxu0 0.0
    %6980 = vmatprep.subr.mxu0 0.0
    %6981 = vmatpush1.msra.mxu0 0.0
    %6982 = vmatprep.subr.mxu0 0.0
    %6983 = vmatpush1.msra.mxu0 0.0
    %6984 = vmatprep.mubr.f32.mxu0 0.0
    %6985 = vmatmul.mubr.f32.gmra.mrb[0].mxu0 %v6616
    %v6986 = vpop.f32.mrb[0].mxu0
    %v6987 = vadd.f32 0.0, %v6986
    %v6988 = vpop.f32.mrb[0].mxu0
    %6989 = vdwg.mxu0
    %6990 = vmatprep.subr.mxu0 0.0
    %6991 = vmatpush1.msra.mxu0 %v6912
    %6992 = vmatprep.subr.mxu0 0.0
    %6993 = vmatpush1.msra.mxu0 %v6913
    %6994 = vmatprep.subr.mxu0 0.0
    %6995 = vmatpush1.msra.mxu0 %v6914
    %6996 = vmatprep.subr.mxu0 0.0
    %6997 = vmatpush1.msra.mxu0 %v6915
    %6998 = vmatprep.subr.mxu0 0.0
    %6999 = vmatpush1.msra.mxu0 0.0
    %7000 = vmatprep.subr.mxu0 0.0
    %7001 = vmatpush1.msra.mxu0 0.0
    %7002 = vmatprep.subr.mxu0 0.0
    %7003 = vmatpush1.msra.mxu0 0.0
    %7004 = vmatprep.subr.mxu0 0.0
    %7005 = vmatpush1.msra.mxu0 0.0
    %7006 = vmatprep.subr.mxu0 0.0
    %7007 = vmatpush1.msra.mxu0 0.0
    %7008 = vmatprep.subr.mxu0 0.0
    %7009 = vmatpush1.msra.mxu0 0.0
    %7010 = vmatprep.subr.mxu0 0.0
    %7011 = vmatpush1.msra.mxu0 0.0
    %7012 = vmatprep.subr.mxu0 0.0
    %7013 = vmatpush1.msra.mxu0 0.0
    %7014 = vmatprep.subr.mxu0 0.0
    %7015 = vmatpush1.msra.mxu0 0.0
    %7016 = vmatprep.subr.mxu0 0.0
    %7017 = vmatpush1.msra.mxu0 0.0
    %7018 = vmatprep.subr.mxu0 0.0
    %7019 = vmatpush1.msra.mxu0 0.0
    %7020 = vmatprep.subr.mxu0 0.0
    %7021 = vmatpush1.msra.mxu0 0.0
    %7022 = vmatprep.subr.mxu0 0.0
    %7023 = vmatpush1.msra.mxu0 0.0
    %7024 = vmatprep.subr.mxu0 0.0
    %7025 = vmatpush1.msra.mxu0 0.0
    %7026 = vmatprep.subr.mxu0 0.0
    %7027 = vmatpush1.msra.mxu0 0.0
    %7028 = vmatprep.subr.mxu0 0.0
    %7029 = vmatpush1.msra.mxu0 0.0
    %7030 = vmatprep.subr.mxu0 0.0
    %7031 = vmatpush1.msra.mxu0 0.0
    %7032 = vmatprep.subr.mxu0 0.0
    %7033 = vmatpush1.msra.mxu0 0.0
    %7034 = vmatprep.subr.mxu0 0.0
    %7035 = vmatpush1.msra.mxu0 0.0
    %7036 = vmatprep.subr.mxu0 0.0
    %7037 = vmatpush1.msra.mxu0 0.0
    %7038 = vmatprep.subr.mxu0 0.0
    %7039 = vmatpush1.msra.mxu0 0.0
    %7040 = vmatprep.subr.mxu0 0.0
    %7041 = vmatpush1.msra.mxu0 0.0
    %7042 = vmatprep.subr.mxu0 0.0
    %7043 = vmatpush1.msra.mxu0 0.0
    %7044 = vmatprep.subr.mxu0 0.0
    %7045 = vmatpush1.msra.mxu0 0.0
    %7046 = vmatprep.subr.mxu0 0.0
    %7047 = vmatpush1.msra.mxu0 0.0
    %7048 = vmatprep.subr.mxu0 0.0
    %7049 = vmatpush1.msra.mxu0 0.0
    %7050 = vmatprep.subr.mxu0 0.0
    %7051 = vmatpush1.msra.mxu0 0.0
    %7052 = vmatprep.subr.mxu0 0.0
    %7053 = vmatpush1.msra.mxu0 0.0
    %7054 = vmatprep.mubr.f32.mxu0 0.0
    %7055 = vmatmul.mubr.f32.gmra.mrb[0].mxu0 %v6690
    %v7056 = vpop.f32.mrb[0].mxu0
    %v7057 = vadd.f32 %v6987, %v7056
    %v7058 = vpop.f32.mrb[0].mxu0
    %7059 = vdwg.mxu0
    %v7060 = vadd.f32 %v7057, %v474
    %v7061 = vld [vmem:[%s1269] sm:$0xff]
    %v7062 = vld [vmem:[%s1269 + $0x8] sm:$0xff]
    %v7063 = vld [vmem:[%s1269 + $0x10] sm:$0xff]
    %v7064 = vld [vmem:[%s1269 + $0x18] sm:$0xff]
    %v7065 = vld [vmem:[%s1274] sm:$0xff]
    %v7066 = vld [vmem:[%s1274 + $0x8] sm:$0xff]
    %v7067 = vld [vmem:[%s1274 + $0x10] sm:$0xff]
    %v7068 = vld [vmem:[%s1274 + $0x18] sm:$0xff]
    %7069 = vmatprep.subr.mxu0 0.0
    %7070 = vmatpush1.msra.mxu0 %v7065
    %7071 = vmatprep.subr.mxu0 0.0
    %7072 = vmatpush1.msra.mxu0 %v7066
    %7073 = vmatprep.subr.mxu0 0.0
    %7074 = vmatpush1.msra.mxu0 %v7067
    %7075 = vmatprep.subr.mxu0 0.0
    %7076 = vmatpush1.msra.mxu0 %v7068
    %7077 = vmatprep.subr.mxu0 0.0
    %7078 = vmatpush1.msra.mxu0 0.0
    %7079 = vmatprep.subr.mxu0 0.0
    %7080 = vmatpush1.msra.mxu0 0.0
    %7081 = vmatprep.subr.mxu0 0.0
    %7082 = vmatpush1.msra.mxu0 0.0
    %7083 = vmatprep.subr.mxu0 0.0
    %7084 = vmatpush1.msra.mxu0 0.0
    %7085 = vmatprep.subr.mxu0 0.0
    %7086 = vmatpush1.msra.mxu0 0.0
    %7087 = vmatprep.subr.mxu0 0.0
    %7088 = vmatpush1.msra.mxu0 0.0
    %7089 = vmatprep.subr.mxu0 0.0
    %7090 = vmatpush1.msra.mxu0 0.0
    %7091 = vmatprep.subr.mxu0 0.0
    %7092 = vmatpush1.msra.mxu0 0.0
    %7093 = vmatprep.subr.mxu0 0.0
    %7094 = vmatpush1.msra.mxu0 0.0
    %7095 = vmatprep.subr.mxu0 0.0
    %7096 = vmatpush1.msra.mxu0 0.0
    %7097 = vmatprep.subr.mxu0 0.0
    %7098 = vmatpush1.msra.mxu0 0.0
    %7099 = vmatprep.subr.mxu0 0.0
    %7100 = vmatpush1.msra.mxu0 0.0
    %7101 = vmatprep.subr.mxu0 0.0
    %7102 = vmatpush1.msra.mxu0 0.0
    %7103 = vmatprep.subr.mxu0 0.0
    %7104 = vmatpush1.msra.mxu0 0.0
    %7105 = vmatprep.subr.mxu0 0.0
    %7106 = vmatpush1.msra.mxu0 0.0
    %7107 = vmatprep.subr.mxu0 0.0
    %7108 = vmatpush1.msra.mxu0 0.0
    %7109 = vmatprep.subr.mxu0 0.0
    %7110 = vmatpush1.msra.mxu0 0.0
    %7111 = vmatprep.subr.mxu0 0.0
    %7112 = vmatpush1.msra.mxu0 0.0
    %7113 = vmatprep.subr.mxu0 0.0
    %7114 = vmatpush1.msra.mxu0 0.0
    %7115 = vmatprep.subr.mxu0 0.0
    %7116 = vmatpush1.msra.mxu0 0.0
    %7117 = vmatprep.subr.mxu0 0.0
    %7118 = vmatpush1.msra.mxu0 0.0
    %7119 = vmatprep.subr.mxu0 0.0
    %7120 = vmatpush1.msra.mxu0 0.0
    %7121 = vmatprep.subr.mxu0 0.0
    %7122 = vmatpush1.msra.mxu0 0.0
    %7123 = vmatprep.subr.mxu0 0.0
    %7124 = vmatpush1.msra.mxu0 0.0
    %7125 = vmatprep.subr.mxu0 0.0
    %7126 = vmatpush1.msra.mxu0 0.0
    %7127 = vmatprep.subr.mxu0 0.0
    %7128 = vmatpush1.msra.mxu0 0.0
    %7129 = vmatprep.subr.mxu0 0.0
    %7130 = vmatpush1.msra.mxu0 0.0
    %7131 = vmatprep.subr.mxu0 0.0
    %7132 = vmatpush1.msra.mxu0 0.0
    %7133 = vmatprep.mubr.f32.mxu0 0.0
    %7134 = vmatmul.mubr.f32.gmra.mrb[0].mxu0 %v6616
    %v7135 = vpop.f32.mrb[0].mxu0
    %v7136 = vadd.f32 0.0, %v7135
    %v7137 = vpop.f32.mrb[0].mxu0
    %7138 = vdwg.mxu0
    %7139 = vmatprep.subr.mxu0 0.0
    %7140 = vmatpush1.msra.mxu0 %v7061
    %7141 = vmatprep.subr.mxu0 0.0
    %7142 = vmatpush1.msra.mxu0 %v7062
    %7143 = vmatprep.subr.mxu0 0.0
    %7144 = vmatpush1.msra.mxu0 %v7063
    %7145 = vmatprep.subr.mxu0 0.0
    %7146 = vmatpush1.msra.mxu0 %v7064
    %7147 = vmatprep.subr.mxu0 0.0
    %7148 = vmatpush1.msra.mxu0 0.0
    %7149 = vmatprep.subr.mxu0 0.0
    %7150 = vmatpush1.msra.mxu0 0.0
    %7151 = vmatprep.subr.mxu0 0.0
    %7152 = vmatpush1.msra.mxu0 0.0
    %7153 = vmatprep.subr.mxu0 0.0
    %7154 = vmatpush1.msra.mxu0 0.0
    %7155 = vmatprep.subr.mxu0 0.0
    %7156 = vmatpush1.msra.mxu0 0.0
    %7157 = vmatprep.subr.mxu0 0.0
    %7158 = vmatpush1.msra.mxu0 0.0
    %7159 = vmatprep.subr.mxu0 0.0
    %7160 = vmatpush1.msra.mxu0 0.0
    %7161 = vmatprep.subr.mxu0 0.0
    %7162 = vmatpush1.msra.mxu0 0.0
    %7163 = vmatprep.subr.mxu0 0.0
    %7164 = vmatpush1.msra.mxu0 0.0
    %7165 = vmatprep.subr.mxu0 0.0
    %7166 = vmatpush1.msra.mxu0 0.0
    %7167 = vmatprep.subr.mxu0 0.0
    %7168 = vmatpush1.msra.mxu0 0.0
    %7169 = vmatprep.subr.mxu0 0.0
    %7170 = vmatpush1.msra.mxu0 0.0
    %7171 = vmatprep.subr.mxu0 0.0
    %7172 = vmatpush1.msra.mxu0 0.0
    %7173 = vmatprep.subr.mxu0 0.0
    %7174 = vmatpush1.msra.mxu0 0.0
    %7175 = vmatprep.subr.mxu0 0.0
    %7176 = vmatpush1.msra.mxu0 0.0
    %7177 = vmatprep.subr.mxu0 0.0
    %7178 = vmatpush1.msra.mxu0 0.0
    %7179 = vmatprep.subr.mxu0 0.0
    %7180 = vmatpush1.msra.mxu0 0.0
    %7181 = vmatprep.subr.mxu0 0.0
    %7182 = vmatpush1.msra.mxu0 0.0
    %7183 = vmatprep.subr.mxu0 0.0
    %7184 = vmatpush1.msra.mxu0 0.0
    %7185 = vmatprep.subr.mxu0 0.0
    %7186 = vmatpush1.msra.mxu0 0.0
    %7187 = vmatprep.subr.mxu0 0.0
    %7188 = vmatpush1.msra.mxu0 0.0
    %7189 = vmatprep.subr.mxu0 0.0
    %7190 = vmatpush1.msra.mxu0 0.0
    %7191 = vmatprep.subr.mxu0 0.0
    %7192 = vmatpush1.msra.mxu0 0.0
    %7193 = vmatprep.subr.mxu0 0.0
    %7194 = vmatpush1.msra.mxu0 0.0
    %7195 = vmatprep.subr.mxu0 0.0
    %7196 = vmatpush1.msra.mxu0 0.0
    %7197 = vmatprep.subr.mxu0 0.0
    %7198 = vmatpush1.msra.mxu0 0.0
    %7199 = vmatprep.subr.mxu0 0.0
    %7200 = vmatpush1.msra.mxu0 0.0
    %7201 = vmatprep.subr.mxu0 0.0
    %7202 = vmatpush1.msra.mxu0 0.0
    %7203 = vmatprep.mubr.f32.mxu0 0.0
    %7204 = vmatmul.mubr.f32.gmra.mrb[0].mxu0 %v6690
    %v7205 = vpop.f32.mrb[0].mxu0
    %v7206 = vadd.f32 %v7136, %v7205
    %v7207 = vpop.f32.mrb[0].mxu0
    %7208 = vdwg.mxu0
    %v7209 = vadd.f32 %v7206, %v482
    %v7210 = vxor.u32 %v6762, 2147483648
    %v7211 = vmul.f32 %v7210, 1.442695
    %v7212 = vpow.pop %v7211
    %v7213 = vadd.f32 %v7212, 1.0
    %v7214 = vrcp.pop %v7213
    %v7215 = vmul.f32 1.0, %v7214
    %v7216 = vxor.u32 %v6911, 2147483648
    %v7217 = vmul.f32 %v7216, 1.442695
    %v7218 = vpow.pop %v7217
    %v7219 = vadd.f32 %v7218, 1.0
    %v7220 = vrcp.pop %v7219
    %v7221 = vmul.f32 1.0, %v7220
    %v7222 = vtanh.pop %v7060
    %v7223 = vxor.u32 %v7209, 2147483648
    %v7224 = vmul.f32 %v7223, 1.442695
    %v7225 = vpow.pop %v7224
    %v7226 = vadd.f32 %v7225, 1.0
    %v7227 = vrcp.pop %v7226
    %v7228 = vmul.f32 1.0, %v7227
    %v7229 = vmul.f32 %v7221, %v6264
    %v7230 = vmul.f32 %v7215, %v7222
    %v7231 = vadd.f32 %v7229, %v7230
    %v7232 = vtanh.pop %v7231
    %v7233 = vmul.f32 %v7228, %v7232
    %7234 = vst.msk [vmem:[#allocation2 + $0xc] sm:$0x3] %vm1444, %v7233
    %v7235 = vld [vmem:[#allocation3] sm:$0xff]
    %v7236 = vld [vmem:[#allocation3 + $0x8] sm:$0xff]
    %v7237 = vld [vmem:[#allocation3 + $0x10] sm:$0xff]
    %v7238 = vld [vmem:[#allocation3 + $0x18] sm:$0xff]
    %7239 = vmatprep.subr.mxu0 0.0
    %7240 = vmatpush1.msra.mxu0 %v7235
    %7241 = vmatprep.subr.mxu0 0.0
    %7242 = vmatpush1.msra.mxu0 %v7236
    %7243 = vmatprep.subr.mxu0 0.0
    %7244 = vmatpush1.msra.mxu0 %v7237
    %7245 = vmatprep.subr.mxu0 0.0
    %7246 = vmatpush1.msra.mxu0 %v7238
    %7247 = vmatprep.subr.mxu0 0.0
    %7248 = vmatpush1.msra.mxu0 0.0
    %7249 = vmatprep.subr.mxu0 0.0
    %7250 = vmatpush1.msra.mxu0 0.0
    %7251 = vmatprep.subr.mxu0 0.0
    %7252 = vmatpush1.msra.mxu0 0.0
    %7253 = vmatprep.subr.mxu0 0.0
    %7254 = vmatpush1.msra.mxu0 0.0
    %7255 = vmatprep.subr.mxu0 0.0
    %7256 = vmatpush1.msra.mxu0 0.0
    %7257 = vmatprep.subr.mxu0 0.0
    %7258 = vmatpush1.msra.mxu0 0.0
    %7259 = vmatprep.subr.mxu0 0.0
    %7260 = vmatpush1.msra.mxu0 0.0
    %7261 = vmatprep.subr.mxu0 0.0
    %7262 = vmatpush1.msra.mxu0 0.0
    %7263 = vmatprep.subr.mxu0 0.0
    %7264 = vmatpush1.msra.mxu0 0.0
    %7265 = vmatprep.subr.mxu0 0.0
    %7266 = vmatpush1.msra.mxu0 0.0
    %7267 = vmatprep.subr.mxu0 0.0
    %7268 = vmatpush1.msra.mxu0 0.0
    %7269 = vmatprep.subr.mxu0 0.0
    %7270 = vmatpush1.msra.mxu0 0.0
    %7271 = vmatprep.subr.mxu0 0.0
    %7272 = vmatpush1.msra.mxu0 0.0
    %7273 = vmatprep.subr.mxu0 0.0
    %7274 = vmatpush1.msra.mxu0 0.0
    %7275 = vmatprep.subr.mxu0 0.0
    %7276 = vmatpush1.msra.mxu0 0.0
    %7277 = vmatprep.subr.mxu0 0.0
    %7278 = vmatpush1.msra.mxu0 0.0
    %7279 = vmatprep.subr.mxu0 0.0
    %7280 = vmatpush1.msra.mxu0 0.0
    %7281 = vmatprep.subr.mxu0 0.0
    %7282 = vmatpush1.msra.mxu0 0.0
    %7283 = vmatprep.subr.mxu0 0.0
    %7284 = vmatpush1.msra.mxu0 0.0
    %7285 = vmatprep.subr.mxu0 0.0
    %7286 = vmatpush1.msra.mxu0 0.0
    %7287 = vmatprep.subr.mxu0 0.0
    %7288 = vmatpush1.msra.mxu0 0.0
    %7289 = vmatprep.subr.mxu0 0.0
    %7290 = vmatpush1.msra.mxu0 0.0
    %7291 = vmatprep.subr.mxu0 0.0
    %7292 = vmatpush1.msra.mxu0 0.0
    %7293 = vmatprep.subr.mxu0 0.0
    %7294 = vmatpush1.msra.mxu0 0.0
    %7295 = vmatprep.subr.mxu0 0.0
    %7296 = vmatpush1.msra.mxu0 0.0
    %7297 = vmatprep.subr.mxu0 0.0
    %7298 = vmatpush1.msra.mxu0 0.0
    %7299 = vmatprep.subr.mxu0 0.0
    %7300 = vmatpush1.msra.mxu0 0.0
    %7301 = vmatprep.subr.mxu0 0.0
    %7302 = vmatpush1.msra.mxu0 0.0
    %7303 = vmatprep.mubr.f32.mxu0 0.0
    %7304 = vmatmul.mubr.f32.gmra.mrb[0].mxu0 %v6690
    %v7305 = vpop.f32.mrb[0].mxu0
    %v7306 = vadd.f32 0.0, %v7305
    %v7307 = vpop.f32.mrb[0].mxu0
    %7308 = vdwg.mxu0
    %v7310 = vrot.slane %v7306, 2
    %v7312 = vadd.f32 %v195, %v7310
    %v7313 = vld [vmem:[%s563] sm:$0xff]
    %v7314 = vld [vmem:[%s563 + $0x8] sm:$0xff]
    %v7315 = vld [vmem:[%s563 + $0x10] sm:$0xff]
    %v7316 = vld [vmem:[%s563 + $0x18] sm:$0xff]
    %7317 = vmatprep.subr.mxu0 0.0
    %7318 = vmatpush1.msra.mxu0 %v7313
    %7319 = vmatprep.subr.mxu0 0.0
    %7320 = vmatpush1.msra.mxu0 %v7314
    %7321 = vmatprep.subr.mxu0 0.0
    %7322 = vmatpush1.msra.mxu0 %v7315
    %7323 = vmatprep.subr.mxu0 0.0
    %7324 = vmatpush1.msra.mxu0 %v7316
    %7325 = vmatprep.subr.mxu0 0.0
    %7326 = vmatpush1.msra.mxu0 0.0
    %7327 = vmatprep.subr.mxu0 0.0
    %7328 = vmatpush1.msra.mxu0 0.0
    %7329 = vmatprep.subr.mxu0 0.0
    %7330 = vmatpush1.msra.mxu0 0.0
    %7331 = vmatprep.subr.mxu0 0.0
    %7332 = vmatpush1.msra.mxu0 0.0
    %7333 = vmatprep.subr.mxu0 0.0
    %7334 = vmatpush1.msra.mxu0 0.0
    %7335 = vmatprep.subr.mxu0 0.0
    %7336 = vmatpush1.msra.mxu0 0.0
    %7337 = vmatprep.subr.mxu0 0.0
    %7338 = vmatpush1.msra.mxu0 0.0
    %7339 = vmatprep.subr.mxu0 0.0
    %7340 = vmatpush1.msra.mxu0 0.0
    %7341 = vmatprep.subr.mxu0 0.0
    %7342 = vmatpush1.msra.mxu0 0.0
    %7343 = vmatprep.subr.mxu0 0.0
    %7344 = vmatpush1.msra.mxu0 0.0
    %7345 = vmatprep.subr.mxu0 0.0
    %7346 = vmatpush1.msra.mxu0 0.0
    %7347 = vmatprep.subr.mxu0 0.0
    %7348 = vmatpush1.msra.mxu0 0.0
    %7349 = vmatprep.subr.mxu0 0.0
    %7350 = vmatpush1.msra.mxu0 0.0
    %7351 = vmatprep.subr.mxu0 0.0
    %7352 = vmatpush1.msra.mxu0 0.0
    %7353 = vmatprep.subr.mxu0 0.0
    %7354 = vmatpush1.msra.mxu0 0.0
    %7355 = vmatprep.subr.mxu0 0.0
    %7356 = vmatpush1.msra.mxu0 0.0
    %7357 = vmatprep.subr.mxu0 0.0
    %7358 = vmatpush1.msra.mxu0 0.0
    %7359 = vmatprep.subr.mxu0 0.0
    %7360 = vmatpush1.msra.mxu0 0.0
    %7361 = vmatprep.subr.mxu0 0.0
    %7362 = vmatpush1.msra.mxu0 0.0
    %7363 = vmatprep.subr.mxu0 0.0
    %7364 = vmatpush1.msra.mxu0 0.0
    %7365 = vmatprep.subr.mxu0 0.0
    %7366 = vmatpush1.msra.mxu0 0.0
    %7367 = vmatprep.subr.mxu0 0.0
    %7368 = vmatpush1.msra.mxu0 0.0
    %7369 = vmatprep.subr.mxu0 0.0
    %7370 = vmatpush1.msra.mxu0 0.0
    %7371 = vmatprep.subr.mxu0 0.0
    %7372 = vmatpush1.msra.mxu0 0.0
    %7373 = vmatprep.subr.mxu0 0.0
    %7374 = vmatpush1.msra.mxu0 0.0
    %7375 = vmatprep.subr.mxu0 0.0
    %7376 = vmatpush1.msra.mxu0 0.0
    %7377 = vmatprep.subr.mxu0 0.0
    %7378 = vmatpush1.msra.mxu0 0.0
    %7379 = vmatprep.subr.mxu0 0.0
    %7380 = vmatpush1.msra.mxu0 0.0
    %7381 = vmatprep.mubr.f32.mxu0 0.0
    %7382 = vmatmul.mubr.f32.gmra.mrb[0].mxu0 %v6690
    %v7383 = vpop.f32.mrb[0].mxu0
    %v7384 = vadd.f32 0.0, %v7383
    %v7385 = vpop.f32.mrb[0].mxu0
    %7386 = vdwg.mxu0
    %v7388 = vrot.slane %v7384, 2
    %v7390 = vadd.f32 %v280, %v7388
    %v7391 = vld [vmem:[%s639] sm:$0xff]
    %v7392 = vld [vmem:[%s639 + $0x8] sm:$0xff]
    %v7393 = vld [vmem:[%s639 + $0x10] sm:$0xff]
    %v7394 = vld [vmem:[%s639 + $0x18] sm:$0xff]
    %7395 = vmatprep.subr.mxu0 0.0
    %7396 = vmatpush1.msra.mxu0 %v7391
    %7397 = vmatprep.subr.mxu0 0.0
    %7398 = vmatpush1.msra.mxu0 %v7392
    %7399 = vmatprep.subr.mxu0 0.0
    %7400 = vmatpush1.msra.mxu0 %v7393
    %7401 = vmatprep.subr.mxu0 0.0
    %7402 = vmatpush1.msra.mxu0 %v7394
    %7403 = vmatprep.subr.mxu0 0.0
    %7404 = vmatpush1.msra.mxu0 0.0
    %7405 = vmatprep.subr.mxu0 0.0
    %7406 = vmatpush1.msra.mxu0 0.0
    %7407 = vmatprep.subr.mxu0 0.0
    %7408 = vmatpush1.msra.mxu0 0.0
    %7409 = vmatprep.subr.mxu0 0.0
    %7410 = vmatpush1.msra.mxu0 0.0
    %7411 = vmatprep.subr.mxu0 0.0
    %7412 = vmatpush1.msra.mxu0 0.0
    %7413 = vmatprep.subr.mxu0 0.0
    %7414 = vmatpush1.msra.mxu0 0.0
    %7415 = vmatprep.subr.mxu0 0.0
    %7416 = vmatpush1.msra.mxu0 0.0
    %7417 = vmatprep.subr.mxu0 0.0
    %7418 = vmatpush1.msra.mxu0 0.0
    %7419 = vmatprep.subr.mxu0 0.0
    %7420 = vmatpush1.msra.mxu0 0.0
    %7421 = vmatprep.subr.mxu0 0.0
    %7422 = vmatpush1.msra.mxu0 0.0
    %7423 = vmatprep.subr.mxu0 0.0
    %7424 = vmatpush1.msra.mxu0 0.0
    %7425 = vmatprep.subr.mxu0 0.0
    %7426 = vmatpush1.msra.mxu0 0.0
    %7427 = vmatprep.subr.mxu0 0.0
    %7428 = vmatpush1.msra.mxu0 0.0
    %7429 = vmatprep.subr.mxu0 0.0
    %7430 = vmatpush1.msra.mxu0 0.0
    %7431 = vmatprep.subr.mxu0 0.0
    %7432 = vmatpush1.msra.mxu0 0.0
    %7433 = vmatprep.subr.mxu0 0.0
    %7434 = vmatpush1.msra.mxu0 0.0
    %7435 = vmatprep.subr.mxu0 0.0
    %7436 = vmatpush1.msra.mxu0 0.0
    %7437 = vmatprep.subr.mxu0 0.0
    %7438 = vmatpush1.msra.mxu0 0.0
    %7439 = vmatprep.subr.mxu0 0.0
    %7440 = vmatpush1.msra.mxu0 0.0
    %7441 = vmatprep.subr.mxu0 0.0
    %7442 = vmatpush1.msra.mxu0 0.0
    %7443 = vmatprep.subr.mxu0 0.0
    %7444 = vmatpush1.msra.mxu0 0.0
    %7445 = vmatprep.subr.mxu0 0.0
    %7446 = vmatpush1.msra.mxu0 0.0
    %7447 = vmatprep.subr.mxu0 0.0
    %7448 = vmatpush1.msra.mxu0 0.0
    %7449 = vmatprep.subr.mxu0 0.0
    %7450 = vmatpush1.msra.mxu0 0.0
    %7451 = vmatprep.subr.mxu0 0.0
    %7452 = vmatpush1.msra.mxu0 0.0
    %7453 = vmatprep.subr.mxu0 0.0
    %7454 = vmatpush1.msra.mxu0 0.0
    %7455 = vmatprep.subr.mxu0 0.0
    %7456 = vmatpush1.msra.mxu0 0.0
    %7457 = vmatprep.subr.mxu0 0.0
    %7458 = vmatpush1.msra.mxu0 0.0
    %7459 = vmatprep.mubr.f32.mxu0 0.0
    %7460 = vmatmul.mubr.f32.gmra.mrb[0].mxu0 %v6690
    %v7461 = vpop.f32.mrb[0].mxu0
    %v7462 = vadd.f32 0.0, %v7461
    %v7463 = vpop.f32.mrb[0].mxu0
    %7464 = vdwg.mxu0
    %v7466 = vrot.slane %v7462, 2
    %v7468 = vadd.f32 %v365, %v7466
    %v7469 = vld [vmem:[%s715] sm:$0xff]
    %v7470 = vld [vmem:[%s715 + $0x8] sm:$0xff]
    %v7471 = vld [vmem:[%s715 + $0x10] sm:$0xff]
    %v7472 = vld [vmem:[%s715 + $0x18] sm:$0xff]
    %7473 = vmatprep.subr.mxu0 0.0
    %7474 = vmatpush1.msra.mxu0 %v7469
    %7475 = vmatprep.subr.mxu0 0.0
    %7476 = vmatpush1.msra.mxu0 %v7470
    %7477 = vmatprep.subr.mxu0 0.0
    %7478 = vmatpush1.msra.mxu0 %v7471
    %7479 = vmatprep.subr.mxu0 0.0
    %7480 = vmatpush1.msra.mxu0 %v7472
    %7481 = vmatprep.subr.mxu0 0.0
    %7482 = vmatpush1.msra.mxu0 0.0
    %7483 = vmatprep.subr.mxu0 0.0
    %7484 = vmatpush1.msra.mxu0 0.0
    %7485 = vmatprep.subr.mxu0 0.0
    %7486 = vmatpush1.msra.mxu0 0.0
    %7487 = vmatprep.subr.mxu0 0.0
    %7488 = vmatpush1.msra.mxu0 0.0
    %7489 = vmatprep.subr.mxu0 0.0
    %7490 = vmatpush1.msra.mxu0 0.0
    %7491 = vmatprep.subr.mxu0 0.0
    %7492 = vmatpush1.msra.mxu0 0.0
    %7493 = vmatprep.subr.mxu0 0.0
    %7494 = vmatpush1.msra.mxu0 0.0
    %7495 = vmatprep.subr.mxu0 0.0
    %7496 = vmatpush1.msra.mxu0 0.0
    %7497 = vmatprep.subr.mxu0 0.0
    %7498 = vmatpush1.msra.mxu0 0.0
    %7499 = vmatprep.subr.mxu0 0.0
    %7500 = vmatpush1.msra.mxu0 0.0
    %7501 = vmatprep.subr.mxu0 0.0
    %7502 = vmatpush1.msra.mxu0 0.0
    %7503 = vmatprep.subr.mxu0 0.0
    %7504 = vmatpush1.msra.mxu0 0.0
    %7505 = vmatprep.subr.mxu0 0.0
    %7506 = vmatpush1.msra.mxu0 0.0
    %7507 = vmatprep.subr.mxu0 0.0
    %7508 = vmatpush1.msra.mxu0 0.0
    %7509 = vmatprep.subr.mxu0 0.0
    %7510 = vmatpush1.msra.mxu0 0.0
    %7511 = vmatprep.subr.mxu0 0.0
    %7512 = vmatpush1.msra.mxu0 0.0
    %7513 = vmatprep.subr.mxu0 0.0
    %7514 = vmatpush1.msra.mxu0 0.0
    %7515 = vmatprep.subr.mxu0 0.0
    %7516 = vmatpush1.msra.mxu0 0.0
    %7517 = vmatprep.subr.mxu0 0.0
    %7518 = vmatpush1.msra.mxu0 0.0
    %7519 = vmatprep.subr.mxu0 0.0
    %7520 = vmatpush1.msra.mxu0 0.0
    %7521 = vmatprep.subr.mxu0 0.0
    %7522 = vmatpush1.msra.mxu0 0.0
    %7523 = vmatprep.subr.mxu0 0.0
    %7524 = vmatpush1.msra.mxu0 0.0
    %7525 = vmatprep.subr.mxu0 0.0
    %7526 = vmatpush1.msra.mxu0 0.0
    %7527 = vmatprep.subr.mxu0 0.0
    %7528 = vmatpush1.msra.mxu0 0.0
    %7529 = vmatprep.subr.mxu0 0.0
    %7530 = vmatpush1.msra.mxu0 0.0
    %7531 = vmatprep.subr.mxu0 0.0
    %7532 = vmatpush1.msra.mxu0 0.0
    %7533 = vmatprep.subr.mxu0 0.0
    %7534 = vmatpush1.msra.mxu0 0.0
    %7535 = vmatprep.subr.mxu0 0.0
    %7536 = vmatpush1.msra.mxu0 0.0
    %7537 = vmatprep.mubr.f32.mxu0 0.0
    %7538 = vmatmul.mubr.f32.gmra.mrb[0].mxu0 %v6690
    %v7539 = vpop.f32.mrb[0].mxu0
    %v7540 = vadd.f32 0.0, %v7539
    %v7541 = vpop.f32.mrb[0].mxu0
    %7542 = vdwg.mxu0
    %v7544 = vrot.slane %v7540, 2
    %v7546 = vadd.f32 %v450, %v7544
    %v7547 = vxor.u32 %v7312, 2147483648
    %v7548 = vmul.f32 %v7547, 1.442695
    %v7549 = vpow.pop %v7548
    %v7550 = vadd.f32 %v7549, 1.0
    %v7551 = vrcp.pop %v7550
    %v7552 = vmul.f32 1.0, %v7551
    %v7553 = vxor.u32 %v7390, 2147483648
    %v7554 = vmul.f32 %v7553, 1.442695
    %v7555 = vpow.pop %v7554
    %v7556 = vadd.f32 %v7555, 1.0
    %v7557 = vrcp.pop %v7556
    %v7558 = vmul.f32 1.0, %v7557
    %v7559 = vtanh.pop %v7468
    %v7560 = vxor.u32 %v7546, 2147483648
    %v7561 = vmul.f32 %v7560, 1.442695
    %v7562 = vpow.pop %v7561
    %v7563 = vadd.f32 %v7562, 1.0
    %v7564 = vrcp.pop %v7563
    %v7565 = vmul.f32 1.0, %v7564
    %v7567 = vrot.slane %v6604, 6
    %v7569 = vmul.f32 %v7558, %v7567
    %v7570 = vmul.f32 %v7552, %v7559
    %v7571 = vadd.f32 %v7569, %v7570
    %v7572 = vtanh.pop %v7571
    %v7573 = vmul.f32 %v7565, %v7572
    %v7574 = vld [vmem:[#allocation5] sm:$0xff]
    %v7575 = vld [vmem:[#allocation5 + $0x8] sm:$0xff]
    %v7576 = vld [vmem:[#allocation5 + $0x10] sm:$0xff]
    %v7577 = vld [vmem:[#allocation5 + $0x18] sm:$0xff]
    %v7578 = vld [vmem:[#allocation7] sm:$0xff]
    %v7579 = vld [vmem:[#allocation7 + $0x8] sm:$0xff]
    %v7580 = vld [vmem:[#allocation7 + $0x10] sm:$0xff]
    %v7581 = vld [vmem:[#allocation7 + $0x18] sm:$0xff]
    %v7583 = vsel %vm488, %v7233, 0
    %7585 = vmatprep.subr.mxu0 0.0
    %7586 = vmatpush1.msra.mxu0 %v7578
    %7587 = vmatprep.subr.mxu0 0.0
    %7588 = vmatpush1.msra.mxu0 %v7579
    %7589 = vmatprep.subr.mxu0 0.0
    %7590 = vmatpush1.msra.mxu0 %v7580
    %7591 = vmatprep.subr.mxu0 0.0
    %7592 = vmatpush1.msra.mxu0 %v7581
    %7593 = vmatprep.subr.mxu0 0.0
    %7594 = vmatpush1.msra.mxu0 0.0
    %7595 = vmatprep.subr.mxu0 0.0
    %7596 = vmatpush1.msra.mxu0 0.0
    %7597 = vmatprep.subr.mxu0 0.0
    %7598 = vmatpush1.msra.mxu0 0.0
    %7599 = vmatprep.subr.mxu0 0.0
    %7600 = vmatpush1.msra.mxu0 0.0
    %7601 = vmatprep.subr.mxu0 0.0
    %7602 = vmatpush1.msra.mxu0 0.0
    %7603 = vmatprep.subr.mxu0 0.0
    %7604 = vmatpush1.msra.mxu0 0.0
    %7605 = vmatprep.subr.mxu0 0.0
    %7606 = vmatpush1.msra.mxu0 0.0
    %7607 = vmatprep.subr.mxu0 0.0
    %7608 = vmatpush1.msra.mxu0 0.0
    %7609 = vmatprep.subr.mxu0 0.0
    %7610 = vmatpush1.msra.mxu0 0.0
    %7611 = vmatprep.subr.mxu0 0.0
    %7612 = vmatpush1.msra.mxu0 0.0
    %7613 = vmatprep.subr.mxu0 0.0
    %7614 = vmatpush1.msra.mxu0 0.0
    %7615 = vmatprep.subr.mxu0 0.0
    %7616 = vmatpush1.msra.mxu0 0.0
    %7617 = vmatprep.subr.mxu0 0.0
    %7618 = vmatpush1.msra.mxu0 0.0
    %7619 = vmatprep.subr.mxu0 0.0
    %7620 = vmatpush1.msra.mxu0 0.0
    %7621 = vmatprep.subr.mxu0 0.0
    %7622 = vmatpush1.msra.mxu0 0.0
    %7623 = vmatprep.subr.mxu0 0.0
    %7624 = vmatpush1.msra.mxu0 0.0
    %7625 = vmatprep.subr.mxu0 0.0
    %7626 = vmatpush1.msra.mxu0 0.0
    %7627 = vmatprep.subr.mxu0 0.0
    %7628 = vmatpush1.msra.mxu0 0.0
    %7629 = vmatprep.subr.mxu0 0.0
    %7630 = vmatpush1.msra.mxu0 0.0
    %7631 = vmatprep.subr.mxu0 0.0
    %7632 = vmatpush1.msra.mxu0 0.0
    %7633 = vmatprep.subr.mxu0 0.0
    %7634 = vmatpush1.msra.mxu0 0.0
    %7635 = vmatprep.subr.mxu0 0.0
    %7636 = vmatpush1.msra.mxu0 0.0
    %7637 = vmatprep.subr.mxu0 0.0
    %7638 = vmatpush1.msra.mxu0 0.0
    %7639 = vmatprep.subr.mxu0 0.0
    %7640 = vmatpush1.msra.mxu0 0.0
    %7641 = vmatprep.subr.mxu0 0.0
    %7642 = vmatpush1.msra.mxu0 0.0
    %7643 = vmatprep.subr.mxu0 0.0
    %7644 = vmatpush1.msra.mxu0 0.0
    %7645 = vmatprep.subr.mxu0 0.0
    %7646 = vmatpush1.msra.mxu0 0.0
    %7647 = vmatprep.subr.mxu0 0.0
    %7648 = vmatpush1.msra.mxu0 0.0
    %7649 = vmatprep.mubr.f32.mxu0 0.0
    %7650 = vmatmul.mubr.f32.gmra.mrb[0].mxu0 %v7583
    %v7651 = vpop.f32.mrb[0].mxu0
    %v7652 = vadd.f32 0.0, %v7651
    %v7653 = vpop.f32.mrb[0].mxu0
    %7654 = vdwg.mxu0
    %v7656 = vrot.slane %v7573, 6
    %v7657 = vsel %vm488, %v7656, 0
    %7659 = vmatprep.subr.mxu0 0.0
    %7660 = vmatpush1.msra.mxu0 %v7574
    %7661 = vmatprep.subr.mxu0 0.0
    %7662 = vmatpush1.msra.mxu0 %v7575
    %7663 = vmatprep.subr.mxu0 0.0
    %7664 = vmatpush1.msra.mxu0 %v7576
    %7665 = vmatprep.subr.mxu0 0.0
    %7666 = vmatpush1.msra.mxu0 %v7577
    %7667 = vmatprep.subr.mxu0 0.0
    %7668 = vmatpush1.msra.mxu0 0.0
    %7669 = vmatprep.subr.mxu0 0.0
    %7670 = vmatpush1.msra.mxu0 0.0
    %7671 = vmatprep.subr.mxu0 0.0
    %7672 = vmatpush1.msra.mxu0 0.0
    %7673 = vmatprep.subr.mxu0 0.0
    %7674 = vmatpush1.msra.mxu0 0.0
    %7675 = vmatprep.subr.mxu0 0.0
    %7676 = vmatpush1.msra.mxu0 0.0
    %7677 = vmatprep.subr.mxu0 0.0
    %7678 = vmatpush1.msra.mxu0 0.0
    %7679 = vmatprep.subr.mxu0 0.0
    %7680 = vmatpush1.msra.mxu0 0.0
    %7681 = vmatprep.subr.mxu0 0.0
    %7682 = vmatpush1.msra.mxu0 0.0
    %7683 = vmatprep.subr.mxu0 0.0
    %7684 = vmatpush1.msra.mxu0 0.0
    %7685 = vmatprep.subr.mxu0 0.0
    %7686 = vmatpush1.msra.mxu0 0.0
    %7687 = vmatprep.subr.mxu0 0.0
    %7688 = vmatpush1.msra.mxu0 0.0
    %7689 = vmatprep.subr.mxu0 0.0
    %7690 = vmatpush1.msra.mxu0 0.0
    %7691 = vmatprep.subr.mxu0 0.0
    %7692 = vmatpush1.msra.mxu0 0.0
    %7693 = vmatprep.subr.mxu0 0.0
    %7694 = vmatpush1.msra.mxu0 0.0
    %7695 = vmatprep.subr.mxu0 0.0
    %7696 = vmatpush1.msra.mxu0 0.0
    %7697 = vmatprep.subr.mxu0 0.0
    %7698 = vmatpush1.msra.mxu0 0.0
    %7699 = vmatprep.subr.mxu0 0.0
    %7700 = vmatpush1.msra.mxu0 0.0
    %7701 = vmatprep.subr.mxu0 0.0
    %7702 = vmatpush1.msra.mxu0 0.0
    %7703 = vmatprep.subr.mxu0 0.0
    %7704 = vmatpush1.msra.mxu0 0.0
    %7705 = vmatprep.subr.mxu0 0.0
    %7706 = vmatpush1.msra.mxu0 0.0
    %7707 = vmatprep.subr.mxu0 0.0
    %7708 = vmatpush1.msra.mxu0 0.0
    %7709 = vmatprep.subr.mxu0 0.0
    %7710 = vmatpush1.msra.mxu0 0.0
    %7711 = vmatprep.subr.mxu0 0.0
    %7712 = vmatpush1.msra.mxu0 0.0
    %7713 = vmatprep.subr.mxu0 0.0
    %7714 = vmatpush1.msra.mxu0 0.0
    %7715 = vmatprep.subr.mxu0 0.0
    %7716 = vmatpush1.msra.mxu0 0.0
    %7717 = vmatprep.subr.mxu0 0.0
    %7718 = vmatpush1.msra.mxu0 0.0
    %7719 = vmatprep.subr.mxu0 0.0
    %7720 = vmatpush1.msra.mxu0 0.0
    %7721 = vmatprep.subr.mxu0 0.0
    %7722 = vmatpush1.msra.mxu0 0.0
    %7723 = vmatprep.mubr.f32.mxu0 0.0
    %7724 = vmatmul.mubr.f32.gmra.mrb[0].mxu0 %v7657
    %v7725 = vpop.f32.mrb[0].mxu0
    %v7726 = vadd.f32 %v7652, %v7725
    %v7727 = vpop.f32.mrb[0].mxu0
    %7728 = vdwg.mxu0
    %v7729 = vadd.f32 %v7726, %v458
    %v7730 = vld [vmem:[%s967] sm:$0xff]
    %v7731 = vld [vmem:[%s967 + $0x8] sm:$0xff]
    %v7732 = vld [vmem:[%s967 + $0x10] sm:$0xff]
    %v7733 = vld [vmem:[%s967 + $0x18] sm:$0xff]
    %v7734 = vld [vmem:[%s972] sm:$0xff]
    %v7735 = vld [vmem:[%s972 + $0x8] sm:$0xff]
    %v7736 = vld [vmem:[%s972 + $0x10] sm:$0xff]
    %v7737 = vld [vmem:[%s972 + $0x18] sm:$0xff]
    %7738 = vmatprep.subr.mxu0 0.0
    %7739 = vmatpush1.msra.mxu0 %v7734
    %7740 = vmatprep.subr.mxu0 0.0
    %7741 = vmatpush1.msra.mxu0 %v7735
    %7742 = vmatprep.subr.mxu0 0.0
    %7743 = vmatpush1.msra.mxu0 %v7736
    %7744 = vmatprep.subr.mxu0 0.0
    %7745 = vmatpush1.msra.mxu0 %v7737
    %7746 = vmatprep.subr.mxu0 0.0
    %7747 = vmatpush1.msra.mxu0 0.0
    %7748 = vmatprep.subr.mxu0 0.0
    %7749 = vmatpush1.msra.mxu0 0.0
    %7750 = vmatprep.subr.mxu0 0.0
    %7751 = vmatpush1.msra.mxu0 0.0
    %7752 = vmatprep.subr.mxu0 0.0
    %7753 = vmatpush1.msra.mxu0 0.0
    %7754 = vmatprep.subr.mxu0 0.0
    %7755 = vmatpush1.msra.mxu0 0.0
    %7756 = vmatprep.subr.mxu0 0.0
    %7757 = vmatpush1.msra.mxu0 0.0
    %7758 = vmatprep.subr.mxu0 0.0
    %7759 = vmatpush1.msra.mxu0 0.0
    %7760 = vmatprep.subr.mxu0 0.0
    %7761 = vmatpush1.msra.mxu0 0.0
    %7762 = vmatprep.subr.mxu0 0.0
    %7763 = vmatpush1.msra.mxu0 0.0
    %7764 = vmatprep.subr.mxu0 0.0
    %7765 = vmatpush1.msra.mxu0 0.0
    %7766 = vmatprep.subr.mxu0 0.0
    %7767 = vmatpush1.msra.mxu0 0.0
    %7768 = vmatprep.subr.mxu0 0.0
    %7769 = vmatpush1.msra.mxu0 0.0
    %7770 = vmatprep.subr.mxu0 0.0
    %7771 = vmatpush1.msra.mxu0 0.0
    %7772 = vmatprep.subr.mxu0 0.0
    %7773 = vmatpush1.msra.mxu0 0.0
    %7774 = vmatprep.subr.mxu0 0.0
    %7775 = vmatpush1.msra.mxu0 0.0
    %7776 = vmatprep.subr.mxu0 0.0
    %7777 = vmatpush1.msra.mxu0 0.0
    %7778 = vmatprep.subr.mxu0 0.0
    %7779 = vmatpush1.msra.mxu0 0.0
    %7780 = vmatprep.subr.mxu0 0.0
    %7781 = vmatpush1.msra.mxu0 0.0
    %7782 = vmatprep.subr.mxu0 0.0
    %7783 = vmatpush1.msra.mxu0 0.0
    %7784 = vmatprep.subr.mxu0 0.0
    %7785 = vmatpush1.msra.mxu0 0.0
    %7786 = vmatprep.subr.mxu0 0.0
    %7787 = vmatpush1.msra.mxu0 0.0
    %7788 = vmatprep.subr.mxu0 0.0
    %7789 = vmatpush1.msra.mxu0 0.0
    %7790 = vmatprep.subr.mxu0 0.0
    %7791 = vmatpush1.msra.mxu0 0.0
    %7792 = vmatprep.subr.mxu0 0.0
    %7793 = vmatpush1.msra.mxu0 0.0
    %7794 = vmatprep.subr.mxu0 0.0
    %7795 = vmatpush1.msra.mxu0 0.0
    %7796 = vmatprep.subr.mxu0 0.0
    %7797 = vmatpush1.msra.mxu0 0.0
    %7798 = vmatprep.subr.mxu0 0.0
    %7799 = vmatpush1.msra.mxu0 0.0
    %7800 = vmatprep.subr.mxu0 0.0
    %7801 = vmatpush1.msra.mxu0 0.0
    %7802 = vmatprep.mubr.f32.mxu0 0.0
    %7803 = vmatmul.mubr.f32.gmra.mrb[0].mxu0 %v7583
    %v7804 = vpop.f32.mrb[0].mxu0
    %v7805 = vadd.f32 0.0, %v7804
    %v7806 = vpop.f32.mrb[0].mxu0
    %7807 = vdwg.mxu0
    %7808 = vmatprep.subr.mxu0 0.0
    %7809 = vmatpush1.msra.mxu0 %v7730
    %7810 = vmatprep.subr.mxu0 0.0
    %7811 = vmatpush1.msra.mxu0 %v7731
    %7812 = vmatprep.subr.mxu0 0.0
    %7813 = vmatpush1.msra.mxu0 %v7732
    %7814 = vmatprep.subr.mxu0 0.0
    %7815 = vmatpush1.msra.mxu0 %v7733
    %7816 = vmatprep.subr.mxu0 0.0
    %7817 = vmatpush1.msra.mxu0 0.0
    %7818 = vmatprep.subr.mxu0 0.0
    %7819 = vmatpush1.msra.mxu0 0.0
    %7820 = vmatprep.subr.mxu0 0.0
    %7821 = vmatpush1.msra.mxu0 0.0
    %7822 = vmatprep.subr.mxu0 0.0
    %7823 = vmatpush1.msra.mxu0 0.0
    %7824 = vmatprep.subr.mxu0 0.0
    %7825 = vmatpush1.msra.mxu0 0.0
    %7826 = vmatprep.subr.mxu0 0.0
    %7827 = vmatpush1.msra.mxu0 0.0
    %7828 = vmatprep.subr.mxu0 0.0
    %7829 = vmatpush1.msra.mxu0 0.0
    %7830 = vmatprep.subr.mxu0 0.0
    %7831 = vmatpush1.msra.mxu0 0.0
    %7832 = vmatprep.subr.mxu0 0.0
    %7833 = vmatpush1.msra.mxu0 0.0
    %7834 = vmatprep.subr.mxu0 0.0
    %7835 = vmatpush1.msra.mxu0 0.0
    %7836 = vmatprep.subr.mxu0 0.0
    %7837 = vmatpush1.msra.mxu0 0.0
    %7838 = vmatprep.subr.mxu0 0.0
    %7839 = vmatpush1.msra.mxu0 0.0
    %7840 = vmatprep.subr.mxu0 0.0
    %7841 = vmatpush1.msra.mxu0 0.0
    %7842 = vmatprep.subr.mxu0 0.0
    %7843 = vmatpush1.msra.mxu0 0.0
    %7844 = vmatprep.subr.mxu0 0.0
    %7845 = vmatpush1.msra.mxu0 0.0
    %7846 = vmatprep.subr.mxu0 0.0
    %7847 = vmatpush1.msra.mxu0 0.0
    %7848 = vmatprep.subr.mxu0 0.0
    %7849 = vmatpush1.msra.mxu0 0.0
    %7850 = vmatprep.subr.mxu0 0.0
    %7851 = vmatpush1.msra.mxu0 0.0
    %7852 = vmatprep.subr.mxu0 0.0
    %7853 = vmatpush1.msra.mxu0 0.0
    %7854 = vmatprep.subr.mxu0 0.0
    %7855 = vmatpush1.msra.mxu0 0.0
    %7856 = vmatprep.subr.mxu0 0.0
    %7857 = vmatpush1.msra.mxu0 0.0
    %7858 = vmatprep.subr.mxu0 0.0
    %7859 = vmatpush1.msra.mxu0 0.0
    %7860 = vmatprep.subr.mxu0 0.0
    %7861 = vmatpush1.msra.mxu0 0.0
    %7862 = vmatprep.subr.mxu0 0.0
    %7863 = vmatpush1.msra.mxu0 0.0
    %7864 = vmatprep.subr.mxu0 0.0
    %7865 = vmatpush1.msra.mxu0 0.0
    %7866 = vmatprep.subr.mxu0 0.0
    %7867 = vmatpush1.msra.mxu0 0.0
    %7868 = vmatprep.subr.mxu0 0.0
    %7869 = vmatpush1.msra.mxu0 0.0
    %7870 = vmatprep.subr.mxu0 0.0
    %7871 = vmatpush1.msra.mxu0 0.0
    %7872 = vmatprep.mubr.f32.mxu0 0.0
    %7873 = vmatmul.mubr.f32.gmra.mrb[0].mxu0 %v7657
    %v7874 = vpop.f32.mrb[0].mxu0
    %v7875 = vadd.f32 %v7805, %v7874
    %v7876 = vpop.f32.mrb[0].mxu0
    %7877 = vdwg.mxu0
    %v7878 = vadd.f32 %v7875, %v466
    %v7879 = vld [vmem:[%s1118] sm:$0xff]
    %v7880 = vld [vmem:[%s1118 + $0x8] sm:$0xff]
    %v7881 = vld [vmem:[%s1118 + $0x10] sm:$0xff]
    %v7882 = vld [vmem:[%s1118 + $0x18] sm:$0xff]
    %v7883 = vld [vmem:[%s1123] sm:$0xff]
    %v7884 = vld [vmem:[%s1123 + $0x8] sm:$0xff]
    %v7885 = vld [vmem:[%s1123 + $0x10] sm:$0xff]
    %v7886 = vld [vmem:[%s1123 + $0x18] sm:$0xff]
    %7887 = vmatprep.subr.mxu0 0.0
    %7888 = vmatpush1.msra.mxu0 %v7883
    %7889 = vmatprep.subr.mxu0 0.0
    %7890 = vmatpush1.msra.mxu0 %v7884
    %7891 = vmatprep.subr.mxu0 0.0
    %7892 = vmatpush1.msra.mxu0 %v7885
    %7893 = vmatprep.subr.mxu0 0.0
    %7894 = vmatpush1.msra.mxu0 %v7886
    %7895 = vmatprep.subr.mxu0 0.0
    %7896 = vmatpush1.msra.mxu0 0.0
    %7897 = vmatprep.subr.mxu0 0.0
    %7898 = vmatpush1.msra.mxu0 0.0
    %7899 = vmatprep.subr.mxu0 0.0
    %7900 = vmatpush1.msra.mxu0 0.0
    %7901 = vmatprep.subr.mxu0 0.0
    %7902 = vmatpush1.msra.mxu0 0.0
    %7903 = vmatprep.subr.mxu0 0.0
    %7904 = vmatpush1.msra.mxu0 0.0
    %7905 = vmatprep.subr.mxu0 0.0
    %7906 = vmatpush1.msra.mxu0 0.0
    %7907 = vmatprep.subr.mxu0 0.0
    %7908 = vmatpush1.msra.mxu0 0.0
    %7909 = vmatprep.subr.mxu0 0.0
    %7910 = vmatpush1.msra.mxu0 0.0
    %7911 = vmatprep.subr.mxu0 0.0
    %7912 = vmatpush1.msra.mxu0 0.0
    %7913 = vmatprep.subr.mxu0 0.0
    %7914 = vmatpush1.msra.mxu0 0.0
    %7915 = vmatprep.subr.mxu0 0.0
    %7916 = vmatpush1.msra.mxu0 0.0
    %7917 = vmatprep.subr.mxu0 0.0
    %7918 = vmatpush1.msra.mxu0 0.0
    %7919 = vmatprep.subr.mxu0 0.0
    %7920 = vmatpush1.msra.mxu0 0.0
    %7921 = vmatprep.subr.mxu0 0.0
    %7922 = vmatpush1.msra.mxu0 0.0
    %7923 = vmatprep.subr.mxu0 0.0
    %7924 = vmatpush1.msra.mxu0 0.0
    %7925 = vmatprep.subr.mxu0 0.0
    %7926 = vmatpush1.msra.mxu0 0.0
    %7927 = vmatprep.subr.mxu0 0.0
    %7928 = vmatpush1.msra.mxu0 0.0
    %7929 = vmatprep.subr.mxu0 0.0
    %7930 = vmatpush1.msra.mxu0 0.0
    %7931 = vmatprep.subr.mxu0 0.0
    %7932 = vmatpush1.msra.mxu0 0.0
    %7933 = vmatprep.subr.mxu0 0.0
    %7934 = vmatpush1.msra.mxu0 0.0
    %7935 = vmatprep.subr.mxu0 0.0
    %7936 = vmatpush1.msra.mxu0 0.0
    %7937 = vmatprep.subr.mxu0 0.0
    %7938 = vmatpush1.msra.mxu0 0.0
    %7939 = vmatprep.subr.mxu0 0.0
    %7940 = vmatpush1.msra.mxu0 0.0
    %7941 = vmatprep.subr.mxu0 0.0
    %7942 = vmatpush1.msra.mxu0 0.0
    %7943 = vmatprep.subr.mxu0 0.0
    %7944 = vmatpush1.msra.mxu0 0.0
    %7945 = vmatprep.subr.mxu0 0.0
    %7946 = vmatpush1.msra.mxu0 0.0
    %7947 = vmatprep.subr.mxu0 0.0
    %7948 = vmatpush1.msra.mxu0 0.0
    %7949 = vmatprep.subr.mxu0 0.0
    %7950 = vmatpush1.msra.mxu0 0.0
    %7951 = vmatprep.mubr.f32.mxu0 0.0
    %7952 = vmatmul.mubr.f32.gmra.mrb[0].mxu0 %v7583
    %v7953 = vpop.f32.mrb[0].mxu0
    %v7954 = vadd.f32 0.0, %v7953
    %v7955 = vpop.f32.mrb[0].mxu0
    %7956 = vdwg.mxu0
    %7957 = vmatprep.subr.mxu0 0.0
    %7958 = vmatpush1.msra.mxu0 %v7879
    %7959 = vmatprep.subr.mxu0 0.0
    %7960 = vmatpush1.msra.mxu0 %v7880
    %7961 = vmatprep.subr.mxu0 0.0
    %7962 = vmatpush1.msra.mxu0 %v7881
    %7963 = vmatprep.subr.mxu0 0.0
    %7964 = vmatpush1.msra.mxu0 %v7882
    %7965 = vmatprep.subr.mxu0 0.0
    %7966 = vmatpush1.msra.mxu0 0.0
    %7967 = vmatprep.subr.mxu0 0.0
    %7968 = vmatpush1.msra.mxu0 0.0
    %7969 = vmatprep.subr.mxu0 0.0
    %7970 = vmatpush1.msra.mxu0 0.0
    %7971 = vmatprep.subr.mxu0 0.0
    %7972 = vmatpush1.msra.mxu0 0.0
    %7973 = vmatprep.subr.mxu0 0.0
    %7974 = vmatpush1.msra.mxu0 0.0
    %7975 = vmatprep.subr.mxu0 0.0
    %7976 = vmatpush1.msra.mxu0 0.0
    %7977 = vmatprep.subr.mxu0 0.0
    %7978 = vmatpush1.msra.mxu0 0.0
    %7979 = vmatprep.subr.mxu0 0.0
    %7980 = vmatpush1.msra.mxu0 0.0
    %7981 = vmatprep.subr.mxu0 0.0
    %7982 = vmatpush1.msra.mxu0 0.0
    %7983 = vmatprep.subr.mxu0 0.0
    %7984 = vmatpush1.msra.mxu0 0.0
    %7985 = vmatprep.subr.mxu0 0.0
    %7986 = vmatpush1.msra.mxu0 0.0
    %7987 = vmatprep.subr.mxu0 0.0
    %7988 = vmatpush1.msra.mxu0 0.0
    %7989 = vmatprep.subr.mxu0 0.0
    %7990 = vmatpush1.msra.mxu0 0.0
    %7991 = vmatprep.subr.mxu0 0.0
    %7992 = vmatpush1.msra.mxu0 0.0
    %7993 = vmatprep.subr.mxu0 0.0
    %7994 = vmatpush1.msra.mxu0 0.0
    %7995 = vmatprep.subr.mxu0 0.0
    %7996 = vmatpush1.msra.mxu0 0.0
    %7997 = vmatprep.subr.mxu0 0.0
    %7998 = vmatpush1.msra.mxu0 0.0
    %7999 = vmatprep.subr.mxu0 0.0
    %8000 = vmatpush1.msra.mxu0 0.0
    %8001 = vmatprep.subr.mxu0 0.0
    %8002 = vmatpush1.msra.mxu0 0.0
    %8003 = vmatprep.subr.mxu0 0.0
    %8004 = vmatpush1.msra.mxu0 0.0
    %8005 = vmatprep.subr.mxu0 0.0
    %8006 = vmatpush1.msra.mxu0 0.0
    %8007 = vmatprep.subr.mxu0 0.0
    %8008 = vmatpush1.msra.mxu0 0.0
    %8009 = vmatprep.subr.mxu0 0.0
    %8010 = vmatpush1.msra.mxu0 0.0
    %8011 = vmatprep.subr.mxu0 0.0
    %8012 = vmatpush1.msra.mxu0 0.0
    %8013 = vmatprep.subr.mxu0 0.0
    %8014 = vmatpush1.msra.mxu0 0.0
    %8015 = vmatprep.subr.mxu0 0.0
    %8016 = vmatpush1.msra.mxu0 0.0
    %8017 = vmatprep.subr.mxu0 0.0
    %8018 = vmatpush1.msra.mxu0 0.0
    %8019 = vmatprep.subr.mxu0 0.0
    %8020 = vmatpush1.msra.mxu0 0.0
    %8021 = vmatprep.mubr.f32.mxu0 0.0
    %8022 = vmatmul.mubr.f32.gmra.mrb[0].mxu0 %v7657
    %v8023 = vpop.f32.mrb[0].mxu0
    %v8024 = vadd.f32 %v7954, %v8023
    %v8025 = vpop.f32.mrb[0].mxu0
    %8026 = vdwg.mxu0
    %v8027 = vadd.f32 %v8024, %v474
    %v8028 = vld [vmem:[%s1269] sm:$0xff]
    %v8029 = vld [vmem:[%s1269 + $0x8] sm:$0xff]
    %v8030 = vld [vmem:[%s1269 + $0x10] sm:$0xff]
    %v8031 = vld [vmem:[%s1269 + $0x18] sm:$0xff]
    %v8032 = vld [vmem:[%s1274] sm:$0xff]
    %v8033 = vld [vmem:[%s1274 + $0x8] sm:$0xff]
    %v8034 = vld [vmem:[%s1274 + $0x10] sm:$0xff]
    %v8035 = vld [vmem:[%s1274 + $0x18] sm:$0xff]
    %8036 = vmatprep.subr.mxu0 0.0
    %8037 = vmatpush1.msra.mxu0 %v8032
    %8038 = vmatprep.subr.mxu0 0.0
    %8039 = vmatpush1.msra.mxu0 %v8033
    %8040 = vmatprep.subr.mxu0 0.0
    %8041 = vmatpush1.msra.mxu0 %v8034
    %8042 = vmatprep.subr.mxu0 0.0
    %8043 = vmatpush1.msra.mxu0 %v8035
    %8044 = vmatprep.subr.mxu0 0.0
    %8045 = vmatpush1.msra.mxu0 0.0
    %8046 = vmatprep.subr.mxu0 0.0
    %8047 = vmatpush1.msra.mxu0 0.0
    %8048 = vmatprep.subr.mxu0 0.0
    %8049 = vmatpush1.msra.mxu0 0.0
    %8050 = vmatprep.subr.mxu0 0.0
    %8051 = vmatpush1.msra.mxu0 0.0
    %8052 = vmatprep.subr.mxu0 0.0
    %8053 = vmatpush1.msra.mxu0 0.0
    %8054 = vmatprep.subr.mxu0 0.0
    %8055 = vmatpush1.msra.mxu0 0.0
    %8056 = vmatprep.subr.mxu0 0.0
    %8057 = vmatpush1.msra.mxu0 0.0
    %8058 = vmatprep.subr.mxu0 0.0
    %8059 = vmatpush1.msra.mxu0 0.0
    %8060 = vmatprep.subr.mxu0 0.0
    %8061 = vmatpush1.msra.mxu0 0.0
    %8062 = vmatprep.subr.mxu0 0.0
    %8063 = vmatpush1.msra.mxu0 0.0
    %8064 = vmatprep.subr.mxu0 0.0
    %8065 = vmatpush1.msra.mxu0 0.0
    %8066 = vmatprep.subr.mxu0 0.0
    %8067 = vmatpush1.msra.mxu0 0.0
    %8068 = vmatprep.subr.mxu0 0.0
    %8069 = vmatpush1.msra.mxu0 0.0
    %8070 = vmatprep.subr.mxu0 0.0
    %8071 = vmatpush1.msra.mxu0 0.0
    %8072 = vmatprep.subr.mxu0 0.0
    %8073 = vmatpush1.msra.mxu0 0.0
    %8074 = vmatprep.subr.mxu0 0.0
    %8075 = vmatpush1.msra.mxu0 0.0
    %8076 = vmatprep.subr.mxu0 0.0
    %8077 = vmatpush1.msra.mxu0 0.0
    %8078 = vmatprep.subr.mxu0 0.0
    %8079 = vmatpush1.msra.mxu0 0.0
    %8080 = vmatprep.subr.mxu0 0.0
    %8081 = vmatpush1.msra.mxu0 0.0
    %8082 = vmatprep.subr.mxu0 0.0
    %8083 = vmatpush1.msra.mxu0 0.0
    %8084 = vmatprep.subr.mxu0 0.0
    %8085 = vmatpush1.msra.mxu0 0.0
    %8086 = vmatprep.subr.mxu0 0.0
    %8087 = vmatpush1.msra.mxu0 0.0
    %8088 = vmatprep.subr.mxu0 0.0
    %8089 = vmatpush1.msra.mxu0 0.0
    %8090 = vmatprep.subr.mxu0 0.0
    %8091 = vmatpush1.msra.mxu0 0.0
    %8092 = vmatprep.subr.mxu0 0.0
    %8093 = vmatpush1.msra.mxu0 0.0
    %8094 = vmatprep.subr.mxu0 0.0
    %8095 = vmatpush1.msra.mxu0 0.0
    %8096 = vmatprep.subr.mxu0 0.0
    %8097 = vmatpush1.msra.mxu0 0.0
    %8098 = vmatprep.subr.mxu0 0.0
    %8099 = vmatpush1.msra.mxu0 0.0
    %8100 = vmatprep.mubr.f32.mxu0 0.0
    %8101 = vmatmul.mubr.f32.gmra.mrb[0].mxu0 %v7583
    %v8102 = vpop.f32.mrb[0].mxu0
    %v8103 = vadd.f32 0.0, %v8102
    %v8104 = vpop.f32.mrb[0].mxu0
    %8105 = vdwg.mxu0
    %8106 = vmatprep.subr.mxu0 0.0
    %8107 = vmatpush1.msra.mxu0 %v8028
    %8108 = vmatprep.subr.mxu0 0.0
    %8109 = vmatpush1.msra.mxu0 %v8029
    %8110 = vmatprep.subr.mxu0 0.0
    %8111 = vmatpush1.msra.mxu0 %v8030
    %8112 = vmatprep.subr.mxu0 0.0
    %8113 = vmatpush1.msra.mxu0 %v8031
    %8114 = vmatprep.subr.mxu0 0.0
    %8115 = vmatpush1.msra.mxu0 0.0
    %8116 = vmatprep.subr.mxu0 0.0
    %8117 = vmatpush1.msra.mxu0 0.0
    %8118 = vmatprep.subr.mxu0 0.0
    %8119 = vmatpush1.msra.mxu0 0.0
    %8120 = vmatprep.subr.mxu0 0.0
    %8121 = vmatpush1.msra.mxu0 0.0
    %8122 = vmatprep.subr.mxu0 0.0
    %8123 = vmatpush1.msra.mxu0 0.0
    %8124 = vmatprep.subr.mxu0 0.0
    %8125 = vmatpush1.msra.mxu0 0.0
    %8126 = vmatprep.subr.mxu0 0.0
    %8127 = vmatpush1.msra.mxu0 0.0
    %8128 = vmatprep.subr.mxu0 0.0
    %8129 = vmatpush1.msra.mxu0 0.0
    %8130 = vmatprep.subr.mxu0 0.0
    %8131 = vmatpush1.msra.mxu0 0.0
    %8132 = vmatprep.subr.mxu0 0.0
    %8133 = vmatpush1.msra.mxu0 0.0
    %8134 = vmatprep.subr.mxu0 0.0
    %8135 = vmatpush1.msra.mxu0 0.0
    %8136 = vmatprep.subr.mxu0 0.0
    %8137 = vmatpush1.msra.mxu0 0.0
    %8138 = vmatprep.subr.mxu0 0.0
    %8139 = vmatpush1.msra.mxu0 0.0
    %8140 = vmatprep.subr.mxu0 0.0
    %8141 = vmatpush1.msra.mxu0 0.0
    %8142 = vmatprep.subr.mxu0 0.0
    %8143 = vmatpush1.msra.mxu0 0.0
    %8144 = vmatprep.subr.mxu0 0.0
    %8145 = vmatpush1.msra.mxu0 0.0
    %8146 = vmatprep.subr.mxu0 0.0
    %8147 = vmatpush1.msra.mxu0 0.0
    %8148 = vmatprep.subr.mxu0 0.0
    %8149 = vmatpush1.msra.mxu0 0.0
    %8150 = vmatprep.subr.mxu0 0.0
    %8151 = vmatpush1.msra.mxu0 0.0
    %8152 = vmatprep.subr.mxu0 0.0
    %8153 = vmatpush1.msra.mxu0 0.0
    %8154 = vmatprep.subr.mxu0 0.0
    %8155 = vmatpush1.msra.mxu0 0.0
    %8156 = vmatprep.subr.mxu0 0.0
    %8157 = vmatpush1.msra.mxu0 0.0
    %8158 = vmatprep.subr.mxu0 0.0
    %8159 = vmatpush1.msra.mxu0 0.0
    %8160 = vmatprep.subr.mxu0 0.0
    %8161 = vmatpush1.msra.mxu0 0.0
    %8162 = vmatprep.subr.mxu0 0.0
    %8163 = vmatpush1.msra.mxu0 0.0
    %8164 = vmatprep.subr.mxu0 0.0
    %8165 = vmatpush1.msra.mxu0 0.0
    %8166 = vmatprep.subr.mxu0 0.0
    %8167 = vmatpush1.msra.mxu0 0.0
    %8168 = vmatprep.subr.mxu0 0.0
    %8169 = vmatpush1.msra.mxu0 0.0
    %8170 = vmatprep.mubr.f32.mxu0 0.0
    %8171 = vmatmul.mubr.f32.gmra.mrb[0].mxu0 %v7657
    %v8172 = vpop.f32.mrb[0].mxu0
    %v8173 = vadd.f32 %v8103, %v8172
    %v8174 = vpop.f32.mrb[0].mxu0
    %8175 = vdwg.mxu0
    %v8176 = vadd.f32 %v8173, %v482
    %v8177 = vxor.u32 %v7729, 2147483648
    %v8178 = vmul.f32 %v8177, 1.442695
    %v8179 = vpow.pop %v8178
    %v8180 = vadd.f32 %v8179, 1.0
    %v8181 = vrcp.pop %v8180
    %v8182 = vmul.f32 1.0, %v8181
    %v8183 = vxor.u32 %v7878, 2147483648
    %v8184 = vmul.f32 %v8183, 1.442695
    %v8185 = vpow.pop %v8184
    %v8186 = vadd.f32 %v8185, 1.0
    %v8187 = vrcp.pop %v8186
    %v8188 = vmul.f32 1.0, %v8187
    %v8189 = vtanh.pop %v8027
    %v8190 = vxor.u32 %v8176, 2147483648
    %v8191 = vmul.f32 %v8190, 1.442695
    %v8192 = vpow.pop %v8191
    %v8193 = vadd.f32 %v8192, 1.0
    %v8194 = vrcp.pop %v8193
    %v8195 = vmul.f32 1.0, %v8194
    %v8196 = vmul.f32 %v8188, %v7231
    %v8197 = vmul.f32 %v8182, %v8189
    %v8198 = vadd.f32 %v8196, %v8197
    %v8199 = vtanh.pop %v8198
    %v8200 = vmul.f32 %v8195, %v8199
    %8201 = vst.msk [vmem:[#allocation2 + $0xe] sm:$0x3] %vm1444, %v8200
    %v8202 = vld [vmem:[#allocation2] sm:$0xff]
    %v8203 = vld [vmem:[#allocation2 + $0x8] sm:$0xff]
    %v8204 = vld [vmem:[#allocation8] sm:$0xff]
    %v8205 = vld [vmem:[#allocation8 + $0x8] sm:$0xff]
    %v8206 = vld [vmem:[#allocation8 + $0x10] sm:$0xff]
    %v8207 = vld [vmem:[#allocation8 + $0x18] sm:$0xff]
    %v8208 = vld [vmem:[%s8] sm:$0x1]
    %v8210 = vlaneseq
    %v8211 = vshrl.u32 %v8210, 7
    %v8212 = vsub.s32 0, %v8211
    %v8213 = vrot.slane %v8208, %v8212
    %v8216 = vsel %vm488, %v8202, 0
    %v8219 = vsel %vm488, %v8203, 0
    %8221 = vmatprep.subr.mxu0 0.0
    %8222 = vmatpush1.msra.mxu0 %v8204
    %8223 = vmatprep.subr.mxu0 0.0
    %8224 = vmatpush1.msra.mxu0 %v8205
    %8225 = vmatprep.subr.mxu0 0.0
    %8226 = vmatpush1.msra.mxu0 %v8206
    %8227 = vmatprep.subr.mxu0 0.0
    %8228 = vmatpush1.msra.mxu0 %v8207
    %8229 = vmatprep.subr.mxu0 0.0
    %8230 = vmatpush1.msra.mxu0 0.0
    %8231 = vmatprep.subr.mxu0 0.0
    %8232 = vmatpush1.msra.mxu0 0.0
    %8233 = vmatprep.subr.mxu0 0.0
    %8234 = vmatpush1.msra.mxu0 0.0
    %8235 = vmatprep.subr.mxu0 0.0
    %8236 = vmatpush1.msra.mxu0 0.0
    %8237 = vmatprep.subr.mxu0 0.0
    %8238 = vmatpush1.msra.mxu0 0.0
    %8239 = vmatprep.subr.mxu0 0.0
    %8240 = vmatpush1.msra.mxu0 0.0
    %8241 = vmatprep.subr.mxu0 0.0
    %8242 = vmatpush1.msra.mxu0 0.0
    %8243 = vmatprep.subr.mxu0 0.0
    %8244 = vmatpush1.msra.mxu0 0.0
    %8245 = vmatprep.subr.mxu0 0.0
    %8246 = vmatpush1.msra.mxu0 0.0
    %8247 = vmatprep.subr.mxu0 0.0
    %8248 = vmatpush1.msra.mxu0 0.0
    %8249 = vmatprep.subr.mxu0 0.0
    %8250 = vmatpush1.msra.mxu0 0.0
    %8251 = vmatprep.subr.mxu0 0.0
    %8252 = vmatpush1.msra.mxu0 0.0
    %8253 = vmatprep.subr.mxu0 0.0
    %8254 = vmatpush1.msra.mxu0 0.0
    %8255 = vmatprep.subr.mxu0 0.0
    %8256 = vmatpush1.msra.mxu0 0.0
    %8257 = vmatprep.subr.mxu0 0.0
    %8258 = vmatpush1.msra.mxu0 0.0
    %8259 = vmatprep.subr.mxu0 0.0
    %8260 = vmatpush1.msra.mxu0 0.0
    %8261 = vmatprep.subr.mxu0 0.0
    %8262 = vmatpush1.msra.mxu0 0.0
    %8263 = vmatprep.subr.mxu0 0.0
    %8264 = vmatpush1.msra.mxu0 0.0
    %8265 = vmatprep.subr.mxu0 0.0
    %8266 = vmatpush1.msra.mxu0 0.0
    %8267 = vmatprep.subr.mxu0 0.0
    %8268 = vmatpush1.msra.mxu0 0.0
    %8269 = vmatprep.subr.mxu0 0.0
    %8270 = vmatpush1.msra.mxu0 0.0
    %8271 = vmatprep.subr.mxu0 0.0
    %8272 = vmatpush1.msra.mxu0 0.0
    %8273 = vmatprep.subr.mxu0 0.0
    %8274 = vmatpush1.msra.mxu0 0.0
    %8275 = vmatprep.subr.mxu0 0.0
    %8276 = vmatpush1.msra.mxu0 0.0
    %8277 = vmatprep.subr.mxu0 0.0
    %8278 = vmatpush1.msra.mxu0 0.0
    %8279 = vmatprep.subr.mxu0 0.0
    %8280 = vmatpush1.msra.mxu0 0.0
    %8281 = vmatprep.subr.mxu0 0.0
    %8282 = vmatpush1.msra.mxu0 0.0
    %8283 = vmatprep.subr.mxu0 0.0
    %8284 = vmatpush1.msra.mxu0 0.0
    %8285 = vmatprep.mubr.f32.mxu0 0.0
    %8286 = vmatmul.mubr.f32.gmra.mrb[0].mxu0 %v8216
    %v8287 = vpop.f32.mrb[0].mxu0
    %v8288 = vadd.f32 %v8213, %v8287
    %v8289 = vpop.f32.mrb[0].mxu0
    %8290 = vmatprep.mubr.f32.mxu0 0.0
    %8291 = vmatmul.mubr.f32.gmra.mrb[0].mxu0 %v8219
    %v8292 = vpop.f32.mrb[0].mxu0
    %v8293 = vadd.f32 %v8213, %v8292
    %v8294 = vpop.f32.mrb[0].mxu0
    %8295 = vdwg.mxu0
    %v8296 = vmax.f32 %v8288, 0.0
    %v8297 = vmax.f32 %v8293, 0.0
    %v8298 = vld [vmem:[#allocation10] sm:$0xff]
    %v8299 = vld [vmem:[#allocation10 + $0x8] sm:$0xff]
    %v8300 = vld [vmem:[#allocation10 + $0x10] sm:$0xff]
    %v8301 = vld [vmem:[#allocation10 + $0x18] sm:$0xff]
    %v8302 = vld [vmem:[#allocation10 + $0x20] sm:$0xff]
    %v8303 = vld [vmem:[#allocation10 + $0x28] sm:$0xff]
    %v8304 = vld [vmem:[#allocation10 + $0x30] sm:$0xff]
    %v8305 = vld [vmem:[#allocation10 + $0x38] sm:$0xff]
    %v8306 = vld [vmem:[#allocation10 + $0x40] sm:$0xff]
    %v8307 = vld [vmem:[#allocation10 + $0x48] sm:$0xff]
    %v8308 = vld [vmem:[#allocation10 + $0x50] sm:$0xff]
    %v8309 = vld [vmem:[#allocation10 + $0x58] sm:$0xff]
    %v8310 = vld [vmem:[#allocation10 + $0x60] sm:$0xff]
    %v8311 = vld [vmem:[#allocation10 + $0x68] sm:$0xff]
    %v8312 = vld [vmem:[#allocation10 + $0x70] sm:$0xff]
    %v8313 = vld [vmem:[#allocation10 + $0x78] sm:$0xff]
    %v8314 = vld [vmem:[%s10] sm:$0x1]
    %v8316 = vlaneseq
    %v8317 = vshrl.u32 %v8316, 7
    %v8318 = vsub.s32 0, %v8317
    %v8319 = vrot.slane %v8314, %v8318
    %8321 = vmatprep.subr.mxu0 0.0
    %8322 = vmatpush1.msra.mxu0 %v8298
    %8323 = vmatprep.subr.mxu0 0.0
    %8324 = vmatpush1.msra.mxu0 %v8299
    %8325 = vmatprep.subr.mxu0 0.0
    %8326 = vmatpush1.msra.mxu0 %v8300
    %8327 = vmatprep.subr.mxu0 0.0
    %8328 = vmatpush1.msra.mxu0 %v8301
    %8329 = vmatprep.subr.mxu0 0.0
    %8330 = vmatpush1.msra.mxu0 %v8302
    %8331 = vmatprep.subr.mxu0 0.0
    %8332 = vmatpush1.msra.mxu0 %v8303
    %8333 = vmatprep.subr.mxu0 0.0
    %8334 = vmatpush1.msra.mxu0 %v8304
    %8335 = vmatprep.subr.mxu0 0.0
    %8336 = vmatpush1.msra.mxu0 %v8305
    %8337 = vmatprep.subr.mxu0 0.0
    %8338 = vmatpush1.msra.mxu0 %v8306
    %8339 = vmatprep.subr.mxu0 0.0
    %8340 = vmatpush1.msra.mxu0 %v8307
    %8341 = vmatprep.subr.mxu0 0.0
    %8342 = vmatpush1.msra.mxu0 %v8308
    %8343 = vmatprep.subr.mxu0 0.0
    %8344 = vmatpush1.msra.mxu0 %v8309
    %8345 = vmatprep.subr.mxu0 0.0
    %8346 = vmatpush1.msra.mxu0 %v8310
    %8347 = vmatprep.subr.mxu0 0.0
    %8348 = vmatpush1.msra.mxu0 %v8311
    %8349 = vmatprep.subr.mxu0 0.0
    %8350 = vmatpush1.msra.mxu0 %v8312
    %8351 = vmatprep.subr.mxu0 0.0
    %8352 = vmatpush1.msra.mxu0 %v8313
    %8353 = vmatprep.subr.mxu0 0.0
    %8354 = vmatpush1.msra.mxu0 0.0
    %8355 = vmatprep.subr.mxu0 0.0
    %8356 = vmatpush1.msra.mxu0 0.0
    %8357 = vmatprep.subr.mxu0 0.0
    %8358 = vmatpush1.msra.mxu0 0.0
    %8359 = vmatprep.subr.mxu0 0.0
    %8360 = vmatpush1.msra.mxu0 0.0
    %8361 = vmatprep.subr.mxu0 0.0
    %8362 = vmatpush1.msra.mxu0 0.0
    %8363 = vmatprep.subr.mxu0 0.0
    %8364 = vmatpush1.msra.mxu0 0.0
    %8365 = vmatprep.subr.mxu0 0.0
    %8366 = vmatpush1.msra.mxu0 0.0
    %8367 = vmatprep.subr.mxu0 0.0
    %8368 = vmatpush1.msra.mxu0 0.0
    %8369 = vmatprep.subr.mxu0 0.0
    %8370 = vmatpush1.msra.mxu0 0.0
    %8371 = vmatprep.subr.mxu0 0.0
    %8372 = vmatpush1.msra.mxu0 0.0
    %8373 = vmatprep.subr.mxu0 0.0
    %8374 = vmatpush1.msra.mxu0 0.0
    %8375 = vmatprep.subr.mxu0 0.0
    %8376 = vmatpush1.msra.mxu0 0.0
    %8377 = vmatprep.subr.mxu0 0.0
    %8378 = vmatpush1.msra.mxu0 0.0
    %8379 = vmatprep.subr.mxu0 0.0
    %8380 = vmatpush1.msra.mxu0 0.0
    %8381 = vmatprep.subr.mxu0 0.0
    %8382 = vmatpush1.msra.mxu0 0.0
    %8383 = vmatprep.subr.mxu0 0.0
    %8384 = vmatpush1.msra.mxu0 0.0
    %8385 = vmatprep.mubr.f32.mxu0 0.0
    %8386 = vmatmul.mubr.f32.gmra.mrb[0].mxu0 %v8296
    %v8387 = vpop.f32.mrb[0].mxu0
    %v8388 = vadd.f32 %v8319, %v8387
    %v8389 = vpop.f32.mrb[0].mxu0
    %8390 = vmatprep.mubr.f32.mxu0 0.0
    %8391 = vmatmul.mubr.f32.gmra.mrb[0].mxu0 %v8297
    %v8392 = vpop.f32.mrb[0].mxu0
    %v8393 = vadd.f32 %v8319, %v8392
    %v8394 = vpop.f32.mrb[0].mxu0
    %8395 = vdwg.mxu0
    %8396 = vst [vmem:[%s11] sm:$0xff] %v8388
    %8397 = vst [vmem:[%s11 + $0x8] sm:$0xff] %v8393
    // Predicated region
    $region66: #{lstm_model_forward.1} parent=1 // pred_check
      _
    $region67: #{lstm_model_forward.1} parent=1 // pred_check_branch
      %8399 = sbr.rel (0) target = $region69
    $region68: #{lstm_model_forward.1} parent=1 // pred_region
      _
    $region69: #{lstm_model_forward.1} parent=1 // pred_fallthru
      _
    // Predicated region
    $region70: #{lstm_model_forward.1} parent=1 // pred_check
      _
    $region71: #{lstm_model_forward.1} parent=1 // pred_check_branch
      %8401 = sbr.rel (0) target = $region73
    $region72: #{lstm_model_forward.1} parent=1 // pred_region
      _
    $region73: #{lstm_model_forward.1} parent=1 // pred_fallthru
      _
    %8402 = vsyncpa [#allocation4], 1
    %8403 = vsyncpa [#allocation6], 1
    %8404 = vsyncpa [#allocation9], 1

</llo_original>
